<compile_context>
chip_gen: v6e
topology: v6e:2x2x1
jax: 0.10.0
libtpu: 0.0.40
codegen_flags: <defaults>
</compile_context>

<pallas_src>
import functools

import jax
import jax.numpy as jnp
from jax.experimental import pallas as pl
from jax.experimental.pallas import tpu as pltpu

EPS = 1e-5  # PyTorch BatchNorm2d default eps


# ---------------------------------------------------------------------------
# In-kernel building block: one ResNet Bottleneck (1x1 -> 3x3 -> 1x1 + skip),
# entirely on VMEM-resident values.  `pad_scr` is a reusable zero-padded
# (h+2, w+2, cmid) VMEM scratch for the 3x3's shifted-window matmuls.
# ---------------------------------------------------------------------------
def _bottleneck_block(x_mat, wrefs, has_ds, h, w, pad_scr):
    if has_ds:
        w1, b1, w2, b2, w3, b3, wds, bds = wrefs
    else:
        w1, b1, w2, b2, w3, b3 = wrefs
        wds = bds = None

    m = h * w
    cmid = w1.shape[-1]                                   # 64

    xb = x_mat.astype(jnp.bfloat16)                       # MXU operand

    # 1x1 conv + folded BN + ReLU.
    y1 = jnp.dot(xb, w1[...], preferred_element_type=jnp.float32)
    y1 = jnp.maximum(y1 + b1[...], 0.0)                   # (m, cmid) f32

    # 3x3 conv + folded BN + ReLU: 9 shifted-window matmul accumulations from
    # a zero-padded VMEM scratch (conv padding = zeros, bias added afterwards).
    pad_scr[...] = jnp.zeros(pad_scr.shape, pad_scr.dtype)
    pad_scr[1:h + 1, 1:w + 1, :] = y1.reshape(h, w, cmid)
    acc = jnp.zeros((m, cmid), jnp.float32)
    for ki in range(3):
        for kj in range(3):
            win = pad_scr[ki:ki + h, kj:kj + w, :]        # (h, w, cmid)
            acc = acc + jnp.dot(
                win.reshape(m, cmid).astype(jnp.bfloat16),
                w2[ki * 3 + kj],
                preferred_element_type=jnp.float32)
    y2 = jnp.maximum(acc + b2[...], 0.0)                  # (m, cmid) f32

    # Final 1x1 conv + folded BN, fused residual add + ReLU (f32 epilogue).
    y3 = jnp.dot(y2.astype(jnp.bfloat16), w3[...],
                 preferred_element_type=jnp.float32) + b3[...]
    if has_ds:
        ident = jnp.dot(xb, wds[...],
                        preferred_element_type=jnp.float32) + bds[...]
    else:
        ident = x_mat                                     # cin == cout here
    return jnp.maximum(y3 + ident, 0.0)                   # (m, cout) f32


# ---------------------------------------------------------------------------
# The single fused kernel: conv1 + bn1 + maxpool + layer1 (3 bottlenecks).
# One grid step per image; the whole per-image network fits easily in VMEM.
# NOTE: the module's Sequential omits resnet.relu -> no ReLU after bn1.
# ---------------------------------------------------------------------------
def _fused_forward_kernel(*refs, ho, wo, has_ds):
    o_ref, stem_scr, pool_scr, blk_scr = refs[-4:]
    xm_ref, c1w_ref, c1b_ref = refs[0], refs[1], refs[2]

    # Per-block weight refs, flattened in call order.
    blocks, pos = [], 3
    for f in has_ds:
        k = 8 if f else 6
        blocks.append(refs[pos:pos + k])
        pos += k

    ph, pw = ho // 2, wo // 2
    cstem = c1w_ref.shape[-1]                              # 64

    # ---- conv1 (im2col matmul, bf16 MXU, f32 accumulate) + folded bn1 ----
    y = jnp.dot(xm_ref[...], c1w_ref[...], preferred_element_type=jnp.float32)
    y = y + c1b_ref[...]                                   # (ho*wo, 64) f32

    # ---- 3x3 / stride-2 / pad-1 max-pool, fully in VMEM -------------------
    stem_scr[...] = jnp.full(stem_scr.shape, -jnp.inf, stem_scr.dtype)
    stem_scr[1:ho + 1, 1:wo + 1, :] = y.reshape(ho, wo, cstem)

    # Row pool: 3-tap max along H (leading axis), then stride-2 subsample via
    # a layout-trivial leading-axis reshape + static index.
    rm = jnp.maximum(jnp.maximum(stem_scr[0:ho], stem_scr[1:ho + 1]),
                     stem_scr[2:ho + 2])                   # (ho, wo+2, 64)
    rm = rm.reshape(ph, 2, wo + 2, cstem)[:, 0]            # even rows -> (ph, wo+2, 64)

    # Column pool: 3-tap max with stride-2 subsample, unrolled over the pw
    # output columns (static indices only), written into a small VMEM scratch.
    for j in range(pw):
        col = jnp.maximum(jnp.maximum(rm[:, 2 * j, :], rm[:, 2 * j + 1, :]),
                          rm[:, 2 * j + 2, :])             # (ph, 64)
        pool_scr[:, j, :] = col

    # ---- layer1: three fused Bottleneck blocks (64 -> 256 channels) -------
    x_mat = pool_scr[...].reshape(ph * pw, cstem)          # (m, 64) f32
    for f, wrefs in zip(has_ds, blocks):
        x_mat = _bottleneck_block(x_mat, wrefs, f, ph, pw, blk_scr)

    o_ref[...] = x_mat.reshape(o_ref.shape).astype(o_ref.dtype)


# ---------------------------------------------------------------------------
# Wrapper: layout glue (im2col for conv1) + the single fused pallas_call.
# ---------------------------------------------------------------------------
def _im2col(x_nhwc, kh, kw, stride, pad):
    N, H, W, C = x_nhwc.shape
    xp = jnp.pad(x_nhwc, ((0, 0), (pad, pad), (pad, pad), (0, 0)))
    Hp, Wp = H + 2 * pad, W + 2 * pad
    Ho = (Hp - kh) // stride + 1
    Wo = (Wp - kw) // stride + 1
    cols = []
    for i in range(kh):
        for j in range(kw):
            cols.append(xp[:, i:i + stride * (Ho - 1) + 1:stride,
                           j:j + stride * (Wo - 1) + 1:stride, :])
    patches = jnp.stack(cols, axis=3)                # (N, Ho, Wo, kh*kw, C)
    return patches.reshape(N * Ho * Wo, kh * kw * C), (Ho, Wo)


def shallow_module_forward(x_nchw, fp):
    n = x_nchw.shape[0]
    x = jnp.transpose(x_nchw, (0, 2, 3, 1))          # NCHW -> NHWC

    # resnet.conv1 (7x7, s2, p3): im2col in the wrapper, K zero-padded up to
    # the (lane-multiple) padded weight K, bf16 for the MXU.
    xm, (ho, wo) = _im2col(x, 7, 7, 2, 3)
    assert ho % 2 == 0 and wo % 2 == 0
    kpad = fp["conv1_w"].shape[0]
    xm = jnp.pad(xm, ((0, 0), (0, kpad - xm.shape[1]))).astype(jnp.bfloat16)

    ph, pw = ho // 2, wo // 2
    cstem = fp["conv1_w"].shape[1]                    # 64
    cmid = fp["layer1"][0]["w1"].shape[1]             # 64
    cout = fp["layer1"][-1]["w3"].shape[1]            # 256
    has_ds = tuple("wds" in q for q in fp["layer1"])

    args = [xm, fp["conv1_w"], fp["conv1_b"]]
    for q in fp["layer1"]:
        args += [q["w1"], q["b1"], q["w2"], q["b2"], q["w3"], q["b3"]]
        if "wds" in q:
            args += [q["wds"], q["bds"]]

    def const_spec(a):
        nd = a.ndim
        return pl.BlockSpec(a.shape, lambda i, _nd=nd: (0,) * _nd)

    in_specs = ([pl.BlockSpec((ho * wo, kpad), lambda i: (i, 0))]
                + [const_spec(a) for a in args[1:]])

    kernel = functools.partial(_fused_forward_kernel, ho=ho, wo=wo,
                               has_ds=has_ds)
    out = pl.pallas_call(
        kernel,
        out_shape=jax.ShapeDtypeStruct((n, ph, pw, cout), jnp.float32),
        grid=(n,),
        in_specs=in_specs,
        out_specs=pl.BlockSpec((1, ph, pw, cout), lambda i: (i, 0, 0, 0)),
        scratch_shapes=[
            pltpu.VMEM((ho + 2, wo + 2, cstem), jnp.float32),   # -inf padded conv1 plane
            pltpu.VMEM((ph, pw, cstem), jnp.float32),           # pooled activation
            pltpu.VMEM((ph + 2, pw + 2, cmid), jnp.float32),    # 3x3 zero-padded plane
        ],
        compiler_params=pltpu.CompilerParams(
            dimension_semantics=("parallel",)),
    )(*args)
    return jnp.transpose(out, (0, 3, 1, 2))           # NHWC -> NCHW


# ---------------------------------------------------------------------------
# One-time weight preparation: fold eval-mode BN, lay out for the kernel,
# cast MXU operands to bf16 (biases stay f32).
# ---------------------------------------------------------------------------
def prepare_params(params):
    def fold(w_oihw, bn):
        cout = w_oihw.shape[0]
        scale = bn["gamma"] / jnp.sqrt(bn["var"] + EPS)
        bias = (bn["beta"] - bn["mean"] * scale).reshape(1, cout)
        return scale, bias.astype(jnp.float32)

    out = {}
    # conv1: OIHW (64,3,7,7) -> (7*7*3, 64), K zero-padded 147 -> 256.
    w = params["conv1_w"]
    s, b = fold(w, params["bn1"])
    w2d = jnp.transpose(w, (2, 3, 1, 0)).reshape(7 * 7 * 3, 64) * s[None, :]
    kpad = 256
    w2d = jnp.pad(w2d, ((0, kpad - w2d.shape[0]), (0, 0)))
    out["conv1_w"] = w2d.astype(jnp.bfloat16)
    out["conv1_b"] = b

    out["layer1"] = []
    for p in params["layer1"]:
        q = {}
        s1, b1 = fold(p["w1"], p["bn1"])
        q["w1"] = (p["w1"][:, :, 0, 0].T * s1[None, :]).astype(jnp.bfloat16)
        q["b1"] = b1
        s2, b2 = fold(p["w2"], p["bn2"])
        # (cout,cin,3,3) -> (3,3,cin,cout) -> (9,cin,cout); tap index = ki*3+kj
        w2 = (jnp.transpose(p["w2"], (2, 3, 1, 0)).reshape(9, 64, 64)
              * s2[None, None, :])
        q["w2"] = w2.astype(jnp.bfloat16)
        q["b2"] = b2
        s3, b3 = fold(p["w3"], p["bn3"])
        q["w3"] = (p["w3"][:, :, 0, 0].T * s3[None, :]).astype(jnp.bfloat16)
        q["b3"] = b3
        if "w_ds" in p:
            sd, bd = fold(p["w_ds"], p["bn_ds"])
            q["wds"] = (p["w_ds"][:, :, 0, 0].T * sd[None, :]).astype(jnp.bfloat16)
            q["bds"] = bd
        out["layer1"].append(q)
    return out


# ---------------------------------------------------------------------------
# Deterministic synthetic parameters (shapes match torchvision resnet50)
# ---------------------------------------------------------------------------
def _bn_params(key, c):
    k1, k2, k3, k4 = jax.random.split(key, 4)
    return dict(
        gamma=jax.random.uniform(k1, (c,), jnp.float32, 0.5, 1.5),
        beta=jax.random.normal(k2, (c,), jnp.float32) * 0.1,
        mean=jax.random.normal(k3, (c,), jnp.float32) * 0.1,
        var=jax.random.uniform(k4, (c,), jnp.float32, 0.5, 1.5),
    )


def _conv_w(key, cout, cin, kh, kw):
    fan_in = cin * kh * kw
    return jax.random.normal(key, (cout, cin, kh, kw), jnp.float32) * (2.0 / fan_in) ** 0.5


def init_params(key):
    keys = iter(jax.random.split(key, 64))
    params = dict(
        conv1_w=_conv_w(next(keys), 64, 3, 7, 7),
        bn1=_bn_params(next(keys), 64),
        layer1=[],
    )
    inplanes = 64
    for blk in range(3):
        p = dict(
            w1=_conv_w(next(keys), 64, inplanes, 1, 1),
            bn1=_bn_params(next(keys), 64),
            w2=_conv_w(next(keys), 64, 64, 3, 3),
            bn2=_bn_params(next(keys), 64),
            w3=_conv_w(next(keys), 256, 64, 1, 1),
            bn3=_bn_params(next(keys), 256),
        )
        if blk == 0:
            p["w_ds"] = _conv_w(next(keys), 256, inplanes, 1, 1)
            p["bn_ds"] = _bn_params(next(keys), 256)
        params["layer1"].append(p)
        inplanes = 256
    return params


if __name__ == "__main__":
    key = jax.random.PRNGKey(0)
    kx, kp = jax.random.split(key)
    # Small NCHW input consistent with the resnet stem: (batch=2, C=3, 32, 32)
    x = jax.random.normal(kx, (2, 3, 32, 32), jnp.float32)
    params = init_params(kp)
    fp = prepare_params(params)          # BN folding + bf16 cast, done once

    y = jax.jit(shallow_module_forward)(x, fp)
    y = jax.block_until_ready(y)

    assert y.shape == (2, 256, 8, 8), y.shape
    assert bool(jnp.all(jnp.isfinite(y)))
    print("KERNEL_OK")
</pallas_src>

<mosaic_0001>
module attributes {stable_mosaic.version = 11 : i64} {
  func.func @_fused_forward_kernel(%arg0: i32, %arg1: memref<256x256xbf16, #tpu.memory_space<vmem>>, %arg2: memref<256x64xbf16, #tpu.memory_space<vmem>>, %arg3: memref<1x64xf32, #tpu.memory_space<vmem>>, %arg4: memref<64x64xbf16, #tpu.memory_space<vmem>>, %arg5: memref<1x64xf32, #tpu.memory_space<vmem>>, %arg6: memref<9x64x64xbf16, #tpu.memory_space<vmem>>, %arg7: memref<1x64xf32, #tpu.memory_space<vmem>>, %arg8: memref<64x256xbf16, #tpu.memory_space<vmem>>, %arg9: memref<1x256xf32, #tpu.memory_space<vmem>>, %arg10: memref<64x256xbf16, #tpu.memory_space<vmem>>, %arg11: memref<1x256xf32, #tpu.memory_space<vmem>>, %arg12: memref<256x64xbf16, #tpu.memory_space<vmem>>, %arg13: memref<1x64xf32, #tpu.memory_space<vmem>>, %arg14: memref<9x64x64xbf16, #tpu.memory_space<vmem>>, %arg15: memref<1x64xf32, #tpu.memory_space<vmem>>, %arg16: memref<64x256xbf16, #tpu.memory_space<vmem>>, %arg17: memref<1x256xf32, #tpu.memory_space<vmem>>, %arg18: memref<256x64xbf16, #tpu.memory_space<vmem>>, %arg19: memref<1x64xf32, #tpu.memory_space<vmem>>, %arg20: memref<9x64x64xbf16, #tpu.memory_space<vmem>>, %arg21: memref<1x64xf32, #tpu.memory_space<vmem>>, %arg22: memref<64x256xbf16, #tpu.memory_space<vmem>>, %arg23: memref<1x256xf32, #tpu.memory_space<vmem>>, %arg24: memref<1x8x8x256xf32, #tpu.memory_space<vmem>>, %arg25: memref<18x18x64xf32, #tpu.memory_space<vmem>>, %arg26: memref<8x8x64xf32, #tpu.memory_space<vmem>>, %arg27: memref<10x10x64xf32, #tpu.memory_space<vmem>>) attributes {dimension_semantics = [#tpu.dimension_semantics<parallel>], iteration_bounds = array<i64: 2>, scalar_prefetch = 0 : i64, scratch_operands = 3 : i64, tpu.core_type = #tpu.core_type<tc>, window_params = [{transform_indices = @transform_0, window_bounds = array<i64: 256, 256>}, {pipeline_mode = #tpu.pipeline_mode<synchronous>, transform_indices = @transform_1, window_bounds = array<i64: 256, 64>}, {pipeline_mode = #tpu.pipeline_mode<synchronous>, transform_indices = @transform_2, window_bounds = array<i64: 1, 64>}, {pipeline_mode = #tpu.pipeline_mode<synchronous>, transform_indices = @transform_3, window_bounds = array<i64: 64, 64>}, {pipeline_mode = #tpu.pipeline_mode<synchronous>, transform_indices = @transform_4, window_bounds = array<i64: 1, 64>}, {pipeline_mode = #tpu.pipeline_mode<synchronous>, transform_indices = @transform_5, window_bounds = array<i64: 9, 64, 64>}, {pipeline_mode = #tpu.pipeline_mode<synchronous>, transform_indices = @transform_6, window_bounds = array<i64: 1, 64>}, {pipeline_mode = #tpu.pipeline_mode<synchronous>, transform_indices = @transform_7, window_bounds = array<i64: 64, 256>}, {pipeline_mode = #tpu.pipeline_mode<synchronous>, transform_indices = @transform_8, window_bounds = array<i64: 1, 256>}, {pipeline_mode = #tpu.pipeline_mode<synchronous>, transform_indices = @transform_9, window_bounds = array<i64: 64, 256>}, {pipeline_mode = #tpu.pipeline_mode<synchronous>, transform_indices = @transform_10, window_bounds = array<i64: 1, 256>}, {pipeline_mode = #tpu.pipeline_mode<synchronous>, transform_indices = @transform_11, window_bounds = array<i64: 256, 64>}, {pipeline_mode = #tpu.pipeline_mode<synchronous>, transform_indices = @transform_12, window_bounds = array<i64: 1, 64>}, {pipeline_mode = #tpu.pipeline_mode<synchronous>, transform_indices = @transform_13, window_bounds = array<i64: 9, 64, 64>}, {pipeline_mode = #tpu.pipeline_mode<synchronous>, transform_indices = @transform_14, window_bounds = array<i64: 1, 64>}, {pipeline_mode = #tpu.pipeline_mode<synchronous>, transform_indices = @transform_15, window_bounds = array<i64: 64, 256>}, {pipeline_mode = #tpu.pipeline_mode<synchronous>, transform_indices = @transform_16, window_bounds = array<i64: 1, 256>}, {pipeline_mode = #tpu.pipeline_mode<synchronous>, transform_indices = @transform_17, window_bounds = array<i64: 256, 64>}, {pipeline_mode = #tpu.pipeline_mode<synchronous>, transform_indices = @transform_18, window_bounds = array<i64: 1, 64>}, {pipeline_mode = #tpu.pipeline_mode<synchronous>, transform_indices = @transform_19, window_bounds = array<i64: 9, 64, 64>}, {pipeline_mode = #tpu.pipeline_mode<synchronous>, transform_indices = @transform_20, window_bounds = array<i64: 1, 64>}, {pipeline_mode = #tpu.pipeline_mode<synchronous>, transform_indices = @transform_21, window_bounds = array<i64: 64, 256>}, {pipeline_mode = #tpu.pipeline_mode<synchronous>, transform_indices = @transform_22, window_bounds = array<i64: 1, 256>}, {transform_indices = @transform_23, window_bounds = array<i64: 1, 8, 8, 256>}]} {
    %c0 = arith.constant 0 : index
    %c0_0 = arith.constant 0 : index
    %0 = vector.load %arg1[%c0, %c0_0] : memref<256x256xbf16, #tpu.memory_space<vmem>>, vector<256x256xbf16>
    %c0_1 = arith.constant 0 : index
    %c0_2 = arith.constant 0 : index
    %1 = vector.load %arg2[%c0_1, %c0_2] : memref<256x64xbf16, #tpu.memory_space<vmem>>, vector<256x64xbf16>
    %cst = arith.constant dense<0.000000e+00> : vector<256x64xf32>
    %2 = tpu.matmul %0, %1, %cst {dimension_numbers = #tpu.dot_dimension_numbers<[1], [0], [0], [1], [0, 0, 1, 1], [], []>} : vector<256x256xbf16>, vector<256x64xbf16>, vector<256x64xf32> -> vector<256x64xf32>
    %c0_3 = arith.constant 0 : index
    %c0_4 = arith.constant 0 : index
    %3 = vector.load %arg3[%c0_3, %c0_4] : memref<1x64xf32, #tpu.memory_space<vmem>>, vector<1x64xf32>
    %4 = vector.broadcast %3 : vector<1x64xf32> to vector<256x64xf32>
    %5 = arith.addf %2, %4 : vector<256x64xf32>
    %cst_5 = arith.constant 0xFF800000 : f32
    %6 = vector.broadcast %cst_5 : f32 to vector<18x18x64xf32>
    %c0_6 = arith.constant 0 : index
    %c0_7 = arith.constant 0 : index
    %c0_8 = arith.constant 0 : index
    %7 = vector.load %arg25[%c0_6, %c0_7, %c0_8] : memref<18x18x64xf32, #tpu.memory_space<vmem>>, vector<18x18x64xf32>
    tpu.vector_store %arg25[%c0_6, %c0_7, %c0_8], %6 {strides = array<i32>} : memref<18x18x64xf32, #tpu.memory_space<vmem>>, vector<18x18x64xf32>,
    %8 = vector.shape_cast %5 : vector<256x64xf32> to vector<16x16x64xf32>
    %c1 = arith.constant 1 : index
    %c1_9 = arith.constant 1 : index
    %c0_10 = arith.constant 0 : index
    %9 = vector.load %arg25[%c1, %c1_9, %c0_10] : memref<18x18x64xf32, #tpu.memory_space<vmem>>, vector<16x16x64xf32>
    tpu.vector_store %arg25[%c1, %c1_9, %c0_10], %8 {strides = array<i32>} : memref<18x18x64xf32, #tpu.memory_space<vmem>>, vector<16x16x64xf32>,
    %c0_11 = arith.constant 0 : index
    %c0_12 = arith.constant 0 : index
    %c0_13 = arith.constant 0 : index
    %10 = vector.load %arg25[%c0_11, %c0_12, %c0_13] : memref<18x18x64xf32, #tpu.memory_space<vmem>>, vector<16x18x64xf32>
    %c1_14 = arith.constant 1 : index
    %c0_15 = arith.constant 0 : index
    %c0_16 = arith.constant 0 : index
    %11 = vector.load %arg25[%c1_14, %c0_15, %c0_16] : memref<18x18x64xf32, #tpu.memory_space<vmem>>, vector<16x18x64xf32>
    %12 = arith.maximumf %10, %11 : vector<16x18x64xf32>
    %c2 = arith.constant 2 : index
    %c0_17 = arith.constant 0 : index
    %c0_18 = arith.constant 0 : index
    %13 = vector.load %arg25[%c2, %c0_17, %c0_18] : memref<18x18x64xf32, #tpu.memory_space<vmem>>, vector<16x18x64xf32>
    %14 = arith.maximumf %12, %13 : vector<16x18x64xf32>
    %15 = vector.shape_cast %14 : vector<16x18x64xf32> to vector<8x2x18x64xf32>
    %16 = vector.extract_strided_slice %15 {offsets = [0, 0, 0, 0], sizes = [8, 1, 18, 64], strides = [1, 1, 1, 1]} : vector<8x2x18x64xf32> to vector<8x1x18x64xf32>
    %17 = vector.shape_cast %16 : vector<8x1x18x64xf32> to vector<8x18x64xf32>
    %18 = vector.extract_strided_slice %17 {offsets = [0, 0, 0], sizes = [8, 1, 64], strides = [1, 1, 1]} : vector<8x18x64xf32> to vector<8x1x64xf32>
    %19 = vector.shape_cast %18 : vector<8x1x64xf32> to vector<8x64xf32>
    %20 = vector.extract_strided_slice %17 {offsets = [0, 1, 0], sizes = [8, 1, 64], strides = [1, 1, 1]} : vector<8x18x64xf32> to vector<8x1x64xf32>
    %21 = vector.shape_cast %20 : vector<8x1x64xf32> to vector<8x64xf32>
    %22 = arith.maximumf %19, %21 : vector<8x64xf32>
    %23 = vector.extract_strided_slice %17 {offsets = [0, 2, 0], sizes = [8, 1, 64], strides = [1, 1, 1]} : vector<8x18x64xf32> to vector<8x1x64xf32>
    %24 = vector.shape_cast %23 : vector<8x1x64xf32> to vector<8x64xf32>
    %25 = arith.maximumf %22, %24 : vector<8x64xf32>
    %c0_19 = arith.constant 0 : index
    %c0_20 = arith.constant 0 : index
    %c0_21 = arith.constant 0 : index
    %26 = vector.load %arg26[%c0_19, %c0_20, %c0_21] : memref<8x8x64xf32, #tpu.memory_space<vmem>>, vector<8x1x64xf32>
    %27 = vector.shape_cast %26 : vector<8x1x64xf32> to vector<8x64xf32>
    %28 = vector.shape_cast %25 : vector<8x64xf32> to vector<8x1x64xf32>
    tpu.vector_store %arg26[%c0_19, %c0_20, %c0_21], %28 {strides = array<i32>} : memref<8x8x64xf32, #tpu.memory_space<vmem>>, vector<8x1x64xf32>,
    %29 = vector.extract_strided_slice %17 {offsets = [0, 2, 0], sizes = [8, 1, 64], strides = [1, 1, 1]} : vector<8x18x64xf32> to vector<8x1x64xf32>
    %30 = vector.shape_cast %29 : vector<8x1x64xf32> to vector<8x64xf32>
    %31 = vector.extract_strided_slice %17 {offsets = [0, 3, 0], sizes = [8, 1, 64], strides = [1, 1, 1]} : vector<8x18x64xf32> to vector<8x1x64xf32>
    %32 = vector.shape_cast %31 : vector<8x1x64xf32> to vector<8x64xf32>
    %33 = arith.maximumf %30, %32 : vector<8x64xf32>
    %34 = vector.extract_strided_slice %17 {offsets = [0, 4, 0], sizes = [8, 1, 64], strides = [1, 1, 1]} : vector<8x18x64xf32> to vector<8x1x64xf32>
    %35 = vector.shape_cast %34 : vector<8x1x64xf32> to vector<8x64xf32>
    %36 = arith.maximumf %33, %35 : vector<8x64xf32>
    %c0_22 = arith.constant 0 : index
    %c1_23 = arith.constant 1 : index
    %c0_24 = arith.constant 0 : index
    %37 = vector.load %arg26[%c0_22, %c1_23, %c0_24] : memref<8x8x64xf32, #tpu.memory_space<vmem>>, vector<8x1x64xf32>
    %38 = vector.shape_cast %37 : vector<8x1x64xf32> to vector<8x64xf32>
    %39 = vector.shape_cast %36 : vector<8x64xf32> to vector<8x1x64xf32>
    tpu.vector_store %arg26[%c0_22, %c1_23, %c0_24], %39 {strides = array<i32>} : memref<8x8x64xf32, #tpu.memory_space<vmem>>, vector<8x1x64xf32>,
    %40 = vector.extract_strided_slice %17 {offsets = [0, 4, 0], sizes = [8, 1, 64], strides = [1, 1, 1]} : vector<8x18x64xf32> to vector<8x1x64xf32>
    %41 = vector.shape_cast %40 : vector<8x1x64xf32> to vector<8x64xf32>
    %42 = vector.extract_strided_slice %17 {offsets = [0, 5, 0], sizes = [8, 1, 64], strides = [1, 1, 1]} : vector<8x18x64xf32> to vector<8x1x64xf32>
    %43 = vector.shape_cast %42 : vector<8x1x64xf32> to vector<8x64xf32>
    %44 = arith.maximumf %41, %43 : vector<8x64xf32>
    %45 = vector.extract_strided_slice %17 {offsets = [0, 6, 0], sizes = [8, 1, 64], strides = [1, 1, 1]} : vector<8x18x64xf32> to vector<8x1x64xf32>
    %46 = vector.shape_cast %45 : vector<8x1x64xf32> to vector<8x64xf32>
    %47 = arith.maximumf %44, %46 : vector<8x64xf32>
    %c0_25 = arith.constant 0 : index
    %c2_26 = arith.constant 2 : index
    %c0_27 = arith.constant 0 : index
    %48 = vector.load %arg26[%c0_25, %c2_26, %c0_27] : memref<8x8x64xf32, #tpu.memory_space<vmem>>, vector<8x1x64xf32>
    %49 = vector.shape_cast %48 : vector<8x1x64xf32> to vector<8x64xf32>
    %50 = vector.shape_cast %47 : vector<8x64xf32> to vector<8x1x64xf32>
    tpu.vector_store %arg26[%c0_25, %c2_26, %c0_27], %50 {strides = array<i32>} : memref<8x8x64xf32, #tpu.memory_space<vmem>>, vector<8x1x64xf32>,
    %51 = vector.extract_strided_slice %17 {offsets = [0, 6, 0], sizes = [8, 1, 64], strides = [1, 1, 1]} : vector<8x18x64xf32> to vector<8x1x64xf32>
    %52 = vector.shape_cast %51 : vector<8x1x64xf32> to vector<8x64xf32>
    %53 = vector.extract_strided_slice %17 {offsets = [0, 7, 0], sizes = [8, 1, 64], strides = [1, 1, 1]} : vector<8x18x64xf32> to vector<8x1x64xf32>
    %54 = vector.shape_cast %53 : vector<8x1x64xf32> to vector<8x64xf32>
    %55 = arith.maximumf %52, %54 : vector<8x64xf32>
    %56 = vector.extract_strided_slice %17 {offsets = [0, 8, 0], sizes = [8, 1, 64], strides = [1, 1, 1]} : vector<8x18x64xf32> to vector<8x1x64xf32>
    %57 = vector.shape_cast %56 : vector<8x1x64xf32> to vector<8x64xf32>
    %58 = arith.maximumf %55, %57 : vector<8x64xf32>
    %c0_28 = arith.constant 0 : index
    %c3 = arith.constant 3 : index
    %c0_29 = arith.constant 0 : index
    %59 = vector.load %arg26[%c0_28, %c3, %c0_29] : memref<8x8x64xf32, #tpu.memory_space<vmem>>, vector<8x1x64xf32>
    %60 = vector.shape_cast %59 : vector<8x1x64xf32> to vector<8x64xf32>
    %61 = vector.shape_cast %58 : vector<8x64xf32> to vector<8x1x64xf32>
    tpu.vector_store %arg26[%c0_28, %c3, %c0_29], %61 {strides = array<i32>} : memref<8x8x64xf32, #tpu.memory_space<vmem>>, vector<8x1x64xf32>,
    %62 = vector.extract_strided_slice %17 {offsets = [0, 8, 0], sizes = [8, 1, 64], strides = [1, 1, 1]} : vector<8x18x64xf32> to vector<8x1x64xf32>
    %63 = vector.shape_cast %62 : vector<8x1x64xf32> to vector<8x64xf32>
    %64 = vector.extract_strided_slice %17 {offsets = [0, 9, 0], sizes = [8, 1, 64], strides = [1, 1, 1]} : vector<8x18x64xf32> to vector<8x1x64xf32>
    %65 = vector.shape_cast %64 : vector<8x1x64xf32> to vector<8x64xf32>
    %66 = arith.maximumf %63, %65 : vector<8x64xf32>
    %67 = vector.extract_strided_slice %17 {offsets = [0, 10, 0], sizes = [8, 1, 64], strides = [1, 1, 1]} : vector<8x18x64xf32> to vector<8x1x64xf32>
    %68 = vector.shape_cast %67 : vector<8x1x64xf32> to vector<8x64xf32>
    %69 = arith.maximumf %66, %68 : vector<8x64xf32>
    %c0_30 = arith.constant 0 : index
    %c4 = arith.constant 4 : index
    %c0_31 = arith.constant 0 : index
    %70 = vector.load %arg26[%c0_30, %c4, %c0_31] : memref<8x8x64xf32, #tpu.memory_space<vmem>>, vector<8x1x64xf32>
    %71 = vector.shape_cast %70 : vector<8x1x64xf32> to vector<8x64xf32>
    %72 = vector.shape_cast %69 : vector<8x64xf32> to vector<8x1x64xf32>
    tpu.vector_store %arg26[%c0_30, %c4, %c0_31], %72 {strides = array<i32>} : memref<8x8x64xf32, #tpu.memory_space<vmem>>, vector<8x1x64xf32>,
    %73 = vector.extract_strided_slice %17 {offsets = [0, 10, 0], sizes = [8, 1, 64], strides = [1, 1, 1]} : vector<8x18x64xf32> to vector<8x1x64xf32>
    %74 = vector.shape_cast %73 : vector<8x1x64xf32> to vector<8x64xf32>
    %75 = vector.extract_strided_slice %17 {offsets = [0, 11, 0], sizes = [8, 1, 64], strides = [1, 1, 1]} : vector<8x18x64xf32> to vector<8x1x64xf32>
    %76 = vector.shape_cast %75 : vector<8x1x64xf32> to vector<8x64xf32>
    %77 = arith.maximumf %74, %76 : vector<8x64xf32>
    %78 = vector.extract_strided_slice %17 {offsets = [0, 12, 0], sizes = [8, 1, 64], strides = [1, 1, 1]} : vector<8x18x64xf32> to vector<8x1x64xf32>
    %79 = vector.shape_cast %78 : vector<8x1x64xf32> to vector<8x64xf32>
    %80 = arith.maximumf %77, %79 : vector<8x64xf32>
    %c0_32 = arith.constant 0 : index
    %c5 = arith.constant 5 : index
    %c0_33 = arith.constant 0 : index
    %81 = vector.load %arg26[%c0_32, %c5, %c0_33] : memref<8x8x64xf32, #tpu.memory_space<vmem>>, vector<8x1x64xf32>
    %82 = vector.shape_cast %81 : vector<8x1x64xf32> to vector<8x64xf32>
    %83 = vector.shape_cast %80 : vector<8x64xf32> to vector<8x1x64xf32>
    tpu.vector_store %arg26[%c0_32, %c5, %c0_33], %83 {strides = array<i32>} : memref<8x8x64xf32, #tpu.memory_space<vmem>>, vector<8x1x64xf32>,
    %84 = vector.extract_strided_slice %17 {offsets = [0, 12, 0], sizes = [8, 1, 64], strides = [1, 1, 1]} : vector<8x18x64xf32> to vector<8x1x64xf32>
    %85 = vector.shape_cast %84 : vector<8x1x64xf32> to vector<8x64xf32>
    %86 = vector.extract_strided_slice %17 {offsets = [0, 13, 0], sizes = [8, 1, 64], strides = [1, 1, 1]} : vector<8x18x64xf32> to vector<8x1x64xf32>
    %87 = vector.shape_cast %86 : vector<8x1x64xf32> to vector<8x64xf32>
    %88 = arith.maximumf %85, %87 : vector<8x64xf32>
    %89 = vector.extract_strided_slice %17 {offsets = [0, 14, 0], sizes = [8, 1, 64], strides = [1, 1, 1]} : vector<8x18x64xf32> to vector<8x1x64xf32>
    %90 = vector.shape_cast %89 : vector<8x1x64xf32> to vector<8x64xf32>
    %91 = arith.maximumf %88, %90 : vector<8x64xf32>
    %c0_34 = arith.constant 0 : index
    %c6 = arith.constant 6 : index
    %c0_35 = arith.constant 0 : index
    %92 = vector.load %arg26[%c0_34, %c6, %c0_35] : memref<8x8x64xf32, #tpu.memory_space<vmem>>, vector<8x1x64xf32>
    %93 = vector.shape_cast %92 : vector<8x1x64xf32> to vector<8x64xf32>
    %94 = vector.shape_cast %91 : vector<8x64xf32> to vector<8x1x64xf32>
    tpu.vector_store %arg26[%c0_34, %c6, %c0_35], %94 {strides = array<i32>} : memref<8x8x64xf32, #tpu.memory_space<vmem>>, vector<8x1x64xf32>,
    %95 = vector.extract_strided_slice %17 {offsets = [0, 14, 0], sizes = [8, 1, 64], strides = [1, 1, 1]} : vector<8x18x64xf32> to vector<8x1x64xf32>
    %96 = vector.shape_cast %95 : vector<8x1x64xf32> to vector<8x64xf32>
    %97 = vector.extract_strided_slice %17 {offsets = [0, 15, 0], sizes = [8, 1, 64], strides = [1, 1, 1]} : vector<8x18x64xf32> to vector<8x1x64xf32>
    %98 = vector.shape_cast %97 : vector<8x1x64xf32> to vector<8x64xf32>
    %99 = arith.maximumf %96, %98 : vector<8x64xf32>
    %100 = vector.extract_strided_slice %17 {offsets = [0, 16, 0], sizes = [8, 1, 64], strides = [1, 1, 1]} : vector<8x18x64xf32> to vector<8x1x64xf32>
    %101 = vector.shape_cast %100 : vector<8x1x64xf32> to vector<8x64xf32>
    %102 = arith.maximumf %99, %101 : vector<8x64xf32>
    %c0_36 = arith.constant 0 : index
    %c7 = arith.constant 7 : index
    %c0_37 = arith.constant 0 : index
    %103 = vector.load %arg26[%c0_36, %c7, %c0_37] : memref<8x8x64xf32, #tpu.memory_space<vmem>>, vector<8x1x64xf32>
    %104 = vector.shape_cast %103 : vector<8x1x64xf32> to vector<8x64xf32>
    %105 = vector.shape_cast %102 : vector<8x64xf32> to vector<8x1x64xf32>
    tpu.vector_store %arg26[%c0_36, %c7, %c0_37], %105 {strides = array<i32>} : memref<8x8x64xf32, #tpu.memory_space<vmem>>, vector<8x1x64xf32>,
    %c0_38 = arith.constant 0 : index
    %c0_39 = arith.constant 0 : index
    %c0_40 = arith.constant 0 : index
    %106 = vector.load %arg26[%c0_38, %c0_39, %c0_40] : memref<8x8x64xf32, #tpu.memory_space<vmem>>, vector<8x8x64xf32>
    %107 = vector.shape_cast %106 : vector<8x8x64xf32> to vector<64x64xf32>
    %108 = arith.truncf %107 : vector<64x64xf32> to vector<64x64xbf16>
    %c0_41 = arith.constant 0 : index
    %c0_42 = arith.constant 0 : index
    %109 = vector.load %arg4[%c0_41, %c0_42] : memref<64x64xbf16, #tpu.memory_space<vmem>>, vector<64x64xbf16>
    %cst_43 = arith.constant dense<0.000000e+00> : vector<64x64xf32>
    %110 = tpu.matmul %108, %109, %cst_43 {dimension_numbers = #tpu.dot_dimension_numbers<[1], [0], [0], [1], [0, 0, 1, 1], [], []>} : vector<64x64xbf16>, vector<64x64xbf16>, vector<64x64xf32> -> vector<64x64xf32>
    %c0_44 = arith.constant 0 : index
    %c0_45 = arith.constant 0 : index
    %111 = vector.load %arg5[%c0_44, %c0_45] : memref<1x64xf32, #tpu.memory_space<vmem>>, vector<1x64xf32>
    %112 = vector.broadcast %111 : vector<1x64xf32> to vector<64x64xf32>
    %113 = arith.addf %110, %112 : vector<64x64xf32>
    %cst_46 = arith.constant 0.000000e+00 : f32
    %114 = vector.broadcast %cst_46 : f32 to vector<64x64xf32>
    %115 = arith.maximumf %113, %114 : vector<64x64xf32>
    %cst_47 = arith.constant 0.000000e+00 : f32
    %116 = vector.broadcast %cst_47 : f32 to vector<10x10x64xf32>
    %c0_48 = arith.constant 0 : index
    %c0_49 = arith.constant 0 : index
    %c0_50 = arith.constant 0 : index
    %117 = vector.load %arg27[%c0_48, %c0_49, %c0_50] : memref<10x10x64xf32, #tpu.memory_space<vmem>>, vector<10x10x64xf32>
    tpu.vector_store %arg27[%c0_48, %c0_49, %c0_50], %116 {strides = array<i32>} : memref<10x10x64xf32, #tpu.memory_space<vmem>>, vector<10x10x64xf32>,
    %118 = vector.shape_cast %115 : vector<64x64xf32> to vector<8x8x64xf32>
    %c1_51 = arith.constant 1 : index
    %c1_52 = arith.constant 1 : index
    %c0_53 = arith.constant 0 : index
    %119 = vector.load %arg27[%c1_51, %c1_52, %c0_53] : memref<10x10x64xf32, #tpu.memory_space<vmem>>, vector<8x8x64xf32>
    tpu.vector_store %arg27[%c1_51, %c1_52, %c0_53], %118 {strides = array<i32>} : memref<10x10x64xf32, #tpu.memory_space<vmem>>, vector<8x8x64xf32>,
    %cst_54 = arith.constant 0.000000e+00 : f32
    %120 = vector.broadcast %cst_54 : f32 to vector<64x64xf32>
    %c0_55 = arith.constant 0 : index
    %c0_56 = arith.constant 0 : index
    %c0_57 = arith.constant 0 : index
    %121 = vector.load %arg27[%c0_55, %c0_56, %c0_57] : memref<10x10x64xf32, #tpu.memory_space<vmem>>, vector<8x8x64xf32>
    %122 = vector.shape_cast %121 : vector<8x8x64xf32> to vector<64x64xf32>
    %123 = arith.truncf %122 : vector<64x64xf32> to vector<64x64xbf16>
    %c0_58 = arith.constant 0 : index
    %c0_59 = arith.constant 0 : index
    %c0_60 = arith.constant 0 : index
    %124 = vector.load %arg6[%c0_58, %c0_59, %c0_60] : memref<9x64x64xbf16, #tpu.memory_space<vmem>>, vector<1x64x64xbf16>
    %125 = vector.shape_cast %124 : vector<1x64x64xbf16> to vector<64x64xbf16>
    %cst_61 = arith.constant dense<0.000000e+00> : vector<64x64xf32>
    %126 = tpu.matmul %123, %125, %cst_61 {dimension_numbers = #tpu.dot_dimension_numbers<[1], [0], [0], [1], [0, 0, 1, 1], [], []>} : vector<64x64xbf16>, vector<64x64xbf16>, vector<64x64xf32> -> vector<64x64xf32>
    %127 = arith.addf %120, %126 : vector<64x64xf32>
    %c0_62 = arith.constant 0 : index
    %c1_63 = arith.constant 1 : index
    %c0_64 = arith.constant 0 : index
    %128 = vector.load %arg27[%c0_62, %c1_63, %c0_64] : memref<10x10x64xf32, #tpu.memory_space<vmem>>, vector<8x8x64xf32>
    %129 = vector.shape_cast %128 : vector<8x8x64xf32> to vector<64x64xf32>
    %130 = arith.truncf %129 : vector<64x64xf32> to vector<64x64xbf16>
    %c1_65 = arith.constant 1 : index
    %c0_66 = arith.constant 0 : index
    %c0_67 = arith.constant 0 : index
    %131 = vector.load %arg6[%c1_65, %c0_66, %c0_67] : memref<9x64x64xbf16, #tpu.memory_space<vmem>>, vector<1x64x64xbf16>
    %132 = vector.shape_cast %131 : vector<1x64x64xbf16> to vector<64x64xbf16>
    %cst_68 = arith.constant dense<0.000000e+00> : vector<64x64xf32>
    %133 = tpu.matmul %130, %132, %cst_68 {dimension_numbers = #tpu.dot_dimension_numbers<[1], [0], [0], [1], [0, 0, 1, 1], [], []>} : vector<64x64xbf16>, vector<64x64xbf16>, vector<64x64xf32> -> vector<64x64xf32>
    %134 = arith.addf %127, %133 : vector<64x64xf32>
    %c0_69 = arith.constant 0 : index
    %c2_70 = arith.constant 2 : index
    %c0_71 = arith.constant 0 : index
    %135 = vector.load %arg27[%c0_69, %c2_70, %c0_71] : memref<10x10x64xf32, #tpu.memory_space<vmem>>, vector<8x8x64xf32>
    %136 = vector.shape_cast %135 : vector<8x8x64xf32> to vector<64x64xf32>
    %137 = arith.truncf %136 : vector<64x64xf32> to vector<64x64xbf16>
    %c2_72 = arith.constant 2 : index
    %c0_73 = arith.constant 0 : index
    %c0_74 = arith.constant 0 : index
    %138 = vector.load %arg6[%c2_72, %c0_73, %c0_74] : memref<9x64x64xbf16, #tpu.memory_space<vmem>>, vector<1x64x64xbf16>
    %139 = vector.shape_cast %138 : vector<1x64x64xbf16> to vector<64x64xbf16>
    %cst_75 = arith.constant dense<0.000000e+00> : vector<64x64xf32>
    %140 = tpu.matmul %137, %139, %cst_75 {dimension_numbers = #tpu.dot_dimension_numbers<[1], [0], [0], [1], [0, 0, 1, 1], [], []>} : vector<64x64xbf16>, vector<64x64xbf16>, vector<64x64xf32> -> vector<64x64xf32>
    %141 = arith.addf %134, %140 : vector<64x64xf32>
    %c1_76 = arith.constant 1 : index
    %c0_77 = arith.constant 0 : index
    %c0_78 = arith.constant 0 : index
    %142 = vector.load %arg27[%c1_76, %c0_77, %c0_78] : memref<10x10x64xf32, #tpu.memory_space<vmem>>, vector<8x8x64xf32>
    %143 = vector.shape_cast %142 : vector<8x8x64xf32> to vector<64x64xf32>
    %144 = arith.truncf %143 : vector<64x64xf32> to vector<64x64xbf16>
    %c3_79 = arith.constant 3 : index
    %c0_80 = arith.constant 0 : index
    %c0_81 = arith.constant 0 : index
    %145 = vector.load %arg6[%c3_79, %c0_80, %c0_81] : memref<9x64x64xbf16, #tpu.memory_space<vmem>>, vector<1x64x64xbf16>
    %146 = vector.shape_cast %145 : vector<1x64x64xbf16> to vector<64x64xbf16>
    %cst_82 = arith.constant dense<0.000000e+00> : vector<64x64xf32>
    %147 = tpu.matmul %144, %146, %cst_82 {dimension_numbers = #tpu.dot_dimension_numbers<[1], [0], [0], [1], [0, 0, 1, 1], [], []>} : vector<64x64xbf16>, vector<64x64xbf16>, vector<64x64xf32> -> vector<64x64xf32>
    %148 = arith.addf %141, %147 : vector<64x64xf32>
    %c1_83 = arith.constant 1 : index
    %c1_84 = arith.constant 1 : index
    %c0_85 = arith.constant 0 : index
    %149 = vector.load %arg27[%c1_83, %c1_84, %c0_85] : memref<10x10x64xf32, #tpu.memory_space<vmem>>, vector<8x8x64xf32>
    %150 = vector.shape_cast %149 : vector<8x8x64xf32> to vector<64x64xf32>
    %151 = arith.truncf %150 : vector<64x64xf32> to vector<64x64xbf16>
    %c4_86 = arith.constant 4 : index
    %c0_87 = arith.constant 0 : index
    %c0_88 = arith.constant 0 : index
    %152 = vector.load %arg6[%c4_86, %c0_87, %c0_88] : memref<9x64x64xbf16, #tpu.memory_space<vmem>>, vector<1x64x64xbf16>
    %153 = vector.shape_cast %152 : vector<1x64x64xbf16> to vector<64x64xbf16>
    %cst_89 = arith.constant dense<0.000000e+00> : vector<64x64xf32>
    %154 = tpu.matmul %151, %153, %cst_89 {dimension_numbers = #tpu.dot_dimension_numbers<[1], [0], [0], [1], [0, 0, 1, 1], [], []>} : vector<64x64xbf16>, vector<64x64xbf16>, vector<64x64xf32> -> vector<64x64xf32>
    %155 = arith.addf %148, %154 : vector<64x64xf32>
    %c1_90 = arith.constant 1 : index
    %c2_91 = arith.constant 2 : index
    %c0_92 = arith.constant 0 : index
    %156 = vector.load %arg27[%c1_90, %c2_91, %c0_92] : memref<10x10x64xf32, #tpu.memory_space<vmem>>, vector<8x8x64xf32>
    %157 = vector.shape_cast %156 : vector<8x8x64xf32> to vector<64x64xf32>
    %158 = arith.truncf %157 : vector<64x64xf32> to vector<64x64xbf16>
    %c5_93 = arith.constant 5 : index
    %c0_94 = arith.constant 0 : index
    %c0_95 = arith.constant 0 : index
    %159 = vector.load %arg6[%c5_93, %c0_94, %c0_95] : memref<9x64x64xbf16, #tpu.memory_space<vmem>>, vector<1x64x64xbf16>
    %160 = vector.shape_cast %159 : vector<1x64x64xbf16> to vector<64x64xbf16>
    %cst_96 = arith.constant dense<0.000000e+00> : vector<64x64xf32>
    %161 = tpu.matmul %158, %160, %cst_96 {dimension_numbers = #tpu.dot_dimension_numbers<[1], [0], [0], [1], [0, 0, 1, 1], [], []>} : vector<64x64xbf16>, vector<64x64xbf16>, vector<64x64xf32> -> vector<64x64xf32>
    %162 = arith.addf %155, %161 : vector<64x64xf32>
    %c2_97 = arith.constant 2 : index
    %c0_98 = arith.constant 0 : index
    %c0_99 = arith.constant 0 : index
    %163 = vector.load %arg27[%c2_97, %c0_98, %c0_99] : memref<10x10x64xf32, #tpu.memory_space<vmem>>, vector<8x8x64xf32>
    %164 = vector.shape_cast %163 : vector<8x8x64xf32> to vector<64x64xf32>
    %165 = arith.truncf %164 : vector<64x64xf32> to vector<64x64xbf16>
    %c6_100 = arith.constant 6 : index
    %c0_101 = arith.constant 0 : index
    %c0_102 = arith.constant 0 : index
    %166 = vector.load %arg6[%c6_100, %c0_101, %c0_102] : memref<9x64x64xbf16, #tpu.memory_space<vmem>>, vector<1x64x64xbf16>
    %167 = vector.shape_cast %166 : vector<1x64x64xbf16> to vector<64x64xbf16>
    %cst_103 = arith.constant dense<0.000000e+00> : vector<64x64xf32>
    %168 = tpu.matmul %165, %167, %cst_103 {dimension_numbers = #tpu.dot_dimension_numbers<[1], [0], [0], [1], [0, 0, 1, 1], [], []>} : vector<64x64xbf16>, vector<64x64xbf16>, vector<64x64xf32> -> vector<64x64xf32>
    %169 = arith.addf %162, %168 : vector<64x64xf32>
    %c2_104 = arith.constant 2 : index
    %c1_105 = arith.constant 1 : index
    %c0_106 = arith.constant 0 : index
    %170 = vector.load %arg27[%c2_104, %c1_105, %c0_106] : memref<10x10x64xf32, #tpu.memory_space<vmem>>, vector<8x8x64xf32>
    %171 = vector.shape_cast %170 : vector<8x8x64xf32> to vector<64x64xf32>
    %172 = arith.truncf %171 : vector<64x64xf32> to vector<64x64xbf16>
    %c7_107 = arith.constant 7 : index
    %c0_108 = arith.constant 0 : index
    %c0_109 = arith.constant 0 : index
    %173 = vector.load %arg6[%c7_107, %c0_108, %c0_109] : memref<9x64x64xbf16, #tpu.memory_space<vmem>>, vector<1x64x64xbf16>
    %174 = vector.shape_cast %173 : vector<1x64x64xbf16> to vector<64x64xbf16>
    %cst_110 = arith.constant dense<0.000000e+00> : vector<64x64xf32>
    %175 = tpu.matmul %172, %174, %cst_110 {dimension_numbers = #tpu.dot_dimension_numbers<[1], [0], [0], [1], [0, 0, 1, 1], [], []>} : vector<64x64xbf16>, vector<64x64xbf16>, vector<64x64xf32> -> vector<64x64xf32>
    %176 = arith.addf %169, %175 : vector<64x64xf32>
    %c2_111 = arith.constant 2 : index
    %c2_112 = arith.constant 2 : index
    %c0_113 = arith.constant 0 : index
    %177 = vector.load %arg27[%c2_111, %c2_112, %c0_113] : memref<10x10x64xf32, #tpu.memory_space<vmem>>, vector<8x8x64xf32>
    %178 = vector.shape_cast %177 : vector<8x8x64xf32> to vector<64x64xf32>
    %179 = arith.truncf %178 : vector<64x64xf32> to vector<64x64xbf16>
    %c8 = arith.constant 8 : index
    %c0_114 = arith.constant 0 : index
    %c0_115 = arith.constant 0 : index
    %180 = vector.load %arg6[%c8, %c0_114, %c0_115] : memref<9x64x64xbf16, #tpu.memory_space<vmem>>, vector<1x64x64xbf16>
    %181 = vector.shape_cast %180 : vector<1x64x64xbf16> to vector<64x64xbf16>
    %cst_116 = arith.constant dense<0.000000e+00> : vector<64x64xf32>
    %182 = tpu.matmul %179, %181, %cst_116 {dimension_numbers = #tpu.dot_dimension_numbers<[1], [0], [0], [1], [0, 0, 1, 1], [], []>} : vector<64x64xbf16>, vector<64x64xbf16>, vector<64x64xf32> -> vector<64x64xf32>
    %183 = arith.addf %176, %182 : vector<64x64xf32>
    %c0_117 = arith.constant 0 : index
    %c0_118 = arith.constant 0 : index
    %184 = vector.load %arg7[%c0_117, %c0_118] : memref<1x64xf32, #tpu.memory_space<vmem>>, vector<1x64xf32>
    %185 = vector.broadcast %184 : vector<1x64xf32> to vector<64x64xf32>
    %186 = arith.addf %183, %185 : vector<64x64xf32>
    %cst_119 = arith.constant 0.000000e+00 : f32
    %187 = vector.broadcast %cst_119 : f32 to vector<64x64xf32>
    %188 = arith.maximumf %186, %187 : vector<64x64xf32>
    %189 = arith.truncf %188 : vector<64x64xf32> to vector<64x64xbf16>
    %c0_120 = arith.constant 0 : index
    %c0_121 = arith.constant 0 : index
    %190 = vector.load %arg8[%c0_120, %c0_121] : memref<64x256xbf16, #tpu.memory_space<vmem>>, vector<64x256xbf16>
    %cst_122 = arith.constant dense<0.000000e+00> : vector<64x256xf32>
    %191 = tpu.matmul %189, %190, %cst_122 {dimension_numbers = #tpu.dot_dimension_numbers<[1], [0], [0], [1], [0, 0, 1, 1], [], []>} : vector<64x64xbf16>, vector<64x256xbf16>, vector<64x256xf32> -> vector<64x256xf32>
    %c0_123 = arith.constant 0 : index
    %c0_124 = arith.constant 0 : index
    %192 = vector.load %arg9[%c0_123, %c0_124] : memref<1x256xf32, #tpu.memory_space<vmem>>, vector<1x256xf32>
    %193 = vector.broadcast %192 : vector<1x256xf32> to vector<64x256xf32>
    %194 = arith.addf %191, %193 : vector<64x256xf32>
    %c0_125 = arith.constant 0 : index
    %c0_126 = arith.constant 0 : index
    %195 = vector.load %arg10[%c0_125, %c0_126] : memref<64x256xbf16, #tpu.memory_space<vmem>>, vector<64x256xbf16>
    %cst_127 = arith.constant dense<0.000000e+00> : vector<64x256xf32>
    %196 = tpu.matmul %108, %195, %cst_127 {dimension_numbers = #tpu.dot_dimension_numbers<[1], [0], [0], [1], [0, 0, 1, 1], [], []>} : vector<64x64xbf16>, vector<64x256xbf16>, vector<64x256xf32> -> vector<64x256xf32>
    %c0_128 = arith.constant 0 : index
    %c0_129 = arith.constant 0 : index
    %197 = vector.load %arg11[%c0_128, %c0_129] : memref<1x256xf32, #tpu.memory_space<vmem>>, vector<1x256xf32>
    %198 = vector.broadcast %197 : vector<1x256xf32> to vector<64x256xf32>
    %199 = arith.addf %196, %198 : vector<64x256xf32>
    %200 = arith.addf %194, %199 : vector<64x256xf32>
    %cst_130 = arith.constant 0.000000e+00 : f32
    %201 = vector.broadcast %cst_130 : f32 to vector<64x256xf32>
    %202 = arith.maximumf %200, %201 : vector<64x256xf32>
    %203 = arith.truncf %202 : vector<64x256xf32> to vector<64x256xbf16>
    %c0_131 = arith.constant 0 : index
    %c0_132 = arith.constant 0 : index
    %204 = vector.load %arg12[%c0_131, %c0_132] : memref<256x64xbf16, #tpu.memory_space<vmem>>, vector<256x64xbf16>
    %cst_133 = arith.constant dense<0.000000e+00> : vector<64x64xf32>
    %205 = tpu.matmul %203, %204, %cst_133 {dimension_numbers = #tpu.dot_dimension_numbers<[1], [0], [0], [1], [0, 0, 1, 1], [], []>} : vector<64x256xbf16>, vector<256x64xbf16>, vector<64x64xf32> -> vector<64x64xf32>
    %c0_134 = arith.constant 0 : index
    %c0_135 = arith.constant 0 : index
    %206 = vector.load %arg13[%c0_134, %c0_135] : memref<1x64xf32, #tpu.memory_space<vmem>>, vector<1x64xf32>
    %207 = vector.broadcast %206 : vector<1x64xf32> to vector<64x64xf32>
    %208 = arith.addf %205, %207 : vector<64x64xf32>
    %cst_136 = arith.constant 0.000000e+00 : f32
    %209 = vector.broadcast %cst_136 : f32 to vector<64x64xf32>
    %210 = arith.maximumf %208, %209 : vector<64x64xf32>
    %cst_137 = arith.constant 0.000000e+00 : f32
    %211 = vector.broadcast %cst_137 : f32 to vector<10x10x64xf32>
    %c0_138 = arith.constant 0 : index
    %c0_139 = arith.constant 0 : index
    %c0_140 = arith.constant 0 : index
    %212 = vector.load %arg27[%c0_138, %c0_139, %c0_140] : memref<10x10x64xf32, #tpu.memory_space<vmem>>, vector<10x10x64xf32>
    tpu.vector_store %arg27[%c0_138, %c0_139, %c0_140], %211 {strides = array<i32>} : memref<10x10x64xf32, #tpu.memory_space<vmem>>, vector<10x10x64xf32>,
    %213 = vector.shape_cast %210 : vector<64x64xf32> to vector<8x8x64xf32>
    %c1_141 = arith.constant 1 : index
    %c1_142 = arith.constant 1 : index
    %c0_143 = arith.constant 0 : index
    %214 = vector.load %arg27[%c1_141, %c1_142, %c0_143] : memref<10x10x64xf32, #tpu.memory_space<vmem>>, vector<8x8x64xf32>
    tpu.vector_store %arg27[%c1_141, %c1_142, %c0_143], %213 {strides = array<i32>} : memref<10x10x64xf32, #tpu.memory_space<vmem>>, vector<8x8x64xf32>,
    %cst_144 = arith.constant 0.000000e+00 : f32
    %215 = vector.broadcast %cst_144 : f32 to vector<64x64xf32>
    %c0_145 = arith.constant 0 : index
    %c0_146 = arith.constant 0 : index
    %c0_147 = arith.constant 0 : index
    %216 = vector.load %arg27[%c0_145, %c0_146, %c0_147] : memref<10x10x64xf32, #tpu.memory_space<vmem>>, vector<8x8x64xf32>
    %217 = vector.shape_cast %216 : vector<8x8x64xf32> to vector<64x64xf32>
    %218 = arith.truncf %217 : vector<64x64xf32> to vector<64x64xbf16>
    %c0_148 = arith.constant 0 : index
    %c0_149 = arith.constant 0 : index
    %c0_150 = arith.constant 0 : index
    %219 = vector.load %arg14[%c0_148, %c0_149, %c0_150] : memref<9x64x64xbf16, #tpu.memory_space<vmem>>, vector<1x64x64xbf16>
    %220 = vector.shape_cast %219 : vector<1x64x64xbf16> to vector<64x64xbf16>
    %cst_151 = arith.constant dense<0.000000e+00> : vector<64x64xf32>
    %221 = tpu.matmul %218, %220, %cst_151 {dimension_numbers = #tpu.dot_dimension_numbers<[1], [0], [0], [1], [0, 0, 1, 1], [], []>} : vector<64x64xbf16>, vector<64x64xbf16>, vector<64x64xf32> -> vector<64x64xf32>
    %222 = arith.addf %215, %221 : vector<64x64xf32>
    %c0_152 = arith.constant 0 : index
    %c1_153 = arith.constant 1 : index
    %c0_154 = arith.constant 0 : index
    %223 = vector.load %arg27[%c0_152, %c1_153, %c0_154] : memref<10x10x64xf32, #tpu.memory_space<vmem>>, vector<8x8x64xf32>
    %224 = vector.shape_cast %223 : vector<8x8x64xf32> to vector<64x64xf32>
    %225 = arith.truncf %224 : vector<64x64xf32> to vector<64x64xbf16>
    %c1_155 = arith.constant 1 : index
    %c0_156 = arith.constant 0 : index
    %c0_157 = arith.constant 0 : index
    %226 = vector.load %arg14[%c1_155, %c0_156, %c0_157] : memref<9x64x64xbf16, #tpu.memory_space<vmem>>, vector<1x64x64xbf16>
    %227 = vector.shape_cast %226 : vector<1x64x64xbf16> to vector<64x64xbf16>
    %cst_158 = arith.constant dense<0.000000e+00> : vector<64x64xf32>
    %228 = tpu.matmul %225, %227, %cst_158 {dimension_numbers = #tpu.dot_dimension_numbers<[1], [0], [0], [1], [0, 0, 1, 1], [], []>} : vector<64x64xbf16>, vector<64x64xbf16>, vector<64x64xf32> -> vector<64x64xf32>
    %229 = arith.addf %222, %228 : vector<64x64xf32>
    %c0_159 = arith.constant 0 : index
    %c2_160 = arith.constant 2 : index
    %c0_161 = arith.constant 0 : index
    %230 = vector.load %arg27[%c0_159, %c2_160, %c0_161] : memref<10x10x64xf32, #tpu.memory_space<vmem>>, vector<8x8x64xf32>
    %231 = vector.shape_cast %230 : vector<8x8x64xf32> to vector<64x64xf32>
    %232 = arith.truncf %231 : vector<64x64xf32> to vector<64x64xbf16>
    %c2_162 = arith.constant 2 : index
    %c0_163 = arith.constant 0 : index
    %c0_164 = arith.constant 0 : index
    %233 = vector.load %arg14[%c2_162, %c0_163, %c0_164] : memref<9x64x64xbf16, #tpu.memory_space<vmem>>, vector<1x64x64xbf16>
    %234 = vector.shape_cast %233 : vector<1x64x64xbf16> to vector<64x64xbf16>
    %cst_165 = arith.constant dense<0.000000e+00> : vector<64x64xf32>
    %235 = tpu.matmul %232, %234, %cst_165 {dimension_numbers = #tpu.dot_dimension_numbers<[1], [0], [0], [1], [0, 0, 1, 1], [], []>} : vector<64x64xbf16>, vector<64x64xbf16>, vector<64x64xf32> -> vector<64x64xf32>
    %236 = arith.addf %229, %235 : vector<64x64xf32>
    %c1_166 = arith.constant 1 : index
    %c0_167 = arith.constant 0 : index
    %c0_168 = arith.constant 0 : index
    %237 = vector.load %arg27[%c1_166, %c0_167, %c0_168] : memref<10x10x64xf32, #tpu.memory_space<vmem>>, vector<8x8x64xf32>
    %238 = vector.shape_cast %237 : vector<8x8x64xf32> to vector<64x64xf32>
    %239 = arith.truncf %238 : vector<64x64xf32> to vector<64x64xbf16>
    %c3_169 = arith.constant 3 : index
    %c0_170 = arith.constant 0 : index
    %c0_171 = arith.constant 0 : index
    %240 = vector.load %arg14[%c3_169, %c0_170, %c0_171] : memref<9x64x64xbf16, #tpu.memory_space<vmem>>, vector<1x64x64xbf16>
    %241 = vector.shape_cast %240 : vector<1x64x64xbf16> to vector<64x64xbf16>
    %cst_172 = arith.constant dense<0.000000e+00> : vector<64x64xf32>
    %242 = tpu.matmul %239, %241, %cst_172 {dimension_numbers = #tpu.dot_dimension_numbers<[1], [0], [0], [1], [0, 0, 1, 1], [], []>} : vector<64x64xbf16>, vector<64x64xbf16>, vector<64x64xf32> -> vector<64x64xf32>
    %243 = arith.addf %236, %242 : vector<64x64xf32>
    %c1_173 = arith.constant 1 : index
    %c1_174 = arith.constant 1 : index
    %c0_175 = arith.constant 0 : index
    %244 = vector.load %arg27[%c1_173, %c1_174, %c0_175] : memref<10x10x64xf32, #tpu.memory_space<vmem>>, vector<8x8x64xf32>
    %245 = vector.shape_cast %244 : vector<8x8x64xf32> to vector<64x64xf32>
    %246 = arith.truncf %245 : vector<64x64xf32> to vector<64x64xbf16>
    %c4_176 = arith.constant 4 : index
    %c0_177 = arith.constant 0 : index
    %c0_178 = arith.constant 0 : index
    %247 = vector.load %arg14[%c4_176, %c0_177, %c0_178] : memref<9x64x64xbf16, #tpu.memory_space<vmem>>, vector<1x64x64xbf16>
    %248 = vector.shape_cast %247 : vector<1x64x64xbf16> to vector<64x64xbf16>
    %cst_179 = arith.constant dense<0.000000e+00> : vector<64x64xf32>
    %249 = tpu.matmul %246, %248, %cst_179 {dimension_numbers = #tpu.dot_dimension_numbers<[1], [0], [0], [1], [0, 0, 1, 1], [], []>} : vector<64x64xbf16>, vector<64x64xbf16>, vector<64x64xf32> -> vector<64x64xf32>
    %250 = arith.addf %243, %249 : vector<64x64xf32>
    %c1_180 = arith.constant 1 : index
    %c2_181 = arith.constant 2 : index
    %c0_182 = arith.constant 0 : index
    %251 = vector.load %arg27[%c1_180, %c2_181, %c0_182] : memref<10x10x64xf32, #tpu.memory_space<vmem>>, vector<8x8x64xf32>
    %252 = vector.shape_cast %251 : vector<8x8x64xf32> to vector<64x64xf32>
    %253 = arith.truncf %252 : vector<64x64xf32> to vector<64x64xbf16>
    %c5_183 = arith.constant 5 : index
    %c0_184 = arith.constant 0 : index
    %c0_185 = arith.constant 0 : index
    %254 = vector.load %arg14[%c5_183, %c0_184, %c0_185] : memref<9x64x64xbf16, #tpu.memory_space<vmem>>, vector<1x64x64xbf16>
    %255 = vector.shape_cast %254 : vector<1x64x64xbf16> to vector<64x64xbf16>
    %cst_186 = arith.constant dense<0.000000e+00> : vector<64x64xf32>
    %256 = tpu.matmul %253, %255, %cst_186 {dimension_numbers = #tpu.dot_dimension_numbers<[1], [0], [0], [1], [0, 0, 1, 1], [], []>} : vector<64x64xbf16>, vector<64x64xbf16>, vector<64x64xf32> -> vector<64x64xf32>
    %257 = arith.addf %250, %256 : vector<64x64xf32>
    %c2_187 = arith.constant 2 : index
    %c0_188 = arith.constant 0 : index
    %c0_189 = arith.constant 0 : index
    %258 = vector.load %arg27[%c2_187, %c0_188, %c0_189] : memref<10x10x64xf32, #tpu.memory_space<vmem>>, vector<8x8x64xf32>
    %259 = vector.shape_cast %258 : vector<8x8x64xf32> to vector<64x64xf32>
    %260 = arith.truncf %259 : vector<64x64xf32> to vector<64x64xbf16>
    %c6_190 = arith.constant 6 : index
    %c0_191 = arith.constant 0 : index
    %c0_192 = arith.constant 0 : index
    %261 = vector.load %arg14[%c6_190, %c0_191, %c0_192] : memref<9x64x64xbf16, #tpu.memory_space<vmem>>, vector<1x64x64xbf16>
    %262 = vector.shape_cast %261 : vector<1x64x64xbf16> to vector<64x64xbf16>
    %cst_193 = arith.constant dense<0.000000e+00> : vector<64x64xf32>
    %263 = tpu.matmul %260, %262, %cst_193 {dimension_numbers = #tpu.dot_dimension_numbers<[1], [0], [0], [1], [0, 0, 1, 1], [], []>} : vector<64x64xbf16>, vector<64x64xbf16>, vector<64x64xf32> -> vector<64x64xf32>
    %264 = arith.addf %257, %263 : vector<64x64xf32>
    %c2_194 = arith.constant 2 : index
    %c1_195 = arith.constant 1 : index
    %c0_196 = arith.constant 0 : index
    %265 = vector.load %arg27[%c2_194, %c1_195, %c0_196] : memref<10x10x64xf32, #tpu.memory_space<vmem>>, vector<8x8x64xf32>
    %266 = vector.shape_cast %265 : vector<8x8x64xf32> to vector<64x64xf32>
    %267 = arith.truncf %266 : vector<64x64xf32> to vector<64x64xbf16>
    %c7_197 = arith.constant 7 : index
    %c0_198 = arith.constant 0 : index
    %c0_199 = arith.constant 0 : index
    %268 = vector.load %arg14[%c7_197, %c0_198, %c0_199] : memref<9x64x64xbf16, #tpu.memory_space<vmem>>, vector<1x64x64xbf16>
    %269 = vector.shape_cast %268 : vector<1x64x64xbf16> to vector<64x64xbf16>
    %cst_200 = arith.constant dense<0.000000e+00> : vector<64x64xf32>
    %270 = tpu.matmul %267, %269, %cst_200 {dimension_numbers = #tpu.dot_dimension_numbers<[1], [0], [0], [1], [0, 0, 1, 1], [], []>} : vector<64x64xbf16>, vector<64x64xbf16>, vector<64x64xf32> -> vector<64x64xf32>
    %271 = arith.addf %264, %270 : vector<64x64xf32>
    %c2_201 = arith.constant 2 : index
    %c2_202 = arith.constant 2 : index
    %c0_203 = arith.constant 0 : index
    %272 = vector.load %arg27[%c2_201, %c2_202, %c0_203] : memref<10x10x64xf32, #tpu.memory_space<vmem>>, vector<8x8x64xf32>
    %273 = vector.shape_cast %272 : vector<8x8x64xf32> to vector<64x64xf32>
    %274 = arith.truncf %273 : vector<64x64xf32> to vector<64x64xbf16>
    %c8_204 = arith.constant 8 : index
    %c0_205 = arith.constant 0 : index
    %c0_206 = arith.constant 0 : index
    %275 = vector.load %arg14[%c8_204, %c0_205, %c0_206] : memref<9x64x64xbf16, #tpu.memory_space<vmem>>, vector<1x64x64xbf16>
    %276 = vector.shape_cast %275 : vector<1x64x64xbf16> to vector<64x64xbf16>
    %cst_207 = arith.constant dense<0.000000e+00> : vector<64x64xf32>
    %277 = tpu.matmul %274, %276, %cst_207 {dimension_numbers = #tpu.dot_dimension_numbers<[1], [0], [0], [1], [0, 0, 1, 1], [], []>} : vector<64x64xbf16>, vector<64x64xbf16>, vector<64x64xf32> -> vector<64x64xf32>
    %278 = arith.addf %271, %277 : vector<64x64xf32>
    %c0_208 = arith.constant 0 : index
    %c0_209 = arith.constant 0 : index
    %279 = vector.load %arg15[%c0_208, %c0_209] : memref<1x64xf32, #tpu.memory_space<vmem>>, vector<1x64xf32>
    %280 = vector.broadcast %279 : vector<1x64xf32> to vector<64x64xf32>
    %281 = arith.addf %278, %280 : vector<64x64xf32>
    %cst_210 = arith.constant 0.000000e+00 : f32
    %282 = vector.broadcast %cst_210 : f32 to vector<64x64xf32>
    %283 = arith.maximumf %281, %282 : vector<64x64xf32>
    %284 = arith.truncf %283 : vector<64x64xf32> to vector<64x64xbf16>
    %c0_211 = arith.constant 0 : index
    %c0_212 = arith.constant 0 : index
    %285 = vector.load %arg16[%c0_211, %c0_212] : memref<64x256xbf16, #tpu.memory_space<vmem>>, vector<64x256xbf16>
    %cst_213 = arith.constant dense<0.000000e+00> : vector<64x256xf32>
    %286 = tpu.matmul %284, %285, %cst_213 {dimension_numbers = #tpu.dot_dimension_numbers<[1], [0], [0], [1], [0, 0, 1, 1], [], []>} : vector<64x64xbf16>, vector<64x256xbf16>, vector<64x256xf32> -> vector<64x256xf32>
    %c0_214 = arith.constant 0 : index
    %c0_215 = arith.constant 0 : index
    %287 = vector.load %arg17[%c0_214, %c0_215] : memref<1x256xf32, #tpu.memory_space<vmem>>, vector<1x256xf32>
    %288 = vector.broadcast %287 : vector<1x256xf32> to vector<64x256xf32>
    %289 = arith.addf %286, %288 : vector<64x256xf32>
    %290 = arith.addf %289, %202 : vector<64x256xf32>
    %cst_216 = arith.constant 0.000000e+00 : f32
    %291 = vector.broadcast %cst_216 : f32 to vector<64x256xf32>
    %292 = arith.maximumf %290, %291 : vector<64x256xf32>
    %293 = arith.truncf %292 : vector<64x256xf32> to vector<64x256xbf16>
    %c0_217 = arith.constant 0 : index
    %c0_218 = arith.constant 0 : index
    %294 = vector.load %arg18[%c0_217, %c0_218] : memref<256x64xbf16, #tpu.memory_space<vmem>>, vector<256x64xbf16>
    %cst_219 = arith.constant dense<0.000000e+00> : vector<64x64xf32>
    %295 = tpu.matmul %293, %294, %cst_219 {dimension_numbers = #tpu.dot_dimension_numbers<[1], [0], [0], [1], [0, 0, 1, 1], [], []>} : vector<64x256xbf16>, vector<256x64xbf16>, vector<64x64xf32> -> vector<64x64xf32>
    %c0_220 = arith.constant 0 : index
    %c0_221 = arith.constant 0 : index
    %296 = vector.load %arg19[%c0_220, %c0_221] : memref<1x64xf32, #tpu.memory_space<vmem>>, vector<1x64xf32>
    %297 = vector.broadcast %296 : vector<1x64xf32> to vector<64x64xf32>
    %298 = arith.addf %295, %297 : vector<64x64xf32>
    %cst_222 = arith.constant 0.000000e+00 : f32
    %299 = vector.broadcast %cst_222 : f32 to vector<64x64xf32>
    %300 = arith.maximumf %298, %299 : vector<64x64xf32>
    %cst_223 = arith.constant 0.000000e+00 : f32
    %301 = vector.broadcast %cst_223 : f32 to vector<10x10x64xf32>
    %c0_224 = arith.constant 0 : index
    %c0_225 = arith.constant 0 : index
    %c0_226 = arith.constant 0 : index
    %302 = vector.load %arg27[%c0_224, %c0_225, %c0_226] : memref<10x10x64xf32, #tpu.memory_space<vmem>>, vector<10x10x64xf32>
    tpu.vector_store %arg27[%c0_224, %c0_225, %c0_226], %301 {strides = array<i32>} : memref<10x10x64xf32, #tpu.memory_space<vmem>>, vector<10x10x64xf32>,
    %303 = vector.shape_cast %300 : vector<64x64xf32> to vector<8x8x64xf32>
    %c1_227 = arith.constant 1 : index
    %c1_228 = arith.constant 1 : index
    %c0_229 = arith.constant 0 : index
    %304 = vector.load %arg27[%c1_227, %c1_228, %c0_229] : memref<10x10x64xf32, #tpu.memory_space<vmem>>, vector<8x8x64xf32>
    tpu.vector_store %arg27[%c1_227, %c1_228, %c0_229], %303 {strides = array<i32>} : memref<10x10x64xf32, #tpu.memory_space<vmem>>, vector<8x8x64xf32>,
    %cst_230 = arith.constant 0.000000e+00 : f32
    %305 = vector.broadcast %cst_230 : f32 to vector<64x64xf32>
    %c0_231 = arith.constant 0 : index
    %c0_232 = arith.constant 0 : index
    %c0_233 = arith.constant 0 : index
    %306 = vector.load %arg27[%c0_231, %c0_232, %c0_233] : memref<10x10x64xf32, #tpu.memory_space<vmem>>, vector<8x8x64xf32>
    %307 = vector.shape_cast %306 : vector<8x8x64xf32> to vector<64x64xf32>
    %308 = arith.truncf %307 : vector<64x64xf32> to vector<64x64xbf16>
    %c0_234 = arith.constant 0 : index
    %c0_235 = arith.constant 0 : index
    %c0_236 = arith.constant 0 : index
    %309 = vector.load %arg20[%c0_234, %c0_235, %c0_236] : memref<9x64x64xbf16, #tpu.memory_space<vmem>>, vector<1x64x64xbf16>
    %310 = vector.shape_cast %309 : vector<1x64x64xbf16> to vector<64x64xbf16>
    %cst_237 = arith.constant dense<0.000000e+00> : vector<64x64xf32>
    %311 = tpu.matmul %308, %310, %cst_237 {dimension_numbers = #tpu.dot_dimension_numbers<[1], [0], [0], [1], [0, 0, 1, 1], [], []>} : vector<64x64xbf16>, vector<64x64xbf16>, vector<64x64xf32> -> vector<64x64xf32>
    %312 = arith.addf %305, %311 : vector<64x64xf32>
    %c0_238 = arith.constant 0 : index
    %c1_239 = arith.constant 1 : index
    %c0_240 = arith.constant 0 : index
    %313 = vector.load %arg27[%c0_238, %c1_239, %c0_240] : memref<10x10x64xf32, #tpu.memory_space<vmem>>, vector<8x8x64xf32>
    %314 = vector.shape_cast %313 : vector<8x8x64xf32> to vector<64x64xf32>
    %315 = arith.truncf %314 : vector<64x64xf32> to vector<64x64xbf16>
    %c1_241 = arith.constant 1 : index
    %c0_242 = arith.constant 0 : index
    %c0_243 = arith.constant 0 : index
    %316 = vector.load %arg20[%c1_241, %c0_242, %c0_243] : memref<9x64x64xbf16, #tpu.memory_space<vmem>>, vector<1x64x64xbf16>
    %317 = vector.shape_cast %316 : vector<1x64x64xbf16> to vector<64x64xbf16>
    %cst_244 = arith.constant dense<0.000000e+00> : vector<64x64xf32>
    %318 = tpu.matmul %315, %317, %cst_244 {dimension_numbers = #tpu.dot_dimension_numbers<[1], [0], [0], [1], [0, 0, 1, 1], [], []>} : vector<64x64xbf16>, vector<64x64xbf16>, vector<64x64xf32> -> vector<64x64xf32>
    %319 = arith.addf %312, %318 : vector<64x64xf32>
    %c0_245 = arith.constant 0 : index
    %c2_246 = arith.constant 2 : index
    %c0_247 = arith.constant 0 : index
    %320 = vector.load %arg27[%c0_245, %c2_246, %c0_247] : memref<10x10x64xf32, #tpu.memory_space<vmem>>, vector<8x8x64xf32>
    %321 = vector.shape_cast %320 : vector<8x8x64xf32> to vector<64x64xf32>
    %322 = arith.truncf %321 : vector<64x64xf32> to vector<64x64xbf16>
    %c2_248 = arith.constant 2 : index
    %c0_249 = arith.constant 0 : index
    %c0_250 = arith.constant 0 : index
    %323 = vector.load %arg20[%c2_248, %c0_249, %c0_250] : memref<9x64x64xbf16, #tpu.memory_space<vmem>>, vector<1x64x64xbf16>
    %324 = vector.shape_cast %323 : vector<1x64x64xbf16> to vector<64x64xbf16>
    %cst_251 = arith.constant dense<0.000000e+00> : vector<64x64xf32>
    %325 = tpu.matmul %322, %324, %cst_251 {dimension_numbers = #tpu.dot_dimension_numbers<[1], [0], [0], [1], [0, 0, 1, 1], [], []>} : vector<64x64xbf16>, vector<64x64xbf16>, vector<64x64xf32> -> vector<64x64xf32>
    %326 = arith.addf %319, %325 : vector<64x64xf32>
    %c1_252 = arith.constant 1 : index
    %c0_253 = arith.constant 0 : index
    %c0_254 = arith.constant 0 : index
    %327 = vector.load %arg27[%c1_252, %c0_253, %c0_254] : memref<10x10x64xf32, #tpu.memory_space<vmem>>, vector<8x8x64xf32>
    %328 = vector.shape_cast %327 : vector<8x8x64xf32> to vector<64x64xf32>
    %329 = arith.truncf %328 : vector<64x64xf32> to vector<64x64xbf16>
    %c3_255 = arith.constant 3 : index
    %c0_256 = arith.constant 0 : index
    %c0_257 = arith.constant 0 : index
    %330 = vector.load %arg20[%c3_255, %c0_256, %c0_257] : memref<9x64x64xbf16, #tpu.memory_space<vmem>>, vector<1x64x64xbf16>
    %331 = vector.shape_cast %330 : vector<1x64x64xbf16> to vector<64x64xbf16>
    %cst_258 = arith.constant dense<0.000000e+00> : vector<64x64xf32>
    %332 = tpu.matmul %329, %331, %cst_258 {dimension_numbers = #tpu.dot_dimension_numbers<[1], [0], [0], [1], [0, 0, 1, 1], [], []>} : vector<64x64xbf16>, vector<64x64xbf16>, vector<64x64xf32> -> vector<64x64xf32>
    %333 = arith.addf %326, %332 : vector<64x64xf32>
    %c1_259 = arith.constant 1 : index
    %c1_260 = arith.constant 1 : index
    %c0_261 = arith.constant 0 : index
    %334 = vector.load %arg27[%c1_259, %c1_260, %c0_261] : memref<10x10x64xf32, #tpu.memory_space<vmem>>, vector<8x8x64xf32>
    %335 = vector.shape_cast %334 : vector<8x8x64xf32> to vector<64x64xf32>
    %336 = arith.truncf %335 : vector<64x64xf32> to vector<64x64xbf16>
    %c4_262 = arith.constant 4 : index
    %c0_263 = arith.constant 0 : index
    %c0_264 = arith.constant 0 : index
    %337 = vector.load %arg20[%c4_262, %c0_263, %c0_264] : memref<9x64x64xbf16, #tpu.memory_space<vmem>>, vector<1x64x64xbf16>
    %338 = vector.shape_cast %337 : vector<1x64x64xbf16> to vector<64x64xbf16>
    %cst_265 = arith.constant dense<0.000000e+00> : vector<64x64xf32>
    %339 = tpu.matmul %336, %338, %cst_265 {dimension_numbers = #tpu.dot_dimension_numbers<[1], [0], [0], [1], [0, 0, 1, 1], [], []>} : vector<64x64xbf16>, vector<64x64xbf16>, vector<64x64xf32> -> vector<64x64xf32>
    %340 = arith.addf %333, %339 : vector<64x64xf32>
    %c1_266 = arith.constant 1 : index
    %c2_267 = arith.constant 2 : index
    %c0_268 = arith.constant 0 : index
    %341 = vector.load %arg27[%c1_266, %c2_267, %c0_268] : memref<10x10x64xf32, #tpu.memory_space<vmem>>, vector<8x8x64xf32>
    %342 = vector.shape_cast %341 : vector<8x8x64xf32> to vector<64x64xf32>
    %343 = arith.truncf %342 : vector<64x64xf32> to vector<64x64xbf16>
    %c5_269 = arith.constant 5 : index
    %c0_270 = arith.constant 0 : index
    %c0_271 = arith.constant 0 : index
    %344 = vector.load %arg20[%c5_269, %c0_270, %c0_271] : memref<9x64x64xbf16, #tpu.memory_space<vmem>>, vector<1x64x64xbf16>
    %345 = vector.shape_cast %344 : vector<1x64x64xbf16> to vector<64x64xbf16>
    %cst_272 = arith.constant dense<0.000000e+00> : vector<64x64xf32>
    %346 = tpu.matmul %343, %345, %cst_272 {dimension_numbers = #tpu.dot_dimension_numbers<[1], [0], [0], [1], [0, 0, 1, 1], [], []>} : vector<64x64xbf16>, vector<64x64xbf16>, vector<64x64xf32> -> vector<64x64xf32>
    %347 = arith.addf %340, %346 : vector<64x64xf32>
    %c2_273 = arith.constant 2 : index
    %c0_274 = arith.constant 0 : index
    %c0_275 = arith.constant 0 : index
    %348 = vector.load %arg27[%c2_273, %c0_274, %c0_275] : memref<10x10x64xf32, #tpu.memory_space<vmem>>, vector<8x8x64xf32>
    %349 = vector.shape_cast %348 : vector<8x8x64xf32> to vector<64x64xf32>
    %350 = arith.truncf %349 : vector<64x64xf32> to vector<64x64xbf16>
    %c6_276 = arith.constant 6 : index
    %c0_277 = arith.constant 0 : index
    %c0_278 = arith.constant 0 : index
    %351 = vector.load %arg20[%c6_276, %c0_277, %c0_278] : memref<9x64x64xbf16, #tpu.memory_space<vmem>>, vector<1x64x64xbf16>
    %352 = vector.shape_cast %351 : vector<1x64x64xbf16> to vector<64x64xbf16>
    %cst_279 = arith.constant dense<0.000000e+00> : vector<64x64xf32>
    %353 = tpu.matmul %350, %352, %cst_279 {dimension_numbers = #tpu.dot_dimension_numbers<[1], [0], [0], [1], [0, 0, 1, 1], [], []>} : vector<64x64xbf16>, vector<64x64xbf16>, vector<64x64xf32> -> vector<64x64xf32>
    %354 = arith.addf %347, %353 : vector<64x64xf32>
    %c2_280 = arith.constant 2 : index
    %c1_281 = arith.constant 1 : index
    %c0_282 = arith.constant 0 : index
    %355 = vector.load %arg27[%c2_280, %c1_281, %c0_282] : memref<10x10x64xf32, #tpu.memory_space<vmem>>, vector<8x8x64xf32>
    %356 = vector.shape_cast %355 : vector<8x8x64xf32> to vector<64x64xf32>
    %357 = arith.truncf %356 : vector<64x64xf32> to vector<64x64xbf16>
    %c7_283 = arith.constant 7 : index
    %c0_284 = arith.constant 0 : index
    %c0_285 = arith.constant 0 : index
    %358 = vector.load %arg20[%c7_283, %c0_284, %c0_285] : memref<9x64x64xbf16, #tpu.memory_space<vmem>>, vector<1x64x64xbf16>
    %359 = vector.shape_cast %358 : vector<1x64x64xbf16> to vector<64x64xbf16>
    %cst_286 = arith.constant dense<0.000000e+00> : vector<64x64xf32>
    %360 = tpu.matmul %357, %359, %cst_286 {dimension_numbers = #tpu.dot_dimension_numbers<[1], [0], [0], [1], [0, 0, 1, 1], [], []>} : vector<64x64xbf16>, vector<64x64xbf16>, vector<64x64xf32> -> vector<64x64xf32>
    %361 = arith.addf %354, %360 : vector<64x64xf32>
    %c2_287 = arith.constant 2 : index
    %c2_288 = arith.constant 2 : index
    %c0_289 = arith.constant 0 : index
    %362 = vector.load %arg27[%c2_287, %c2_288, %c0_289] : memref<10x10x64xf32, #tpu.memory_space<vmem>>, vector<8x8x64xf32>
    %363 = vector.shape_cast %362 : vector<8x8x64xf32> to vector<64x64xf32>
    %364 = arith.truncf %363 : vector<64x64xf32> to vector<64x64xbf16>
    %c8_290 = arith.constant 8 : index
    %c0_291 = arith.constant 0 : index
    %c0_292 = arith.constant 0 : index
    %365 = vector.load %arg20[%c8_290, %c0_291, %c0_292] : memref<9x64x64xbf16, #tpu.memory_space<vmem>>, vector<1x64x64xbf16>
    %366 = vector.shape_cast %365 : vector<1x64x64xbf16> to vector<64x64xbf16>
    %cst_293 = arith.constant dense<0.000000e+00> : vector<64x64xf32>
    %367 = tpu.matmul %364, %366, %cst_293 {dimension_numbers = #tpu.dot_dimension_numbers<[1], [0], [0], [1], [0, 0, 1, 1], [], []>} : vector<64x64xbf16>, vector<64x64xbf16>, vector<64x64xf32> -> vector<64x64xf32>
    %368 = arith.addf %361, %367 : vector<64x64xf32>
    %c0_294 = arith.constant 0 : index
    %c0_295 = arith.constant 0 : index
    %369 = vector.load %arg21[%c0_294, %c0_295] : memref<1x64xf32, #tpu.memory_space<vmem>>, vector<1x64xf32>
    %370 = vector.broadcast %369 : vector<1x64xf32> to vector<64x64xf32>
    %371 = arith.addf %368, %370 : vector<64x64xf32>
    %cst_296 = arith.constant 0.000000e+00 : f32
    %372 = vector.broadcast %cst_296 : f32 to vector<64x64xf32>
    %373 = arith.maximumf %371, %372 : vector<64x64xf32>
    %374 = arith.truncf %373 : vector<64x64xf32> to vector<64x64xbf16>
    %c0_297 = arith.constant 0 : index
    %c0_298 = arith.constant 0 : index
    %375 = vector.load %arg22[%c0_297, %c0_298] : memref<64x256xbf16, #tpu.memory_space<vmem>>, vector<64x256xbf16>
    %cst_299 = arith.constant dense<0.000000e+00> : vector<64x256xf32>
    %376 = tpu.matmul %374, %375, %cst_299 {dimension_numbers = #tpu.dot_dimension_numbers<[1], [0], [0], [1], [0, 0, 1, 1], [], []>} : vector<64x64xbf16>, vector<64x256xbf16>, vector<64x256xf32> -> vector<64x256xf32>
    %c0_300 = arith.constant 0 : index
    %c0_301 = arith.constant 0 : index
    %377 = vector.load %arg23[%c0_300, %c0_301] : memref<1x256xf32, #tpu.memory_space<vmem>>, vector<1x256xf32>
    %378 = vector.broadcast %377 : vector<1x256xf32> to vector<64x256xf32>
    %379 = arith.addf %376, %378 : vector<64x256xf32>
    %380 = arith.addf %379, %292 : vector<64x256xf32>
    %cst_302 = arith.constant 0.000000e+00 : f32
    %381 = vector.broadcast %cst_302 : f32 to vector<64x256xf32>
    %382 = arith.maximumf %380, %381 : vector<64x256xf32>
    %383 = vector.shape_cast %382 : vector<64x256xf32> to vector<1x8x8x256xf32>
    %c0_303 = arith.constant 0 : index
    %c0_304 = arith.constant 0 : index
    %c0_305 = arith.constant 0 : index
    %c0_306 = arith.constant 0 : index
    %384 = vector.load %arg24[%c0_303, %c0_304, %c0_305, %c0_306] : memref<1x8x8x256xf32, #tpu.memory_space<vmem>>, vector<1x8x8x256xf32>
    tpu.vector_store %arg24[%c0_303, %c0_304, %c0_305, %c0_306], %383 {strides = array<i32>} : memref<1x8x8x256xf32, #tpu.memory_space<vmem>>, vector<1x8x8x256xf32>,
    return
  }
  func.func @transform_0(%arg0: i32) -> (i32, i32) {
    %c0_i32 = arith.constant 0 : i32
    %c0_i32_0 = arith.constant 0 : i32
    return %arg0, %c0_i32 : i32, i32
  }
  func.func @transform_1(%arg0: i32) -> (i32, i32) {
    %c0_i32 = arith.constant 0 : i32
    %c0_i32_0 = arith.constant 0 : i32
    %c0_i32_1 = arith.constant 0 : i32
    return %c0_i32, %c0_i32_0 : i32, i32
  }
  func.func @transform_2(%arg0: i32) -> (i32, i32) {
    %c0_i32 = arith.constant 0 : i32
    %c0_i32_0 = arith.constant 0 : i32
    %c0_i32_1 = arith.constant 0 : i32
    return %c0_i32, %c0_i32_0 : i32, i32
  }
  func.func @transform_3(%arg0: i32) -> (i32, i32) {
    %c0_i32 = arith.constant 0 : i32
    %c0_i32_0 = arith.constant 0 : i32
    %c0_i32_1 = arith.constant 0 : i32
    return %c0_i32, %c0_i32_0 : i32, i32
  }
  func.func @transform_4(%arg0: i32) -> (i32, i32) {
    %c0_i32 = arith.constant 0 : i32
    %c0_i32_0 = arith.constant 0 : i32
    %c0_i32_1 = arith.constant 0 : i32
    return %c0_i32, %c0_i32_0 : i32, i32
  }
  func.func @transform_5(%arg0: i32) -> (i32, i32, i32) {
    %c0_i32 = arith.constant 0 : i32
    %c0_i32_0 = arith.constant 0 : i32
    %c0_i32_1 = arith.constant 0 : i32
    %c0_i32_2 = arith.constant 0 : i32
    return %c0_i32, %c0_i32_0, %c0_i32_1 : i32, i32, i32
  }
  func.func @transform_6(%arg0: i32) -> (i32, i32) {
    %c0_i32 = arith.constant 0 : i32
    %c0_i32_0 = arith.constant 0 : i32
    %c0_i32_1 = arith.constant 0 : i32
    return %c0_i32, %c0_i32_0 : i32, i32
  }
  func.func @transform_7(%arg0: i32) -> (i32, i32) {
    %c0_i32 = arith.constant 0 : i32
    %c0_i32_0 = arith.constant 0 : i32
    %c0_i32_1 = arith.constant 0 : i32
    return %c0_i32, %c0_i32_0 : i32, i32
  }
  func.func @transform_8(%arg0: i32) -> (i32, i32) {
    %c0_i32 = arith.constant 0 : i32
    %c0_i32_0 = arith.constant 0 : i32
    %c0_i32_1 = arith.constant 0 : i32
    return %c0_i32, %c0_i32_0 : i32, i32
  }
  func.func @transform_9(%arg0: i32) -> (i32, i32) {
    %c0_i32 = arith.constant 0 : i32
    %c0_i32_0 = arith.constant 0 : i32
    %c0_i32_1 = arith.constant 0 : i32
    return %c0_i32, %c0_i32_0 : i32, i32
  }
  func.func @transform_10(%arg0: i32) -> (i32, i32) {
    %c0_i32 = arith.constant 0 : i32
    %c0_i32_0 = arith.constant 0 : i32
    %c0_i32_1 = arith.constant 0 : i32
    return %c0_i32, %c0_i32_0 : i32, i32
  }
  func.func @transform_11(%arg0: i32) -> (i32, i32) {
    %c0_i32 = arith.constant 0 : i32
    %c0_i32_0 = arith.constant 0 : i32
    %c0_i32_1 = arith.constant 0 : i32
    return %c0_i32, %c0_i32_0 : i32, i32
  }
  func.func @transform_12(%arg0: i32) -> (i32, i32) {
    %c0_i32 = arith.constant 0 : i32
    %c0_i32_0 = arith.constant 0 : i32
    %c0_i32_1 = arith.constant 0 : i32
    return %c0_i32, %c0_i32_0 : i32, i32
  }
  func.func @transform_13(%arg0: i32) -> (i32, i32, i32) {
    %c0_i32 = arith.constant 0 : i32
    %c0_i32_0 = arith.constant 0 : i32
    %c0_i32_1 = arith.constant 0 : i32
    %c0_i32_2 = arith.constant 0 : i32
    return %c0_i32, %c0_i32_0, %c0_i32_1 : i32, i32, i32
  }
  func.func @transform_14(%arg0: i32) -> (i32, i32) {
    %c0_i32 = arith.constant 0 : i32
    %c0_i32_0 = arith.constant 0 : i32
    %c0_i32_1 = arith.constant 0 : i32
    return %c0_i32, %c0_i32_0 : i32, i32
  }
  func.func @transform_15(%arg0: i32) -> (i32, i32) {
    %c0_i32 = arith.constant 0 : i32
    %c0_i32_0 = arith.constant 0 : i32
    %c0_i32_1 = arith.constant 0 : i32
    return %c0_i32, %c0_i32_0 : i32, i32
  }
  func.func @transform_16(%arg0: i32) -> (i32, i32) {
    %c0_i32 = arith.constant 0 : i32
    %c0_i32_0 = arith.constant 0 : i32
    %c0_i32_1 = arith.constant 0 : i32
    return %c0_i32, %c0_i32_0 : i32, i32
  }
  func.func @transform_17(%arg0: i32) -> (i32, i32) {
    %c0_i32 = arith.constant 0 : i32
    %c0_i32_0 = arith.constant 0 : i32
    %c0_i32_1 = arith.constant 0 : i32
    return %c0_i32, %c0_i32_0 : i32, i32
  }
  func.func @transform_18(%arg0: i32) -> (i32, i32) {
    %c0_i32 = arith.constant 0 : i32
    %c0_i32_0 = arith.constant 0 : i32
    %c0_i32_1 = arith.constant 0 : i32
    return %c0_i32, %c0_i32_0 : i32, i32
  }
  func.func @transform_19(%arg0: i32) -> (i32, i32, i32) {
    %c0_i32 = arith.constant 0 : i32
    %c0_i32_0 = arith.constant 0 : i32
    %c0_i32_1 = arith.constant 0 : i32
    %c0_i32_2 = arith.constant 0 : i32
    return %c0_i32, %c0_i32_0, %c0_i32_1 : i32, i32, i32
  }
  func.func @transform_20(%arg0: i32) -> (i32, i32) {
    %c0_i32 = arith.constant 0 : i32
    %c0_i32_0 = arith.constant 0 : i32
    %c0_i32_1 = arith.constant 0 : i32
    return %c0_i32, %c0_i32_0 : i32, i32
  }
  func.func @transform_21(%arg0: i32) -> (i32, i32) {
    %c0_i32 = arith.constant 0 : i32
    %c0_i32_0 = arith.constant 0 : i32
    %c0_i32_1 = arith.constant 0 : i32
    return %c0_i32, %c0_i32_0 : i32, i32
  }
  func.func @transform_22(%arg0: i32) -> (i32, i32) {
    %c0_i32 = arith.constant 0 : i32
    %c0_i32_0 = arith.constant 0 : i32
    %c0_i32_1 = arith.constant 0 : i32
    return %c0_i32, %c0_i32_0 : i32, i32
  }
  func.func @transform_23(%arg0: i32) -> (i32, i32, i32, i32) {
    %c0_i32 = arith.constant 0 : i32
    %c0_i32_0 = arith.constant 0 : i32
    %c0_i32_1 = arith.constant 0 : i32
    %c0_i32_2 = arith.constant 0 : i32
    return %arg0, %c0_i32, %c0_i32_0, %c0_i32_1 : i32, i32, i32, i32
  }
}

</mosaic_0001>

<llo_original>
// kernel: shallow_module_forward.1
$region0: #{shallow_module_forward.1}
  #allocation0 [shape = 'u32[]', space=smem, size = 0x4, offset = 0x4, fixed_abs, tag = 'smem constant byte address 0x4 - core index']
  #allocation1 [shape = 'u32[144,128]{1,0:T(1,128)}', space=vmem, size = 0x12000, scoped, tag = 'internal scratch']
  #allocation2 [shape = 'f32[18,18,64]{2,1,0:T(8,128)}', space=vmem, size = 0x36000, scoped, tag = 'scratch operand']
  #allocation3 [shape = 'f32[8,8,64]{2,1,0:T(8,128)}', space=vmem, size = 0x8000, scoped, tag = 'scratch operand']
  #allocation4 [shape = 'f32[10,10,64]{2,1,0:T(8,128)}', space=vmem, size = 0x14000, scoped, tag = 'scratch operand']
  %s0 = inlined_call_operand.vmem [shape: bf16[512,256], index: 0, kind: input, shape index: {}]
  %s1 = inlined_call_operand.vmem [shape: bf16[256,64], index: 1, kind: input, shape index: {}]
  %s2 = inlined_call_operand.vmem [shape: f32[1,64], index: 2, kind: input, shape index: {}]
  %s3 = inlined_call_operand.vmem [shape: bf16[64,64], index: 3, kind: input, shape index: {}]
  %s4 = inlined_call_operand.vmem [shape: f32[1,64], index: 4, kind: input, shape index: {}]
  %s5 = inlined_call_operand.vmem [shape: bf16[9,64,64], index: 5, kind: input, shape index: {}]
  %s6 = inlined_call_operand.vmem [shape: f32[1,64], index: 6, kind: input, shape index: {}]
  %s7 = inlined_call_operand.vmem [shape: bf16[64,256], index: 7, kind: input, shape index: {}]
  %s8 = inlined_call_operand.vmem [shape: f32[1,256], index: 8, kind: input, shape index: {}]
  %s9 = inlined_call_operand.vmem [shape: bf16[64,256], index: 9, kind: input, shape index: {}]
  %s10 = inlined_call_operand.vmem [shape: f32[1,256], index: 10, kind: input, shape index: {}]
  %s11 = inlined_call_operand.vmem [shape: bf16[256,64], index: 11, kind: input, shape index: {}]
  %s12 = inlined_call_operand.vmem [shape: f32[1,64], index: 12, kind: input, shape index: {}]
  %s13 = inlined_call_operand.vmem [shape: bf16[9,64,64], index: 13, kind: input, shape index: {}]
  %s14 = inlined_call_operand.vmem [shape: f32[1,64], index: 14, kind: input, shape index: {}]
  %s15 = inlined_call_operand.vmem [shape: bf16[64,256], index: 15, kind: input, shape index: {}]
  %s16 = inlined_call_operand.vmem [shape: f32[1,256], index: 16, kind: input, shape index: {}]
  %s17 = inlined_call_operand.vmem [shape: bf16[256,64], index: 17, kind: input, shape index: {}]
  %s18 = inlined_call_operand.vmem [shape: f32[1,64], index: 18, kind: input, shape index: {}]
  %s19 = inlined_call_operand.vmem [shape: bf16[9,64,64], index: 19, kind: input, shape index: {}]
  %s20 = inlined_call_operand.vmem [shape: f32[1,64], index: 20, kind: input, shape index: {}]
  %s21 = inlined_call_operand.vmem [shape: bf16[64,256], index: 21, kind: input, shape index: {}]
  %s22 = inlined_call_operand.vmem [shape: f32[1,256], index: 22, kind: input, shape index: {}]
  %s23 = inlined_call_operand.hbm [shape: f32[2,8,8,256], index: 23, kind: output, shape index: {}]
  %s24 = sld [smem:[#allocation0]]
  $region125: #{shallow_module_forward.1} parent=0
    _
  %s26 = ssub.s32 1, %s24
  %s27 = scalar_select 0, %s26, %s24
  $region1: #{shallow_module_forward.1} parent=0
    #allocation5 [shape = 'u8[131072]{0}', space=vmem, size = 0x20000, scoped, tag = 'output window, operand 0']
    #allocation6 [shape = 's32[2]{0}', space=sflag, size = 0x8, scoped, tag = 'scoped memory for shallow_module_forward.1']
    %28 = vsyncpa [#allocation6], 0
    %s29 = scalar_lea.sflag [#allocation6], 1
    %30 = vsyncpa %s29, 0
    loop: start=0, step=1, limit=4
    $region2: #{shallow_module_forward.1} parent=1 // loop_pre_header
      _
    $region3: #{shallow_module_forward.1} parent=1 // loop_header
      %s32 = sphi 0, %s36
      %p33 = scmp.ge.s32.totalorder %s32, 4
      %s42 = sphi 0, %s44
      %s45 = sphi 0, %s42
      %s46 = sphi 0, %s45
      %s62 = sphi 0, %s46
      %s66 = sphi 0, %s66
      %s68 = sphi 0, %s66
      %s69 = sphi 0, %s68
      %s83 = sphi 0, %s69
      %s87 = sphi 0, %s87
      %s89 = sphi 0, %s87
      %s90 = sphi 0, %s89
      %s104 = sphi 0, %s90
      %s108 = sphi 0, %s108
      %s110 = sphi 0, %s108
      %s111 = sphi 0, %s110
      %s125 = sphi 0, %s111
      %s129 = sphi 0, %s129
      %s131 = sphi 0, %s129
      %s132 = sphi 0, %s131
      %s146 = sphi 0, %s132
      %s150 = sphi 0, %s150
      %s152 = sphi 0, %s150
      %s153 = sphi 0, %s152
      %s167 = sphi 0, %s153
      %s171 = sphi 0, %s171
      %s173 = sphi 0, %s171
      %s174 = sphi 0, %s173
      %s188 = sphi 0, %s174
      %s192 = sphi 0, %s192
      %s194 = sphi 0, %s192
      %s195 = sphi 0, %s194
      %s209 = sphi 0, %s195
      %s213 = sphi 0, %s213
      %s215 = sphi 0, %s213
      %s216 = sphi 0, %s215
      %s230 = sphi 0, %s216
      %s234 = sphi 0, %s234
      %s236 = sphi 0, %s234
      %s237 = sphi 0, %s236
      %s251 = sphi 0, %s237
      %s255 = sphi 0, %s255
      %s257 = sphi 0, %s255
      %s258 = sphi 0, %s257
      %s272 = sphi 0, %s258
      %s276 = sphi 0, %s276
      %s278 = sphi 0, %s276
      %s279 = sphi 0, %s278
      %s293 = sphi 0, %s279
      %s297 = sphi 0, %s297
      %s299 = sphi 0, %s297
      %s300 = sphi 0, %s299
      %s314 = sphi 0, %s300
      %s318 = sphi 0, %s318
      %s320 = sphi 0, %s318
      %s321 = sphi 0, %s320
      %s335 = sphi 0, %s321
      %s339 = sphi 0, %s339
      %s341 = sphi 0, %s339
      %s342 = sphi 0, %s341
      %s356 = sphi 0, %s342
      %s360 = sphi 0, %s360
      %s362 = sphi 0, %s360
      %s363 = sphi 0, %s362
      %s377 = sphi 0, %s363
      %s381 = sphi 0, %s381
      %s383 = sphi 0, %s381
      %s384 = sphi 0, %s383
      %s398 = sphi 0, %s384
      %s402 = sphi 0, %s402
      %s404 = sphi 0, %s402
      %s405 = sphi 0, %s404
      %s419 = sphi 0, %s405
      %s423 = sphi 0, %s423
      %s425 = sphi 0, %s423
      %s426 = sphi 0, %s425
      %s440 = sphi 0, %s426
      %s444 = sphi 0, %s444
      %s446 = sphi 0, %s444
      %s447 = sphi 0, %s446
      %s461 = sphi 0, %s447
      %s465 = sphi 0, %s465
      %s467 = sphi 0, %s465
      %s468 = sphi 0, %s467
      %s482 = sphi 0, %s468
      %s486 = sphi 0, %s486
      %s488 = sphi 0, %s486
      %s489 = sphi 0, %s488
      %s503 = sphi 0, %s489
      %s507 = sphi 0, %s507
      %s509 = sphi 0, %s507
      %s510 = sphi 0, %s509
      %s524 = sphi 0, %s510
      %s530 = sphi 0, %s532
      %s533 = sphi 0, %s530
      %s534 = sphi 0, %s533
      %s550 = sphi 0, %s534
    $region4: #{shallow_module_forward.1} parent=1 // loop_header_branch
      %35 = sbr.rel (%p33) target = $region8
    $region5: #{shallow_module_forward.1} parent=1 // loop_body
      %s37 = ssub.s32 %s32, 1
      %s38 = ssub.s32 %s32, 2
      %s39 = sadd.s32 %s32, 1
      %s40 = ssub.s32 %s32, %s39
      %p41 = scmp.eq.s32.totalorder %s40, 0
      %s43 = sadd.s32 %s42, 1
      %s44 = scalar_select %p41, %s42, %s43
      %p47 = pneg %p41
      %p48 = scmp.eq.s32.totalorder %s32, 1
      %p49 = por %p47, %p48
      %p50 = scmp.ne.s32.totalorder %s42, %s45
      %p51 = scmp.eq.s32.totalorder %s32, 0
      %p52 = por %p50, %p51
      %p53 = scmp.ne.s32.totalorder %s42, %s45
      %p54 = scmp.eq.s32.totalorder %s37, 1
      %p55 = por %p53, %p54
      %p56 = scmp.ne.s32.totalorder %s45, %s46
      %p57 = scmp.eq.s32.totalorder %s37, 0
      %p58 = por %p56, %p57
      %p59 = scmp.ne.s32.totalorder %s45, %s46
      %p60 = scmp.eq.s32.totalorder %s38, 1
      %p61 = por %p59, %p60
      %p63 = scmp.ne.s32.totalorder %s46, %s62
      %p64 = scmp.eq.s32.totalorder %s38, 0
      %p65 = por %p63, %p64
      %s67 = sadd.s32 %s66, 1
      %p70 = scmp.eq.s32.totalorder %s32, 1
      %p71 = scmp.ne.s32.totalorder %s66, %s68
      %p72 = scmp.eq.s32.totalorder %s32, 0
      %p73 = por %p71, %p72
      %p74 = scmp.ne.s32.totalorder %s66, %s68
      %p75 = scmp.eq.s32.totalorder %s37, 1
      %p76 = por %p74, %p75
      %p77 = scmp.ne.s32.totalorder %s68, %s69
      %p78 = scmp.eq.s32.totalorder %s37, 0
      %p79 = por %p77, %p78
      %p80 = scmp.ne.s32.totalorder %s68, %s69
      %p81 = scmp.eq.s32.totalorder %s38, 1
      %p82 = por %p80, %p81
      %p84 = scmp.ne.s32.totalorder %s69, %s83
      %p85 = scmp.eq.s32.totalorder %s38, 0
      %p86 = por %p84, %p85
      %s88 = sadd.s32 %s87, 1
      %p91 = scmp.eq.s32.totalorder %s32, 1
      %p92 = scmp.ne.s32.totalorder %s87, %s89
      %p93 = scmp.eq.s32.totalorder %s32, 0
      %p94 = por %p92, %p93
      %p95 = scmp.ne.s32.totalorder %s87, %s89
      %p96 = scmp.eq.s32.totalorder %s37, 1
      %p97 = por %p95, %p96
      %p98 = scmp.ne.s32.totalorder %s89, %s90
      %p99 = scmp.eq.s32.totalorder %s37, 0
      %p100 = por %p98, %p99
      %p101 = scmp.ne.s32.totalorder %s89, %s90
      %p102 = scmp.eq.s32.totalorder %s38, 1
      %p103 = por %p101, %p102
      %p105 = scmp.ne.s32.totalorder %s90, %s104
      %p106 = scmp.eq.s32.totalorder %s38, 0
      %p107 = por %p105, %p106
      %s109 = sadd.s32 %s108, 1
      %p112 = scmp.eq.s32.totalorder %s32, 1
      %p113 = scmp.ne.s32.totalorder %s108, %s110
      %p114 = scmp.eq.s32.totalorder %s32, 0
      %p115 = por %p113, %p114
      %p116 = scmp.ne.s32.totalorder %s108, %s110
      %p117 = scmp.eq.s32.totalorder %s37, 1
      %p118 = por %p116, %p117
      %p119 = scmp.ne.s32.totalorder %s110, %s111
      %p120 = scmp.eq.s32.totalorder %s37, 0
      %p121 = por %p119, %p120
      %p122 = scmp.ne.s32.totalorder %s110, %s111
      %p123 = scmp.eq.s32.totalorder %s38, 1
      %p124 = por %p122, %p123
      %p126 = scmp.ne.s32.totalorder %s111, %s125
      %p127 = scmp.eq.s32.totalorder %s38, 0
      %p128 = por %p126, %p127
      %s130 = sadd.s32 %s129, 1
      %p133 = scmp.eq.s32.totalorder %s32, 1
      %p134 = scmp.ne.s32.totalorder %s129, %s131
      %p135 = scmp.eq.s32.totalorder %s32, 0
      %p136 = por %p134, %p135
      %p137 = scmp.ne.s32.totalorder %s129, %s131
      %p138 = scmp.eq.s32.totalorder %s37, 1
      %p139 = por %p137, %p138
      %p140 = scmp.ne.s32.totalorder %s131, %s132
      %p141 = scmp.eq.s32.totalorder %s37, 0
      %p142 = por %p140, %p141
      %p143 = scmp.ne.s32.totalorder %s131, %s132
      %p144 = scmp.eq.s32.totalorder %s38, 1
      %p145 = por %p143, %p144
      %p147 = scmp.ne.s32.totalorder %s132, %s146
      %p148 = scmp.eq.s32.totalorder %s38, 0
      %p149 = por %p147, %p148
      %s151 = sadd.s32 %s150, 1
      %p154 = scmp.eq.s32.totalorder %s32, 1
      %p155 = scmp.ne.s32.totalorder %s150, %s152
      %p156 = scmp.eq.s32.totalorder %s32, 0
      %p157 = por %p155, %p156
      %p158 = scmp.ne.s32.totalorder %s150, %s152
      %p159 = scmp.eq.s32.totalorder %s37, 1
      %p160 = por %p158, %p159
      %p161 = scmp.ne.s32.totalorder %s152, %s153
      %p162 = scmp.eq.s32.totalorder %s37, 0
      %p163 = por %p161, %p162
      %p164 = scmp.ne.s32.totalorder %s152, %s153
      %p165 = scmp.eq.s32.totalorder %s38, 1
      %p166 = por %p164, %p165
      %p168 = scmp.ne.s32.totalorder %s153, %s167
      %p169 = scmp.eq.s32.totalorder %s38, 0
      %p170 = por %p168, %p169
      %s172 = sadd.s32 %s171, 1
      %p175 = scmp.eq.s32.totalorder %s32, 1
      %p176 = scmp.ne.s32.totalorder %s171, %s173
      %p177 = scmp.eq.s32.totalorder %s32, 0
      %p178 = por %p176, %p177
      %p179 = scmp.ne.s32.totalorder %s171, %s173
      %p180 = scmp.eq.s32.totalorder %s37, 1
      %p181 = por %p179, %p180
      %p182 = scmp.ne.s32.totalorder %s173, %s174
      %p183 = scmp.eq.s32.totalorder %s37, 0
      %p184 = por %p182, %p183
      %p185 = scmp.ne.s32.totalorder %s173, %s174
      %p186 = scmp.eq.s32.totalorder %s38, 1
      %p187 = por %p185, %p186
      %p189 = scmp.ne.s32.totalorder %s174, %s188
      %p190 = scmp.eq.s32.totalorder %s38, 0
      %p191 = por %p189, %p190
      %s193 = sadd.s32 %s192, 1
      %p196 = scmp.eq.s32.totalorder %s32, 1
      %p197 = scmp.ne.s32.totalorder %s192, %s194
      %p198 = scmp.eq.s32.totalorder %s32, 0
      %p199 = por %p197, %p198
      %p200 = scmp.ne.s32.totalorder %s192, %s194
      %p201 = scmp.eq.s32.totalorder %s37, 1
      %p202 = por %p200, %p201
      %p203 = scmp.ne.s32.totalorder %s194, %s195
      %p204 = scmp.eq.s32.totalorder %s37, 0
      %p205 = por %p203, %p204
      %p206 = scmp.ne.s32.totalorder %s194, %s195
      %p207 = scmp.eq.s32.totalorder %s38, 1
      %p208 = por %p206, %p207
      %p210 = scmp.ne.s32.totalorder %s195, %s209
      %p211 = scmp.eq.s32.totalorder %s38, 0
      %p212 = por %p210, %p211
      %s214 = sadd.s32 %s213, 1
      %p217 = scmp.eq.s32.totalorder %s32, 1
      %p218 = scmp.ne.s32.totalorder %s213, %s215
      %p219 = scmp.eq.s32.totalorder %s32, 0
      %p220 = por %p218, %p219
      %p221 = scmp.ne.s32.totalorder %s213, %s215
      %p222 = scmp.eq.s32.totalorder %s37, 1
      %p223 = por %p221, %p222
      %p224 = scmp.ne.s32.totalorder %s215, %s216
      %p225 = scmp.eq.s32.totalorder %s37, 0
      %p226 = por %p224, %p225
      %p227 = scmp.ne.s32.totalorder %s215, %s216
      %p228 = scmp.eq.s32.totalorder %s38, 1
      %p229 = por %p227, %p228
      %p231 = scmp.ne.s32.totalorder %s216, %s230
      %p232 = scmp.eq.s32.totalorder %s38, 0
      %p233 = por %p231, %p232
      %s235 = sadd.s32 %s234, 1
      %p238 = scmp.eq.s32.totalorder %s32, 1
      %p239 = scmp.ne.s32.totalorder %s234, %s236
      %p240 = scmp.eq.s32.totalorder %s32, 0
      %p241 = por %p239, %p240
      %p242 = scmp.ne.s32.totalorder %s234, %s236
      %p243 = scmp.eq.s32.totalorder %s37, 1
      %p244 = por %p242, %p243
      %p245 = scmp.ne.s32.totalorder %s236, %s237
      %p246 = scmp.eq.s32.totalorder %s37, 0
      %p247 = por %p245, %p246
      %p248 = scmp.ne.s32.totalorder %s236, %s237
      %p249 = scmp.eq.s32.totalorder %s38, 1
      %p250 = por %p248, %p249
      %p252 = scmp.ne.s32.totalorder %s237, %s251
      %p253 = scmp.eq.s32.totalorder %s38, 0
      %p254 = por %p252, %p253
      %s256 = sadd.s32 %s255, 1
      %p259 = scmp.eq.s32.totalorder %s32, 1
      %p260 = scmp.ne.s32.totalorder %s255, %s257
      %p261 = scmp.eq.s32.totalorder %s32, 0
      %p262 = por %p260, %p261
      %p263 = scmp.ne.s32.totalorder %s255, %s257
      %p264 = scmp.eq.s32.totalorder %s37, 1
      %p265 = por %p263, %p264
      %p266 = scmp.ne.s32.totalorder %s257, %s258
      %p267 = scmp.eq.s32.totalorder %s37, 0
      %p268 = por %p266, %p267
      %p269 = scmp.ne.s32.totalorder %s257, %s258
      %p270 = scmp.eq.s32.totalorder %s38, 1
      %p271 = por %p269, %p270
      %p273 = scmp.ne.s32.totalorder %s258, %s272
      %p274 = scmp.eq.s32.totalorder %s38, 0
      %p275 = por %p273, %p274
      %s277 = sadd.s32 %s276, 1
      %p280 = scmp.eq.s32.totalorder %s32, 1
      %p281 = scmp.ne.s32.totalorder %s276, %s278
      %p282 = scmp.eq.s32.totalorder %s32, 0
      %p283 = por %p281, %p282
      %p284 = scmp.ne.s32.totalorder %s276, %s278
      %p285 = scmp.eq.s32.totalorder %s37, 1
      %p286 = por %p284, %p285
      %p287 = scmp.ne.s32.totalorder %s278, %s279
      %p288 = scmp.eq.s32.totalorder %s37, 0
      %p289 = por %p287, %p288
      %p290 = scmp.ne.s32.totalorder %s278, %s279
      %p291 = scmp.eq.s32.totalorder %s38, 1
      %p292 = por %p290, %p291
      %p294 = scmp.ne.s32.totalorder %s279, %s293
      %p295 = scmp.eq.s32.totalorder %s38, 0
      %p296 = por %p294, %p295
      %s298 = sadd.s32 %s297, 1
      %p301 = scmp.eq.s32.totalorder %s32, 1
      %p302 = scmp.ne.s32.totalorder %s297, %s299
      %p303 = scmp.eq.s32.totalorder %s32, 0
      %p304 = por %p302, %p303
      %p305 = scmp.ne.s32.totalorder %s297, %s299
      %p306 = scmp.eq.s32.totalorder %s37, 1
      %p307 = por %p305, %p306
      %p308 = scmp.ne.s32.totalorder %s299, %s300
      %p309 = scmp.eq.s32.totalorder %s37, 0
      %p310 = por %p308, %p309
      %p311 = scmp.ne.s32.totalorder %s299, %s300
      %p312 = scmp.eq.s32.totalorder %s38, 1
      %p313 = por %p311, %p312
      %p315 = scmp.ne.s32.totalorder %s300, %s314
      %p316 = scmp.eq.s32.totalorder %s38, 0
      %p317 = por %p315, %p316
      %s319 = sadd.s32 %s318, 1
      %p322 = scmp.eq.s32.totalorder %s32, 1
      %p323 = scmp.ne.s32.totalorder %s318, %s320
      %p324 = scmp.eq.s32.totalorder %s32, 0
      %p325 = por %p323, %p324
      %p326 = scmp.ne.s32.totalorder %s318, %s320
      %p327 = scmp.eq.s32.totalorder %s37, 1
      %p328 = por %p326, %p327
      %p329 = scmp.ne.s32.totalorder %s320, %s321
      %p330 = scmp.eq.s32.totalorder %s37, 0
      %p331 = por %p329, %p330
      %p332 = scmp.ne.s32.totalorder %s320, %s321
      %p333 = scmp.eq.s32.totalorder %s38, 1
      %p334 = por %p332, %p333
      %p336 = scmp.ne.s32.totalorder %s321, %s335
      %p337 = scmp.eq.s32.totalorder %s38, 0
      %p338 = por %p336, %p337
      %s340 = sadd.s32 %s339, 1
      %p343 = scmp.eq.s32.totalorder %s32, 1
      %p344 = scmp.ne.s32.totalorder %s339, %s341
      %p345 = scmp.eq.s32.totalorder %s32, 0
      %p346 = por %p344, %p345
      %p347 = scmp.ne.s32.totalorder %s339, %s341
      %p348 = scmp.eq.s32.totalorder %s37, 1
      %p349 = por %p347, %p348
      %p350 = scmp.ne.s32.totalorder %s341, %s342
      %p351 = scmp.eq.s32.totalorder %s37, 0
      %p352 = por %p350, %p351
      %p353 = scmp.ne.s32.totalorder %s341, %s342
      %p354 = scmp.eq.s32.totalorder %s38, 1
      %p355 = por %p353, %p354
      %p357 = scmp.ne.s32.totalorder %s342, %s356
      %p358 = scmp.eq.s32.totalorder %s38, 0
      %p359 = por %p357, %p358
      %s361 = sadd.s32 %s360, 1
      %p364 = scmp.eq.s32.totalorder %s32, 1
      %p365 = scmp.ne.s32.totalorder %s360, %s362
      %p366 = scmp.eq.s32.totalorder %s32, 0
      %p367 = por %p365, %p366
      %p368 = scmp.ne.s32.totalorder %s360, %s362
      %p369 = scmp.eq.s32.totalorder %s37, 1
      %p370 = por %p368, %p369
      %p371 = scmp.ne.s32.totalorder %s362, %s363
      %p372 = scmp.eq.s32.totalorder %s37, 0
      %p373 = por %p371, %p372
      %p374 = scmp.ne.s32.totalorder %s362, %s363
      %p375 = scmp.eq.s32.totalorder %s38, 1
      %p376 = por %p374, %p375
      %p378 = scmp.ne.s32.totalorder %s363, %s377
      %p379 = scmp.eq.s32.totalorder %s38, 0
      %p380 = por %p378, %p379
      %s382 = sadd.s32 %s381, 1
      %p385 = scmp.eq.s32.totalorder %s32, 1
      %p386 = scmp.ne.s32.totalorder %s381, %s383
      %p387 = scmp.eq.s32.totalorder %s32, 0
      %p388 = por %p386, %p387
      %p389 = scmp.ne.s32.totalorder %s381, %s383
      %p390 = scmp.eq.s32.totalorder %s37, 1
      %p391 = por %p389, %p390
      %p392 = scmp.ne.s32.totalorder %s383, %s384
      %p393 = scmp.eq.s32.totalorder %s37, 0
      %p394 = por %p392, %p393
      %p395 = scmp.ne.s32.totalorder %s383, %s384
      %p396 = scmp.eq.s32.totalorder %s38, 1
      %p397 = por %p395, %p396
      %p399 = scmp.ne.s32.totalorder %s384, %s398
      %p400 = scmp.eq.s32.totalorder %s38, 0
      %p401 = por %p399, %p400
      %s403 = sadd.s32 %s402, 1
      %p406 = scmp.eq.s32.totalorder %s32, 1
      %p407 = scmp.ne.s32.totalorder %s402, %s404
      %p408 = scmp.eq.s32.totalorder %s32, 0
      %p409 = por %p407, %p408
      %p410 = scmp.ne.s32.totalorder %s402, %s404
      %p411 = scmp.eq.s32.totalorder %s37, 1
      %p412 = por %p410, %p411
      %p413 = scmp.ne.s32.totalorder %s404, %s405
      %p414 = scmp.eq.s32.totalorder %s37, 0
      %p415 = por %p413, %p414
      %p416 = scmp.ne.s32.totalorder %s404, %s405
      %p417 = scmp.eq.s32.totalorder %s38, 1
      %p418 = por %p416, %p417
      %p420 = scmp.ne.s32.totalorder %s405, %s419
      %p421 = scmp.eq.s32.totalorder %s38, 0
      %p422 = por %p420, %p421
      %s424 = sadd.s32 %s423, 1
      %p427 = scmp.eq.s32.totalorder %s32, 1
      %p428 = scmp.ne.s32.totalorder %s423, %s425
      %p429 = scmp.eq.s32.totalorder %s32, 0
      %p430 = por %p428, %p429
      %p431 = scmp.ne.s32.totalorder %s423, %s425
      %p432 = scmp.eq.s32.totalorder %s37, 1
      %p433 = por %p431, %p432
      %p434 = scmp.ne.s32.totalorder %s425, %s426
      %p435 = scmp.eq.s32.totalorder %s37, 0
      %p436 = por %p434, %p435
      %p437 = scmp.ne.s32.totalorder %s425, %s426
      %p438 = scmp.eq.s32.totalorder %s38, 1
      %p439 = por %p437, %p438
      %p441 = scmp.ne.s32.totalorder %s426, %s440
      %p442 = scmp.eq.s32.totalorder %s38, 0
      %p443 = por %p441, %p442
      %s445 = sadd.s32 %s444, 1
      %p448 = scmp.eq.s32.totalorder %s32, 1
      %p449 = scmp.ne.s32.totalorder %s444, %s446
      %p450 = scmp.eq.s32.totalorder %s32, 0
      %p451 = por %p449, %p450
      %p452 = scmp.ne.s32.totalorder %s444, %s446
      %p453 = scmp.eq.s32.totalorder %s37, 1
      %p454 = por %p452, %p453
      %p455 = scmp.ne.s32.totalorder %s446, %s447
      %p456 = scmp.eq.s32.totalorder %s37, 0
      %p457 = por %p455, %p456
      %p458 = scmp.ne.s32.totalorder %s446, %s447
      %p459 = scmp.eq.s32.totalorder %s38, 1
      %p460 = por %p458, %p459
      %p462 = scmp.ne.s32.totalorder %s447, %s461
      %p463 = scmp.eq.s32.totalorder %s38, 0
      %p464 = por %p462, %p463
      %s466 = sadd.s32 %s465, 1
      %p469 = scmp.eq.s32.totalorder %s32, 1
      %p470 = scmp.ne.s32.totalorder %s465, %s467
      %p471 = scmp.eq.s32.totalorder %s32, 0
      %p472 = por %p470, %p471
      %p473 = scmp.ne.s32.totalorder %s465, %s467
      %p474 = scmp.eq.s32.totalorder %s37, 1
      %p475 = por %p473, %p474
      %p476 = scmp.ne.s32.totalorder %s467, %s468
      %p477 = scmp.eq.s32.totalorder %s37, 0
      %p478 = por %p476, %p477
      %p479 = scmp.ne.s32.totalorder %s467, %s468
      %p480 = scmp.eq.s32.totalorder %s38, 1
      %p481 = por %p479, %p480
      %p483 = scmp.ne.s32.totalorder %s468, %s482
      %p484 = scmp.eq.s32.totalorder %s38, 0
      %p485 = por %p483, %p484
      %s487 = sadd.s32 %s486, 1
      %p490 = scmp.eq.s32.totalorder %s32, 1
      %p491 = scmp.ne.s32.totalorder %s486, %s488
      %p492 = scmp.eq.s32.totalorder %s32, 0
      %p493 = por %p491, %p492
      %p494 = scmp.ne.s32.totalorder %s486, %s488
      %p495 = scmp.eq.s32.totalorder %s37, 1
      %p496 = por %p494, %p495
      %p497 = scmp.ne.s32.totalorder %s488, %s489
      %p498 = scmp.eq.s32.totalorder %s37, 0
      %p499 = por %p497, %p498
      %p500 = scmp.ne.s32.totalorder %s488, %s489
      %p501 = scmp.eq.s32.totalorder %s38, 1
      %p502 = por %p500, %p501
      %p504 = scmp.ne.s32.totalorder %s489, %s503
      %p505 = scmp.eq.s32.totalorder %s38, 0
      %p506 = por %p504, %p505
      %s508 = sadd.s32 %s507, 1
      %p511 = scmp.eq.s32.totalorder %s32, 1
      %p512 = scmp.ne.s32.totalorder %s507, %s509
      %p513 = scmp.eq.s32.totalorder %s32, 0
      %p514 = por %p512, %p513
      %p515 = scmp.ne.s32.totalorder %s507, %s509
      %p516 = scmp.eq.s32.totalorder %s37, 1
      %p517 = por %p515, %p516
      %p518 = scmp.ne.s32.totalorder %s509, %s510
      %p519 = scmp.eq.s32.totalorder %s37, 0
      %p520 = por %p518, %p519
      %p521 = scmp.ne.s32.totalorder %s509, %s510
      %p522 = scmp.eq.s32.totalorder %s38, 1
      %p523 = por %p521, %p522
      %p525 = scmp.ne.s32.totalorder %s510, %s524
      %p526 = scmp.eq.s32.totalorder %s38, 0
      %p527 = por %p525, %p526
      %s528 = ssub.s32 %s32, %s39
      %p529 = scmp.eq.s32.totalorder %s528, 0
      %s531 = sadd.s32 %s530, 1
      %s532 = scalar_select %p529, %s530, %s531
      %p535 = pneg %p529
      %p536 = scmp.eq.s32.totalorder %s32, 1
      %p537 = por %p535, %p536
      %p538 = scmp.ne.s32.totalorder %s530, %s533
      %p539 = scmp.eq.s32.totalorder %s32, 0
      %p540 = por %p538, %p539
      %p541 = scmp.ne.s32.totalorder %s530, %s533
      %p542 = scmp.eq.s32.totalorder %s37, 1
      %p543 = por %p541, %p542
      %p544 = scmp.ne.s32.totalorder %s533, %s534
      %p545 = scmp.eq.s32.totalorder %s37, 0
      %p546 = por %p544, %p545
      %p547 = scmp.ne.s32.totalorder %s533, %s534
      %p548 = scmp.eq.s32.totalorder %s38, 1
      %p549 = por %p547, %p548
      %p551 = scmp.ne.s32.totalorder %s534, %s550
      %p552 = scmp.eq.s32.totalorder %s38, 0
      %p553 = por %p551, %p552
      %p554 = scmp.le.s32.totalorder 1, %s32
      %p555 = scmp.lt.s32.totalorder %s32, 3
      %p556 = pnand %p554, %p555
      %p557 = pneg %p556
      // Predicated region
      $region9: #{shallow_module_forward.1} parent=5 // pred_check
        _
      $region10: #{shallow_module_forward.1} parent=5 // pred_check_branch
        %559 = sbr.rel (%p556) target = $region12
      $region11: #{shallow_module_forward.1} parent=5 // pred_region
        %s560 = ssub.s32 %s32, 1
        // Predicated region
        $region13: #{shallow_module_forward.1} parent=11 // pred_check
          %p561 = pneg %p79
        $region14: #{shallow_module_forward.1} parent=11 // pred_check_branch
          %563 = sbr.rel (%p561) target = $region16
        $region15: #{shallow_module_forward.1} parent=11 // pred_region
          _
        $region16: #{shallow_module_forward.1} parent=11 // pred_fallthru
          _
        // Predicated region
        $region17: #{shallow_module_forward.1} parent=11 // pred_check
          %p564 = pneg %p100
        $region18: #{shallow_module_forward.1} parent=11 // pred_check_branch
          %566 = sbr.rel (%p564) target = $region20
        $region19: #{shallow_module_forward.1} parent=11 // pred_region
          _
        $region20: #{shallow_module_forward.1} parent=11 // pred_fallthru
          _
        // Predicated region
        $region21: #{shallow_module_forward.1} parent=11 // pred_check
          %p567 = pneg %p121
        $region22: #{shallow_module_forward.1} parent=11 // pred_check_branch
          %569 = sbr.rel (%p567) target = $region24
        $region23: #{shallow_module_forward.1} parent=11 // pred_region
          _
        $region24: #{shallow_module_forward.1} parent=11 // pred_fallthru
          _
        // Predicated region
        $region25: #{shallow_module_forward.1} parent=11 // pred_check
          %p570 = pneg %p142
        $region26: #{shallow_module_forward.1} parent=11 // pred_check_branch
          %572 = sbr.rel (%p570) target = $region28
        $region27: #{shallow_module_forward.1} parent=11 // pred_region
          _
        $region28: #{shallow_module_forward.1} parent=11 // pred_fallthru
          _
        // Predicated region
        $region29: #{shallow_module_forward.1} parent=11 // pred_check
          %p573 = pneg %p163
        $region30: #{shallow_module_forward.1} parent=11 // pred_check_branch
          %575 = sbr.rel (%p573) target = $region32
        $region31: #{shallow_module_forward.1} parent=11 // pred_region
          _
        $region32: #{shallow_module_forward.1} parent=11 // pred_fallthru
          _
        // Predicated region
        $region33: #{shallow_module_forward.1} parent=11 // pred_check
          %p576 = pneg %p184
        $region34: #{shallow_module_forward.1} parent=11 // pred_check_branch
          %578 = sbr.rel (%p576) target = $region36
        $region35: #{shallow_module_forward.1} parent=11 // pred_region
          _
        $region36: #{shallow_module_forward.1} parent=11 // pred_fallthru
          _
        // Predicated region
        $region37: #{shallow_module_forward.1} parent=11 // pred_check
          %p579 = pneg %p205
        $region38: #{shallow_module_forward.1} parent=11 // pred_check_branch
          %581 = sbr.rel (%p579) target = $region40
        $region39: #{shallow_module_forward.1} parent=11 // pred_region
          _
        $region40: #{shallow_module_forward.1} parent=11 // pred_fallthru
          _
        // Predicated region
        $region41: #{shallow_module_forward.1} parent=11 // pred_check
          %p582 = pneg %p226
        $region42: #{shallow_module_forward.1} parent=11 // pred_check_branch
          %584 = sbr.rel (%p582) target = $region44
        $region43: #{shallow_module_forward.1} parent=11 // pred_region
          _
        $region44: #{shallow_module_forward.1} parent=11 // pred_fallthru
          _
        // Predicated region
        $region45: #{shallow_module_forward.1} parent=11 // pred_check
          %p585 = pneg %p247
        $region46: #{shallow_module_forward.1} parent=11 // pred_check_branch
          %587 = sbr.rel (%p585) target = $region48
        $region47: #{shallow_module_forward.1} parent=11 // pred_region
          _
        $region48: #{shallow_module_forward.1} parent=11 // pred_fallthru
          _
        // Predicated region
        $region49: #{shallow_module_forward.1} parent=11 // pred_check
          %p588 = pneg %p268
        $region50: #{shallow_module_forward.1} parent=11 // pred_check_branch
          %590 = sbr.rel (%p588) target = $region52
        $region51: #{shallow_module_forward.1} parent=11 // pred_region
          _
        $region52: #{shallow_module_forward.1} parent=11 // pred_fallthru
          _
        // Predicated region
        $region53: #{shallow_module_forward.1} parent=11 // pred_check
          %p591 = pneg %p289
        $region54: #{shallow_module_forward.1} parent=11 // pred_check_branch
          %593 = sbr.rel (%p591) target = $region56
        $region55: #{shallow_module_forward.1} parent=11 // pred_region
          _
        $region56: #{shallow_module_forward.1} parent=11 // pred_fallthru
          _
        // Predicated region
        $region57: #{shallow_module_forward.1} parent=11 // pred_check
          %p594 = pneg %p310
        $region58: #{shallow_module_forward.1} parent=11 // pred_check_branch
          %596 = sbr.rel (%p594) target = $region60
        $region59: #{shallow_module_forward.1} parent=11 // pred_region
          _
        $region60: #{shallow_module_forward.1} parent=11 // pred_fallthru
          _
        // Predicated region
        $region61: #{shallow_module_forward.1} parent=11 // pred_check
          %p597 = pneg %p331
        $region62: #{shallow_module_forward.1} parent=11 // pred_check_branch
          %599 = sbr.rel (%p597) target = $region64
        $region63: #{shallow_module_forward.1} parent=11 // pred_region
          _
        $region64: #{shallow_module_forward.1} parent=11 // pred_fallthru
          _
        // Predicated region
        $region65: #{shallow_module_forward.1} parent=11 // pred_check
          %p600 = pneg %p352
        $region66: #{shallow_module_forward.1} parent=11 // pred_check_branch
          %602 = sbr.rel (%p600) target = $region68
        $region67: #{shallow_module_forward.1} parent=11 // pred_region
          _
        $region68: #{shallow_module_forward.1} parent=11 // pred_fallthru
          _
        // Predicated region
        $region69: #{shallow_module_forward.1} parent=11 // pred_check
          %p603 = pneg %p373
        $region70: #{shallow_module_forward.1} parent=11 // pred_check_branch
          %605 = sbr.rel (%p603) target = $region72
        $region71: #{shallow_module_forward.1} parent=11 // pred_region
          _
        $region72: #{shallow_module_forward.1} parent=11 // pred_fallthru
          _
        // Predicated region
        $region73: #{shallow_module_forward.1} parent=11 // pred_check
          %p606 = pneg %p394
        $region74: #{shallow_module_forward.1} parent=11 // pred_check_branch
          %608 = sbr.rel (%p606) target = $region76
        $region75: #{shallow_module_forward.1} parent=11 // pred_region
          _
        $region76: #{shallow_module_forward.1} parent=11 // pred_fallthru
          _
        // Predicated region
        $region77: #{shallow_module_forward.1} parent=11 // pred_check
          %p609 = pneg %p415
        $region78: #{shallow_module_forward.1} parent=11 // pred_check_branch
          %611 = sbr.rel (%p609) target = $region80
        $region79: #{shallow_module_forward.1} parent=11 // pred_region
          _
        $region80: #{shallow_module_forward.1} parent=11 // pred_fallthru
          _
        // Predicated region
        $region81: #{shallow_module_forward.1} parent=11 // pred_check
          %p612 = pneg %p436
        $region82: #{shallow_module_forward.1} parent=11 // pred_check_branch
          %614 = sbr.rel (%p612) target = $region84
        $region83: #{shallow_module_forward.1} parent=11 // pred_region
          _
        $region84: #{shallow_module_forward.1} parent=11 // pred_fallthru
          _
        // Predicated region
        $region85: #{shallow_module_forward.1} parent=11 // pred_check
          %p615 = pneg %p457
        $region86: #{shallow_module_forward.1} parent=11 // pred_check_branch
          %617 = sbr.rel (%p615) target = $region88
        $region87: #{shallow_module_forward.1} parent=11 // pred_region
          _
        $region88: #{shallow_module_forward.1} parent=11 // pred_fallthru
          _
        // Predicated region
        $region89: #{shallow_module_forward.1} parent=11 // pred_check
          %p618 = pneg %p478
        $region90: #{shallow_module_forward.1} parent=11 // pred_check_branch
          %620 = sbr.rel (%p618) target = $region92
        $region91: #{shallow_module_forward.1} parent=11 // pred_region
          _
        $region92: #{shallow_module_forward.1} parent=11 // pred_fallthru
          _
        // Predicated region
        $region93: #{shallow_module_forward.1} parent=11 // pred_check
          %p621 = pneg %p499
        $region94: #{shallow_module_forward.1} parent=11 // pred_check_branch
          %623 = sbr.rel (%p621) target = $region96
        $region95: #{shallow_module_forward.1} parent=11 // pred_region
          _
        $region96: #{shallow_module_forward.1} parent=11 // pred_fallthru
          _
        // Predicated region
        $region97: #{shallow_module_forward.1} parent=11 // pred_check
          %p624 = pneg %p520
        $region98: #{shallow_module_forward.1} parent=11 // pred_check_branch
          %626 = sbr.rel (%p624) target = $region100
        $region99: #{shallow_module_forward.1} parent=11 // pred_region
          _
        $region100: #{shallow_module_forward.1} parent=11 // pred_fallthru
          _
      $region12: #{shallow_module_forward.1} parent=5 // pred_fallthru
        _
      %p627 = scmp.lt.s32.totalorder %s32, 2
      // Predicated region
      $region101: #{shallow_module_forward.1} parent=5 // pred_check
        %p628 = pneg %p627
      $region102: #{shallow_module_forward.1} parent=5 // pred_check_branch
        %630 = sbr.rel (%p628) target = $region104
      $region103: #{shallow_module_forward.1} parent=5 // pred_region
        // Predicated region
        $region105: #{shallow_module_forward.1} parent=103 // pred_check
          %p631 = pneg %p52
        $region106: #{shallow_module_forward.1} parent=103 // pred_check_branch
          %633 = sbr.rel (%p631) target = $region108
        $region107: #{shallow_module_forward.1} parent=103 // pred_region
          %s634 = smul.u32 32, %s32
          %p635 = scmp.lt.s32.totalorder %s634, 63
          %s636 = scalar_select %p635, %s634, 63
          %s637 = smul.addr %s636, 2
          %s638 = smul.addr %s637, 4
          %s639 = scalar_lea.vmem %s0, %s638
          %s640 = smul.u32 32, %s32
        $region108: #{shallow_module_forward.1} parent=103 // pred_fallthru
          _
      $region104: #{shallow_module_forward.1} parent=5 // pred_fallthru
        _
      %p641 = scmp.le.s32.totalorder 1, %s32
      %p642 = scmp.lt.s32.totalorder %s32, 3
      %p643 = pnand %p641, %p642
      %p644 = pneg %p643
      // Predicated region
      $region109: #{shallow_module_forward.1} parent=5 // pred_check
        _
      $region110: #{shallow_module_forward.1} parent=5 // pred_check_branch
        %646 = sbr.rel (%p643) target = $region112
      $region111: #{shallow_module_forward.1} parent=5 // pred_region
        %s647 = ssub.s32 %s32, 1
        %s648 = smul.u32 32, %s37
        %p649 = scmp.lt.s32.totalorder %s648, 63
        %s650 = scalar_select %p649, %s648, 63
        %s651 = smul.addr %s650, 2
        %s652 = smul.addr %s651, 4
        %s653 = scalar_lea.vmem %s0, %s652
        %p654 = pneg %p58
        %p655 = pneg %p55
        %p656 = pneg %p79
        %p657 = pneg %p76
        %p658 = pneg %p100
        %p659 = pneg %p97
        %p660 = pneg %p121
        %p661 = pneg %p118
        %p662 = pneg %p142
        %p663 = pneg %p139
        %p664 = pneg %p163
        %p665 = pneg %p160
        %p666 = pneg %p184
        %p667 = pneg %p181
        %p668 = pneg %p205
        %p669 = pneg %p202
        %p670 = pneg %p226
        %p671 = pneg %p223
        %p672 = pneg %p247
        %p673 = pneg %p244
        %p674 = pneg %p268
        %p675 = pneg %p265
        %p676 = pneg %p289
        %p677 = pneg %p286
        %p678 = pneg %p310
        %p679 = pneg %p307
        %p680 = pneg %p331
        %p681 = pneg %p328
        %p682 = pneg %p352
        %p683 = pneg %p349
        %p684 = pneg %p373
        %p685 = pneg %p370
        %p686 = pneg %p394
        %p687 = pneg %p391
        %p688 = pneg %p415
        %p689 = pneg %p412
        %p690 = pneg %p436
        %p691 = pneg %p433
        %p692 = pneg %p457
        %p693 = pneg %p454
        %p694 = pneg %p478
        %p695 = pneg %p475
        %p696 = pneg %p499
        %p697 = pneg %p496
        %p698 = pneg %p520
        %p699 = pneg %p517
        %p700 = pneg %p546
        %p701 = pneg %p543
        %s702 = sand.u32 %s533, 1
        %s703 = scalar_lea.sflag [#allocation6], %s702
        %s704 = sand.u32 %s533, 1
        %s705 = smul.addr %s704, 128
        %s706 = scalar_lea.vmem [#allocation5], %s705
        %s707 = smul.u32 32, %s37
        %p708 = scmp.lt.s32.totalorder %s707, 63
        %s709 = scalar_select %p708, %s707, 63
        %s710 = smul.addr %s709, 2
        %s711 = smul.addr %s710, 4
        %s712 = scalar_lea.vmem %s0, %s711
        %s713 = smul.u32 32, %s37
        %v715 = vld [vmem:[%s712] sm:$0xff]
        %v716 = vld [vmem:[%s712 + $0x8] sm:$0xff]
        %v717 = vld [vmem:[%s712 + $0x10] sm:$0xff]
        %v718 = vld [vmem:[%s712 + $0x18] sm:$0xff]
        %v719 = vld [vmem:[%s712 + $0x20] sm:$0xff]
        %v720 = vld [vmem:[%s712 + $0x28] sm:$0xff]
        %v721 = vld [vmem:[%s712 + $0x30] sm:$0xff]
        %v722 = vld [vmem:[%s712 + $0x38] sm:$0xff]
        %v723 = vld [vmem:[%s712 + $0x40] sm:$0xff]
        %v724 = vld [vmem:[%s712 + $0x48] sm:$0xff]
        %v725 = vld [vmem:[%s712 + $0x50] sm:$0xff]
        %v726 = vld [vmem:[%s712 + $0x58] sm:$0xff]
        %v727 = vld [vmem:[%s712 + $0x60] sm:$0xff]
        %v728 = vld [vmem:[%s712 + $0x68] sm:$0xff]
        %v729 = vld [vmem:[%s712 + $0x70] sm:$0xff]
        %v730 = vld [vmem:[%s712 + $0x78] sm:$0xff]
        %v731 = vld [vmem:[%s712 + $0x80] sm:$0xff]
        %v732 = vld [vmem:[%s712 + $0x88] sm:$0xff]
        %v733 = vld [vmem:[%s712 + $0x90] sm:$0xff]
        %v734 = vld [vmem:[%s712 + $0x98] sm:$0xff]
        %v735 = vld [vmem:[%s712 + $0xa0] sm:$0xff]
        %v736 = vld [vmem:[%s712 + $0xa8] sm:$0xff]
        %v737 = vld [vmem:[%s712 + $0xb0] sm:$0xff]
        %v738 = vld [vmem:[%s712 + $0xb8] sm:$0xff]
        %v739 = vld [vmem:[%s712 + $0xc0] sm:$0xff]
        %v740 = vld [vmem:[%s712 + $0xc8] sm:$0xff]
        %v741 = vld [vmem:[%s712 + $0xd0] sm:$0xff]
        %v742 = vld [vmem:[%s712 + $0xd8] sm:$0xff]
        %v743 = vld [vmem:[%s712 + $0xe0] sm:$0xff]
        %v744 = vld [vmem:[%s712 + $0xe8] sm:$0xff]
        %v745 = vld [vmem:[%s712 + $0xf0] sm:$0xff]
        %v746 = vld [vmem:[%s712 + $0xf8] sm:$0xff]
        %v747 = vld [vmem:[%s1] sm:$0xf]
        %v748 = vld [vmem:[%s1 + $0x4] sm:$0xf]
        %v749 = vld [vmem:[%s1 + $0x8] sm:$0xf]
        %v750 = vld [vmem:[%s1 + $0xc] sm:$0xf]
        %v751 = vld [vmem:[%s1 + $0x10] sm:$0xf]
        %v752 = vld [vmem:[%s1 + $0x14] sm:$0xf]
        %v753 = vld [vmem:[%s1 + $0x18] sm:$0xf]
        %v754 = vld [vmem:[%s1 + $0x1c] sm:$0xf]
        %v755 = vld [vmem:[%s1 + $0x20] sm:$0xf]
        %v756 = vld [vmem:[%s1 + $0x24] sm:$0xf]
        %v757 = vld [vmem:[%s1 + $0x28] sm:$0xf]
        %v758 = vld [vmem:[%s1 + $0x2c] sm:$0xf]
        %v759 = vld [vmem:[%s1 + $0x30] sm:$0xf]
        %v760 = vld [vmem:[%s1 + $0x34] sm:$0xf]
        %v761 = vld [vmem:[%s1 + $0x38] sm:$0xf]
        %v762 = vld [vmem:[%s1 + $0x3c] sm:$0xf]
        %v763 = vld [vmem:[%s1 + $0x40] sm:$0xf]
        %v764 = vld [vmem:[%s1 + $0x44] sm:$0xf]
        %v765 = vld [vmem:[%s1 + $0x48] sm:$0xf]
        %v766 = vld [vmem:[%s1 + $0x4c] sm:$0xf]
        %v767 = vld [vmem:[%s1 + $0x50] sm:$0xf]
        %v768 = vld [vmem:[%s1 + $0x54] sm:$0xf]
        %v769 = vld [vmem:[%s1 + $0x58] sm:$0xf]
        %v770 = vld [vmem:[%s1 + $0x5c] sm:$0xf]
        %v771 = vld [vmem:[%s1 + $0x60] sm:$0xf]
        %v772 = vld [vmem:[%s1 + $0x64] sm:$0xf]
        %v773 = vld [vmem:[%s1 + $0x68] sm:$0xf]
        %v774 = vld [vmem:[%s1 + $0x6c] sm:$0xf]
        %v775 = vld [vmem:[%s1 + $0x70] sm:$0xf]
        %v776 = vld [vmem:[%s1 + $0x74] sm:$0xf]
        %v777 = vld [vmem:[%s1 + $0x78] sm:$0xf]
        %v778 = vld [vmem:[%s1 + $0x7c] sm:$0xf]
        %v779 = vld [vmem:[%s2] sm:$0x1]
        %v781 = vlaneseq
        %v782 = vshrl.u32 %v781, 7
        %v783 = vsub.s32 0, %v782
        %v784 = vrot.slane %v779, %v783
        %v818 = vunpack.c.l.b16 %v715
        %v819 = vunpack.c.h.b16 %v715
        %v820 = vunpack.c.l.b16 %v716
        %v821 = vunpack.c.h.b16 %v716
        %v822 = vunpack.c.l.b16 %v717
        %v823 = vunpack.c.h.b16 %v717
        %v824 = vunpack.c.l.b16 %v718
        %v825 = vunpack.c.h.b16 %v718
        %v826 = vunpack.c.l.b16 %v719
        %v827 = vunpack.c.h.b16 %v719
        %v828 = vunpack.c.l.b16 %v720
        %v829 = vunpack.c.h.b16 %v720
        %v830 = vunpack.c.l.b16 %v721
        %v831 = vunpack.c.h.b16 %v721
        %v832 = vunpack.c.l.b16 %v722
        %v833 = vunpack.c.h.b16 %v722
        %v834 = vunpack.c.l.b16 %v723
        %v835 = vunpack.c.h.b16 %v723
        %v836 = vunpack.c.l.b16 %v724
        %v837 = vunpack.c.h.b16 %v724
        %v838 = vunpack.c.l.b16 %v725
        %v839 = vunpack.c.h.b16 %v725
        %v840 = vunpack.c.l.b16 %v726
        %v841 = vunpack.c.h.b16 %v726
        %v842 = vunpack.c.l.b16 %v727
        %v843 = vunpack.c.h.b16 %v727
        %v844 = vunpack.c.l.b16 %v728
        %v845 = vunpack.c.h.b16 %v728
        %v846 = vunpack.c.l.b16 %v729
        %v847 = vunpack.c.h.b16 %v729
        %v848 = vunpack.c.l.b16 %v730
        %v849 = vunpack.c.h.b16 %v730
        %v850 = vunpack.c.l.b16 %v731
        %v851 = vunpack.c.h.b16 %v731
        %v852 = vunpack.c.l.b16 %v732
        %v853 = vunpack.c.h.b16 %v732
        %v854 = vunpack.c.l.b16 %v733
        %v855 = vunpack.c.h.b16 %v733
        %v856 = vunpack.c.l.b16 %v734
        %v857 = vunpack.c.h.b16 %v734
        %v858 = vunpack.c.l.b16 %v735
        %v859 = vunpack.c.h.b16 %v735
        %v860 = vunpack.c.l.b16 %v736
        %v861 = vunpack.c.h.b16 %v736
        %v862 = vunpack.c.l.b16 %v737
        %v863 = vunpack.c.h.b16 %v737
        %v864 = vunpack.c.l.b16 %v738
        %v865 = vunpack.c.h.b16 %v738
        %v866 = vunpack.c.l.b16 %v739
        %v867 = vunpack.c.h.b16 %v739
        %v868 = vunpack.c.l.b16 %v740
        %v869 = vunpack.c.h.b16 %v740
        %v870 = vunpack.c.l.b16 %v741
        %v871 = vunpack.c.h.b16 %v741
        %v872 = vunpack.c.l.b16 %v742
        %v873 = vunpack.c.h.b16 %v742
        %v874 = vunpack.c.l.b16 %v743
        %v875 = vunpack.c.h.b16 %v743
        %v876 = vunpack.c.l.b16 %v744
        %v877 = vunpack.c.h.b16 %v744
        %v878 = vunpack.c.l.b16 %v745
        %v879 = vunpack.c.h.b16 %v745
        %v880 = vunpack.c.l.b16 %v746
        %v881 = vunpack.c.h.b16 %v746
        %v882 = vpack.c.b16 %v820, %v818
        %v883 = vpack.c.b16 %v821, %v819
        %v884 = vpack.c.b16 %v824, %v822
        %v885 = vpack.c.b16 %v825, %v823
        %v886 = vpack.c.b16 %v828, %v826
        %v887 = vpack.c.b16 %v829, %v827
        %v888 = vpack.c.b16 %v832, %v830
        %v889 = vpack.c.b16 %v833, %v831
        %v890 = vpack.c.b16 %v836, %v834
        %v891 = vpack.c.b16 %v837, %v835
        %v892 = vpack.c.b16 %v840, %v838
        %v893 = vpack.c.b16 %v841, %v839
        %v894 = vpack.c.b16 %v844, %v842
        %v895 = vpack.c.b16 %v845, %v843
        %v896 = vpack.c.b16 %v848, %v846
        %v897 = vpack.c.b16 %v849, %v847
        %v898 = vpack.c.b16 %v852, %v850
        %v899 = vpack.c.b16 %v853, %v851
        %v900 = vpack.c.b16 %v856, %v854
        %v901 = vpack.c.b16 %v857, %v855
        %v902 = vpack.c.b16 %v860, %v858
        %v903 = vpack.c.b16 %v861, %v859
        %v904 = vpack.c.b16 %v864, %v862
        %v905 = vpack.c.b16 %v865, %v863
        %v906 = vpack.c.b16 %v868, %v866
        %v907 = vpack.c.b16 %v869, %v867
        %v908 = vpack.c.b16 %v872, %v870
        %v909 = vpack.c.b16 %v873, %v871
        %v910 = vpack.c.b16 %v876, %v874
        %v911 = vpack.c.b16 %v877, %v875
        %v912 = vpack.c.b16 %v880, %v878
        %v913 = vpack.c.b16 %v881, %v879
        %v978 = vunpack.c.l.b16 %v747
        %v979 = vunpack.c.l.b16 %v748
        %v980 = vunpack.c.l.b16 %v749
        %v981 = vunpack.c.l.b16 %v750
        %v982 = vunpack.c.l.b16 %v751
        %v983 = vunpack.c.l.b16 %v752
        %v984 = vunpack.c.l.b16 %v753
        %v985 = vunpack.c.l.b16 %v754
        %v986 = vunpack.c.l.b16 %v755
        %v987 = vunpack.c.l.b16 %v756
        %v988 = vunpack.c.l.b16 %v757
        %v989 = vunpack.c.l.b16 %v758
        %v990 = vunpack.c.l.b16 %v759
        %v991 = vunpack.c.l.b16 %v760
        %v992 = vunpack.c.l.b16 %v761
        %v993 = vunpack.c.l.b16 %v762
        %v994 = vunpack.c.l.b16 %v763
        %v995 = vunpack.c.l.b16 %v764
        %v996 = vunpack.c.l.b16 %v765
        %v997 = vunpack.c.l.b16 %v766
        %v998 = vunpack.c.l.b16 %v767
        %v999 = vunpack.c.l.b16 %v768
        %v1000 = vunpack.c.l.b16 %v769
        %v1001 = vunpack.c.l.b16 %v770
        %v1002 = vunpack.c.l.b16 %v771
        %v1003 = vunpack.c.l.b16 %v772
        %v1004 = vunpack.c.l.b16 %v773
        %v1005 = vunpack.c.l.b16 %v774
        %v1006 = vunpack.c.l.b16 %v775
        %v1007 = vunpack.c.l.b16 %v776
        %v1008 = vunpack.c.l.b16 %v777
        %v1009 = vunpack.c.l.b16 %v778
        %v1010 = vpack.c.b16 %v979, %v978
        %v1011 = vpack.c.b16 %v981, %v980
        %v1012 = vpack.c.b16 %v983, %v982
        %v1013 = vpack.c.b16 %v985, %v984
        %v1014 = vpack.c.b16 %v987, %v986
        %v1015 = vpack.c.b16 %v989, %v988
        %v1016 = vpack.c.b16 %v991, %v990
        %v1017 = vpack.c.b16 %v993, %v992
        %v1018 = vpack.c.b16 %v995, %v994
        %v1019 = vpack.c.b16 %v997, %v996
        %v1020 = vpack.c.b16 %v999, %v998
        %v1021 = vpack.c.b16 %v1001, %v1000
        %v1022 = vpack.c.b16 %v1003, %v1002
        %v1023 = vpack.c.b16 %v1005, %v1004
        %v1024 = vpack.c.b16 %v1007, %v1006
        %v1025 = vpack.c.b16 %v1009, %v1008
        %1042 = vmatprep.subr.bf16.mxu0 0
        %1043 = vmatpush1.bf16.msra.mxu0 %v1017
        %1044 = vmatprep.subr.bf16.mxu0 0
        %1045 = vmatpush1.bf16.msra.mxu0 %v1016
        %1046 = vmatprep.subr.bf16.mxu0 0
        %1047 = vmatpush1.bf16.msra.mxu0 %v1015
        %1048 = vmatprep.subr.bf16.mxu0 0
        %1049 = vmatpush1.bf16.msra.mxu0 %v1014
        %1050 = vmatprep.subr.bf16.mxu0 0
        %1051 = vmatpush1.bf16.msra.mxu0 %v1013
        %1052 = vmatprep.subr.bf16.mxu0 0
        %1053 = vmatpush1.bf16.msra.mxu0 %v1012
        %1054 = vmatprep.subr.bf16.mxu0 0
        %1055 = vmatpush1.bf16.msra.mxu0 %v1011
        %1056 = vmatprep.subr.bf16.mxu0 0
        %1057 = vmatpush1.bf16.msra.mxu0 %v1010
        %1058 = vmatprep.subr.bf16.mxu0 0
        %1059 = vmatpush2.bf16.msra.mxu0 %v1025
        %1060 = vmatprep.subr.bf16.mxu0 0
        %1061 = vmatpush2.bf16.msra.mxu0 %v1024
        %1062 = vmatprep.subr.bf16.mxu0 0
        %1063 = vmatpush2.bf16.msra.mxu0 %v1023
        %1064 = vmatprep.subr.bf16.mxu0 0
        %1065 = vmatpush2.bf16.msra.mxu0 %v1022
        %1066 = vmatprep.subr.bf16.mxu0 0
        %1067 = vmatpush2.bf16.msra.mxu0 %v1021
        %1068 = vmatprep.subr.bf16.mxu0 0
        %1069 = vmatpush2.bf16.msra.mxu0 %v1020
        %1070 = vmatprep.subr.bf16.mxu0 0
        %1071 = vmatpush2.bf16.msra.mxu0 %v1019
        %1072 = vmatprep.subr.bf16.mxu0 0
        %1073 = vmatpush2.bf16.msra.mxu0 %v1018
        %1074 = vmatprep.mubr.bf16.mxu0 %v883
        %1075 = vmatmul.mubr.bf16.gmra.mxu0 %v882
        %v1076 = vpop.f32.mrf.mxu0
        %v1077 = vadd.f32 %v784, %v1076
        %v1078 = vpop.f32.mrf.mxu0
        %v1079 = vpop.f32.mrf.mxu0
        %v1080 = vadd.f32 %v784, %v1079
        %v1081 = vpop.f32.mrf.mxu0
        %1082 = vmatprep.mubr.bf16.mxu0 %v885
        %1083 = vmatmul.mubr.bf16.gmra.mxu0 %v884
        %v1084 = vpop.f32.mrf.mxu0
        %v1085 = vadd.f32 %v784, %v1084
        %v1086 = vpop.f32.mrf.mxu0
        %v1087 = vpop.f32.mrf.mxu0
        %v1088 = vadd.f32 %v784, %v1087
        %v1089 = vpop.f32.mrf.mxu0
        %1090 = vmatprep.mubr.bf16.mxu0 %v887
        %1091 = vmatmul.mubr.bf16.gmra.mxu0 %v886
        %v1092 = vpop.f32.mrf.mxu0
        %v1093 = vadd.f32 %v784, %v1092
        %v1094 = vpop.f32.mrf.mxu0
        %v1095 = vpop.f32.mrf.mxu0
        %v1096 = vadd.f32 %v784, %v1095
        %v1097 = vpop.f32.mrf.mxu0
        %1098 = vmatprep.mubr.bf16.mxu0 %v889
        %1099 = vmatmul.mubr.bf16.gmra.mxu0 %v888
        %v1100 = vpop.f32.mrf.mxu0
        %v1101 = vadd.f32 %v784, %v1100
        %v1102 = vpop.f32.mrf.mxu0
        %v1103 = vpop.f32.mrf.mxu0
        %v1104 = vadd.f32 %v784, %v1103
        %v1105 = vpop.f32.mrf.mxu0
        %1106 = vmatprep.mubr.bf16.mxu0 %v891
        %1107 = vmatmul.mubr.bf16.gmra.mxu0 %v890
        %v1108 = vpop.f32.mrf.mxu0
        %v1109 = vadd.f32 %v784, %v1108
        %v1110 = vpop.f32.mrf.mxu0
        %v1111 = vpop.f32.mrf.mxu0
        %v1112 = vadd.f32 %v784, %v1111
        %v1113 = vpop.f32.mrf.mxu0
        %1114 = vmatprep.mubr.bf16.mxu0 %v893
        %1115 = vmatmul.mubr.bf16.gmra.mxu0 %v892
        %v1116 = vpop.f32.mrf.mxu0
        %v1117 = vadd.f32 %v784, %v1116
        %v1118 = vpop.f32.mrf.mxu0
        %v1119 = vpop.f32.mrf.mxu0
        %v1120 = vadd.f32 %v784, %v1119
        %v1121 = vpop.f32.mrf.mxu0
        %1122 = vmatprep.mubr.bf16.mxu0 %v895
        %1123 = vmatmul.mubr.bf16.gmra.mxu0 %v894
        %v1124 = vpop.f32.mrf.mxu0
        %v1125 = vadd.f32 %v784, %v1124
        %v1126 = vpop.f32.mrf.mxu0
        %v1127 = vpop.f32.mrf.mxu0
        %v1128 = vadd.f32 %v784, %v1127
        %v1129 = vpop.f32.mrf.mxu0
        %1130 = vmatprep.mubr.bf16.mxu0 %v897
        %1131 = vmatmul.mubr.bf16.gmra.mxu0 %v896
        %v1132 = vpop.f32.mrf.mxu0
        %v1133 = vadd.f32 %v784, %v1132
        %v1134 = vpop.f32.mrf.mxu0
        %v1135 = vpop.f32.mrf.mxu0
        %v1136 = vadd.f32 %v784, %v1135
        %v1137 = vpop.f32.mrf.mxu0
        %1138 = vmatprep.mubr.bf16.mxu0 %v899
        %1139 = vmatmul.mubr.bf16.gmra.mxu0 %v898
        %v1140 = vpop.f32.mrf.mxu0
        %v1141 = vadd.f32 %v784, %v1140
        %v1142 = vpop.f32.mrf.mxu0
        %v1143 = vpop.f32.mrf.mxu0
        %v1144 = vadd.f32 %v784, %v1143
        %v1145 = vpop.f32.mrf.mxu0
        %1146 = vmatprep.mubr.bf16.mxu0 %v901
        %1147 = vmatmul.mubr.bf16.gmra.mxu0 %v900
        %v1148 = vpop.f32.mrf.mxu0
        %v1149 = vadd.f32 %v784, %v1148
        %v1150 = vpop.f32.mrf.mxu0
        %v1151 = vpop.f32.mrf.mxu0
        %v1152 = vadd.f32 %v784, %v1151
        %v1153 = vpop.f32.mrf.mxu0
        %1154 = vmatprep.mubr.bf16.mxu0 %v903
        %1155 = vmatmul.mubr.bf16.gmra.mxu0 %v902
        %v1156 = vpop.f32.mrf.mxu0
        %v1157 = vadd.f32 %v784, %v1156
        %v1158 = vpop.f32.mrf.mxu0
        %v1159 = vpop.f32.mrf.mxu0
        %v1160 = vadd.f32 %v784, %v1159
        %v1161 = vpop.f32.mrf.mxu0
        %1162 = vmatprep.mubr.bf16.mxu0 %v905
        %1163 = vmatmul.mubr.bf16.gmra.mxu0 %v904
        %v1164 = vpop.f32.mrf.mxu0
        %v1165 = vadd.f32 %v784, %v1164
        %v1166 = vpop.f32.mrf.mxu0
        %v1167 = vpop.f32.mrf.mxu0
        %v1168 = vadd.f32 %v784, %v1167
        %v1169 = vpop.f32.mrf.mxu0
        %1170 = vmatprep.mubr.bf16.mxu0 %v907
        %1171 = vmatmul.mubr.bf16.gmra.mxu0 %v906
        %v1172 = vpop.f32.mrf.mxu0
        %v1173 = vadd.f32 %v784, %v1172
        %v1174 = vpop.f32.mrf.mxu0
        %v1175 = vpop.f32.mrf.mxu0
        %v1176 = vadd.f32 %v784, %v1175
        %v1177 = vpop.f32.mrf.mxu0
        %1178 = vmatprep.mubr.bf16.mxu0 %v909
        %1179 = vmatmul.mubr.bf16.gmra.mxu0 %v908
        %v1180 = vpop.f32.mrf.mxu0
        %v1181 = vadd.f32 %v784, %v1180
        %v1182 = vpop.f32.mrf.mxu0
        %v1183 = vpop.f32.mrf.mxu0
        %v1184 = vadd.f32 %v784, %v1183
        %v1185 = vpop.f32.mrf.mxu0
        %1186 = vmatprep.mubr.bf16.mxu0 %v911
        %1187 = vmatmul.mubr.bf16.gmra.mxu0 %v910
        %v1188 = vpop.f32.mrf.mxu0
        %v1189 = vadd.f32 %v784, %v1188
        %v1190 = vpop.f32.mrf.mxu0
        %v1191 = vpop.f32.mrf.mxu0
        %v1192 = vadd.f32 %v784, %v1191
        %v1193 = vpop.f32.mrf.mxu0
        %1194 = vmatprep.mubr.bf16.mxu0 %v913
        %1195 = vmatmul.mubr.bf16.gmra.mxu0 %v912
        %v1196 = vpop.f32.mrf.mxu0
        %v1197 = vadd.f32 %v784, %v1196
        %v1198 = vpop.f32.mrf.mxu0
        %v1199 = vpop.f32.mrf.mxu0
        %v1200 = vadd.f32 %v784, %v1199
        %v1201 = vpop.f32.mrf.mxu0
        %1202 = vdwg.mxu0
        %vm1203 = vcmask 523264
        %1204 = vst.msk [vmem:[#allocation2] sm:$0xff] %vm1203, -inf
        %1205 = vst.msk [vmem:[#allocation2 + $0x8] sm:$0xff] %vm1203, -inf
        %vm1206 = vcmask 517120
        %1207 = vst.msk [vmem:[#allocation2 + $0x10] sm:$0x3] %vm1206, -inf
        %1208 = vst.msk [vmem:[#allocation2 + $0x18] sm:$0xff] %vm1203, -inf
        %1209 = vst.msk [vmem:[#allocation2 + $0x20] sm:$0xff] %vm1203, -inf
        %1210 = vst.msk [vmem:[#allocation2 + $0x28] sm:$0x3] %vm1206, -inf
        %1211 = vst.msk [vmem:[#allocation2 + $0x30] sm:$0xff] %vm1203, -inf
        %1212 = vst.msk [vmem:[#allocation2 + $0x38] sm:$0xff] %vm1203, -inf
        %1213 = vst.msk [vmem:[#allocation2 + $0x40] sm:$0x3] %vm1206, -inf
        %1214 = vst.msk [vmem:[#allocation2 + $0x48] sm:$0xff] %vm1203, -inf
        %1215 = vst.msk [vmem:[#allocation2 + $0x50] sm:$0xff] %vm1203, -inf
        %1216 = vst.msk [vmem:[#allocation2 + $0x58] sm:$0x3] %vm1206, -inf
        %1217 = vst.msk [vmem:[#allocation2 + $0x60] sm:$0xff] %vm1203, -inf
        %1218 = vst.msk [vmem:[#allocation2 + $0x68] sm:$0xff] %vm1203, -inf
        %1219 = vst.msk [vmem:[#allocation2 + $0x70] sm:$0x3] %vm1206, -inf
        %1220 = vst.msk [vmem:[#allocation2 + $0x78] sm:$0xff] %vm1203, -inf
        %1221 = vst.msk [vmem:[#allocation2 + $0x80] sm:$0xff] %vm1203, -inf
        %1222 = vst.msk [vmem:[#allocation2 + $0x88] sm:$0x3] %vm1206, -inf
        %1223 = vst.msk [vmem:[#allocation2 + $0x90] sm:$0xff] %vm1203, -inf
        %1224 = vst.msk [vmem:[#allocation2 + $0x98] sm:$0xff] %vm1203, -inf
        %1225 = vst.msk [vmem:[#allocation2 + $0xa0] sm:$0x3] %vm1206, -inf
        %1226 = vst.msk [vmem:[#allocation2 + $0xa8] sm:$0xff] %vm1203, -inf
        %1227 = vst.msk [vmem:[#allocation2 + $0xb0] sm:$0xff] %vm1203, -inf
        %1228 = vst.msk [vmem:[#allocation2 + $0xb8] sm:$0x3] %vm1206, -inf
        %1229 = vst.msk [vmem:[#allocation2 + $0xc0] sm:$0xff] %vm1203, -inf
        %1230 = vst.msk [vmem:[#allocation2 + $0xc8] sm:$0xff] %vm1203, -inf
        %1231 = vst.msk [vmem:[#allocation2 + $0xd0] sm:$0x3] %vm1206, -inf
        %1232 = vst.msk [vmem:[#allocation2 + $0xd8] sm:$0xff] %vm1203, -inf
        %1233 = vst.msk [vmem:[#allocation2 + $0xe0] sm:$0xff] %vm1203, -inf
        %1234 = vst.msk [vmem:[#allocation2 + $0xe8] sm:$0x3] %vm1206, -inf
        %1235 = vst.msk [vmem:[#allocation2 + $0xf0] sm:$0xff] %vm1203, -inf
        %1236 = vst.msk [vmem:[#allocation2 + $0xf8] sm:$0xff] %vm1203, -inf
        %1237 = vst.msk [vmem:[#allocation2 + $0x100] sm:$0x3] %vm1206, -inf
        %1238 = vst.msk [vmem:[#allocation2 + $0x108] sm:$0xff] %vm1203, -inf
        %1239 = vst.msk [vmem:[#allocation2 + $0x110] sm:$0xff] %vm1203, -inf
        %1240 = vst.msk [vmem:[#allocation2 + $0x118] sm:$0x3] %vm1206, -inf
        %1241 = vst.msk [vmem:[#allocation2 + $0x120] sm:$0xff] %vm1203, -inf
        %1242 = vst.msk [vmem:[#allocation2 + $0x128] sm:$0xff] %vm1203, -inf
        %1243 = vst.msk [vmem:[#allocation2 + $0x130] sm:$0x3] %vm1206, -inf
        %1244 = vst.msk [vmem:[#allocation2 + $0x138] sm:$0xff] %vm1203, -inf
        %1245 = vst.msk [vmem:[#allocation2 + $0x140] sm:$0xff] %vm1203, -inf
        %1246 = vst.msk [vmem:[#allocation2 + $0x148] sm:$0x3] %vm1206, -inf
        %1247 = vst.msk [vmem:[#allocation2 + $0x150] sm:$0xff] %vm1203, -inf
        %1248 = vst.msk [vmem:[#allocation2 + $0x158] sm:$0xff] %vm1203, -inf
        %1249 = vst.msk [vmem:[#allocation2 + $0x160] sm:$0x3] %vm1206, -inf
        %1250 = vst.msk [vmem:[#allocation2 + $0x168] sm:$0xff] %vm1203, -inf
        %1251 = vst.msk [vmem:[#allocation2 + $0x170] sm:$0xff] %vm1203, -inf
        %1252 = vst.msk [vmem:[#allocation2 + $0x178] sm:$0x3] %vm1206, -inf
        %1253 = vst.msk [vmem:[#allocation2 + $0x180] sm:$0xff] %vm1203, -inf
        %1254 = vst.msk [vmem:[#allocation2 + $0x188] sm:$0xff] %vm1203, -inf
        %1255 = vst.msk [vmem:[#allocation2 + $0x190] sm:$0x3] %vm1206, -inf
        %1256 = vst.msk [vmem:[#allocation2 + $0x198] sm:$0xff] %vm1203, -inf
        %1257 = vst.msk [vmem:[#allocation2 + $0x1a0] sm:$0xff] %vm1203, -inf
        %1258 = vst.msk [vmem:[#allocation2 + $0x1a8] sm:$0x3] %vm1206, -inf
        %s1259 = scalar_lea.vmem [#allocation2], 24
        %1260 = vst.msk [vmem:[%s1259 + $0x1] sm:$0xff] %vm1203, %v1077
        %1261 = vst.msk [vmem:[%s1259 + $0x9] sm:$0xff] %vm1203, %v1080
        %1262 = vst.msk [vmem:[%s1259 + $0x19] sm:$0xff] %vm1203, %v1085
        %1263 = vst.msk [vmem:[%s1259 + $0x21] sm:$0xff] %vm1203, %v1088
        %1264 = vst.msk [vmem:[%s1259 + $0x31] sm:$0xff] %vm1203, %v1093
        %1265 = vst.msk [vmem:[%s1259 + $0x39] sm:$0xff] %vm1203, %v1096
        %1266 = vst.msk [vmem:[%s1259 + $0x49] sm:$0xff] %vm1203, %v1101
        %1267 = vst.msk [vmem:[%s1259 + $0x51] sm:$0xff] %vm1203, %v1104
        %1268 = vst.msk [vmem:[%s1259 + $0x61] sm:$0xff] %vm1203, %v1109
        %1269 = vst.msk [vmem:[%s1259 + $0x69] sm:$0xff] %vm1203, %v1112
        %1270 = vst.msk [vmem:[%s1259 + $0x79] sm:$0xff] %vm1203, %v1117
        %1271 = vst.msk [vmem:[%s1259 + $0x81] sm:$0xff] %vm1203, %v1120
        %1272 = vst.msk [vmem:[%s1259 + $0x91] sm:$0xff] %vm1203, %v1125
        %1273 = vst.msk [vmem:[%s1259 + $0x99] sm:$0xff] %vm1203, %v1128
        %1274 = vst.msk [vmem:[%s1259 + $0xa9] sm:$0xff] %vm1203, %v1133
        %1275 = vst.msk [vmem:[%s1259 + $0xb1] sm:$0xff] %vm1203, %v1136
        %1276 = vst.msk [vmem:[%s1259 + $0xc1] sm:$0xff] %vm1203, %v1141
        %1277 = vst.msk [vmem:[%s1259 + $0xc9] sm:$0xff] %vm1203, %v1144
        %1278 = vst.msk [vmem:[%s1259 + $0xd9] sm:$0xff] %vm1203, %v1149
        %1279 = vst.msk [vmem:[%s1259 + $0xe1] sm:$0xff] %vm1203, %v1152
        %1280 = vst.msk [vmem:[%s1259 + $0xf1] sm:$0xff] %vm1203, %v1157
        %1281 = vst.msk [vmem:[%s1259 + $0xf9] sm:$0xff] %vm1203, %v1160
        %1282 = vst.msk [vmem:[%s1259 + $0x109] sm:$0xff] %vm1203, %v1165
        %1283 = vst.msk [vmem:[%s1259 + $0x111] sm:$0xff] %vm1203, %v1168
        %1284 = vst.msk [vmem:[%s1259 + $0x121] sm:$0xff] %vm1203, %v1173
        %1285 = vst.msk [vmem:[%s1259 + $0x129] sm:$0xff] %vm1203, %v1176
        %1286 = vst.msk [vmem:[%s1259 + $0x139] sm:$0xff] %vm1203, %v1181
        %1287 = vst.msk [vmem:[%s1259 + $0x141] sm:$0xff] %vm1203, %v1184
        %1288 = vst.msk [vmem:[%s1259 + $0x151] sm:$0xff] %vm1203, %v1189
        %1289 = vst.msk [vmem:[%s1259 + $0x159] sm:$0xff] %vm1203, %v1192
        %1290 = vst.msk [vmem:[%s1259 + $0x169] sm:$0xff] %vm1203, %v1197
        %1291 = vst.msk [vmem:[%s1259 + $0x171] sm:$0xff] %vm1203, %v1200
        %v1292 = vld [vmem:[#allocation2] sm:$0xff]
        %v1293 = vld [vmem:[#allocation2 + $0x8] sm:$0xff]
        %v1294 = vld [vmem:[#allocation2 + $0x10] sm:$0x3]
        %v1295 = vld [vmem:[#allocation2 + $0x30] sm:$0xff]
        %v1296 = vld [vmem:[#allocation2 + $0x38] sm:$0xff]
        %v1297 = vld [vmem:[#allocation2 + $0x40] sm:$0x3]
        %v1298 = vld [vmem:[#allocation2 + $0x60] sm:$0xff]
        %v1299 = vld [vmem:[#allocation2 + $0x68] sm:$0xff]
        %v1300 = vld [vmem:[#allocation2 + $0x70] sm:$0x3]
        %v1301 = vld [vmem:[#allocation2 + $0x90] sm:$0xff]
        %v1302 = vld [vmem:[#allocation2 + $0x98] sm:$0xff]
        %v1303 = vld [vmem:[#allocation2 + $0xa0] sm:$0x3]
        %v1304 = vld [vmem:[#allocation2 + $0xc0] sm:$0xff]
        %v1305 = vld [vmem:[#allocation2 + $0xc8] sm:$0xff]
        %v1306 = vld [vmem:[#allocation2 + $0xd0] sm:$0x3]
        %v1307 = vld [vmem:[#allocation2 + $0xf0] sm:$0xff]
        %v1308 = vld [vmem:[#allocation2 + $0xf8] sm:$0xff]
        %v1309 = vld [vmem:[#allocation2 + $0x100] sm:$0x3]
        %v1310 = vld [vmem:[#allocation2 + $0x120] sm:$0xff]
        %v1311 = vld [vmem:[#allocation2 + $0x128] sm:$0xff]
        %v1312 = vld [vmem:[#allocation2 + $0x130] sm:$0x3]
        %v1313 = vld [vmem:[#allocation2 + $0x150] sm:$0xff]
        %v1314 = vld [vmem:[#allocation2 + $0x158] sm:$0xff]
        %v1315 = vld [vmem:[#allocation2 + $0x160] sm:$0x3]
        %v1316 = vld [vmem:[%s1259] sm:$0xff]
        %v1317 = vld [vmem:[%s1259 + $0x8] sm:$0xff]
        %v1318 = vld [vmem:[%s1259 + $0x10] sm:$0x3]
        %v1319 = vld [vmem:[%s1259 + $0x30] sm:$0xff]
        %v1320 = vld [vmem:[%s1259 + $0x38] sm:$0xff]
        %v1321 = vld [vmem:[%s1259 + $0x40] sm:$0x3]
        %v1322 = vld [vmem:[%s1259 + $0x60] sm:$0xff]
        %v1323 = vld [vmem:[%s1259 + $0x68] sm:$0xff]
        %v1324 = vld [vmem:[%s1259 + $0x70] sm:$0x3]
        %v1325 = vld [vmem:[%s1259 + $0x90] sm:$0xff]
        %v1326 = vld [vmem:[%s1259 + $0x98] sm:$0xff]
        %v1327 = vld [vmem:[%s1259 + $0xa0] sm:$0x3]
        %v1328 = vld [vmem:[%s1259 + $0xc0] sm:$0xff]
        %v1329 = vld [vmem:[%s1259 + $0xc8] sm:$0xff]
        %v1330 = vld [vmem:[%s1259 + $0xd0] sm:$0x3]
        %v1331 = vld [vmem:[%s1259 + $0xf0] sm:$0xff]
        %v1332 = vld [vmem:[%s1259 + $0xf8] sm:$0xff]
        %v1333 = vld [vmem:[%s1259 + $0x100] sm:$0x3]
        %v1334 = vld [vmem:[%s1259 + $0x120] sm:$0xff]
        %v1335 = vld [vmem:[%s1259 + $0x128] sm:$0xff]
        %v1336 = vld [vmem:[%s1259 + $0x130] sm:$0x3]
        %v1337 = vld [vmem:[%s1259 + $0x150] sm:$0xff]
        %v1338 = vld [vmem:[%s1259 + $0x158] sm:$0xff]
        %v1339 = vld [vmem:[%s1259 + $0x160] sm:$0x3]
        %v1340 = vmax.f32 %v1292, %v1316
        %v1341 = vmax.f32 %v1293, %v1317
        %v1342 = vmax.f32 %v1294, %v1318
        %v1343 = vmax.f32 %v1295, %v1319
        %v1344 = vmax.f32 %v1296, %v1320
        %v1345 = vmax.f32 %v1297, %v1321
        %v1346 = vmax.f32 %v1298, %v1322
        %v1347 = vmax.f32 %v1299, %v1323
        %v1348 = vmax.f32 %v1300, %v1324
        %v1349 = vmax.f32 %v1301, %v1325
        %v1350 = vmax.f32 %v1302, %v1326
        %v1351 = vmax.f32 %v1303, %v1327
        %v1352 = vmax.f32 %v1304, %v1328
        %v1353 = vmax.f32 %v1305, %v1329
        %v1354 = vmax.f32 %v1306, %v1330
        %v1355 = vmax.f32 %v1307, %v1331
        %v1356 = vmax.f32 %v1308, %v1332
        %v1357 = vmax.f32 %v1309, %v1333
        %v1358 = vmax.f32 %v1310, %v1334
        %v1359 = vmax.f32 %v1311, %v1335
        %v1360 = vmax.f32 %v1312, %v1336
        %v1361 = vmax.f32 %v1313, %v1337
        %v1362 = vmax.f32 %v1314, %v1338
        %v1363 = vmax.f32 %v1315, %v1339
        %s1364 = scalar_lea.vmem [#allocation2], 48
        %v1365 = vld [vmem:[%s1364] sm:$0xff]
        %v1366 = vld [vmem:[%s1364 + $0x8] sm:$0xff]
        %v1367 = vld [vmem:[%s1364 + $0x10] sm:$0x3]
        %v1368 = vld [vmem:[%s1364 + $0x30] sm:$0xff]
        %v1369 = vld [vmem:[%s1364 + $0x38] sm:$0xff]
        %v1370 = vld [vmem:[%s1364 + $0x40] sm:$0x3]
        %v1371 = vld [vmem:[%s1364 + $0x60] sm:$0xff]
        %v1372 = vld [vmem:[%s1364 + $0x68] sm:$0xff]
        %v1373 = vld [vmem:[%s1364 + $0x70] sm:$0x3]
        %v1374 = vld [vmem:[%s1364 + $0x90] sm:$0xff]
        %v1375 = vld [vmem:[%s1364 + $0x98] sm:$0xff]
        %v1376 = vld [vmem:[%s1364 + $0xa0] sm:$0x3]
        %v1377 = vld [vmem:[%s1364 + $0xc0] sm:$0xff]
        %v1378 = vld [vmem:[%s1364 + $0xc8] sm:$0xff]
        %v1379 = vld [vmem:[%s1364 + $0xd0] sm:$0x3]
        %v1380 = vld [vmem:[%s1364 + $0xf0] sm:$0xff]
        %v1381 = vld [vmem:[%s1364 + $0xf8] sm:$0xff]
        %v1382 = vld [vmem:[%s1364 + $0x100] sm:$0x3]
        %v1383 = vld [vmem:[%s1364 + $0x120] sm:$0xff]
        %v1384 = vld [vmem:[%s1364 + $0x128] sm:$0xff]
        %v1385 = vld [vmem:[%s1364 + $0x130] sm:$0x3]
        %v1386 = vld [vmem:[%s1364 + $0x150] sm:$0xff]
        %v1387 = vld [vmem:[%s1364 + $0x158] sm:$0xff]
        %v1388 = vld [vmem:[%s1364 + $0x160] sm:$0x3]
        %v1389 = vmax.f32 %v1340, %v1365
        %v1390 = vmax.f32 %v1341, %v1366
        %v1391 = vmax.f32 %v1342, %v1367
        %v1392 = vmax.f32 %v1343, %v1368
        %v1393 = vmax.f32 %v1344, %v1369
        %v1394 = vmax.f32 %v1345, %v1370
        %v1395 = vmax.f32 %v1346, %v1371
        %v1396 = vmax.f32 %v1347, %v1372
        %v1397 = vmax.f32 %v1348, %v1373
        %v1398 = vmax.f32 %v1349, %v1374
        %v1399 = vmax.f32 %v1350, %v1375
        %v1400 = vmax.f32 %v1351, %v1376
        %v1401 = vmax.f32 %v1352, %v1377
        %v1402 = vmax.f32 %v1353, %v1378
        %v1403 = vmax.f32 %v1354, %v1379
        %v1404 = vmax.f32 %v1355, %v1380
        %v1405 = vmax.f32 %v1356, %v1381
        %v1406 = vmax.f32 %v1357, %v1382
        %v1407 = vmax.f32 %v1358, %v1383
        %v1408 = vmax.f32 %v1359, %v1384
        %v1409 = vmax.f32 %v1360, %v1385
        %v1410 = vmax.f32 %v1361, %v1386
        %v1411 = vmax.f32 %v1362, %v1387
        %v1412 = vmax.f32 %v1363, %v1388
        %v1421 = vrot.slane %v1389, 1
        %v1422 = vrot.slane %v1392, 1
        %v1423 = vrot.slane %v1395, 1
        %v1424 = vrot.slane %v1398, 1
        %v1425 = vrot.slane %v1401, 1
        %v1426 = vrot.slane %v1404, 1
        %v1427 = vrot.slane %v1407, 1
        %v1428 = vrot.slane %v1410, 1
        %v1437 = vmax.f32 %v1389, %v1421
        %v1438 = vmax.f32 %v1392, %v1422
        %v1439 = vmax.f32 %v1395, %v1423
        %v1440 = vmax.f32 %v1398, %v1424
        %v1441 = vmax.f32 %v1401, %v1425
        %v1442 = vmax.f32 %v1404, %v1426
        %v1443 = vmax.f32 %v1407, %v1427
        %v1444 = vmax.f32 %v1410, %v1428
        %v1445 = vrot.slane %v1389, 2
        %v1446 = vrot.slane %v1392, 2
        %v1447 = vrot.slane %v1395, 2
        %v1448 = vrot.slane %v1398, 2
        %v1449 = vrot.slane %v1401, 2
        %v1450 = vrot.slane %v1404, 2
        %v1451 = vrot.slane %v1407, 2
        %v1452 = vrot.slane %v1410, 2
        %v1461 = vmax.f32 %v1437, %v1445
        %v1462 = vmax.f32 %v1438, %v1446
        %v1463 = vmax.f32 %v1439, %v1447
        %v1464 = vmax.f32 %v1440, %v1448
        %v1465 = vmax.f32 %v1441, %v1449
        %v1466 = vmax.f32 %v1442, %v1450
        %v1467 = vmax.f32 %v1443, %v1451
        %v1468 = vmax.f32 %v1444, %v1452
        %vm1469 = vcmask 516096
        %1470 = vst.msk [vmem:[#allocation3] sm:$0x1] %vm1469, %v1461
        %1471 = vst.msk [vmem:[#allocation3 + $0x8] sm:$0x1] %vm1469, %v1462
        %1472 = vst.msk [vmem:[#allocation3 + $0x10] sm:$0x1] %vm1469, %v1463
        %1473 = vst.msk [vmem:[#allocation3 + $0x18] sm:$0x1] %vm1469, %v1464
        %1474 = vst.msk [vmem:[#allocation3 + $0x20] sm:$0x1] %vm1469, %v1465
        %1475 = vst.msk [vmem:[#allocation3 + $0x28] sm:$0x1] %vm1469, %v1466
        %1476 = vst.msk [vmem:[#allocation3 + $0x30] sm:$0x1] %vm1469, %v1467
        %1477 = vst.msk [vmem:[#allocation3 + $0x38] sm:$0x1] %vm1469, %v1468
        %vm1478 = vcmask 518146
        %1479 = vst.msk [vmem:[#allocation3 - $0x1] sm:$0x4] %vm1478, %v1461
        %1480 = vst.msk [vmem:[#allocation3 + $0x7] sm:$0x4] %vm1478, %v1462
        %1481 = vst.msk [vmem:[#allocation3 + $0xf] sm:$0x4] %vm1478, %v1463
        %1482 = vst.msk [vmem:[#allocation3 + $0x17] sm:$0x4] %vm1478, %v1464
        %1483 = vst.msk [vmem:[#allocation3 + $0x1f] sm:$0x4] %vm1478, %v1465
        %1484 = vst.msk [vmem:[#allocation3 + $0x27] sm:$0x4] %vm1478, %v1466
        %1485 = vst.msk [vmem:[#allocation3 + $0x2f] sm:$0x4] %vm1478, %v1467
        %1486 = vst.msk [vmem:[#allocation3 + $0x37] sm:$0x4] %vm1478, %v1468
        %vm1487 = vcmask 520196
        %1488 = vst.msk [vmem:[#allocation3 - $0x2] sm:$0x10] %vm1487, %v1461
        %1489 = vst.msk [vmem:[#allocation3 + $0x6] sm:$0x10] %vm1487, %v1462
        %1490 = vst.msk [vmem:[#allocation3 + $0xe] sm:$0x10] %vm1487, %v1463
        %1491 = vst.msk [vmem:[#allocation3 + $0x16] sm:$0x10] %vm1487, %v1464
        %1492 = vst.msk [vmem:[#allocation3 + $0x1e] sm:$0x10] %vm1487, %v1465
        %1493 = vst.msk [vmem:[#allocation3 + $0x26] sm:$0x10] %vm1487, %v1466
        %1494 = vst.msk [vmem:[#allocation3 + $0x2e] sm:$0x10] %vm1487, %v1467
        %1495 = vst.msk [vmem:[#allocation3 + $0x36] sm:$0x10] %vm1487, %v1468
        %v1504 = vrot.slane %v1390, 2
        %v1505 = vrot.slane %v1393, 2
        %v1506 = vrot.slane %v1396, 2
        %v1507 = vrot.slane %v1399, 2
        %v1508 = vrot.slane %v1402, 2
        %v1509 = vrot.slane %v1405, 2
        %v1510 = vrot.slane %v1408, 2
        %v1511 = vrot.slane %v1411, 2
        %v1520 = vmax.f32 %v1437, %v1504
        %v1521 = vmax.f32 %v1438, %v1505
        %v1522 = vmax.f32 %v1439, %v1506
        %v1523 = vmax.f32 %v1440, %v1507
        %v1524 = vmax.f32 %v1441, %v1508
        %v1525 = vmax.f32 %v1442, %v1509
        %v1526 = vmax.f32 %v1443, %v1510
        %v1527 = vmax.f32 %v1444, %v1511
        %vm1528 = vcmask 522246
        %1529 = vst.msk [vmem:[#allocation3 - $0x3] sm:$0x40] %vm1528, %v1520
        %1530 = vst.msk [vmem:[#allocation3 + $0x5] sm:$0x40] %vm1528, %v1521
        %1531 = vst.msk [vmem:[#allocation3 + $0xd] sm:$0x40] %vm1528, %v1522
        %1532 = vst.msk [vmem:[#allocation3 + $0x15] sm:$0x40] %vm1528, %v1523
        %1533 = vst.msk [vmem:[#allocation3 + $0x1d] sm:$0x40] %vm1528, %v1524
        %1534 = vst.msk [vmem:[#allocation3 + $0x25] sm:$0x40] %vm1528, %v1525
        %1535 = vst.msk [vmem:[#allocation3 + $0x2d] sm:$0x40] %vm1528, %v1526
        %1536 = vst.msk [vmem:[#allocation3 + $0x35] sm:$0x40] %vm1528, %v1527
        %v1537 = vrot.slane %v1390, 1
        %v1538 = vrot.slane %v1393, 1
        %v1539 = vrot.slane %v1396, 1
        %v1540 = vrot.slane %v1399, 1
        %v1541 = vrot.slane %v1402, 1
        %v1542 = vrot.slane %v1405, 1
        %v1543 = vrot.slane %v1408, 1
        %v1544 = vrot.slane %v1411, 1
        %v1553 = vmax.f32 %v1390, %v1537
        %v1554 = vmax.f32 %v1393, %v1538
        %v1555 = vmax.f32 %v1396, %v1539
        %v1556 = vmax.f32 %v1399, %v1540
        %v1557 = vmax.f32 %v1402, %v1541
        %v1558 = vmax.f32 %v1405, %v1542
        %v1559 = vmax.f32 %v1408, %v1543
        %v1560 = vmax.f32 %v1411, %v1544
        %v1561 = vmax.f32 %v1553, %v1504
        %v1562 = vmax.f32 %v1554, %v1505
        %v1563 = vmax.f32 %v1555, %v1506
        %v1564 = vmax.f32 %v1556, %v1507
        %v1565 = vmax.f32 %v1557, %v1508
        %v1566 = vmax.f32 %v1558, %v1509
        %v1567 = vmax.f32 %v1559, %v1510
        %v1568 = vmax.f32 %v1560, %v1511
        %1569 = vst.msk [vmem:[#allocation3 + $0x4] sm:$0x1] %vm1469, %v1561
        %1570 = vst.msk [vmem:[#allocation3 + $0xc] sm:$0x1] %vm1469, %v1562
        %1571 = vst.msk [vmem:[#allocation3 + $0x14] sm:$0x1] %vm1469, %v1563
        %1572 = vst.msk [vmem:[#allocation3 + $0x1c] sm:$0x1] %vm1469, %v1564
        %1573 = vst.msk [vmem:[#allocation3 + $0x24] sm:$0x1] %vm1469, %v1565
        %1574 = vst.msk [vmem:[#allocation3 + $0x2c] sm:$0x1] %vm1469, %v1566
        %1575 = vst.msk [vmem:[#allocation3 + $0x34] sm:$0x1] %vm1469, %v1567
        %1576 = vst.msk [vmem:[#allocation3 + $0x3c] sm:$0x1] %vm1469, %v1568
        %1577 = vst.msk [vmem:[#allocation3 + $0x3] sm:$0x4] %vm1478, %v1561
        %1578 = vst.msk [vmem:[#allocation3 + $0xb] sm:$0x4] %vm1478, %v1562
        %1579 = vst.msk [vmem:[#allocation3 + $0x13] sm:$0x4] %vm1478, %v1563
        %1580 = vst.msk [vmem:[#allocation3 + $0x1b] sm:$0x4] %vm1478, %v1564
        %1581 = vst.msk [vmem:[#allocation3 + $0x23] sm:$0x4] %vm1478, %v1565
        %1582 = vst.msk [vmem:[#allocation3 + $0x2b] sm:$0x4] %vm1478, %v1566
        %1583 = vst.msk [vmem:[#allocation3 + $0x33] sm:$0x4] %vm1478, %v1567
        %1584 = vst.msk [vmem:[#allocation3 + $0x3b] sm:$0x4] %vm1478, %v1568
        %1585 = vst.msk [vmem:[#allocation3 + $0x2] sm:$0x10] %vm1487, %v1561
        %1586 = vst.msk [vmem:[#allocation3 + $0xa] sm:$0x10] %vm1487, %v1562
        %1587 = vst.msk [vmem:[#allocation3 + $0x12] sm:$0x10] %vm1487, %v1563
        %1588 = vst.msk [vmem:[#allocation3 + $0x1a] sm:$0x10] %vm1487, %v1564
        %1589 = vst.msk [vmem:[#allocation3 + $0x22] sm:$0x10] %vm1487, %v1565
        %1590 = vst.msk [vmem:[#allocation3 + $0x2a] sm:$0x10] %vm1487, %v1566
        %1591 = vst.msk [vmem:[#allocation3 + $0x32] sm:$0x10] %vm1487, %v1567
        %1592 = vst.msk [vmem:[#allocation3 + $0x3a] sm:$0x10] %vm1487, %v1568
        %v1601 = vrot.slane %v1391, 2
        %v1602 = vrot.slane %v1394, 2
        %v1603 = vrot.slane %v1397, 2
        %v1604 = vrot.slane %v1400, 2
        %v1605 = vrot.slane %v1403, 2
        %v1606 = vrot.slane %v1406, 2
        %v1607 = vrot.slane %v1409, 2
        %v1608 = vrot.slane %v1412, 2
        %v1617 = vmax.f32 %v1553, %v1601
        %v1618 = vmax.f32 %v1554, %v1602
        %v1619 = vmax.f32 %v1555, %v1603
        %v1620 = vmax.f32 %v1556, %v1604
        %v1621 = vmax.f32 %v1557, %v1605
        %v1622 = vmax.f32 %v1558, %v1606
        %v1623 = vmax.f32 %v1559, %v1607
        %v1624 = vmax.f32 %v1560, %v1608
        %1625 = vst.msk [vmem:[#allocation3 + $0x1] sm:$0x40] %vm1528, %v1617
        %1626 = vst.msk [vmem:[#allocation3 + $0x9] sm:$0x40] %vm1528, %v1618
        %1627 = vst.msk [vmem:[#allocation3 + $0x11] sm:$0x40] %vm1528, %v1619
        %1628 = vst.msk [vmem:[#allocation3 + $0x19] sm:$0x40] %vm1528, %v1620
        %1629 = vst.msk [vmem:[#allocation3 + $0x21] sm:$0x40] %vm1528, %v1621
        %1630 = vst.msk [vmem:[#allocation3 + $0x29] sm:$0x40] %vm1528, %v1622
        %1631 = vst.msk [vmem:[#allocation3 + $0x31] sm:$0x40] %vm1528, %v1623
        %1632 = vst.msk [vmem:[#allocation3 + $0x39] sm:$0x40] %vm1528, %v1624
        %v1633 = vld [vmem:[#allocation3] sm:$0xff]
        %v1634 = vld [vmem:[#allocation3 + $0x8] sm:$0xff]
        %v1635 = vld [vmem:[#allocation3 + $0x10] sm:$0xff]
        %v1636 = vld [vmem:[#allocation3 + $0x18] sm:$0xff]
        %v1637 = vld [vmem:[#allocation3 + $0x20] sm:$0xff]
        %v1638 = vld [vmem:[#allocation3 + $0x28] sm:$0xff]
        %v1639 = vld [vmem:[#allocation3 + $0x30] sm:$0xff]
        %v1640 = vld [vmem:[#allocation3 + $0x38] sm:$0xff]
        %v1641 = vpack.c.bf16 %v1634, %v1633
        %v1642 = vpack.c.bf16 %v1636, %v1635
        %v1643 = vpack.c.bf16 %v1638, %v1637
        %v1644 = vpack.c.bf16 %v1640, %v1639
        %v1645 = vld [vmem:[%s3] sm:$0xf]
        %v1646 = vld [vmem:[%s3 + $0x4] sm:$0xf]
        %v1647 = vld [vmem:[%s3 + $0x8] sm:$0xf]
        %v1648 = vld [vmem:[%s3 + $0xc] sm:$0xf]
        %v1649 = vld [vmem:[%s3 + $0x10] sm:$0xf]
        %v1650 = vld [vmem:[%s3 + $0x14] sm:$0xf]
        %v1651 = vld [vmem:[%s3 + $0x18] sm:$0xf]
        %v1652 = vld [vmem:[%s3 + $0x1c] sm:$0xf]
        %v1653 = vld [vmem:[%s4] sm:$0x1]
        %v1655 = vlaneseq
        %v1656 = vshrl.u32 %v1655, 7
        %v1657 = vsub.s32 0, %v1656
        %v1658 = vrot.slane %v1653, %v1657
        %v1668 = vunpack.c.l.b16 %v1645
        %v1669 = vunpack.c.l.b16 %v1646
        %v1670 = vunpack.c.l.b16 %v1647
        %v1671 = vunpack.c.l.b16 %v1648
        %v1672 = vunpack.c.l.b16 %v1649
        %v1673 = vunpack.c.l.b16 %v1650
        %v1674 = vunpack.c.l.b16 %v1651
        %v1675 = vunpack.c.l.b16 %v1652
        %v1676 = vpack.c.b16 %v1669, %v1668
        %v1677 = vpack.c.b16 %v1671, %v1670
        %v1678 = vpack.c.b16 %v1673, %v1672
        %v1679 = vpack.c.b16 %v1675, %v1674
        %v1685 = vsel %vm1203, %v1641, 0
        %v1688 = vsel %vm1203, %v1642, 0
        %v1691 = vsel %vm1203, %v1643, 0
        %v1694 = vsel %vm1203, %v1644, 0
        %1696 = vmatprep.subr.bf16.mxu0 0
        %1697 = vmatpush1.bf16.msra.mxu0 0
        %1698 = vmatprep.subr.bf16.mxu0 0
        %1699 = vmatpush1.bf16.msra.mxu0 0
        %1700 = vmatprep.subr.bf16.mxu0 0
        %1701 = vmatpush1.bf16.msra.mxu0 0
        %1702 = vmatprep.subr.bf16.mxu0 0
        %1703 = vmatpush1.bf16.msra.mxu0 0
        %1704 = vmatprep.subr.bf16.mxu0 0
        %1705 = vmatpush1.bf16.msra.mxu0 %v1679
        %1706 = vmatprep.subr.bf16.mxu0 0
        %1707 = vmatpush1.bf16.msra.mxu0 %v1678
        %1708 = vmatprep.subr.bf16.mxu0 0
        %1709 = vmatpush1.bf16.msra.mxu0 %v1677
        %1710 = vmatprep.subr.bf16.mxu0 0
        %1711 = vmatpush1.bf16.msra.mxu0 %v1676
        %1712 = vmatprep.subr.bf16.mxu0 0
        %1713 = vmatpush2.bf16.msra.mxu0 0
        %1714 = vmatprep.subr.bf16.mxu0 0
        %1715 = vmatpush2.bf16.msra.mxu0 0
        %1716 = vmatprep.subr.bf16.mxu0 0
        %1717 = vmatpush2.bf16.msra.mxu0 0
        %1718 = vmatprep.subr.bf16.mxu0 0
        %1719 = vmatpush2.bf16.msra.mxu0 0
        %1720 = vmatprep.subr.bf16.mxu0 0
        %1721 = vmatpush2.bf16.msra.mxu0 0
        %1722 = vmatprep.subr.bf16.mxu0 0
        %1723 = vmatpush2.bf16.msra.mxu0 0
        %1724 = vmatprep.subr.bf16.mxu0 0
        %1725 = vmatpush2.bf16.msra.mxu0 0
        %1726 = vmatprep.subr.bf16.mxu0 0
        %1727 = vmatpush2.bf16.msra.mxu0 0
        %1728 = vmatprep.mubr.bf16.mxu0 0
        %1729 = vmatmul.mubr.bf16.gmra.mxu0 %v1685
        %v1730 = vpop.f32.mrf.mxu0
        %v1731 = vadd.f32 %v1658, %v1730
        %v1732 = vpop.f32.mrf.mxu0
        %v1733 = vpop.f32.mrf.mxu0
        %v1734 = vadd.f32 %v1658, %v1733
        %v1735 = vpop.f32.mrf.mxu0
        %1736 = vmatprep.mubr.bf16.mxu0 0
        %1737 = vmatmul.mubr.bf16.gmra.mxu0 %v1688
        %v1738 = vpop.f32.mrf.mxu0
        %v1739 = vadd.f32 %v1658, %v1738
        %v1740 = vpop.f32.mrf.mxu0
        %v1741 = vpop.f32.mrf.mxu0
        %v1742 = vadd.f32 %v1658, %v1741
        %v1743 = vpop.f32.mrf.mxu0
        %1744 = vmatprep.mubr.bf16.mxu0 0
        %1745 = vmatmul.mubr.bf16.gmra.mxu0 %v1691
        %v1746 = vpop.f32.mrf.mxu0
        %v1747 = vadd.f32 %v1658, %v1746
        %v1748 = vpop.f32.mrf.mxu0
        %v1749 = vpop.f32.mrf.mxu0
        %v1750 = vadd.f32 %v1658, %v1749
        %v1751 = vpop.f32.mrf.mxu0
        %1752 = vmatprep.mubr.bf16.mxu0 0
        %1753 = vmatmul.mubr.bf16.gmra.mxu0 %v1694
        %v1754 = vpop.f32.mrf.mxu0
        %v1755 = vadd.f32 %v1658, %v1754
        %v1756 = vpop.f32.mrf.mxu0
        %v1757 = vpop.f32.mrf.mxu0
        %v1758 = vadd.f32 %v1658, %v1757
        %v1759 = vpop.f32.mrf.mxu0
        %1760 = vdwg.mxu0
        %v1761 = vmax.f32 %v1731, 0.0
        %v1762 = vmax.f32 %v1734, 0.0
        %v1763 = vmax.f32 %v1739, 0.0
        %v1764 = vmax.f32 %v1742, 0.0
        %v1765 = vmax.f32 %v1747, 0.0
        %v1766 = vmax.f32 %v1750, 0.0
        %v1767 = vmax.f32 %v1755, 0.0
        %v1768 = vmax.f32 %v1758, 0.0
        %1769 = vst.msk [vmem:[#allocation4] sm:$0xff] %vm1203, 0.0
        %1770 = vst.msk [vmem:[#allocation4 + $0x8] sm:$0x3] %vm1206, 0.0
        %1771 = vst.msk [vmem:[#allocation4 + $0x10] sm:$0xff] %vm1203, 0.0
        %1772 = vst.msk [vmem:[#allocation4 + $0x18] sm:$0x3] %vm1206, 0.0
        %1773 = vst.msk [vmem:[#allocation4 + $0x20] sm:$0xff] %vm1203, 0.0
        %1774 = vst.msk [vmem:[#allocation4 + $0x28] sm:$0x3] %vm1206, 0.0
        %1775 = vst.msk [vmem:[#allocation4 + $0x30] sm:$0xff] %vm1203, 0.0
        %1776 = vst.msk [vmem:[#allocation4 + $0x38] sm:$0x3] %vm1206, 0.0
        %1777 = vst.msk [vmem:[#allocation4 + $0x40] sm:$0xff] %vm1203, 0.0
        %1778 = vst.msk [vmem:[#allocation4 + $0x48] sm:$0x3] %vm1206, 0.0
        %1779 = vst.msk [vmem:[#allocation4 + $0x50] sm:$0xff] %vm1203, 0.0
        %1780 = vst.msk [vmem:[#allocation4 + $0x58] sm:$0x3] %vm1206, 0.0
        %1781 = vst.msk [vmem:[#allocation4 + $0x60] sm:$0xff] %vm1203, 0.0
        %1782 = vst.msk [vmem:[#allocation4 + $0x68] sm:$0x3] %vm1206, 0.0
        %1783 = vst.msk [vmem:[#allocation4 + $0x70] sm:$0xff] %vm1203, 0.0
        %1784 = vst.msk [vmem:[#allocation4 + $0x78] sm:$0x3] %vm1206, 0.0
        %1785 = vst.msk [vmem:[#allocation4 + $0x80] sm:$0xff] %vm1203, 0.0
        %1786 = vst.msk [vmem:[#allocation4 + $0x88] sm:$0x3] %vm1206, 0.0
        %1787 = vst.msk [vmem:[#allocation4 + $0x90] sm:$0xff] %vm1203, 0.0
        %1788 = vst.msk [vmem:[#allocation4 + $0x98] sm:$0x3] %vm1206, 0.0
        %s1789 = scalar_lea.vmem [#allocation4], 16
        %1790 = vst.msk [vmem:[%s1789 + $0x1] sm:$0xff] %vm1203, %v1761
        %1791 = vst.msk [vmem:[%s1789 + $0x11] sm:$0xff] %vm1203, %v1762
        %1792 = vst.msk [vmem:[%s1789 + $0x21] sm:$0xff] %vm1203, %v1763
        %1793 = vst.msk [vmem:[%s1789 + $0x31] sm:$0xff] %vm1203, %v1764
        %1794 = vst.msk [vmem:[%s1789 + $0x41] sm:$0xff] %vm1203, %v1765
        %1795 = vst.msk [vmem:[%s1789 + $0x51] sm:$0xff] %vm1203, %v1766
        %1796 = vst.msk [vmem:[%s1789 + $0x61] sm:$0xff] %vm1203, %v1767
        %1797 = vst.msk [vmem:[%s1789 + $0x71] sm:$0xff] %vm1203, %v1768
        %v1798 = vld [vmem:[#allocation4] sm:$0xff]
        %v1799 = vld [vmem:[#allocation4 + $0x10] sm:$0xff]
        %v1800 = vld [vmem:[#allocation4 + $0x20] sm:$0xff]
        %v1801 = vld [vmem:[#allocation4 + $0x30] sm:$0xff]
        %v1802 = vld [vmem:[#allocation4 + $0x40] sm:$0xff]
        %v1803 = vld [vmem:[#allocation4 + $0x50] sm:$0xff]
        %v1804 = vld [vmem:[#allocation4 + $0x60] sm:$0xff]
        %v1805 = vld [vmem:[#allocation4 + $0x70] sm:$0xff]
        %v1806 = vpack.c.bf16 %v1799, %v1798
        %v1807 = vpack.c.bf16 %v1801, %v1800
        %v1808 = vpack.c.bf16 %v1803, %v1802
        %v1809 = vpack.c.bf16 %v1805, %v1804
        %v1810 = vld [vmem:[%s5] sm:$0xf]
        %v1811 = vld [vmem:[%s5 + $0x4] sm:$0xf]
        %v1812 = vld [vmem:[%s5 + $0x8] sm:$0xf]
        %v1813 = vld [vmem:[%s5 + $0xc] sm:$0xf]
        %v1814 = vld [vmem:[%s5 + $0x10] sm:$0xf]
        %v1815 = vld [vmem:[%s5 + $0x14] sm:$0xf]
        %v1816 = vld [vmem:[%s5 + $0x18] sm:$0xf]
        %v1817 = vld [vmem:[%s5 + $0x1c] sm:$0xf]
        %v1818 = vld [vmem:[#allocation4 + $0x1] sm:$0xff]
        %v1819 = vld [vmem:[#allocation4 + $0x11] sm:$0xff]
        %v1820 = vld [vmem:[#allocation4 + $0x21] sm:$0xff]
        %v1821 = vld [vmem:[#allocation4 + $0x31] sm:$0xff]
        %v1822 = vld [vmem:[#allocation4 + $0x41] sm:$0xff]
        %v1823 = vld [vmem:[#allocation4 + $0x51] sm:$0xff]
        %v1824 = vld [vmem:[#allocation4 + $0x61] sm:$0xff]
        %v1825 = vld [vmem:[#allocation4 + $0x71] sm:$0xff]
        %v1826 = vpack.c.bf16 %v1819, %v1818
        %v1827 = vpack.c.bf16 %v1821, %v1820
        %v1828 = vpack.c.bf16 %v1823, %v1822
        %v1829 = vpack.c.bf16 %v1825, %v1824
        %s1830 = scalar_lea.vmem %s5, 32
        %v1831 = vld [vmem:[%s1830] sm:$0xf]
        %v1832 = vld [vmem:[%s1830 + $0x4] sm:$0xf]
        %v1833 = vld [vmem:[%s1830 + $0x8] sm:$0xf]
        %v1834 = vld [vmem:[%s1830 + $0xc] sm:$0xf]
        %v1835 = vld [vmem:[%s1830 + $0x10] sm:$0xf]
        %v1836 = vld [vmem:[%s1830 + $0x14] sm:$0xf]
        %v1837 = vld [vmem:[%s1830 + $0x18] sm:$0xf]
        %v1838 = vld [vmem:[%s1830 + $0x1c] sm:$0xf]
        %v1847 = vunpack.c.l.b16 %v1831
        %v1848 = vunpack.c.l.b16 %v1832
        %v1849 = vunpack.c.l.b16 %v1833
        %v1850 = vunpack.c.l.b16 %v1834
        %v1851 = vunpack.c.l.b16 %v1835
        %v1852 = vunpack.c.l.b16 %v1836
        %v1853 = vunpack.c.l.b16 %v1837
        %v1854 = vunpack.c.l.b16 %v1838
        %v1855 = vpack.c.b16 %v1848, %v1847
        %v1856 = vpack.c.b16 %v1850, %v1849
        %v1857 = vpack.c.b16 %v1852, %v1851
        %v1858 = vpack.c.b16 %v1854, %v1853
        %v1864 = vsel %vm1203, %v1826, 0
        %v1867 = vsel %vm1203, %v1827, 0
        %v1870 = vsel %vm1203, %v1828, 0
        %v1873 = vsel %vm1203, %v1829, 0
        %1875 = vmatprep.subr.bf16.mxu0 0
        %1876 = vmatpush1.bf16.msra.mxu0 0
        %1877 = vmatprep.subr.bf16.mxu0 0
        %1878 = vmatpush1.bf16.msra.mxu0 0
        %1879 = vmatprep.subr.bf16.mxu0 0
        %1880 = vmatpush1.bf16.msra.mxu0 0
        %1881 = vmatprep.subr.bf16.mxu0 0
        %1882 = vmatpush1.bf16.msra.mxu0 0
        %1883 = vmatprep.subr.bf16.mxu0 0
        %1884 = vmatpush1.bf16.msra.mxu0 %v1858
        %1885 = vmatprep.subr.bf16.mxu0 0
        %1886 = vmatpush1.bf16.msra.mxu0 %v1857
        %1887 = vmatprep.subr.bf16.mxu0 0
        %1888 = vmatpush1.bf16.msra.mxu0 %v1856
        %1889 = vmatprep.subr.bf16.mxu0 0
        %1890 = vmatpush1.bf16.msra.mxu0 %v1855
        %1891 = vmatprep.subr.bf16.mxu0 0
        %1892 = vmatpush2.bf16.msra.mxu0 0
        %1893 = vmatprep.subr.bf16.mxu0 0
        %1894 = vmatpush2.bf16.msra.mxu0 0
        %1895 = vmatprep.subr.bf16.mxu0 0
        %1896 = vmatpush2.bf16.msra.mxu0 0
        %1897 = vmatprep.subr.bf16.mxu0 0
        %1898 = vmatpush2.bf16.msra.mxu0 0
        %1899 = vmatprep.subr.bf16.mxu0 0
        %1900 = vmatpush2.bf16.msra.mxu0 0
        %1901 = vmatprep.subr.bf16.mxu0 0
        %1902 = vmatpush2.bf16.msra.mxu0 0
        %1903 = vmatprep.subr.bf16.mxu0 0
        %1904 = vmatpush2.bf16.msra.mxu0 0
        %1905 = vmatprep.subr.bf16.mxu0 0
        %1906 = vmatpush2.bf16.msra.mxu0 0
        %1907 = vmatprep.mubr.bf16.mxu0 0
        %1908 = vmatmul.mubr.bf16.gmra.mxu0 %v1864
        %v1909 = vpop.f32.mrf.mxu0
        %v1910 = vadd.f32 0.0, %v1909
        %v1911 = vpop.f32.mrf.mxu0
        %v1912 = vpop.f32.mrf.mxu0
        %v1913 = vadd.f32 0.0, %v1912
        %v1914 = vpop.f32.mrf.mxu0
        %1915 = vmatprep.mubr.bf16.mxu0 0
        %1916 = vmatmul.mubr.bf16.gmra.mxu0 %v1867
        %v1917 = vpop.f32.mrf.mxu0
        %v1918 = vadd.f32 0.0, %v1917
        %v1919 = vpop.f32.mrf.mxu0
        %v1920 = vpop.f32.mrf.mxu0
        %v1921 = vadd.f32 0.0, %v1920
        %v1922 = vpop.f32.mrf.mxu0
        %1923 = vmatprep.mubr.bf16.mxu0 0
        %1924 = vmatmul.mubr.bf16.gmra.mxu0 %v1870
        %v1925 = vpop.f32.mrf.mxu0
        %v1926 = vadd.f32 0.0, %v1925
        %v1927 = vpop.f32.mrf.mxu0
        %v1928 = vpop.f32.mrf.mxu0
        %v1929 = vadd.f32 0.0, %v1928
        %v1930 = vpop.f32.mrf.mxu0
        %1931 = vmatprep.mubr.bf16.mxu0 0
        %1932 = vmatmul.mubr.bf16.gmra.mxu0 %v1873
        %v1933 = vpop.f32.mrf.mxu0
        %v1934 = vadd.f32 0.0, %v1933
        %v1935 = vpop.f32.mrf.mxu0
        %v1936 = vpop.f32.mrf.mxu0
        %v1937 = vadd.f32 0.0, %v1936
        %v1938 = vpop.f32.mrf.mxu0
        %1939 = vdwg.mxu0
        %v1948 = vunpack.c.l.b16 %v1810
        %v1949 = vunpack.c.l.b16 %v1811
        %v1950 = vunpack.c.l.b16 %v1812
        %v1951 = vunpack.c.l.b16 %v1813
        %v1952 = vunpack.c.l.b16 %v1814
        %v1953 = vunpack.c.l.b16 %v1815
        %v1954 = vunpack.c.l.b16 %v1816
        %v1955 = vunpack.c.l.b16 %v1817
        %v1956 = vpack.c.b16 %v1949, %v1948
        %v1957 = vpack.c.b16 %v1951, %v1950
        %v1958 = vpack.c.b16 %v1953, %v1952
        %v1959 = vpack.c.b16 %v1955, %v1954
        %v1965 = vsel %vm1203, %v1806, 0
        %v1968 = vsel %vm1203, %v1807, 0
        %v1971 = vsel %vm1203, %v1808, 0
        %v1974 = vsel %vm1203, %v1809, 0
        %1976 = vmatprep.subr.bf16.mxu0 0
        %1977 = vmatpush1.bf16.msra.mxu0 0
        %1978 = vmatprep.subr.bf16.mxu0 0
        %1979 = vmatpush1.bf16.msra.mxu0 0
        %1980 = vmatprep.subr.bf16.mxu0 0
        %1981 = vmatpush1.bf16.msra.mxu0 0
        %1982 = vmatprep.subr.bf16.mxu0 0
        %1983 = vmatpush1.bf16.msra.mxu0 0
        %1984 = vmatprep.subr.bf16.mxu0 0
        %1985 = vmatpush1.bf16.msra.mxu0 %v1959
        %1986 = vmatprep.subr.bf16.mxu0 0
        %1987 = vmatpush1.bf16.msra.mxu0 %v1958
        %1988 = vmatprep.subr.bf16.mxu0 0
        %1989 = vmatpush1.bf16.msra.mxu0 %v1957
        %1990 = vmatprep.subr.bf16.mxu0 0
        %1991 = vmatpush1.bf16.msra.mxu0 %v1956
        %1992 = vmatprep.subr.bf16.mxu0 0
        %1993 = vmatpush2.bf16.msra.mxu0 0
        %1994 = vmatprep.subr.bf16.mxu0 0
        %1995 = vmatpush2.bf16.msra.mxu0 0
        %1996 = vmatprep.subr.bf16.mxu0 0
        %1997 = vmatpush2.bf16.msra.mxu0 0
        %1998 = vmatprep.subr.bf16.mxu0 0
        %1999 = vmatpush2.bf16.msra.mxu0 0
        %2000 = vmatprep.subr.bf16.mxu0 0
        %2001 = vmatpush2.bf16.msra.mxu0 0
        %2002 = vmatprep.subr.bf16.mxu0 0
        %2003 = vmatpush2.bf16.msra.mxu0 0
        %2004 = vmatprep.subr.bf16.mxu0 0
        %2005 = vmatpush2.bf16.msra.mxu0 0
        %2006 = vmatprep.subr.bf16.mxu0 0
        %2007 = vmatpush2.bf16.msra.mxu0 0
        %2008 = vmatprep.mubr.bf16.mxu0 0
        %2009 = vmatmul.mubr.bf16.gmra.mxu0 %v1965
        %v2010 = vpop.f32.mrf.mxu0
        %v2011 = vadd.f32 %v1910, %v2010
        %v2012 = vpop.f32.mrf.mxu0
        %v2013 = vpop.f32.mrf.mxu0
        %v2014 = vadd.f32 %v1913, %v2013
        %v2015 = vpop.f32.mrf.mxu0
        %2016 = vmatprep.mubr.bf16.mxu0 0
        %2017 = vmatmul.mubr.bf16.gmra.mxu0 %v1968
        %v2018 = vpop.f32.mrf.mxu0
        %v2019 = vadd.f32 %v1918, %v2018
        %v2020 = vpop.f32.mrf.mxu0
        %v2021 = vpop.f32.mrf.mxu0
        %v2022 = vadd.f32 %v1921, %v2021
        %v2023 = vpop.f32.mrf.mxu0
        %2024 = vmatprep.mubr.bf16.mxu0 0
        %2025 = vmatmul.mubr.bf16.gmra.mxu0 %v1971
        %v2026 = vpop.f32.mrf.mxu0
        %v2027 = vadd.f32 %v1926, %v2026
        %v2028 = vpop.f32.mrf.mxu0
        %v2029 = vpop.f32.mrf.mxu0
        %v2030 = vadd.f32 %v1929, %v2029
        %v2031 = vpop.f32.mrf.mxu0
        %2032 = vmatprep.mubr.bf16.mxu0 0
        %2033 = vmatmul.mubr.bf16.gmra.mxu0 %v1974
        %v2034 = vpop.f32.mrf.mxu0
        %v2035 = vadd.f32 %v1934, %v2034
        %v2036 = vpop.f32.mrf.mxu0
        %v2037 = vpop.f32.mrf.mxu0
        %v2038 = vadd.f32 %v1937, %v2037
        %v2039 = vpop.f32.mrf.mxu0
        %2040 = vdwg.mxu0
        %v2041 = vld [vmem:[#allocation4 + $0x2] sm:$0xff]
        %v2042 = vld [vmem:[#allocation4 + $0x12] sm:$0xff]
        %v2043 = vld [vmem:[#allocation4 + $0x22] sm:$0xff]
        %v2044 = vld [vmem:[#allocation4 + $0x32] sm:$0xff]
        %v2045 = vld [vmem:[#allocation4 + $0x42] sm:$0xff]
        %v2046 = vld [vmem:[#allocation4 + $0x52] sm:$0xff]
        %v2047 = vld [vmem:[#allocation4 + $0x62] sm:$0xff]
        %v2048 = vld [vmem:[#allocation4 + $0x72] sm:$0xff]
        %v2049 = vpack.c.bf16 %v2042, %v2041
        %v2050 = vpack.c.bf16 %v2044, %v2043
        %v2051 = vpack.c.bf16 %v2046, %v2045
        %v2052 = vpack.c.bf16 %v2048, %v2047
        %s2053 = scalar_lea.vmem %s5, 64
        %v2054 = vld [vmem:[%s2053] sm:$0xf]
        %v2055 = vld [vmem:[%s2053 + $0x4] sm:$0xf]
        %v2056 = vld [vmem:[%s2053 + $0x8] sm:$0xf]
        %v2057 = vld [vmem:[%s2053 + $0xc] sm:$0xf]
        %v2058 = vld [vmem:[%s2053 + $0x10] sm:$0xf]
        %v2059 = vld [vmem:[%s2053 + $0x14] sm:$0xf]
        %v2060 = vld [vmem:[%s2053 + $0x18] sm:$0xf]
        %v2061 = vld [vmem:[%s2053 + $0x1c] sm:$0xf]
        %v2070 = vunpack.c.l.b16 %v2054
        %v2071 = vunpack.c.l.b16 %v2055
        %v2072 = vunpack.c.l.b16 %v2056
        %v2073 = vunpack.c.l.b16 %v2057
        %v2074 = vunpack.c.l.b16 %v2058
        %v2075 = vunpack.c.l.b16 %v2059
        %v2076 = vunpack.c.l.b16 %v2060
        %v2077 = vunpack.c.l.b16 %v2061
        %v2078 = vpack.c.b16 %v2071, %v2070
        %v2079 = vpack.c.b16 %v2073, %v2072
        %v2080 = vpack.c.b16 %v2075, %v2074
        %v2081 = vpack.c.b16 %v2077, %v2076
        %v2087 = vsel %vm1203, %v2049, 0
        %v2090 = vsel %vm1203, %v2050, 0
        %v2093 = vsel %vm1203, %v2051, 0
        %v2096 = vsel %vm1203, %v2052, 0
        %2098 = vmatprep.subr.bf16.mxu0 0
        %2099 = vmatpush1.bf16.msra.mxu0 0
        %2100 = vmatprep.subr.bf16.mxu0 0
        %2101 = vmatpush1.bf16.msra.mxu0 0
        %2102 = vmatprep.subr.bf16.mxu0 0
        %2103 = vmatpush1.bf16.msra.mxu0 0
        %2104 = vmatprep.subr.bf16.mxu0 0
        %2105 = vmatpush1.bf16.msra.mxu0 0
        %2106 = vmatprep.subr.bf16.mxu0 0
        %2107 = vmatpush1.bf16.msra.mxu0 %v2081
        %2108 = vmatprep.subr.bf16.mxu0 0
        %2109 = vmatpush1.bf16.msra.mxu0 %v2080
        %2110 = vmatprep.subr.bf16.mxu0 0
        %2111 = vmatpush1.bf16.msra.mxu0 %v2079
        %2112 = vmatprep.subr.bf16.mxu0 0
        %2113 = vmatpush1.bf16.msra.mxu0 %v2078
        %2114 = vmatprep.subr.bf16.mxu0 0
        %2115 = vmatpush2.bf16.msra.mxu0 0
        %2116 = vmatprep.subr.bf16.mxu0 0
        %2117 = vmatpush2.bf16.msra.mxu0 0
        %2118 = vmatprep.subr.bf16.mxu0 0
        %2119 = vmatpush2.bf16.msra.mxu0 0
        %2120 = vmatprep.subr.bf16.mxu0 0
        %2121 = vmatpush2.bf16.msra.mxu0 0
        %2122 = vmatprep.subr.bf16.mxu0 0
        %2123 = vmatpush2.bf16.msra.mxu0 0
        %2124 = vmatprep.subr.bf16.mxu0 0
        %2125 = vmatpush2.bf16.msra.mxu0 0
        %2126 = vmatprep.subr.bf16.mxu0 0
        %2127 = vmatpush2.bf16.msra.mxu0 0
        %2128 = vmatprep.subr.bf16.mxu0 0
        %2129 = vmatpush2.bf16.msra.mxu0 0
        %2130 = vmatprep.mubr.bf16.mxu0 0
        %2131 = vmatmul.mubr.bf16.gmra.mxu0 %v2087
        %v2132 = vpop.f32.mrf.mxu0
        %v2133 = vadd.f32 0.0, %v2132
        %v2134 = vpop.f32.mrf.mxu0
        %v2135 = vpop.f32.mrf.mxu0
        %v2136 = vadd.f32 0.0, %v2135
        %v2137 = vpop.f32.mrf.mxu0
        %2138 = vmatprep.mubr.bf16.mxu0 0
        %2139 = vmatmul.mubr.bf16.gmra.mxu0 %v2090
        %v2140 = vpop.f32.mrf.mxu0
        %v2141 = vadd.f32 0.0, %v2140
        %v2142 = vpop.f32.mrf.mxu0
        %v2143 = vpop.f32.mrf.mxu0
        %v2144 = vadd.f32 0.0, %v2143
        %v2145 = vpop.f32.mrf.mxu0
        %2146 = vmatprep.mubr.bf16.mxu0 0
        %2147 = vmatmul.mubr.bf16.gmra.mxu0 %v2093
        %v2148 = vpop.f32.mrf.mxu0
        %v2149 = vadd.f32 0.0, %v2148
        %v2150 = vpop.f32.mrf.mxu0
        %v2151 = vpop.f32.mrf.mxu0
        %v2152 = vadd.f32 0.0, %v2151
        %v2153 = vpop.f32.mrf.mxu0
        %2154 = vmatprep.mubr.bf16.mxu0 0
        %2155 = vmatmul.mubr.bf16.gmra.mxu0 %v2096
        %v2156 = vpop.f32.mrf.mxu0
        %v2157 = vadd.f32 0.0, %v2156
        %v2158 = vpop.f32.mrf.mxu0
        %v2159 = vpop.f32.mrf.mxu0
        %v2160 = vadd.f32 0.0, %v2159
        %v2161 = vpop.f32.mrf.mxu0
        %2162 = vdwg.mxu0
        %v2163 = vadd.f32 %v2011, %v2133
        %v2164 = vadd.f32 %v2014, %v2136
        %v2165 = vadd.f32 %v2019, %v2141
        %v2166 = vadd.f32 %v2022, %v2144
        %v2167 = vadd.f32 %v2027, %v2149
        %v2168 = vadd.f32 %v2030, %v2152
        %v2169 = vadd.f32 %v2035, %v2157
        %v2170 = vadd.f32 %v2038, %v2160
        %v2171 = vld [vmem:[%s1789] sm:$0xff]
        %v2172 = vld [vmem:[%s1789 + $0x10] sm:$0xff]
        %v2173 = vld [vmem:[%s1789 + $0x20] sm:$0xff]
        %v2174 = vld [vmem:[%s1789 + $0x30] sm:$0xff]
        %v2175 = vld [vmem:[%s1789 + $0x40] sm:$0xff]
        %v2176 = vld [vmem:[%s1789 + $0x50] sm:$0xff]
        %v2177 = vld [vmem:[%s1789 + $0x60] sm:$0xff]
        %v2178 = vld [vmem:[%s1789 + $0x70] sm:$0xff]
        %v2179 = vpack.c.bf16 %v2172, %v2171
        %v2180 = vpack.c.bf16 %v2174, %v2173
        %v2181 = vpack.c.bf16 %v2176, %v2175
        %v2182 = vpack.c.bf16 %v2178, %v2177
        %s2183 = scalar_lea.vmem %s5, 96
        %v2184 = vld [vmem:[%s2183] sm:$0xf]
        %v2185 = vld [vmem:[%s2183 + $0x4] sm:$0xf]
        %v2186 = vld [vmem:[%s2183 + $0x8] sm:$0xf]
        %v2187 = vld [vmem:[%s2183 + $0xc] sm:$0xf]
        %v2188 = vld [vmem:[%s2183 + $0x10] sm:$0xf]
        %v2189 = vld [vmem:[%s2183 + $0x14] sm:$0xf]
        %v2190 = vld [vmem:[%s2183 + $0x18] sm:$0xf]
        %v2191 = vld [vmem:[%s2183 + $0x1c] sm:$0xf]
        %v2200 = vunpack.c.l.b16 %v2184
        %v2201 = vunpack.c.l.b16 %v2185
        %v2202 = vunpack.c.l.b16 %v2186
        %v2203 = vunpack.c.l.b16 %v2187
        %v2204 = vunpack.c.l.b16 %v2188
        %v2205 = vunpack.c.l.b16 %v2189
        %v2206 = vunpack.c.l.b16 %v2190
        %v2207 = vunpack.c.l.b16 %v2191
        %v2208 = vpack.c.b16 %v2201, %v2200
        %v2209 = vpack.c.b16 %v2203, %v2202
        %v2210 = vpack.c.b16 %v2205, %v2204
        %v2211 = vpack.c.b16 %v2207, %v2206
        %v2217 = vsel %vm1203, %v2179, 0
        %v2220 = vsel %vm1203, %v2180, 0
        %v2223 = vsel %vm1203, %v2181, 0
        %v2226 = vsel %vm1203, %v2182, 0
        %2228 = vmatprep.subr.bf16.mxu0 0
        %2229 = vmatpush1.bf16.msra.mxu0 0
        %2230 = vmatprep.subr.bf16.mxu0 0
        %2231 = vmatpush1.bf16.msra.mxu0 0
        %2232 = vmatprep.subr.bf16.mxu0 0
        %2233 = vmatpush1.bf16.msra.mxu0 0
        %2234 = vmatprep.subr.bf16.mxu0 0
        %2235 = vmatpush1.bf16.msra.mxu0 0
        %2236 = vmatprep.subr.bf16.mxu0 0
        %2237 = vmatpush1.bf16.msra.mxu0 %v2211
        %2238 = vmatprep.subr.bf16.mxu0 0
        %2239 = vmatpush1.bf16.msra.mxu0 %v2210
        %2240 = vmatprep.subr.bf16.mxu0 0
        %2241 = vmatpush1.bf16.msra.mxu0 %v2209
        %2242 = vmatprep.subr.bf16.mxu0 0
        %2243 = vmatpush1.bf16.msra.mxu0 %v2208
        %2244 = vmatprep.subr.bf16.mxu0 0
        %2245 = vmatpush2.bf16.msra.mxu0 0
        %2246 = vmatprep.subr.bf16.mxu0 0
        %2247 = vmatpush2.bf16.msra.mxu0 0
        %2248 = vmatprep.subr.bf16.mxu0 0
        %2249 = vmatpush2.bf16.msra.mxu0 0
        %2250 = vmatprep.subr.bf16.mxu0 0
        %2251 = vmatpush2.bf16.msra.mxu0 0
        %2252 = vmatprep.subr.bf16.mxu0 0
        %2253 = vmatpush2.bf16.msra.mxu0 0
        %2254 = vmatprep.subr.bf16.mxu0 0
        %2255 = vmatpush2.bf16.msra.mxu0 0
        %2256 = vmatprep.subr.bf16.mxu0 0
        %2257 = vmatpush2.bf16.msra.mxu0 0
        %2258 = vmatprep.subr.bf16.mxu0 0
        %2259 = vmatpush2.bf16.msra.mxu0 0
        %2260 = vmatprep.mubr.bf16.mxu0 0
        %2261 = vmatmul.mubr.bf16.gmra.mxu0 %v2217
        %v2262 = vpop.f32.mrf.mxu0
        %v2263 = vadd.f32 0.0, %v2262
        %v2264 = vpop.f32.mrf.mxu0
        %v2265 = vpop.f32.mrf.mxu0
        %v2266 = vadd.f32 0.0, %v2265
        %v2267 = vpop.f32.mrf.mxu0
        %2268 = vmatprep.mubr.bf16.mxu0 0
        %2269 = vmatmul.mubr.bf16.gmra.mxu0 %v2220
        %v2270 = vpop.f32.mrf.mxu0
        %v2271 = vadd.f32 0.0, %v2270
        %v2272 = vpop.f32.mrf.mxu0
        %v2273 = vpop.f32.mrf.mxu0
        %v2274 = vadd.f32 0.0, %v2273
        %v2275 = vpop.f32.mrf.mxu0
        %2276 = vmatprep.mubr.bf16.mxu0 0
        %2277 = vmatmul.mubr.bf16.gmra.mxu0 %v2223
        %v2278 = vpop.f32.mrf.mxu0
        %v2279 = vadd.f32 0.0, %v2278
        %v2280 = vpop.f32.mrf.mxu0
        %v2281 = vpop.f32.mrf.mxu0
        %v2282 = vadd.f32 0.0, %v2281
        %v2283 = vpop.f32.mrf.mxu0
        %2284 = vmatprep.mubr.bf16.mxu0 0
        %2285 = vmatmul.mubr.bf16.gmra.mxu0 %v2226
        %v2286 = vpop.f32.mrf.mxu0
        %v2287 = vadd.f32 0.0, %v2286
        %v2288 = vpop.f32.mrf.mxu0
        %v2289 = vpop.f32.mrf.mxu0
        %v2290 = vadd.f32 0.0, %v2289
        %v2291 = vpop.f32.mrf.mxu0
        %2292 = vdwg.mxu0
        %v2293 = vadd.f32 %v2163, %v2263
        %v2294 = vadd.f32 %v2164, %v2266
        %v2295 = vadd.f32 %v2165, %v2271
        %v2296 = vadd.f32 %v2166, %v2274
        %v2297 = vadd.f32 %v2167, %v2279
        %v2298 = vadd.f32 %v2168, %v2282
        %v2299 = vadd.f32 %v2169, %v2287
        %v2300 = vadd.f32 %v2170, %v2290
        %v2301 = vld [vmem:[%s1789 + $0x1] sm:$0xff]
        %v2302 = vld [vmem:[%s1789 + $0x11] sm:$0xff]
        %v2303 = vld [vmem:[%s1789 + $0x21] sm:$0xff]
        %v2304 = vld [vmem:[%s1789 + $0x31] sm:$0xff]
        %v2305 = vld [vmem:[%s1789 + $0x41] sm:$0xff]
        %v2306 = vld [vmem:[%s1789 + $0x51] sm:$0xff]
        %v2307 = vld [vmem:[%s1789 + $0x61] sm:$0xff]
        %v2308 = vld [vmem:[%s1789 + $0x71] sm:$0xff]
        %v2309 = vpack.c.bf16 %v2302, %v2301
        %v2310 = vpack.c.bf16 %v2304, %v2303
        %v2311 = vpack.c.bf16 %v2306, %v2305
        %v2312 = vpack.c.bf16 %v2308, %v2307
        %s2313 = scalar_lea.vmem %s5, 128
        %v2314 = vld [vmem:[%s2313] sm:$0xf]
        %v2315 = vld [vmem:[%s2313 + $0x4] sm:$0xf]
        %v2316 = vld [vmem:[%s2313 + $0x8] sm:$0xf]
        %v2317 = vld [vmem:[%s2313 + $0xc] sm:$0xf]
        %v2318 = vld [vmem:[%s2313 + $0x10] sm:$0xf]
        %v2319 = vld [vmem:[%s2313 + $0x14] sm:$0xf]
        %v2320 = vld [vmem:[%s2313 + $0x18] sm:$0xf]
        %v2321 = vld [vmem:[%s2313 + $0x1c] sm:$0xf]
        %v2330 = vunpack.c.l.b16 %v2314
        %v2331 = vunpack.c.l.b16 %v2315
        %v2332 = vunpack.c.l.b16 %v2316
        %v2333 = vunpack.c.l.b16 %v2317
        %v2334 = vunpack.c.l.b16 %v2318
        %v2335 = vunpack.c.l.b16 %v2319
        %v2336 = vunpack.c.l.b16 %v2320
        %v2337 = vunpack.c.l.b16 %v2321
        %v2338 = vpack.c.b16 %v2331, %v2330
        %v2339 = vpack.c.b16 %v2333, %v2332
        %v2340 = vpack.c.b16 %v2335, %v2334
        %v2341 = vpack.c.b16 %v2337, %v2336
        %v2347 = vsel %vm1203, %v2309, 0
        %v2350 = vsel %vm1203, %v2310, 0
        %v2353 = vsel %vm1203, %v2311, 0
        %v2356 = vsel %vm1203, %v2312, 0
        %2358 = vmatprep.subr.bf16.mxu0 0
        %2359 = vmatpush1.bf16.msra.mxu0 0
        %2360 = vmatprep.subr.bf16.mxu0 0
        %2361 = vmatpush1.bf16.msra.mxu0 0
        %2362 = vmatprep.subr.bf16.mxu0 0
        %2363 = vmatpush1.bf16.msra.mxu0 0
        %2364 = vmatprep.subr.bf16.mxu0 0
        %2365 = vmatpush1.bf16.msra.mxu0 0
        %2366 = vmatprep.subr.bf16.mxu0 0
        %2367 = vmatpush1.bf16.msra.mxu0 %v2341
        %2368 = vmatprep.subr.bf16.mxu0 0
        %2369 = vmatpush1.bf16.msra.mxu0 %v2340
        %2370 = vmatprep.subr.bf16.mxu0 0
        %2371 = vmatpush1.bf16.msra.mxu0 %v2339
        %2372 = vmatprep.subr.bf16.mxu0 0
        %2373 = vmatpush1.bf16.msra.mxu0 %v2338
        %2374 = vmatprep.subr.bf16.mxu0 0
        %2375 = vmatpush2.bf16.msra.mxu0 0
        %2376 = vmatprep.subr.bf16.mxu0 0
        %2377 = vmatpush2.bf16.msra.mxu0 0
        %2378 = vmatprep.subr.bf16.mxu0 0
        %2379 = vmatpush2.bf16.msra.mxu0 0
        %2380 = vmatprep.subr.bf16.mxu0 0
        %2381 = vmatpush2.bf16.msra.mxu0 0
        %2382 = vmatprep.subr.bf16.mxu0 0
        %2383 = vmatpush2.bf16.msra.mxu0 0
        %2384 = vmatprep.subr.bf16.mxu0 0
        %2385 = vmatpush2.bf16.msra.mxu0 0
        %2386 = vmatprep.subr.bf16.mxu0 0
        %2387 = vmatpush2.bf16.msra.mxu0 0
        %2388 = vmatprep.subr.bf16.mxu0 0
        %2389 = vmatpush2.bf16.msra.mxu0 0
        %2390 = vmatprep.mubr.bf16.mxu0 0
        %2391 = vmatmul.mubr.bf16.gmra.mxu0 %v2347
        %v2392 = vpop.f32.mrf.mxu0
        %v2393 = vadd.f32 0.0, %v2392
        %v2394 = vpop.f32.mrf.mxu0
        %v2395 = vpop.f32.mrf.mxu0
        %v2396 = vadd.f32 0.0, %v2395
        %v2397 = vpop.f32.mrf.mxu0
        %2398 = vmatprep.mubr.bf16.mxu0 0
        %2399 = vmatmul.mubr.bf16.gmra.mxu0 %v2350
        %v2400 = vpop.f32.mrf.mxu0
        %v2401 = vadd.f32 0.0, %v2400
        %v2402 = vpop.f32.mrf.mxu0
        %v2403 = vpop.f32.mrf.mxu0
        %v2404 = vadd.f32 0.0, %v2403
        %v2405 = vpop.f32.mrf.mxu0
        %2406 = vmatprep.mubr.bf16.mxu0 0
        %2407 = vmatmul.mubr.bf16.gmra.mxu0 %v2353
        %v2408 = vpop.f32.mrf.mxu0
        %v2409 = vadd.f32 0.0, %v2408
        %v2410 = vpop.f32.mrf.mxu0
        %v2411 = vpop.f32.mrf.mxu0
        %v2412 = vadd.f32 0.0, %v2411
        %v2413 = vpop.f32.mrf.mxu0
        %2414 = vmatprep.mubr.bf16.mxu0 0
        %2415 = vmatmul.mubr.bf16.gmra.mxu0 %v2356
        %v2416 = vpop.f32.mrf.mxu0
        %v2417 = vadd.f32 0.0, %v2416
        %v2418 = vpop.f32.mrf.mxu0
        %v2419 = vpop.f32.mrf.mxu0
        %v2420 = vadd.f32 0.0, %v2419
        %v2421 = vpop.f32.mrf.mxu0
        %2422 = vdwg.mxu0
        %v2423 = vadd.f32 %v2293, %v2393
        %v2424 = vadd.f32 %v2294, %v2396
        %v2425 = vadd.f32 %v2295, %v2401
        %v2426 = vadd.f32 %v2296, %v2404
        %v2427 = vadd.f32 %v2297, %v2409
        %v2428 = vadd.f32 %v2298, %v2412
        %v2429 = vadd.f32 %v2299, %v2417
        %v2430 = vadd.f32 %v2300, %v2420
        %v2431 = vld [vmem:[%s1789 + $0x2] sm:$0xff]
        %v2432 = vld [vmem:[%s1789 + $0x12] sm:$0xff]
        %v2433 = vld [vmem:[%s1789 + $0x22] sm:$0xff]
        %v2434 = vld [vmem:[%s1789 + $0x32] sm:$0xff]
        %v2435 = vld [vmem:[%s1789 + $0x42] sm:$0xff]
        %v2436 = vld [vmem:[%s1789 + $0x52] sm:$0xff]
        %v2437 = vld [vmem:[%s1789 + $0x62] sm:$0xff]
        %v2438 = vld [vmem:[%s1789 + $0x72] sm:$0xff]
        %v2439 = vpack.c.bf16 %v2432, %v2431
        %v2440 = vpack.c.bf16 %v2434, %v2433
        %v2441 = vpack.c.bf16 %v2436, %v2435
        %v2442 = vpack.c.bf16 %v2438, %v2437
        %s2443 = scalar_lea.vmem %s5, 160
        %v2444 = vld [vmem:[%s2443] sm:$0xf]
        %v2445 = vld [vmem:[%s2443 + $0x4] sm:$0xf]
        %v2446 = vld [vmem:[%s2443 + $0x8] sm:$0xf]
        %v2447 = vld [vmem:[%s2443 + $0xc] sm:$0xf]
        %v2448 = vld [vmem:[%s2443 + $0x10] sm:$0xf]
        %v2449 = vld [vmem:[%s2443 + $0x14] sm:$0xf]
        %v2450 = vld [vmem:[%s2443 + $0x18] sm:$0xf]
        %v2451 = vld [vmem:[%s2443 + $0x1c] sm:$0xf]
        %v2460 = vunpack.c.l.b16 %v2444
        %v2461 = vunpack.c.l.b16 %v2445
        %v2462 = vunpack.c.l.b16 %v2446
        %v2463 = vunpack.c.l.b16 %v2447
        %v2464 = vunpack.c.l.b16 %v2448
        %v2465 = vunpack.c.l.b16 %v2449
        %v2466 = vunpack.c.l.b16 %v2450
        %v2467 = vunpack.c.l.b16 %v2451
        %v2468 = vpack.c.b16 %v2461, %v2460
        %v2469 = vpack.c.b16 %v2463, %v2462
        %v2470 = vpack.c.b16 %v2465, %v2464
        %v2471 = vpack.c.b16 %v2467, %v2466
        %v2477 = vsel %vm1203, %v2439, 0
        %v2480 = vsel %vm1203, %v2440, 0
        %v2483 = vsel %vm1203, %v2441, 0
        %v2486 = vsel %vm1203, %v2442, 0
        %2488 = vmatprep.subr.bf16.mxu0 0
        %2489 = vmatpush1.bf16.msra.mxu0 0
        %2490 = vmatprep.subr.bf16.mxu0 0
        %2491 = vmatpush1.bf16.msra.mxu0 0
        %2492 = vmatprep.subr.bf16.mxu0 0
        %2493 = vmatpush1.bf16.msra.mxu0 0
        %2494 = vmatprep.subr.bf16.mxu0 0
        %2495 = vmatpush1.bf16.msra.mxu0 0
        %2496 = vmatprep.subr.bf16.mxu0 0
        %2497 = vmatpush1.bf16.msra.mxu0 %v2471
        %2498 = vmatprep.subr.bf16.mxu0 0
        %2499 = vmatpush1.bf16.msra.mxu0 %v2470
        %2500 = vmatprep.subr.bf16.mxu0 0
        %2501 = vmatpush1.bf16.msra.mxu0 %v2469
        %2502 = vmatprep.subr.bf16.mxu0 0
        %2503 = vmatpush1.bf16.msra.mxu0 %v2468
        %2504 = vmatprep.subr.bf16.mxu0 0
        %2505 = vmatpush2.bf16.msra.mxu0 0
        %2506 = vmatprep.subr.bf16.mxu0 0
        %2507 = vmatpush2.bf16.msra.mxu0 0
        %2508 = vmatprep.subr.bf16.mxu0 0
        %2509 = vmatpush2.bf16.msra.mxu0 0
        %2510 = vmatprep.subr.bf16.mxu0 0
        %2511 = vmatpush2.bf16.msra.mxu0 0
        %2512 = vmatprep.subr.bf16.mxu0 0
        %2513 = vmatpush2.bf16.msra.mxu0 0
        %2514 = vmatprep.subr.bf16.mxu0 0
        %2515 = vmatpush2.bf16.msra.mxu0 0
        %2516 = vmatprep.subr.bf16.mxu0 0
        %2517 = vmatpush2.bf16.msra.mxu0 0
        %2518 = vmatprep.subr.bf16.mxu0 0
        %2519 = vmatpush2.bf16.msra.mxu0 0
        %2520 = vmatprep.mubr.bf16.mxu0 0
        %2521 = vmatmul.mubr.bf16.gmra.mxu0 %v2477
        %v2522 = vpop.f32.mrf.mxu0
        %v2523 = vadd.f32 0.0, %v2522
        %v2524 = vpop.f32.mrf.mxu0
        %v2525 = vpop.f32.mrf.mxu0
        %v2526 = vadd.f32 0.0, %v2525
        %v2527 = vpop.f32.mrf.mxu0
        %2528 = vmatprep.mubr.bf16.mxu0 0
        %2529 = vmatmul.mubr.bf16.gmra.mxu0 %v2480
        %v2530 = vpop.f32.mrf.mxu0
        %v2531 = vadd.f32 0.0, %v2530
        %v2532 = vpop.f32.mrf.mxu0
        %v2533 = vpop.f32.mrf.mxu0
        %v2534 = vadd.f32 0.0, %v2533
        %v2535 = vpop.f32.mrf.mxu0
        %2536 = vmatprep.mubr.bf16.mxu0 0
        %2537 = vmatmul.mubr.bf16.gmra.mxu0 %v2483
        %v2538 = vpop.f32.mrf.mxu0
        %v2539 = vadd.f32 0.0, %v2538
        %v2540 = vpop.f32.mrf.mxu0
        %v2541 = vpop.f32.mrf.mxu0
        %v2542 = vadd.f32 0.0, %v2541
        %v2543 = vpop.f32.mrf.mxu0
        %2544 = vmatprep.mubr.bf16.mxu0 0
        %2545 = vmatmul.mubr.bf16.gmra.mxu0 %v2486
        %v2546 = vpop.f32.mrf.mxu0
        %v2547 = vadd.f32 0.0, %v2546
        %v2548 = vpop.f32.mrf.mxu0
        %v2549 = vpop.f32.mrf.mxu0
        %v2550 = vadd.f32 0.0, %v2549
        %v2551 = vpop.f32.mrf.mxu0
        %2552 = vdwg.mxu0
        %v2553 = vadd.f32 %v2423, %v2523
        %v2554 = vadd.f32 %v2424, %v2526
        %v2555 = vadd.f32 %v2425, %v2531
        %v2556 = vadd.f32 %v2426, %v2534
        %v2557 = vadd.f32 %v2427, %v2539
        %v2558 = vadd.f32 %v2428, %v2542
        %v2559 = vadd.f32 %v2429, %v2547
        %v2560 = vadd.f32 %v2430, %v2550
        %s2561 = scalar_lea.vmem [#allocation4], 32
        %v2562 = vld [vmem:[%s2561] sm:$0xff]
        %v2563 = vld [vmem:[%s2561 + $0x10] sm:$0xff]
        %v2564 = vld [vmem:[%s2561 + $0x20] sm:$0xff]
        %v2565 = vld [vmem:[%s2561 + $0x30] sm:$0xff]
        %v2566 = vld [vmem:[%s2561 + $0x40] sm:$0xff]
        %v2567 = vld [vmem:[%s2561 + $0x50] sm:$0xff]
        %v2568 = vld [vmem:[%s2561 + $0x60] sm:$0xff]
        %v2569 = vld [vmem:[%s2561 + $0x70] sm:$0xff]
        %v2570 = vpack.c.bf16 %v2563, %v2562
        %v2571 = vpack.c.bf16 %v2565, %v2564
        %v2572 = vpack.c.bf16 %v2567, %v2566
        %v2573 = vpack.c.bf16 %v2569, %v2568
        %s2574 = scalar_lea.vmem %s5, 192
        %v2575 = vld [vmem:[%s2574] sm:$0xf]
        %v2576 = vld [vmem:[%s2574 + $0x4] sm:$0xf]
        %v2577 = vld [vmem:[%s2574 + $0x8] sm:$0xf]
        %v2578 = vld [vmem:[%s2574 + $0xc] sm:$0xf]
        %v2579 = vld [vmem:[%s2574 + $0x10] sm:$0xf]
        %v2580 = vld [vmem:[%s2574 + $0x14] sm:$0xf]
        %v2581 = vld [vmem:[%s2574 + $0x18] sm:$0xf]
        %v2582 = vld [vmem:[%s2574 + $0x1c] sm:$0xf]
        %v2591 = vunpack.c.l.b16 %v2575
        %v2592 = vunpack.c.l.b16 %v2576
        %v2593 = vunpack.c.l.b16 %v2577
        %v2594 = vunpack.c.l.b16 %v2578
        %v2595 = vunpack.c.l.b16 %v2579
        %v2596 = vunpack.c.l.b16 %v2580
        %v2597 = vunpack.c.l.b16 %v2581
        %v2598 = vunpack.c.l.b16 %v2582
        %v2599 = vpack.c.b16 %v2592, %v2591
        %v2600 = vpack.c.b16 %v2594, %v2593
        %v2601 = vpack.c.b16 %v2596, %v2595
        %v2602 = vpack.c.b16 %v2598, %v2597
        %v2608 = vsel %vm1203, %v2570, 0
        %v2611 = vsel %vm1203, %v2571, 0
        %v2614 = vsel %vm1203, %v2572, 0
        %v2617 = vsel %vm1203, %v2573, 0
        %2619 = vmatprep.subr.bf16.mxu0 0
        %2620 = vmatpush1.bf16.msra.mxu0 0
        %2621 = vmatprep.subr.bf16.mxu0 0
        %2622 = vmatpush1.bf16.msra.mxu0 0
        %2623 = vmatprep.subr.bf16.mxu0 0
        %2624 = vmatpush1.bf16.msra.mxu0 0
        %2625 = vmatprep.subr.bf16.mxu0 0
        %2626 = vmatpush1.bf16.msra.mxu0 0
        %2627 = vmatprep.subr.bf16.mxu0 0
        %2628 = vmatpush1.bf16.msra.mxu0 %v2602
        %2629 = vmatprep.subr.bf16.mxu0 0
        %2630 = vmatpush1.bf16.msra.mxu0 %v2601
        %2631 = vmatprep.subr.bf16.mxu0 0
        %2632 = vmatpush1.bf16.msra.mxu0 %v2600
        %2633 = vmatprep.subr.bf16.mxu0 0
        %2634 = vmatpush1.bf16.msra.mxu0 %v2599
        %2635 = vmatprep.subr.bf16.mxu0 0
        %2636 = vmatpush2.bf16.msra.mxu0 0
        %2637 = vmatprep.subr.bf16.mxu0 0
        %2638 = vmatpush2.bf16.msra.mxu0 0
        %2639 = vmatprep.subr.bf16.mxu0 0
        %2640 = vmatpush2.bf16.msra.mxu0 0
        %2641 = vmatprep.subr.bf16.mxu0 0
        %2642 = vmatpush2.bf16.msra.mxu0 0
        %2643 = vmatprep.subr.bf16.mxu0 0
        %2644 = vmatpush2.bf16.msra.mxu0 0
        %2645 = vmatprep.subr.bf16.mxu0 0
        %2646 = vmatpush2.bf16.msra.mxu0 0
        %2647 = vmatprep.subr.bf16.mxu0 0
        %2648 = vmatpush2.bf16.msra.mxu0 0
        %2649 = vmatprep.subr.bf16.mxu0 0
        %2650 = vmatpush2.bf16.msra.mxu0 0
        %2651 = vmatprep.mubr.bf16.mxu0 0
        %2652 = vmatmul.mubr.bf16.gmra.mxu0 %v2608
        %v2653 = vpop.f32.mrf.mxu0
        %v2654 = vadd.f32 0.0, %v2653
        %v2655 = vpop.f32.mrf.mxu0
        %v2656 = vpop.f32.mrf.mxu0
        %v2657 = vadd.f32 0.0, %v2656
        %v2658 = vpop.f32.mrf.mxu0
        %2659 = vmatprep.mubr.bf16.mxu0 0
        %2660 = vmatmul.mubr.bf16.gmra.mxu0 %v2611
        %v2661 = vpop.f32.mrf.mxu0
        %v2662 = vadd.f32 0.0, %v2661
        %v2663 = vpop.f32.mrf.mxu0
        %v2664 = vpop.f32.mrf.mxu0
        %v2665 = vadd.f32 0.0, %v2664
        %v2666 = vpop.f32.mrf.mxu0
        %2667 = vmatprep.mubr.bf16.mxu0 0
        %2668 = vmatmul.mubr.bf16.gmra.mxu0 %v2614
        %v2669 = vpop.f32.mrf.mxu0
        %v2670 = vadd.f32 0.0, %v2669
        %v2671 = vpop.f32.mrf.mxu0
        %v2672 = vpop.f32.mrf.mxu0
        %v2673 = vadd.f32 0.0, %v2672
        %v2674 = vpop.f32.mrf.mxu0
        %2675 = vmatprep.mubr.bf16.mxu0 0
        %2676 = vmatmul.mubr.bf16.gmra.mxu0 %v2617
        %v2677 = vpop.f32.mrf.mxu0
        %v2678 = vadd.f32 0.0, %v2677
        %v2679 = vpop.f32.mrf.mxu0
        %v2680 = vpop.f32.mrf.mxu0
        %v2681 = vadd.f32 0.0, %v2680
        %v2682 = vpop.f32.mrf.mxu0
        %2683 = vdwg.mxu0
        %v2684 = vadd.f32 %v2553, %v2654
        %v2685 = vadd.f32 %v2554, %v2657
        %v2686 = vadd.f32 %v2555, %v2662
        %v2687 = vadd.f32 %v2556, %v2665
        %v2688 = vadd.f32 %v2557, %v2670
        %v2689 = vadd.f32 %v2558, %v2673
        %v2690 = vadd.f32 %v2559, %v2678
        %v2691 = vadd.f32 %v2560, %v2681
        %v2692 = vld [vmem:[%s2561 + $0x1] sm:$0xff]
        %v2693 = vld [vmem:[%s2561 + $0x11] sm:$0xff]
        %v2694 = vld [vmem:[%s2561 + $0x21] sm:$0xff]
        %v2695 = vld [vmem:[%s2561 + $0x31] sm:$0xff]
        %v2696 = vld [vmem:[%s2561 + $0x41] sm:$0xff]
        %v2697 = vld [vmem:[%s2561 + $0x51] sm:$0xff]
        %v2698 = vld [vmem:[%s2561 + $0x61] sm:$0xff]
        %v2699 = vld [vmem:[%s2561 + $0x71] sm:$0xff]
        %v2700 = vpack.c.bf16 %v2693, %v2692
        %v2701 = vpack.c.bf16 %v2695, %v2694
        %v2702 = vpack.c.bf16 %v2697, %v2696
        %v2703 = vpack.c.bf16 %v2699, %v2698
        %s2704 = scalar_lea.vmem %s5, 224
        %v2705 = vld [vmem:[%s2704] sm:$0xf]
        %v2706 = vld [vmem:[%s2704 + $0x4] sm:$0xf]
        %v2707 = vld [vmem:[%s2704 + $0x8] sm:$0xf]
        %v2708 = vld [vmem:[%s2704 + $0xc] sm:$0xf]
        %v2709 = vld [vmem:[%s2704 + $0x10] sm:$0xf]
        %v2710 = vld [vmem:[%s2704 + $0x14] sm:$0xf]
        %v2711 = vld [vmem:[%s2704 + $0x18] sm:$0xf]
        %v2712 = vld [vmem:[%s2704 + $0x1c] sm:$0xf]
        %v2721 = vunpack.c.l.b16 %v2705
        %v2722 = vunpack.c.l.b16 %v2706
        %v2723 = vunpack.c.l.b16 %v2707
        %v2724 = vunpack.c.l.b16 %v2708
        %v2725 = vunpack.c.l.b16 %v2709
        %v2726 = vunpack.c.l.b16 %v2710
        %v2727 = vunpack.c.l.b16 %v2711
        %v2728 = vunpack.c.l.b16 %v2712
        %v2729 = vpack.c.b16 %v2722, %v2721
        %v2730 = vpack.c.b16 %v2724, %v2723
        %v2731 = vpack.c.b16 %v2726, %v2725
        %v2732 = vpack.c.b16 %v2728, %v2727
        %v2738 = vsel %vm1203, %v2700, 0
        %v2741 = vsel %vm1203, %v2701, 0
        %v2744 = vsel %vm1203, %v2702, 0
        %v2747 = vsel %vm1203, %v2703, 0
        %2749 = vmatprep.subr.bf16.mxu0 0
        %2750 = vmatpush1.bf16.msra.mxu0 0
        %2751 = vmatprep.subr.bf16.mxu0 0
        %2752 = vmatpush1.bf16.msra.mxu0 0
        %2753 = vmatprep.subr.bf16.mxu0 0
        %2754 = vmatpush1.bf16.msra.mxu0 0
        %2755 = vmatprep.subr.bf16.mxu0 0
        %2756 = vmatpush1.bf16.msra.mxu0 0
        %2757 = vmatprep.subr.bf16.mxu0 0
        %2758 = vmatpush1.bf16.msra.mxu0 %v2732
        %2759 = vmatprep.subr.bf16.mxu0 0
        %2760 = vmatpush1.bf16.msra.mxu0 %v2731
        %2761 = vmatprep.subr.bf16.mxu0 0
        %2762 = vmatpush1.bf16.msra.mxu0 %v2730
        %2763 = vmatprep.subr.bf16.mxu0 0
        %2764 = vmatpush1.bf16.msra.mxu0 %v2729
        %2765 = vmatprep.subr.bf16.mxu0 0
        %2766 = vmatpush2.bf16.msra.mxu0 0
        %2767 = vmatprep.subr.bf16.mxu0 0
        %2768 = vmatpush2.bf16.msra.mxu0 0
        %2769 = vmatprep.subr.bf16.mxu0 0
        %2770 = vmatpush2.bf16.msra.mxu0 0
        %2771 = vmatprep.subr.bf16.mxu0 0
        %2772 = vmatpush2.bf16.msra.mxu0 0
        %2773 = vmatprep.subr.bf16.mxu0 0
        %2774 = vmatpush2.bf16.msra.mxu0 0
        %2775 = vmatprep.subr.bf16.mxu0 0
        %2776 = vmatpush2.bf16.msra.mxu0 0
        %2777 = vmatprep.subr.bf16.mxu0 0
        %2778 = vmatpush2.bf16.msra.mxu0 0
        %2779 = vmatprep.subr.bf16.mxu0 0
        %2780 = vmatpush2.bf16.msra.mxu0 0
        %2781 = vmatprep.mubr.bf16.mxu0 0
        %2782 = vmatmul.mubr.bf16.gmra.mxu0 %v2738
        %v2783 = vpop.f32.mrf.mxu0
        %v2784 = vadd.f32 0.0, %v2783
        %v2785 = vpop.f32.mrf.mxu0
        %v2786 = vpop.f32.mrf.mxu0
        %v2787 = vadd.f32 0.0, %v2786
        %v2788 = vpop.f32.mrf.mxu0
        %2789 = vmatprep.mubr.bf16.mxu0 0
        %2790 = vmatmul.mubr.bf16.gmra.mxu0 %v2741
        %v2791 = vpop.f32.mrf.mxu0
        %v2792 = vadd.f32 0.0, %v2791
        %v2793 = vpop.f32.mrf.mxu0
        %v2794 = vpop.f32.mrf.mxu0
        %v2795 = vadd.f32 0.0, %v2794
        %v2796 = vpop.f32.mrf.mxu0
        %2797 = vmatprep.mubr.bf16.mxu0 0
        %2798 = vmatmul.mubr.bf16.gmra.mxu0 %v2744
        %v2799 = vpop.f32.mrf.mxu0
        %v2800 = vadd.f32 0.0, %v2799
        %v2801 = vpop.f32.mrf.mxu0
        %v2802 = vpop.f32.mrf.mxu0
        %v2803 = vadd.f32 0.0, %v2802
        %v2804 = vpop.f32.mrf.mxu0
        %2805 = vmatprep.mubr.bf16.mxu0 0
        %2806 = vmatmul.mubr.bf16.gmra.mxu0 %v2747
        %v2807 = vpop.f32.mrf.mxu0
        %v2808 = vadd.f32 0.0, %v2807
        %v2809 = vpop.f32.mrf.mxu0
        %v2810 = vpop.f32.mrf.mxu0
        %v2811 = vadd.f32 0.0, %v2810
        %v2812 = vpop.f32.mrf.mxu0
        %2813 = vdwg.mxu0
        %v2814 = vadd.f32 %v2684, %v2784
        %v2815 = vadd.f32 %v2685, %v2787
        %v2816 = vadd.f32 %v2686, %v2792
        %v2817 = vadd.f32 %v2687, %v2795
        %v2818 = vadd.f32 %v2688, %v2800
        %v2819 = vadd.f32 %v2689, %v2803
        %v2820 = vadd.f32 %v2690, %v2808
        %v2821 = vadd.f32 %v2691, %v2811
        %v2822 = vld [vmem:[%s2561 + $0x2] sm:$0xff]
        %v2823 = vld [vmem:[%s2561 + $0x12] sm:$0xff]
        %v2824 = vld [vmem:[%s2561 + $0x22] sm:$0xff]
        %v2825 = vld [vmem:[%s2561 + $0x32] sm:$0xff]
        %v2826 = vld [vmem:[%s2561 + $0x42] sm:$0xff]
        %v2827 = vld [vmem:[%s2561 + $0x52] sm:$0xff]
        %v2828 = vld [vmem:[%s2561 + $0x62] sm:$0xff]
        %v2829 = vld [vmem:[%s2561 + $0x72] sm:$0xff]
        %v2830 = vpack.c.bf16 %v2823, %v2822
        %v2831 = vpack.c.bf16 %v2825, %v2824
        %v2832 = vpack.c.bf16 %v2827, %v2826
        %v2833 = vpack.c.bf16 %v2829, %v2828
        %s2834 = scalar_lea.vmem %s5, 256
        %v2835 = vld [vmem:[%s2834] sm:$0xf]
        %v2836 = vld [vmem:[%s2834 + $0x4] sm:$0xf]
        %v2837 = vld [vmem:[%s2834 + $0x8] sm:$0xf]
        %v2838 = vld [vmem:[%s2834 + $0xc] sm:$0xf]
        %v2839 = vld [vmem:[%s2834 + $0x10] sm:$0xf]
        %v2840 = vld [vmem:[%s2834 + $0x14] sm:$0xf]
        %v2841 = vld [vmem:[%s2834 + $0x18] sm:$0xf]
        %v2842 = vld [vmem:[%s2834 + $0x1c] sm:$0xf]
        %v2851 = vunpack.c.l.b16 %v2835
        %v2852 = vunpack.c.l.b16 %v2836
        %v2853 = vunpack.c.l.b16 %v2837
        %v2854 = vunpack.c.l.b16 %v2838
        %v2855 = vunpack.c.l.b16 %v2839
        %v2856 = vunpack.c.l.b16 %v2840
        %v2857 = vunpack.c.l.b16 %v2841
        %v2858 = vunpack.c.l.b16 %v2842
        %v2859 = vpack.c.b16 %v2852, %v2851
        %v2860 = vpack.c.b16 %v2854, %v2853
        %v2861 = vpack.c.b16 %v2856, %v2855
        %v2862 = vpack.c.b16 %v2858, %v2857
        %v2868 = vsel %vm1203, %v2830, 0
        %v2871 = vsel %vm1203, %v2831, 0
        %v2874 = vsel %vm1203, %v2832, 0
        %v2877 = vsel %vm1203, %v2833, 0
        %2879 = vmatprep.subr.bf16.mxu0 0
        %2880 = vmatpush1.bf16.msra.mxu0 0
        %2881 = vmatprep.subr.bf16.mxu0 0
        %2882 = vmatpush1.bf16.msra.mxu0 0
        %2883 = vmatprep.subr.bf16.mxu0 0
        %2884 = vmatpush1.bf16.msra.mxu0 0
        %2885 = vmatprep.subr.bf16.mxu0 0
        %2886 = vmatpush1.bf16.msra.mxu0 0
        %2887 = vmatprep.subr.bf16.mxu0 0
        %2888 = vmatpush1.bf16.msra.mxu0 %v2862
        %2889 = vmatprep.subr.bf16.mxu0 0
        %2890 = vmatpush1.bf16.msra.mxu0 %v2861
        %2891 = vmatprep.subr.bf16.mxu0 0
        %2892 = vmatpush1.bf16.msra.mxu0 %v2860
        %2893 = vmatprep.subr.bf16.mxu0 0
        %2894 = vmatpush1.bf16.msra.mxu0 %v2859
        %2895 = vmatprep.subr.bf16.mxu0 0
        %2896 = vmatpush2.bf16.msra.mxu0 0
        %2897 = vmatprep.subr.bf16.mxu0 0
        %2898 = vmatpush2.bf16.msra.mxu0 0
        %2899 = vmatprep.subr.bf16.mxu0 0
        %2900 = vmatpush2.bf16.msra.mxu0 0
        %2901 = vmatprep.subr.bf16.mxu0 0
        %2902 = vmatpush2.bf16.msra.mxu0 0
        %2903 = vmatprep.subr.bf16.mxu0 0
        %2904 = vmatpush2.bf16.msra.mxu0 0
        %2905 = vmatprep.subr.bf16.mxu0 0
        %2906 = vmatpush2.bf16.msra.mxu0 0
        %2907 = vmatprep.subr.bf16.mxu0 0
        %2908 = vmatpush2.bf16.msra.mxu0 0
        %2909 = vmatprep.subr.bf16.mxu0 0
        %2910 = vmatpush2.bf16.msra.mxu0 0
        %2911 = vmatprep.mubr.bf16.mxu0 0
        %2912 = vmatmul.mubr.bf16.gmra.mxu0 %v2868
        %v2913 = vpop.f32.mrf.mxu0
        %v2914 = vadd.f32 0.0, %v2913
        %v2915 = vpop.f32.mrf.mxu0
        %v2916 = vpop.f32.mrf.mxu0
        %v2917 = vadd.f32 0.0, %v2916
        %v2918 = vpop.f32.mrf.mxu0
        %2919 = vmatprep.mubr.bf16.mxu0 0
        %2920 = vmatmul.mubr.bf16.gmra.mxu0 %v2871
        %v2921 = vpop.f32.mrf.mxu0
        %v2922 = vadd.f32 0.0, %v2921
        %v2923 = vpop.f32.mrf.mxu0
        %v2924 = vpop.f32.mrf.mxu0
        %v2925 = vadd.f32 0.0, %v2924
        %v2926 = vpop.f32.mrf.mxu0
        %2927 = vmatprep.mubr.bf16.mxu0 0
        %2928 = vmatmul.mubr.bf16.gmra.mxu0 %v2874
        %v2929 = vpop.f32.mrf.mxu0
        %v2930 = vadd.f32 0.0, %v2929
        %v2931 = vpop.f32.mrf.mxu0
        %v2932 = vpop.f32.mrf.mxu0
        %v2933 = vadd.f32 0.0, %v2932
        %v2934 = vpop.f32.mrf.mxu0
        %2935 = vmatprep.mubr.bf16.mxu0 0
        %2936 = vmatmul.mubr.bf16.gmra.mxu0 %v2877
        %v2937 = vpop.f32.mrf.mxu0
        %v2938 = vadd.f32 0.0, %v2937
        %v2939 = vpop.f32.mrf.mxu0
        %v2940 = vpop.f32.mrf.mxu0
        %v2941 = vadd.f32 0.0, %v2940
        %v2942 = vpop.f32.mrf.mxu0
        %2943 = vdwg.mxu0
        %v2944 = vadd.f32 %v2814, %v2914
        %v2945 = vadd.f32 %v2815, %v2917
        %v2946 = vadd.f32 %v2816, %v2922
        %v2947 = vadd.f32 %v2817, %v2925
        %v2948 = vadd.f32 %v2818, %v2930
        %v2949 = vadd.f32 %v2819, %v2933
        %v2950 = vadd.f32 %v2820, %v2938
        %v2951 = vadd.f32 %v2821, %v2941
        %v2952 = vld [vmem:[%s6] sm:$0x1]
        %v2954 = vlaneseq
        %v2955 = vshrl.u32 %v2954, 7
        %v2956 = vsub.s32 0, %v2955
        %v2957 = vrot.slane %v2952, %v2956
        %v2959 = vadd.f32 %v2944, %v2957
        %v2960 = vadd.f32 %v2945, %v2957
        %v2961 = vadd.f32 %v2946, %v2957
        %v2962 = vadd.f32 %v2947, %v2957
        %v2963 = vadd.f32 %v2948, %v2957
        %v2964 = vadd.f32 %v2949, %v2957
        %v2965 = vadd.f32 %v2950, %v2957
        %v2966 = vadd.f32 %v2951, %v2957
        %v2967 = vmax.f32 %v2959, 0.0
        %v2968 = vmax.f32 %v2960, 0.0
        %v2969 = vmax.f32 %v2961, 0.0
        %v2970 = vmax.f32 %v2962, 0.0
        %v2971 = vmax.f32 %v2963, 0.0
        %v2972 = vmax.f32 %v2964, 0.0
        %v2973 = vmax.f32 %v2965, 0.0
        %v2974 = vmax.f32 %v2966, 0.0
        %v2975 = vpack.c.bf16 %v2968, %v2967
        %v2976 = vpack.c.bf16 %v2970, %v2969
        %v2977 = vpack.c.bf16 %v2972, %v2971
        %v2978 = vpack.c.bf16 %v2974, %v2973
        %v2979 = vld [vmem:[%s7] sm:$0xff]
        %v2980 = vld [vmem:[%s7 + $0x8] sm:$0xff]
        %v2981 = vld [vmem:[%s7 + $0x10] sm:$0xff]
        %v2982 = vld [vmem:[%s7 + $0x18] sm:$0xff]
        %v2983 = vld [vmem:[%s7 + $0x20] sm:$0xff]
        %v2984 = vld [vmem:[%s7 + $0x28] sm:$0xff]
        %v2985 = vld [vmem:[%s7 + $0x30] sm:$0xff]
        %v2986 = vld [vmem:[%s7 + $0x38] sm:$0xff]
        %v2987 = vld [vmem:[%s8] sm:$0x3]
        %v2989 = vlaneseq
        %v2990 = vshrl.u32 %v2989, 7
        %v2991 = vsub.s32 0, %v2990
        %v2992 = vrot.slane %v2987, %v2991
        %v2993 = vlaneseq
        %v2994 = vshrl.u32 %v2993, 7
        %v2995 = vsub.s32 1, %v2994
        %v2996 = vrot.slane %v2987, %v2995
        %v3007 = vunpack.c.l.b16 %v2979
        %v3008 = vunpack.c.h.b16 %v2979
        %v3009 = vunpack.c.l.b16 %v2980
        %v3010 = vunpack.c.h.b16 %v2980
        %v3011 = vunpack.c.l.b16 %v2981
        %v3012 = vunpack.c.h.b16 %v2981
        %v3013 = vunpack.c.l.b16 %v2982
        %v3014 = vunpack.c.h.b16 %v2982
        %v3015 = vunpack.c.l.b16 %v2983
        %v3016 = vunpack.c.h.b16 %v2983
        %v3017 = vunpack.c.l.b16 %v2984
        %v3018 = vunpack.c.h.b16 %v2984
        %v3019 = vunpack.c.l.b16 %v2985
        %v3020 = vunpack.c.h.b16 %v2985
        %v3021 = vunpack.c.l.b16 %v2986
        %v3022 = vunpack.c.h.b16 %v2986
        %v3023 = vpack.c.b16 %v3009, %v3007
        %v3024 = vpack.c.b16 %v3010, %v3008
        %v3025 = vpack.c.b16 %v3013, %v3011
        %v3026 = vpack.c.b16 %v3014, %v3012
        %v3027 = vpack.c.b16 %v3017, %v3015
        %v3028 = vpack.c.b16 %v3018, %v3016
        %v3029 = vpack.c.b16 %v3021, %v3019
        %v3030 = vpack.c.b16 %v3022, %v3020
        %v3040 = vsel %vm1203, %v2975, 0
        %v3043 = vsel %vm1203, %v2976, 0
        %v3046 = vsel %vm1203, %v2977, 0
        %v3049 = vsel %vm1203, %v2978, 0
        %3051 = vmatprep.subr.bf16.mxu0 0
        %3052 = vmatpush1.bf16.msra.mxu0 0
        %3053 = vmatprep.subr.bf16.mxu0 0
        %3054 = vmatpush1.bf16.msra.mxu0 0
        %3055 = vmatprep.subr.bf16.mxu0 0
        %3056 = vmatpush1.bf16.msra.mxu0 0
        %3057 = vmatprep.subr.bf16.mxu0 0
        %3058 = vmatpush1.bf16.msra.mxu0 0
        %3059 = vmatprep.subr.bf16.mxu0 %v3030
        %3060 = vmatpush1.bf16.msra.mxu0 %v3029
        %3061 = vmatprep.subr.bf16.mxu0 %v3028
        %3062 = vmatpush1.bf16.msra.mxu0 %v3027
        %3063 = vmatprep.subr.bf16.mxu0 %v3026
        %3064 = vmatpush1.bf16.msra.mxu0 %v3025
        %3065 = vmatprep.subr.bf16.mxu0 %v3024
        %3066 = vmatpush1.bf16.msra.mxu0 %v3023
        %3067 = vmatprep.subr.bf16.mxu0 0
        %3068 = vmatpush2.bf16.msra.mxu0 0
        %3069 = vmatprep.subr.bf16.mxu0 0
        %3070 = vmatpush2.bf16.msra.mxu0 0
        %3071 = vmatprep.subr.bf16.mxu0 0
        %3072 = vmatpush2.bf16.msra.mxu0 0
        %3073 = vmatprep.subr.bf16.mxu0 0
        %3074 = vmatpush2.bf16.msra.mxu0 0
        %3075 = vmatprep.subr.bf16.mxu0 0
        %3076 = vmatpush2.bf16.msra.mxu0 0
        %3077 = vmatprep.subr.bf16.mxu0 0
        %3078 = vmatpush2.bf16.msra.mxu0 0
        %3079 = vmatprep.subr.bf16.mxu0 0
        %3080 = vmatpush2.bf16.msra.mxu0 0
        %3081 = vmatprep.subr.bf16.mxu0 0
        %3082 = vmatpush2.bf16.msra.mxu0 0
        %3083 = vmatprep.mubr.bf16.mxu0 0
        %3084 = vmatmul.mubr.bf16.gmra.mxu0 %v3040
        %v3085 = vpop.f32.mrf.mxu0
        %v3086 = vadd.f32 %v2992, %v3085
        %v3087 = vpop.f32.mrf.mxu0
        %v3088 = vadd.f32 %v2996, %v3087
        %v3089 = vpop.f32.mrf.mxu0
        %v3090 = vadd.f32 %v2992, %v3089
        %v3091 = vpop.f32.mrf.mxu0
        %v3092 = vadd.f32 %v2996, %v3091
        %3093 = vmatprep.mubr.bf16.mxu0 0
        %3094 = vmatmul.mubr.bf16.gmra.mxu0 %v3043
        %v3095 = vpop.f32.mrf.mxu0
        %v3096 = vadd.f32 %v2992, %v3095
        %v3097 = vpop.f32.mrf.mxu0
        %v3098 = vadd.f32 %v2996, %v3097
        %v3099 = vpop.f32.mrf.mxu0
        %v3100 = vadd.f32 %v2992, %v3099
        %v3101 = vpop.f32.mrf.mxu0
        %v3102 = vadd.f32 %v2996, %v3101
        %3103 = vmatprep.mubr.bf16.mxu0 0
        %3104 = vmatmul.mubr.bf16.gmra.mxu0 %v3046
        %v3105 = vpop.f32.mrf.mxu0
        %v3106 = vadd.f32 %v2992, %v3105
        %v3107 = vpop.f32.mrf.mxu0
        %v3108 = vadd.f32 %v2996, %v3107
        %v3109 = vpop.f32.mrf.mxu0
        %v3110 = vadd.f32 %v2992, %v3109
        %v3111 = vpop.f32.mrf.mxu0
        %v3112 = vadd.f32 %v2996, %v3111
        %3113 = vmatprep.mubr.bf16.mxu0 0
        %3114 = vmatmul.mubr.bf16.gmra.mxu0 %v3049
        %v3115 = vpop.f32.mrf.mxu0
        %v3116 = vadd.f32 %v2992, %v3115
        %v3117 = vpop.f32.mrf.mxu0
        %v3118 = vadd.f32 %v2996, %v3117
        %v3119 = vpop.f32.mrf.mxu0
        %v3120 = vadd.f32 %v2992, %v3119
        %v3121 = vpop.f32.mrf.mxu0
        %v3122 = vadd.f32 %v2996, %v3121
        %3123 = vdwg.mxu0
        %v3124 = vld [vmem:[%s9] sm:$0xff]
        %v3125 = vld [vmem:[%s9 + $0x8] sm:$0xff]
        %v3126 = vld [vmem:[%s9 + $0x10] sm:$0xff]
        %v3127 = vld [vmem:[%s9 + $0x18] sm:$0xff]
        %v3128 = vld [vmem:[%s9 + $0x20] sm:$0xff]
        %v3129 = vld [vmem:[%s9 + $0x28] sm:$0xff]
        %v3130 = vld [vmem:[%s9 + $0x30] sm:$0xff]
        %v3131 = vld [vmem:[%s9 + $0x38] sm:$0xff]
        %v3132 = vld [vmem:[%s10] sm:$0x3]
        %v3134 = vlaneseq
        %v3135 = vshrl.u32 %v3134, 7
        %v3136 = vsub.s32 0, %v3135
        %v3137 = vrot.slane %v3132, %v3136
        %v3138 = vlaneseq
        %v3139 = vshrl.u32 %v3138, 7
        %v3140 = vsub.s32 1, %v3139
        %v3141 = vrot.slane %v3132, %v3140
        %v3152 = vunpack.c.l.b16 %v3124
        %v3153 = vunpack.c.h.b16 %v3124
        %v3154 = vunpack.c.l.b16 %v3125
        %v3155 = vunpack.c.h.b16 %v3125
        %v3156 = vunpack.c.l.b16 %v3126
        %v3157 = vunpack.c.h.b16 %v3126
        %v3158 = vunpack.c.l.b16 %v3127
        %v3159 = vunpack.c.h.b16 %v3127
        %v3160 = vunpack.c.l.b16 %v3128
        %v3161 = vunpack.c.h.b16 %v3128
        %v3162 = vunpack.c.l.b16 %v3129
        %v3163 = vunpack.c.h.b16 %v3129
        %v3164 = vunpack.c.l.b16 %v3130
        %v3165 = vunpack.c.h.b16 %v3130
        %v3166 = vunpack.c.l.b16 %v3131
        %v3167 = vunpack.c.h.b16 %v3131
        %v3168 = vpack.c.b16 %v3154, %v3152
        %v3169 = vpack.c.b16 %v3155, %v3153
        %v3170 = vpack.c.b16 %v3158, %v3156
        %v3171 = vpack.c.b16 %v3159, %v3157
        %v3172 = vpack.c.b16 %v3162, %v3160
        %v3173 = vpack.c.b16 %v3163, %v3161
        %v3174 = vpack.c.b16 %v3166, %v3164
        %v3175 = vpack.c.b16 %v3167, %v3165
        %3184 = vmatprep.subr.bf16.mxu0 0
        %3185 = vmatpush1.bf16.msra.mxu0 0
        %3186 = vmatprep.subr.bf16.mxu0 0
        %3187 = vmatpush1.bf16.msra.mxu0 0
        %3188 = vmatprep.subr.bf16.mxu0 0
        %3189 = vmatpush1.bf16.msra.mxu0 0
        %3190 = vmatprep.subr.bf16.mxu0 0
        %3191 = vmatpush1.bf16.msra.mxu0 0
        %3192 = vmatprep.subr.bf16.mxu0 %v3175
        %3193 = vmatpush1.bf16.msra.mxu0 %v3174
        %3194 = vmatprep.subr.bf16.mxu0 %v3173
        %3195 = vmatpush1.bf16.msra.mxu0 %v3172
        %3196 = vmatprep.subr.bf16.mxu0 %v3171
        %3197 = vmatpush1.bf16.msra.mxu0 %v3170
        %3198 = vmatprep.subr.bf16.mxu0 %v3169
        %3199 = vmatpush1.bf16.msra.mxu0 %v3168
        %3200 = vmatprep.subr.bf16.mxu0 0
        %3201 = vmatpush2.bf16.msra.mxu0 0
        %3202 = vmatprep.subr.bf16.mxu0 0
        %3203 = vmatpush2.bf16.msra.mxu0 0
        %3204 = vmatprep.subr.bf16.mxu0 0
        %3205 = vmatpush2.bf16.msra.mxu0 0
        %3206 = vmatprep.subr.bf16.mxu0 0
        %3207 = vmatpush2.bf16.msra.mxu0 0
        %3208 = vmatprep.subr.bf16.mxu0 0
        %3209 = vmatpush2.bf16.msra.mxu0 0
        %3210 = vmatprep.subr.bf16.mxu0 0
        %3211 = vmatpush2.bf16.msra.mxu0 0
        %3212 = vmatprep.subr.bf16.mxu0 0
        %3213 = vmatpush2.bf16.msra.mxu0 0
        %3214 = vmatprep.subr.bf16.mxu0 0
        %3215 = vmatpush2.bf16.msra.mxu0 0
        %3216 = vmatprep.mubr.bf16.mxu0 0
        %3217 = vmatmul.mubr.bf16.gmra.mxu0 %v1685
        %v3218 = vpop.f32.mrf.mxu0
        %v3219 = vadd.f32 %v3137, %v3218
        %v3220 = vpop.f32.mrf.mxu0
        %v3221 = vadd.f32 %v3141, %v3220
        %v3222 = vpop.f32.mrf.mxu0
        %v3223 = vadd.f32 %v3137, %v3222
        %v3224 = vpop.f32.mrf.mxu0
        %v3225 = vadd.f32 %v3141, %v3224
        %3226 = vmatprep.mubr.bf16.mxu0 0
        %3227 = vmatmul.mubr.bf16.gmra.mxu0 %v1688
        %v3228 = vpop.f32.mrf.mxu0
        %v3229 = vadd.f32 %v3137, %v3228
        %v3230 = vpop.f32.mrf.mxu0
        %v3231 = vadd.f32 %v3141, %v3230
        %v3232 = vpop.f32.mrf.mxu0
        %v3233 = vadd.f32 %v3137, %v3232
        %v3234 = vpop.f32.mrf.mxu0
        %v3235 = vadd.f32 %v3141, %v3234
        %3236 = vmatprep.mubr.bf16.mxu0 0
        %3237 = vmatmul.mubr.bf16.gmra.mxu0 %v1691
        %v3238 = vpop.f32.mrf.mxu0
        %v3239 = vadd.f32 %v3137, %v3238
        %v3240 = vpop.f32.mrf.mxu0
        %v3241 = vadd.f32 %v3141, %v3240
        %v3242 = vpop.f32.mrf.mxu0
        %v3243 = vadd.f32 %v3137, %v3242
        %v3244 = vpop.f32.mrf.mxu0
        %v3245 = vadd.f32 %v3141, %v3244
        %3246 = vmatprep.mubr.bf16.mxu0 0
        %3247 = vmatmul.mubr.bf16.gmra.mxu0 %v1694
        %v3248 = vpop.f32.mrf.mxu0
        %v3249 = vadd.f32 %v3137, %v3248
        %v3250 = vpop.f32.mrf.mxu0
        %v3251 = vadd.f32 %v3141, %v3250
        %v3252 = vpop.f32.mrf.mxu0
        %v3253 = vadd.f32 %v3137, %v3252
        %v3254 = vpop.f32.mrf.mxu0
        %v3255 = vadd.f32 %v3141, %v3254
        %3256 = vdwg.mxu0
        %v3257 = vadd.f32 %v3086, %v3219
        %v3258 = vadd.f32 %v3088, %v3221
        %v3259 = vadd.f32 %v3090, %v3223
        %v3260 = vadd.f32 %v3092, %v3225
        %v3261 = vadd.f32 %v3096, %v3229
        %v3262 = vadd.f32 %v3098, %v3231
        %v3263 = vadd.f32 %v3100, %v3233
        %v3264 = vadd.f32 %v3102, %v3235
        %v3265 = vadd.f32 %v3106, %v3239
        %v3266 = vadd.f32 %v3108, %v3241
        %v3267 = vadd.f32 %v3110, %v3243
        %v3268 = vadd.f32 %v3112, %v3245
        %v3269 = vadd.f32 %v3116, %v3249
        %v3270 = vadd.f32 %v3118, %v3251
        %v3271 = vadd.f32 %v3120, %v3253
        %v3272 = vadd.f32 %v3122, %v3255
        %v3273 = vmax.f32 %v3257, 0.0
        %v3274 = vmax.f32 %v3258, 0.0
        %v3275 = vmax.f32 %v3259, 0.0
        %v3276 = vmax.f32 %v3260, 0.0
        %v3277 = vmax.f32 %v3261, 0.0
        %v3278 = vmax.f32 %v3262, 0.0
        %v3279 = vmax.f32 %v3263, 0.0
        %v3280 = vmax.f32 %v3264, 0.0
        %v3281 = vmax.f32 %v3265, 0.0
        %v3282 = vmax.f32 %v3266, 0.0
        %v3283 = vmax.f32 %v3267, 0.0
        %v3284 = vmax.f32 %v3268, 0.0
        %v3285 = vmax.f32 %v3269, 0.0
        %v3286 = vmax.f32 %v3270, 0.0
        %v3287 = vmax.f32 %v3271, 0.0
        %v3288 = vmax.f32 %v3272, 0.0
        %v3289 = vpack.c.bf16 %v3275, %v3273
        %v3290 = vpack.c.bf16 %v3276, %v3274
        %v3291 = vpack.c.bf16 %v3279, %v3277
        %v3292 = vpack.c.bf16 %v3280, %v3278
        %v3293 = vpack.c.bf16 %v3283, %v3281
        %v3294 = vpack.c.bf16 %v3284, %v3282
        %v3295 = vpack.c.bf16 %v3287, %v3285
        %v3296 = vpack.c.bf16 %v3288, %v3286
        %v3297 = vld [vmem:[%s11] sm:$0xf]
        %v3298 = vld [vmem:[%s11 + $0x4] sm:$0xf]
        %v3299 = vld [vmem:[%s11 + $0x8] sm:$0xf]
        %v3300 = vld [vmem:[%s11 + $0xc] sm:$0xf]
        %v3301 = vld [vmem:[%s11 + $0x10] sm:$0xf]
        %v3302 = vld [vmem:[%s11 + $0x14] sm:$0xf]
        %v3303 = vld [vmem:[%s11 + $0x18] sm:$0xf]
        %v3304 = vld [vmem:[%s11 + $0x1c] sm:$0xf]
        %v3305 = vld [vmem:[%s11 + $0x20] sm:$0xf]
        %v3306 = vld [vmem:[%s11 + $0x24] sm:$0xf]
        %v3307 = vld [vmem:[%s11 + $0x28] sm:$0xf]
        %v3308 = vld [vmem:[%s11 + $0x2c] sm:$0xf]
        %v3309 = vld [vmem:[%s11 + $0x30] sm:$0xf]
        %v3310 = vld [vmem:[%s11 + $0x34] sm:$0xf]
        %v3311 = vld [vmem:[%s11 + $0x38] sm:$0xf]
        %v3312 = vld [vmem:[%s11 + $0x3c] sm:$0xf]
        %v3313 = vld [vmem:[%s11 + $0x40] sm:$0xf]
        %v3314 = vld [vmem:[%s11 + $0x44] sm:$0xf]
        %v3315 = vld [vmem:[%s11 + $0x48] sm:$0xf]
        %v3316 = vld [vmem:[%s11 + $0x4c] sm:$0xf]
        %v3317 = vld [vmem:[%s11 + $0x50] sm:$0xf]
        %v3318 = vld [vmem:[%s11 + $0x54] sm:$0xf]
        %v3319 = vld [vmem:[%s11 + $0x58] sm:$0xf]
        %v3320 = vld [vmem:[%s11 + $0x5c] sm:$0xf]
        %v3321 = vld [vmem:[%s11 + $0x60] sm:$0xf]
        %v3322 = vld [vmem:[%s11 + $0x64] sm:$0xf]
        %v3323 = vld [vmem:[%s11 + $0x68] sm:$0xf]
        %v3324 = vld [vmem:[%s11 + $0x6c] sm:$0xf]
        %v3325 = vld [vmem:[%s11 + $0x70] sm:$0xf]
        %v3326 = vld [vmem:[%s11 + $0x74] sm:$0xf]
        %v3327 = vld [vmem:[%s11 + $0x78] sm:$0xf]
        %v3328 = vld [vmem:[%s11 + $0x7c] sm:$0xf]
        %v3329 = vld [vmem:[%s12] sm:$0x1]
        %v3331 = vlaneseq
        %v3332 = vshrl.u32 %v3331, 7
        %v3333 = vsub.s32 0, %v3332
        %v3334 = vrot.slane %v3329, %v3333
        %v3368 = vunpack.c.l.b16 %v3297
        %v3369 = vunpack.c.l.b16 %v3298
        %v3370 = vunpack.c.l.b16 %v3299
        %v3371 = vunpack.c.l.b16 %v3300
        %v3372 = vunpack.c.l.b16 %v3301
        %v3373 = vunpack.c.l.b16 %v3302
        %v3374 = vunpack.c.l.b16 %v3303
        %v3375 = vunpack.c.l.b16 %v3304
        %v3376 = vunpack.c.l.b16 %v3305
        %v3377 = vunpack.c.l.b16 %v3306
        %v3378 = vunpack.c.l.b16 %v3307
        %v3379 = vunpack.c.l.b16 %v3308
        %v3380 = vunpack.c.l.b16 %v3309
        %v3381 = vunpack.c.l.b16 %v3310
        %v3382 = vunpack.c.l.b16 %v3311
        %v3383 = vunpack.c.l.b16 %v3312
        %v3384 = vunpack.c.l.b16 %v3313
        %v3385 = vunpack.c.l.b16 %v3314
        %v3386 = vunpack.c.l.b16 %v3315
        %v3387 = vunpack.c.l.b16 %v3316
        %v3388 = vunpack.c.l.b16 %v3317
        %v3389 = vunpack.c.l.b16 %v3318
        %v3390 = vunpack.c.l.b16 %v3319
        %v3391 = vunpack.c.l.b16 %v3320
        %v3392 = vunpack.c.l.b16 %v3321
        %v3393 = vunpack.c.l.b16 %v3322
        %v3394 = vunpack.c.l.b16 %v3323
        %v3395 = vunpack.c.l.b16 %v3324
        %v3396 = vunpack.c.l.b16 %v3325
        %v3397 = vunpack.c.l.b16 %v3326
        %v3398 = vunpack.c.l.b16 %v3327
        %v3399 = vunpack.c.l.b16 %v3328
        %v3400 = vpack.c.b16 %v3369, %v3368
        %v3401 = vpack.c.b16 %v3371, %v3370
        %v3402 = vpack.c.b16 %v3373, %v3372
        %v3403 = vpack.c.b16 %v3375, %v3374
        %v3404 = vpack.c.b16 %v3377, %v3376
        %v3405 = vpack.c.b16 %v3379, %v3378
        %v3406 = vpack.c.b16 %v3381, %v3380
        %v3407 = vpack.c.b16 %v3383, %v3382
        %v3408 = vpack.c.b16 %v3385, %v3384
        %v3409 = vpack.c.b16 %v3387, %v3386
        %v3410 = vpack.c.b16 %v3389, %v3388
        %v3411 = vpack.c.b16 %v3391, %v3390
        %v3412 = vpack.c.b16 %v3393, %v3392
        %v3413 = vpack.c.b16 %v3395, %v3394
        %v3414 = vpack.c.b16 %v3397, %v3396
        %v3415 = vpack.c.b16 %v3399, %v3398
        %3432 = vmatprep.subr.bf16.mxu0 0
        %3433 = vmatpush1.bf16.msra.mxu0 %v3407
        %3434 = vmatprep.subr.bf16.mxu0 0
        %3435 = vmatpush1.bf16.msra.mxu0 %v3406
        %3436 = vmatprep.subr.bf16.mxu0 0
        %3437 = vmatpush1.bf16.msra.mxu0 %v3405
        %3438 = vmatprep.subr.bf16.mxu0 0
        %3439 = vmatpush1.bf16.msra.mxu0 %v3404
        %3440 = vmatprep.subr.bf16.mxu0 0
        %3441 = vmatpush1.bf16.msra.mxu0 %v3403
        %3442 = vmatprep.subr.bf16.mxu0 0
        %3443 = vmatpush1.bf16.msra.mxu0 %v3402
        %3444 = vmatprep.subr.bf16.mxu0 0
        %3445 = vmatpush1.bf16.msra.mxu0 %v3401
        %3446 = vmatprep.subr.bf16.mxu0 0
        %3447 = vmatpush1.bf16.msra.mxu0 %v3400
        %3448 = vmatprep.subr.bf16.mxu0 0
        %3449 = vmatpush2.bf16.msra.mxu0 %v3415
        %3450 = vmatprep.subr.bf16.mxu0 0
        %3451 = vmatpush2.bf16.msra.mxu0 %v3414
        %3452 = vmatprep.subr.bf16.mxu0 0
        %3453 = vmatpush2.bf16.msra.mxu0 %v3413
        %3454 = vmatprep.subr.bf16.mxu0 0
        %3455 = vmatpush2.bf16.msra.mxu0 %v3412
        %3456 = vmatprep.subr.bf16.mxu0 0
        %3457 = vmatpush2.bf16.msra.mxu0 %v3411
        %3458 = vmatprep.subr.bf16.mxu0 0
        %3459 = vmatpush2.bf16.msra.mxu0 %v3410
        %3460 = vmatprep.subr.bf16.mxu0 0
        %3461 = vmatpush2.bf16.msra.mxu0 %v3409
        %3462 = vmatprep.subr.bf16.mxu0 0
        %3463 = vmatpush2.bf16.msra.mxu0 %v3408
        %3464 = vmatprep.mubr.bf16.mxu0 %v3290
        %3465 = vmatmul.mubr.bf16.gmra.mxu0 %v3289
        %v3466 = vpop.f32.mrf.mxu0
        %v3467 = vadd.f32 %v3334, %v3466
        %v3468 = vpop.f32.mrf.mxu0
        %v3469 = vpop.f32.mrf.mxu0
        %v3470 = vadd.f32 %v3334, %v3469
        %v3471 = vpop.f32.mrf.mxu0
        %3472 = vmatprep.mubr.bf16.mxu0 %v3292
        %3473 = vmatmul.mubr.bf16.gmra.mxu0 %v3291
        %v3474 = vpop.f32.mrf.mxu0
        %v3475 = vadd.f32 %v3334, %v3474
        %v3476 = vpop.f32.mrf.mxu0
        %v3477 = vpop.f32.mrf.mxu0
        %v3478 = vadd.f32 %v3334, %v3477
        %v3479 = vpop.f32.mrf.mxu0
        %3480 = vmatprep.mubr.bf16.mxu0 %v3294
        %3481 = vmatmul.mubr.bf16.gmra.mxu0 %v3293
        %v3482 = vpop.f32.mrf.mxu0
        %v3483 = vadd.f32 %v3334, %v3482
        %v3484 = vpop.f32.mrf.mxu0
        %v3485 = vpop.f32.mrf.mxu0
        %v3486 = vadd.f32 %v3334, %v3485
        %v3487 = vpop.f32.mrf.mxu0
        %3488 = vmatprep.mubr.bf16.mxu0 %v3296
        %3489 = vmatmul.mubr.bf16.gmra.mxu0 %v3295
        %v3490 = vpop.f32.mrf.mxu0
        %v3491 = vadd.f32 %v3334, %v3490
        %v3492 = vpop.f32.mrf.mxu0
        %v3493 = vpop.f32.mrf.mxu0
        %v3494 = vadd.f32 %v3334, %v3493
        %v3495 = vpop.f32.mrf.mxu0
        %3496 = vdwg.mxu0
        %v3497 = vmax.f32 %v3467, 0.0
        %v3498 = vmax.f32 %v3470, 0.0
        %v3499 = vmax.f32 %v3475, 0.0
        %v3500 = vmax.f32 %v3478, 0.0
        %v3501 = vmax.f32 %v3483, 0.0
        %v3502 = vmax.f32 %v3486, 0.0
        %v3503 = vmax.f32 %v3491, 0.0
        %v3504 = vmax.f32 %v3494, 0.0
        %3505 = vst.msk [vmem:[#allocation4] sm:$0xff] %vm1203, 0.0
        %3506 = vst.msk [vmem:[#allocation4 + $0x8] sm:$0x3] %vm1206, 0.0
        %3507 = vst.msk [vmem:[#allocation4 + $0x10] sm:$0xff] %vm1203, 0.0
        %3508 = vst.msk [vmem:[#allocation4 + $0x18] sm:$0x3] %vm1206, 0.0
        %3509 = vst.msk [vmem:[#allocation4 + $0x20] sm:$0xff] %vm1203, 0.0
        %3510 = vst.msk [vmem:[#allocation4 + $0x28] sm:$0x3] %vm1206, 0.0
        %3511 = vst.msk [vmem:[#allocation4 + $0x30] sm:$0xff] %vm1203, 0.0
        %3512 = vst.msk [vmem:[#allocation4 + $0x38] sm:$0x3] %vm1206, 0.0
        %3513 = vst.msk [vmem:[#allocation4 + $0x40] sm:$0xff] %vm1203, 0.0
        %3514 = vst.msk [vmem:[#allocation4 + $0x48] sm:$0x3] %vm1206, 0.0
        %3515 = vst.msk [vmem:[#allocation4 + $0x50] sm:$0xff] %vm1203, 0.0
        %3516 = vst.msk [vmem:[#allocation4 + $0x58] sm:$0x3] %vm1206, 0.0
        %3517 = vst.msk [vmem:[#allocation4 + $0x60] sm:$0xff] %vm1203, 0.0
        %3518 = vst.msk [vmem:[#allocation4 + $0x68] sm:$0x3] %vm1206, 0.0
        %3519 = vst.msk [vmem:[#allocation4 + $0x70] sm:$0xff] %vm1203, 0.0
        %3520 = vst.msk [vmem:[#allocation4 + $0x78] sm:$0x3] %vm1206, 0.0
        %3521 = vst.msk [vmem:[#allocation4 + $0x80] sm:$0xff] %vm1203, 0.0
        %3522 = vst.msk [vmem:[#allocation4 + $0x88] sm:$0x3] %vm1206, 0.0
        %3523 = vst.msk [vmem:[#allocation4 + $0x90] sm:$0xff] %vm1203, 0.0
        %3524 = vst.msk [vmem:[#allocation4 + $0x98] sm:$0x3] %vm1206, 0.0
        %3525 = vst.msk [vmem:[%s1789 + $0x1] sm:$0xff] %vm1203, %v3497
        %3526 = vst.msk [vmem:[%s1789 + $0x11] sm:$0xff] %vm1203, %v3498
        %3527 = vst.msk [vmem:[%s1789 + $0x21] sm:$0xff] %vm1203, %v3499
        %3528 = vst.msk [vmem:[%s1789 + $0x31] sm:$0xff] %vm1203, %v3500
        %3529 = vst.msk [vmem:[%s1789 + $0x41] sm:$0xff] %vm1203, %v3501
        %3530 = vst.msk [vmem:[%s1789 + $0x51] sm:$0xff] %vm1203, %v3502
        %3531 = vst.msk [vmem:[%s1789 + $0x61] sm:$0xff] %vm1203, %v3503
        %3532 = vst.msk [vmem:[%s1789 + $0x71] sm:$0xff] %vm1203, %v3504
        %v3533 = vld [vmem:[#allocation4] sm:$0xff]
        %v3534 = vld [vmem:[#allocation4 + $0x10] sm:$0xff]
        %v3535 = vld [vmem:[#allocation4 + $0x20] sm:$0xff]
        %v3536 = vld [vmem:[#allocation4 + $0x30] sm:$0xff]
        %v3537 = vld [vmem:[#allocation4 + $0x40] sm:$0xff]
        %v3538 = vld [vmem:[#allocation4 + $0x50] sm:$0xff]
        %v3539 = vld [vmem:[#allocation4 + $0x60] sm:$0xff]
        %v3540 = vld [vmem:[#allocation4 + $0x70] sm:$0xff]
        %v3541 = vpack.c.bf16 %v3534, %v3533
        %v3542 = vpack.c.bf16 %v3536, %v3535
        %v3543 = vpack.c.bf16 %v3538, %v3537
        %v3544 = vpack.c.bf16 %v3540, %v3539
        %v3545 = vld [vmem:[%s13] sm:$0xf]
        %v3546 = vld [vmem:[%s13 + $0x4] sm:$0xf]
        %v3547 = vld [vmem:[%s13 + $0x8] sm:$0xf]
        %v3548 = vld [vmem:[%s13 + $0xc] sm:$0xf]
        %v3549 = vld [vmem:[%s13 + $0x10] sm:$0xf]
        %v3550 = vld [vmem:[%s13 + $0x14] sm:$0xf]
        %v3551 = vld [vmem:[%s13 + $0x18] sm:$0xf]
        %v3552 = vld [vmem:[%s13 + $0x1c] sm:$0xf]
        %v3553 = vld [vmem:[#allocation4 + $0x1] sm:$0xff]
        %v3554 = vld [vmem:[#allocation4 + $0x11] sm:$0xff]
        %v3555 = vld [vmem:[#allocation4 + $0x21] sm:$0xff]
        %v3556 = vld [vmem:[#allocation4 + $0x31] sm:$0xff]
        %v3557 = vld [vmem:[#allocation4 + $0x41] sm:$0xff]
        %v3558 = vld [vmem:[#allocation4 + $0x51] sm:$0xff]
        %v3559 = vld [vmem:[#allocation4 + $0x61] sm:$0xff]
        %v3560 = vld [vmem:[#allocation4 + $0x71] sm:$0xff]
        %v3561 = vpack.c.bf16 %v3554, %v3553
        %v3562 = vpack.c.bf16 %v3556, %v3555
        %v3563 = vpack.c.bf16 %v3558, %v3557
        %v3564 = vpack.c.bf16 %v3560, %v3559
        %s3565 = scalar_lea.vmem %s13, 32
        %v3566 = vld [vmem:[%s3565] sm:$0xf]
        %v3567 = vld [vmem:[%s3565 + $0x4] sm:$0xf]
        %v3568 = vld [vmem:[%s3565 + $0x8] sm:$0xf]
        %v3569 = vld [vmem:[%s3565 + $0xc] sm:$0xf]
        %v3570 = vld [vmem:[%s3565 + $0x10] sm:$0xf]
        %v3571 = vld [vmem:[%s3565 + $0x14] sm:$0xf]
        %v3572 = vld [vmem:[%s3565 + $0x18] sm:$0xf]
        %v3573 = vld [vmem:[%s3565 + $0x1c] sm:$0xf]
        %v3582 = vunpack.c.l.b16 %v3566
        %v3583 = vunpack.c.l.b16 %v3567
        %v3584 = vunpack.c.l.b16 %v3568
        %v3585 = vunpack.c.l.b16 %v3569
        %v3586 = vunpack.c.l.b16 %v3570
        %v3587 = vunpack.c.l.b16 %v3571
        %v3588 = vunpack.c.l.b16 %v3572
        %v3589 = vunpack.c.l.b16 %v3573
        %v3590 = vpack.c.b16 %v3583, %v3582
        %v3591 = vpack.c.b16 %v3585, %v3584
        %v3592 = vpack.c.b16 %v3587, %v3586
        %v3593 = vpack.c.b16 %v3589, %v3588
        %v3599 = vsel %vm1203, %v3561, 0
        %v3602 = vsel %vm1203, %v3562, 0
        %v3605 = vsel %vm1203, %v3563, 0
        %v3608 = vsel %vm1203, %v3564, 0
        %3610 = vmatprep.subr.bf16.mxu0 0
        %3611 = vmatpush1.bf16.msra.mxu0 0
        %3612 = vmatprep.subr.bf16.mxu0 0
        %3613 = vmatpush1.bf16.msra.mxu0 0
        %3614 = vmatprep.subr.bf16.mxu0 0
        %3615 = vmatpush1.bf16.msra.mxu0 0
        %3616 = vmatprep.subr.bf16.mxu0 0
        %3617 = vmatpush1.bf16.msra.mxu0 0
        %3618 = vmatprep.subr.bf16.mxu0 0
        %3619 = vmatpush1.bf16.msra.mxu0 %v3593
        %3620 = vmatprep.subr.bf16.mxu0 0
        %3621 = vmatpush1.bf16.msra.mxu0 %v3592
        %3622 = vmatprep.subr.bf16.mxu0 0
        %3623 = vmatpush1.bf16.msra.mxu0 %v3591
        %3624 = vmatprep.subr.bf16.mxu0 0
        %3625 = vmatpush1.bf16.msra.mxu0 %v3590
        %3626 = vmatprep.subr.bf16.mxu0 0
        %3627 = vmatpush2.bf16.msra.mxu0 0
        %3628 = vmatprep.subr.bf16.mxu0 0
        %3629 = vmatpush2.bf16.msra.mxu0 0
        %3630 = vmatprep.subr.bf16.mxu0 0
        %3631 = vmatpush2.bf16.msra.mxu0 0
        %3632 = vmatprep.subr.bf16.mxu0 0
        %3633 = vmatpush2.bf16.msra.mxu0 0
        %3634 = vmatprep.subr.bf16.mxu0 0
        %3635 = vmatpush2.bf16.msra.mxu0 0
        %3636 = vmatprep.subr.bf16.mxu0 0
        %3637 = vmatpush2.bf16.msra.mxu0 0
        %3638 = vmatprep.subr.bf16.mxu0 0
        %3639 = vmatpush2.bf16.msra.mxu0 0
        %3640 = vmatprep.subr.bf16.mxu0 0
        %3641 = vmatpush2.bf16.msra.mxu0 0
        %3642 = vmatprep.mubr.bf16.mxu0 0
        %3643 = vmatmul.mubr.bf16.gmra.mxu0 %v3599
        %v3644 = vpop.f32.mrf.mxu0
        %v3645 = vadd.f32 0.0, %v3644
        %v3646 = vpop.f32.mrf.mxu0
        %v3647 = vpop.f32.mrf.mxu0
        %v3648 = vadd.f32 0.0, %v3647
        %v3649 = vpop.f32.mrf.mxu0
        %3650 = vmatprep.mubr.bf16.mxu0 0
        %3651 = vmatmul.mubr.bf16.gmra.mxu0 %v3602
        %v3652 = vpop.f32.mrf.mxu0
        %v3653 = vadd.f32 0.0, %v3652
        %v3654 = vpop.f32.mrf.mxu0
        %v3655 = vpop.f32.mrf.mxu0
        %v3656 = vadd.f32 0.0, %v3655
        %v3657 = vpop.f32.mrf.mxu0
        %3658 = vmatprep.mubr.bf16.mxu0 0
        %3659 = vmatmul.mubr.bf16.gmra.mxu0 %v3605
        %v3660 = vpop.f32.mrf.mxu0
        %v3661 = vadd.f32 0.0, %v3660
        %v3662 = vpop.f32.mrf.mxu0
        %v3663 = vpop.f32.mrf.mxu0
        %v3664 = vadd.f32 0.0, %v3663
        %v3665 = vpop.f32.mrf.mxu0
        %3666 = vmatprep.mubr.bf16.mxu0 0
        %3667 = vmatmul.mubr.bf16.gmra.mxu0 %v3608
        %v3668 = vpop.f32.mrf.mxu0
        %v3669 = vadd.f32 0.0, %v3668
        %v3670 = vpop.f32.mrf.mxu0
        %v3671 = vpop.f32.mrf.mxu0
        %v3672 = vadd.f32 0.0, %v3671
        %v3673 = vpop.f32.mrf.mxu0
        %3674 = vdwg.mxu0
        %v3683 = vunpack.c.l.b16 %v3545
        %v3684 = vunpack.c.l.b16 %v3546
        %v3685 = vunpack.c.l.b16 %v3547
        %v3686 = vunpack.c.l.b16 %v3548
        %v3687 = vunpack.c.l.b16 %v3549
        %v3688 = vunpack.c.l.b16 %v3550
        %v3689 = vunpack.c.l.b16 %v3551
        %v3690 = vunpack.c.l.b16 %v3552
        %v3691 = vpack.c.b16 %v3684, %v3683
        %v3692 = vpack.c.b16 %v3686, %v3685
        %v3693 = vpack.c.b16 %v3688, %v3687
        %v3694 = vpack.c.b16 %v3690, %v3689
        %v3700 = vsel %vm1203, %v3541, 0
        %v3703 = vsel %vm1203, %v3542, 0
        %v3706 = vsel %vm1203, %v3543, 0
        %v3709 = vsel %vm1203, %v3544, 0
        %3711 = vmatprep.subr.bf16.mxu0 0
        %3712 = vmatpush1.bf16.msra.mxu0 0
        %3713 = vmatprep.subr.bf16.mxu0 0
        %3714 = vmatpush1.bf16.msra.mxu0 0
        %3715 = vmatprep.subr.bf16.mxu0 0
        %3716 = vmatpush1.bf16.msra.mxu0 0
        %3717 = vmatprep.subr.bf16.mxu0 0
        %3718 = vmatpush1.bf16.msra.mxu0 0
        %3719 = vmatprep.subr.bf16.mxu0 0
        %3720 = vmatpush1.bf16.msra.mxu0 %v3694
        %3721 = vmatprep.subr.bf16.mxu0 0
        %3722 = vmatpush1.bf16.msra.mxu0 %v3693
        %3723 = vmatprep.subr.bf16.mxu0 0
        %3724 = vmatpush1.bf16.msra.mxu0 %v3692
        %3725 = vmatprep.subr.bf16.mxu0 0
        %3726 = vmatpush1.bf16.msra.mxu0 %v3691
        %3727 = vmatprep.subr.bf16.mxu0 0
        %3728 = vmatpush2.bf16.msra.mxu0 0
        %3729 = vmatprep.subr.bf16.mxu0 0
        %3730 = vmatpush2.bf16.msra.mxu0 0
        %3731 = vmatprep.subr.bf16.mxu0 0
        %3732 = vmatpush2.bf16.msra.mxu0 0
        %3733 = vmatprep.subr.bf16.mxu0 0
        %3734 = vmatpush2.bf16.msra.mxu0 0
        %3735 = vmatprep.subr.bf16.mxu0 0
        %3736 = vmatpush2.bf16.msra.mxu0 0
        %3737 = vmatprep.subr.bf16.mxu0 0
        %3738 = vmatpush2.bf16.msra.mxu0 0
        %3739 = vmatprep.subr.bf16.mxu0 0
        %3740 = vmatpush2.bf16.msra.mxu0 0
        %3741 = vmatprep.subr.bf16.mxu0 0
        %3742 = vmatpush2.bf16.msra.mxu0 0
        %3743 = vmatprep.mubr.bf16.mxu0 0
        %3744 = vmatmul.mubr.bf16.gmra.mxu0 %v3700
        %v3745 = vpop.f32.mrf.mxu0
        %v3746 = vadd.f32 %v3645, %v3745
        %v3747 = vpop.f32.mrf.mxu0
        %v3748 = vpop.f32.mrf.mxu0
        %v3749 = vadd.f32 %v3648, %v3748
        %v3750 = vpop.f32.mrf.mxu0
        %3751 = vmatprep.mubr.bf16.mxu0 0
        %3752 = vmatmul.mubr.bf16.gmra.mxu0 %v3703
        %v3753 = vpop.f32.mrf.mxu0
        %v3754 = vadd.f32 %v3653, %v3753
        %v3755 = vpop.f32.mrf.mxu0
        %v3756 = vpop.f32.mrf.mxu0
        %v3757 = vadd.f32 %v3656, %v3756
        %v3758 = vpop.f32.mrf.mxu0
        %3759 = vmatprep.mubr.bf16.mxu0 0
        %3760 = vmatmul.mubr.bf16.gmra.mxu0 %v3706
        %v3761 = vpop.f32.mrf.mxu0
        %v3762 = vadd.f32 %v3661, %v3761
        %v3763 = vpop.f32.mrf.mxu0
        %v3764 = vpop.f32.mrf.mxu0
        %v3765 = vadd.f32 %v3664, %v3764
        %v3766 = vpop.f32.mrf.mxu0
        %3767 = vmatprep.mubr.bf16.mxu0 0
        %3768 = vmatmul.mubr.bf16.gmra.mxu0 %v3709
        %v3769 = vpop.f32.mrf.mxu0
        %v3770 = vadd.f32 %v3669, %v3769
        %v3771 = vpop.f32.mrf.mxu0
        %v3772 = vpop.f32.mrf.mxu0
        %v3773 = vadd.f32 %v3672, %v3772
        %v3774 = vpop.f32.mrf.mxu0
        %3775 = vdwg.mxu0
        %v3776 = vld [vmem:[#allocation4 + $0x2] sm:$0xff]
        %v3777 = vld [vmem:[#allocation4 + $0x12] sm:$0xff]
        %v3778 = vld [vmem:[#allocation4 + $0x22] sm:$0xff]
        %v3779 = vld [vmem:[#allocation4 + $0x32] sm:$0xff]
        %v3780 = vld [vmem:[#allocation4 + $0x42] sm:$0xff]
        %v3781 = vld [vmem:[#allocation4 + $0x52] sm:$0xff]
        %v3782 = vld [vmem:[#allocation4 + $0x62] sm:$0xff]
        %v3783 = vld [vmem:[#allocation4 + $0x72] sm:$0xff]
        %v3784 = vpack.c.bf16 %v3777, %v3776
        %v3785 = vpack.c.bf16 %v3779, %v3778
        %v3786 = vpack.c.bf16 %v3781, %v3780
        %v3787 = vpack.c.bf16 %v3783, %v3782
        %s3788 = scalar_lea.vmem %s13, 64
        %v3789 = vld [vmem:[%s3788] sm:$0xf]
        %v3790 = vld [vmem:[%s3788 + $0x4] sm:$0xf]
        %v3791 = vld [vmem:[%s3788 + $0x8] sm:$0xf]
        %v3792 = vld [vmem:[%s3788 + $0xc] sm:$0xf]
        %v3793 = vld [vmem:[%s3788 + $0x10] sm:$0xf]
        %v3794 = vld [vmem:[%s3788 + $0x14] sm:$0xf]
        %v3795 = vld [vmem:[%s3788 + $0x18] sm:$0xf]
        %v3796 = vld [vmem:[%s3788 + $0x1c] sm:$0xf]
        %v3805 = vunpack.c.l.b16 %v3789
        %v3806 = vunpack.c.l.b16 %v3790
        %v3807 = vunpack.c.l.b16 %v3791
        %v3808 = vunpack.c.l.b16 %v3792
        %v3809 = vunpack.c.l.b16 %v3793
        %v3810 = vunpack.c.l.b16 %v3794
        %v3811 = vunpack.c.l.b16 %v3795
        %v3812 = vunpack.c.l.b16 %v3796
        %v3813 = vpack.c.b16 %v3806, %v3805
        %v3814 = vpack.c.b16 %v3808, %v3807
        %v3815 = vpack.c.b16 %v3810, %v3809
        %v3816 = vpack.c.b16 %v3812, %v3811
        %v3822 = vsel %vm1203, %v3784, 0
        %v3825 = vsel %vm1203, %v3785, 0
        %v3828 = vsel %vm1203, %v3786, 0
        %v3831 = vsel %vm1203, %v3787, 0
        %3833 = vmatprep.subr.bf16.mxu0 0
        %3834 = vmatpush1.bf16.msra.mxu0 0
        %3835 = vmatprep.subr.bf16.mxu0 0
        %3836 = vmatpush1.bf16.msra.mxu0 0
        %3837 = vmatprep.subr.bf16.mxu0 0
        %3838 = vmatpush1.bf16.msra.mxu0 0
        %3839 = vmatprep.subr.bf16.mxu0 0
        %3840 = vmatpush1.bf16.msra.mxu0 0
        %3841 = vmatprep.subr.bf16.mxu0 0
        %3842 = vmatpush1.bf16.msra.mxu0 %v3816
        %3843 = vmatprep.subr.bf16.mxu0 0
        %3844 = vmatpush1.bf16.msra.mxu0 %v3815
        %3845 = vmatprep.subr.bf16.mxu0 0
        %3846 = vmatpush1.bf16.msra.mxu0 %v3814
        %3847 = vmatprep.subr.bf16.mxu0 0
        %3848 = vmatpush1.bf16.msra.mxu0 %v3813
        %3849 = vmatprep.subr.bf16.mxu0 0
        %3850 = vmatpush2.bf16.msra.mxu0 0
        %3851 = vmatprep.subr.bf16.mxu0 0
        %3852 = vmatpush2.bf16.msra.mxu0 0
        %3853 = vmatprep.subr.bf16.mxu0 0
        %3854 = vmatpush2.bf16.msra.mxu0 0
        %3855 = vmatprep.subr.bf16.mxu0 0
        %3856 = vmatpush2.bf16.msra.mxu0 0
        %3857 = vmatprep.subr.bf16.mxu0 0
        %3858 = vmatpush2.bf16.msra.mxu0 0
        %3859 = vmatprep.subr.bf16.mxu0 0
        %3860 = vmatpush2.bf16.msra.mxu0 0
        %3861 = vmatprep.subr.bf16.mxu0 0
        %3862 = vmatpush2.bf16.msra.mxu0 0
        %3863 = vmatprep.subr.bf16.mxu0 0
        %3864 = vmatpush2.bf16.msra.mxu0 0
        %3865 = vmatprep.mubr.bf16.mxu0 0
        %3866 = vmatmul.mubr.bf16.gmra.mxu0 %v3822
        %v3867 = vpop.f32.mrf.mxu0
        %v3868 = vadd.f32 0.0, %v3867
        %v3869 = vpop.f32.mrf.mxu0
        %v3870 = vpop.f32.mrf.mxu0
        %v3871 = vadd.f32 0.0, %v3870
        %v3872 = vpop.f32.mrf.mxu0
        %3873 = vmatprep.mubr.bf16.mxu0 0
        %3874 = vmatmul.mubr.bf16.gmra.mxu0 %v3825
        %v3875 = vpop.f32.mrf.mxu0
        %v3876 = vadd.f32 0.0, %v3875
        %v3877 = vpop.f32.mrf.mxu0
        %v3878 = vpop.f32.mrf.mxu0
        %v3879 = vadd.f32 0.0, %v3878
        %v3880 = vpop.f32.mrf.mxu0
        %3881 = vmatprep.mubr.bf16.mxu0 0
        %3882 = vmatmul.mubr.bf16.gmra.mxu0 %v3828
        %v3883 = vpop.f32.mrf.mxu0
        %v3884 = vadd.f32 0.0, %v3883
        %v3885 = vpop.f32.mrf.mxu0
        %v3886 = vpop.f32.mrf.mxu0
        %v3887 = vadd.f32 0.0, %v3886
        %v3888 = vpop.f32.mrf.mxu0
        %3889 = vmatprep.mubr.bf16.mxu0 0
        %3890 = vmatmul.mubr.bf16.gmra.mxu0 %v3831
        %v3891 = vpop.f32.mrf.mxu0
        %v3892 = vadd.f32 0.0, %v3891
        %v3893 = vpop.f32.mrf.mxu0
        %v3894 = vpop.f32.mrf.mxu0
        %v3895 = vadd.f32 0.0, %v3894
        %v3896 = vpop.f32.mrf.mxu0
        %3897 = vdwg.mxu0
        %v3898 = vadd.f32 %v3746, %v3868
        %v3899 = vadd.f32 %v3749, %v3871
        %v3900 = vadd.f32 %v3754, %v3876
        %v3901 = vadd.f32 %v3757, %v3879
        %v3902 = vadd.f32 %v3762, %v3884
        %v3903 = vadd.f32 %v3765, %v3887
        %v3904 = vadd.f32 %v3770, %v3892
        %v3905 = vadd.f32 %v3773, %v3895
        %v3906 = vld [vmem:[%s1789] sm:$0xff]
        %v3907 = vld [vmem:[%s1789 + $0x10] sm:$0xff]
        %v3908 = vld [vmem:[%s1789 + $0x20] sm:$0xff]
        %v3909 = vld [vmem:[%s1789 + $0x30] sm:$0xff]
        %v3910 = vld [vmem:[%s1789 + $0x40] sm:$0xff]
        %v3911 = vld [vmem:[%s1789 + $0x50] sm:$0xff]
        %v3912 = vld [vmem:[%s1789 + $0x60] sm:$0xff]
        %v3913 = vld [vmem:[%s1789 + $0x70] sm:$0xff]
        %v3914 = vpack.c.bf16 %v3907, %v3906
        %v3915 = vpack.c.bf16 %v3909, %v3908
        %v3916 = vpack.c.bf16 %v3911, %v3910
        %v3917 = vpack.c.bf16 %v3913, %v3912
        %s3918 = scalar_lea.vmem %s13, 96
        %v3919 = vld [vmem:[%s3918] sm:$0xf]
        %v3920 = vld [vmem:[%s3918 + $0x4] sm:$0xf]
        %v3921 = vld [vmem:[%s3918 + $0x8] sm:$0xf]
        %v3922 = vld [vmem:[%s3918 + $0xc] sm:$0xf]
        %v3923 = vld [vmem:[%s3918 + $0x10] sm:$0xf]
        %v3924 = vld [vmem:[%s3918 + $0x14] sm:$0xf]
        %v3925 = vld [vmem:[%s3918 + $0x18] sm:$0xf]
        %v3926 = vld [vmem:[%s3918 + $0x1c] sm:$0xf]
        %v3935 = vunpack.c.l.b16 %v3919
        %v3936 = vunpack.c.l.b16 %v3920
        %v3937 = vunpack.c.l.b16 %v3921
        %v3938 = vunpack.c.l.b16 %v3922
        %v3939 = vunpack.c.l.b16 %v3923
        %v3940 = vunpack.c.l.b16 %v3924
        %v3941 = vunpack.c.l.b16 %v3925
        %v3942 = vunpack.c.l.b16 %v3926
        %v3943 = vpack.c.b16 %v3936, %v3935
        %v3944 = vpack.c.b16 %v3938, %v3937
        %v3945 = vpack.c.b16 %v3940, %v3939
        %v3946 = vpack.c.b16 %v3942, %v3941
        %v3952 = vsel %vm1203, %v3914, 0
        %v3955 = vsel %vm1203, %v3915, 0
        %v3958 = vsel %vm1203, %v3916, 0
        %v3961 = vsel %vm1203, %v3917, 0
        %3963 = vmatprep.subr.bf16.mxu0 0
        %3964 = vmatpush1.bf16.msra.mxu0 0
        %3965 = vmatprep.subr.bf16.mxu0 0
        %3966 = vmatpush1.bf16.msra.mxu0 0
        %3967 = vmatprep.subr.bf16.mxu0 0
        %3968 = vmatpush1.bf16.msra.mxu0 0
        %3969 = vmatprep.subr.bf16.mxu0 0
        %3970 = vmatpush1.bf16.msra.mxu0 0
        %3971 = vmatprep.subr.bf16.mxu0 0
        %3972 = vmatpush1.bf16.msra.mxu0 %v3946
        %3973 = vmatprep.subr.bf16.mxu0 0
        %3974 = vmatpush1.bf16.msra.mxu0 %v3945
        %3975 = vmatprep.subr.bf16.mxu0 0
        %3976 = vmatpush1.bf16.msra.mxu0 %v3944
        %3977 = vmatprep.subr.bf16.mxu0 0
        %3978 = vmatpush1.bf16.msra.mxu0 %v3943
        %3979 = vmatprep.subr.bf16.mxu0 0
        %3980 = vmatpush2.bf16.msra.mxu0 0
        %3981 = vmatprep.subr.bf16.mxu0 0
        %3982 = vmatpush2.bf16.msra.mxu0 0
        %3983 = vmatprep.subr.bf16.mxu0 0
        %3984 = vmatpush2.bf16.msra.mxu0 0
        %3985 = vmatprep.subr.bf16.mxu0 0
        %3986 = vmatpush2.bf16.msra.mxu0 0
        %3987 = vmatprep.subr.bf16.mxu0 0
        %3988 = vmatpush2.bf16.msra.mxu0 0
        %3989 = vmatprep.subr.bf16.mxu0 0
        %3990 = vmatpush2.bf16.msra.mxu0 0
        %3991 = vmatprep.subr.bf16.mxu0 0
        %3992 = vmatpush2.bf16.msra.mxu0 0
        %3993 = vmatprep.subr.bf16.mxu0 0
        %3994 = vmatpush2.bf16.msra.mxu0 0
        %3995 = vmatprep.mubr.bf16.mxu0 0
        %3996 = vmatmul.mubr.bf16.gmra.mxu0 %v3952
        %v3997 = vpop.f32.mrf.mxu0
        %v3998 = vadd.f32 0.0, %v3997
        %v3999 = vpop.f32.mrf.mxu0
        %v4000 = vpop.f32.mrf.mxu0
        %v4001 = vadd.f32 0.0, %v4000
        %v4002 = vpop.f32.mrf.mxu0
        %4003 = vmatprep.mubr.bf16.mxu0 0
        %4004 = vmatmul.mubr.bf16.gmra.mxu0 %v3955
        %v4005 = vpop.f32.mrf.mxu0
        %v4006 = vadd.f32 0.0, %v4005
        %v4007 = vpop.f32.mrf.mxu0
        %v4008 = vpop.f32.mrf.mxu0
        %v4009 = vadd.f32 0.0, %v4008
        %v4010 = vpop.f32.mrf.mxu0
        %4011 = vmatprep.mubr.bf16.mxu0 0
        %4012 = vmatmul.mubr.bf16.gmra.mxu0 %v3958
        %v4013 = vpop.f32.mrf.mxu0
        %v4014 = vadd.f32 0.0, %v4013
        %v4015 = vpop.f32.mrf.mxu0
        %v4016 = vpop.f32.mrf.mxu0
        %v4017 = vadd.f32 0.0, %v4016
        %v4018 = vpop.f32.mrf.mxu0
        %4019 = vmatprep.mubr.bf16.mxu0 0
        %4020 = vmatmul.mubr.bf16.gmra.mxu0 %v3961
        %v4021 = vpop.f32.mrf.mxu0
        %v4022 = vadd.f32 0.0, %v4021
        %v4023 = vpop.f32.mrf.mxu0
        %v4024 = vpop.f32.mrf.mxu0
        %v4025 = vadd.f32 0.0, %v4024
        %v4026 = vpop.f32.mrf.mxu0
        %4027 = vdwg.mxu0
        %v4028 = vadd.f32 %v3898, %v3998
        %v4029 = vadd.f32 %v3899, %v4001
        %v4030 = vadd.f32 %v3900, %v4006
        %v4031 = vadd.f32 %v3901, %v4009
        %v4032 = vadd.f32 %v3902, %v4014
        %v4033 = vadd.f32 %v3903, %v4017
        %v4034 = vadd.f32 %v3904, %v4022
        %v4035 = vadd.f32 %v3905, %v4025
        %v4036 = vld [vmem:[%s1789 + $0x1] sm:$0xff]
        %v4037 = vld [vmem:[%s1789 + $0x11] sm:$0xff]
        %v4038 = vld [vmem:[%s1789 + $0x21] sm:$0xff]
        %v4039 = vld [vmem:[%s1789 + $0x31] sm:$0xff]
        %v4040 = vld [vmem:[%s1789 + $0x41] sm:$0xff]
        %v4041 = vld [vmem:[%s1789 + $0x51] sm:$0xff]
        %v4042 = vld [vmem:[%s1789 + $0x61] sm:$0xff]
        %v4043 = vld [vmem:[%s1789 + $0x71] sm:$0xff]
        %v4044 = vpack.c.bf16 %v4037, %v4036
        %v4045 = vpack.c.bf16 %v4039, %v4038
        %v4046 = vpack.c.bf16 %v4041, %v4040
        %v4047 = vpack.c.bf16 %v4043, %v4042
        %s4048 = scalar_lea.vmem %s13, 128
        %v4049 = vld [vmem:[%s4048] sm:$0xf]
        %v4050 = vld [vmem:[%s4048 + $0x4] sm:$0xf]
        %v4051 = vld [vmem:[%s4048 + $0x8] sm:$0xf]
        %v4052 = vld [vmem:[%s4048 + $0xc] sm:$0xf]
        %v4053 = vld [vmem:[%s4048 + $0x10] sm:$0xf]
        %v4054 = vld [vmem:[%s4048 + $0x14] sm:$0xf]
        %v4055 = vld [vmem:[%s4048 + $0x18] sm:$0xf]
        %v4056 = vld [vmem:[%s4048 + $0x1c] sm:$0xf]
        %v4065 = vunpack.c.l.b16 %v4049
        %v4066 = vunpack.c.l.b16 %v4050
        %v4067 = vunpack.c.l.b16 %v4051
        %v4068 = vunpack.c.l.b16 %v4052
        %v4069 = vunpack.c.l.b16 %v4053
        %v4070 = vunpack.c.l.b16 %v4054
        %v4071 = vunpack.c.l.b16 %v4055
        %v4072 = vunpack.c.l.b16 %v4056
        %v4073 = vpack.c.b16 %v4066, %v4065
        %v4074 = vpack.c.b16 %v4068, %v4067
        %v4075 = vpack.c.b16 %v4070, %v4069
        %v4076 = vpack.c.b16 %v4072, %v4071
        %v4082 = vsel %vm1203, %v4044, 0
        %v4085 = vsel %vm1203, %v4045, 0
        %v4088 = vsel %vm1203, %v4046, 0
        %v4091 = vsel %vm1203, %v4047, 0
        %4093 = vmatprep.subr.bf16.mxu0 0
        %4094 = vmatpush1.bf16.msra.mxu0 0
        %4095 = vmatprep.subr.bf16.mxu0 0
        %4096 = vmatpush1.bf16.msra.mxu0 0
        %4097 = vmatprep.subr.bf16.mxu0 0
        %4098 = vmatpush1.bf16.msra.mxu0 0
        %4099 = vmatprep.subr.bf16.mxu0 0
        %4100 = vmatpush1.bf16.msra.mxu0 0
        %4101 = vmatprep.subr.bf16.mxu0 0
        %4102 = vmatpush1.bf16.msra.mxu0 %v4076
        %4103 = vmatprep.subr.bf16.mxu0 0
        %4104 = vmatpush1.bf16.msra.mxu0 %v4075
        %4105 = vmatprep.subr.bf16.mxu0 0
        %4106 = vmatpush1.bf16.msra.mxu0 %v4074
        %4107 = vmatprep.subr.bf16.mxu0 0
        %4108 = vmatpush1.bf16.msra.mxu0 %v4073
        %4109 = vmatprep.subr.bf16.mxu0 0
        %4110 = vmatpush2.bf16.msra.mxu0 0
        %4111 = vmatprep.subr.bf16.mxu0 0
        %4112 = vmatpush2.bf16.msra.mxu0 0
        %4113 = vmatprep.subr.bf16.mxu0 0
        %4114 = vmatpush2.bf16.msra.mxu0 0
        %4115 = vmatprep.subr.bf16.mxu0 0
        %4116 = vmatpush2.bf16.msra.mxu0 0
        %4117 = vmatprep.subr.bf16.mxu0 0
        %4118 = vmatpush2.bf16.msra.mxu0 0
        %4119 = vmatprep.subr.bf16.mxu0 0
        %4120 = vmatpush2.bf16.msra.mxu0 0
        %4121 = vmatprep.subr.bf16.mxu0 0
        %4122 = vmatpush2.bf16.msra.mxu0 0
        %4123 = vmatprep.subr.bf16.mxu0 0
        %4124 = vmatpush2.bf16.msra.mxu0 0
        %4125 = vmatprep.mubr.bf16.mxu0 0
        %4126 = vmatmul.mubr.bf16.gmra.mxu0 %v4082
        %v4127 = vpop.f32.mrf.mxu0
        %v4128 = vadd.f32 0.0, %v4127
        %v4129 = vpop.f32.mrf.mxu0
        %v4130 = vpop.f32.mrf.mxu0
        %v4131 = vadd.f32 0.0, %v4130
        %v4132 = vpop.f32.mrf.mxu0
        %4133 = vmatprep.mubr.bf16.mxu0 0
        %4134 = vmatmul.mubr.bf16.gmra.mxu0 %v4085
        %v4135 = vpop.f32.mrf.mxu0
        %v4136 = vadd.f32 0.0, %v4135
        %v4137 = vpop.f32.mrf.mxu0
        %v4138 = vpop.f32.mrf.mxu0
        %v4139 = vadd.f32 0.0, %v4138
        %v4140 = vpop.f32.mrf.mxu0
        %4141 = vmatprep.mubr.bf16.mxu0 0
        %4142 = vmatmul.mubr.bf16.gmra.mxu0 %v4088
        %v4143 = vpop.f32.mrf.mxu0
        %v4144 = vadd.f32 0.0, %v4143
        %v4145 = vpop.f32.mrf.mxu0
        %v4146 = vpop.f32.mrf.mxu0
        %v4147 = vadd.f32 0.0, %v4146
        %v4148 = vpop.f32.mrf.mxu0
        %4149 = vmatprep.mubr.bf16.mxu0 0
        %4150 = vmatmul.mubr.bf16.gmra.mxu0 %v4091
        %v4151 = vpop.f32.mrf.mxu0
        %v4152 = vadd.f32 0.0, %v4151
        %v4153 = vpop.f32.mrf.mxu0
        %v4154 = vpop.f32.mrf.mxu0
        %v4155 = vadd.f32 0.0, %v4154
        %v4156 = vpop.f32.mrf.mxu0
        %4157 = vdwg.mxu0
        %v4158 = vadd.f32 %v4028, %v4128
        %v4159 = vadd.f32 %v4029, %v4131
        %v4160 = vadd.f32 %v4030, %v4136
        %v4161 = vadd.f32 %v4031, %v4139
        %v4162 = vadd.f32 %v4032, %v4144
        %v4163 = vadd.f32 %v4033, %v4147
        %v4164 = vadd.f32 %v4034, %v4152
        %v4165 = vadd.f32 %v4035, %v4155
        %v4166 = vld [vmem:[%s1789 + $0x2] sm:$0xff]
        %v4167 = vld [vmem:[%s1789 + $0x12] sm:$0xff]
        %v4168 = vld [vmem:[%s1789 + $0x22] sm:$0xff]
        %v4169 = vld [vmem:[%s1789 + $0x32] sm:$0xff]
        %v4170 = vld [vmem:[%s1789 + $0x42] sm:$0xff]
        %v4171 = vld [vmem:[%s1789 + $0x52] sm:$0xff]
        %v4172 = vld [vmem:[%s1789 + $0x62] sm:$0xff]
        %v4173 = vld [vmem:[%s1789 + $0x72] sm:$0xff]
        %v4174 = vpack.c.bf16 %v4167, %v4166
        %v4175 = vpack.c.bf16 %v4169, %v4168
        %v4176 = vpack.c.bf16 %v4171, %v4170
        %v4177 = vpack.c.bf16 %v4173, %v4172
        %s4178 = scalar_lea.vmem %s13, 160
        %v4179 = vld [vmem:[%s4178] sm:$0xf]
        %v4180 = vld [vmem:[%s4178 + $0x4] sm:$0xf]
        %v4181 = vld [vmem:[%s4178 + $0x8] sm:$0xf]
        %v4182 = vld [vmem:[%s4178 + $0xc] sm:$0xf]
        %v4183 = vld [vmem:[%s4178 + $0x10] sm:$0xf]
        %v4184 = vld [vmem:[%s4178 + $0x14] sm:$0xf]
        %v4185 = vld [vmem:[%s4178 + $0x18] sm:$0xf]
        %v4186 = vld [vmem:[%s4178 + $0x1c] sm:$0xf]
        %v4195 = vunpack.c.l.b16 %v4179
        %v4196 = vunpack.c.l.b16 %v4180
        %v4197 = vunpack.c.l.b16 %v4181
        %v4198 = vunpack.c.l.b16 %v4182
        %v4199 = vunpack.c.l.b16 %v4183
        %v4200 = vunpack.c.l.b16 %v4184
        %v4201 = vunpack.c.l.b16 %v4185
        %v4202 = vunpack.c.l.b16 %v4186
        %v4203 = vpack.c.b16 %v4196, %v4195
        %v4204 = vpack.c.b16 %v4198, %v4197
        %v4205 = vpack.c.b16 %v4200, %v4199
        %v4206 = vpack.c.b16 %v4202, %v4201
        %v4212 = vsel %vm1203, %v4174, 0
        %v4215 = vsel %vm1203, %v4175, 0
        %v4218 = vsel %vm1203, %v4176, 0
        %v4221 = vsel %vm1203, %v4177, 0
        %4223 = vmatprep.subr.bf16.mxu0 0
        %4224 = vmatpush1.bf16.msra.mxu0 0
        %4225 = vmatprep.subr.bf16.mxu0 0
        %4226 = vmatpush1.bf16.msra.mxu0 0
        %4227 = vmatprep.subr.bf16.mxu0 0
        %4228 = vmatpush1.bf16.msra.mxu0 0
        %4229 = vmatprep.subr.bf16.mxu0 0
        %4230 = vmatpush1.bf16.msra.mxu0 0
        %4231 = vmatprep.subr.bf16.mxu0 0
        %4232 = vmatpush1.bf16.msra.mxu0 %v4206
        %4233 = vmatprep.subr.bf16.mxu0 0
        %4234 = vmatpush1.bf16.msra.mxu0 %v4205
        %4235 = vmatprep.subr.bf16.mxu0 0
        %4236 = vmatpush1.bf16.msra.mxu0 %v4204
        %4237 = vmatprep.subr.bf16.mxu0 0
        %4238 = vmatpush1.bf16.msra.mxu0 %v4203
        %4239 = vmatprep.subr.bf16.mxu0 0
        %4240 = vmatpush2.bf16.msra.mxu0 0
        %4241 = vmatprep.subr.bf16.mxu0 0
        %4242 = vmatpush2.bf16.msra.mxu0 0
        %4243 = vmatprep.subr.bf16.mxu0 0
        %4244 = vmatpush2.bf16.msra.mxu0 0
        %4245 = vmatprep.subr.bf16.mxu0 0
        %4246 = vmatpush2.bf16.msra.mxu0 0
        %4247 = vmatprep.subr.bf16.mxu0 0
        %4248 = vmatpush2.bf16.msra.mxu0 0
        %4249 = vmatprep.subr.bf16.mxu0 0
        %4250 = vmatpush2.bf16.msra.mxu0 0
        %4251 = vmatprep.subr.bf16.mxu0 0
        %4252 = vmatpush2.bf16.msra.mxu0 0
        %4253 = vmatprep.subr.bf16.mxu0 0
        %4254 = vmatpush2.bf16.msra.mxu0 0
        %4255 = vmatprep.mubr.bf16.mxu0 0
        %4256 = vmatmul.mubr.bf16.gmra.mxu0 %v4212
        %v4257 = vpop.f32.mrf.mxu0
        %v4258 = vadd.f32 0.0, %v4257
        %v4259 = vpop.f32.mrf.mxu0
        %v4260 = vpop.f32.mrf.mxu0
        %v4261 = vadd.f32 0.0, %v4260
        %v4262 = vpop.f32.mrf.mxu0
        %4263 = vmatprep.mubr.bf16.mxu0 0
        %4264 = vmatmul.mubr.bf16.gmra.mxu0 %v4215
        %v4265 = vpop.f32.mrf.mxu0
        %v4266 = vadd.f32 0.0, %v4265
        %v4267 = vpop.f32.mrf.mxu0
        %v4268 = vpop.f32.mrf.mxu0
        %v4269 = vadd.f32 0.0, %v4268
        %v4270 = vpop.f32.mrf.mxu0
        %4271 = vmatprep.mubr.bf16.mxu0 0
        %4272 = vmatmul.mubr.bf16.gmra.mxu0 %v4218
        %v4273 = vpop.f32.mrf.mxu0
        %v4274 = vadd.f32 0.0, %v4273
        %v4275 = vpop.f32.mrf.mxu0
        %v4276 = vpop.f32.mrf.mxu0
        %v4277 = vadd.f32 0.0, %v4276
        %v4278 = vpop.f32.mrf.mxu0
        %4279 = vmatprep.mubr.bf16.mxu0 0
        %4280 = vmatmul.mubr.bf16.gmra.mxu0 %v4221
        %v4281 = vpop.f32.mrf.mxu0
        %v4282 = vadd.f32 0.0, %v4281
        %v4283 = vpop.f32.mrf.mxu0
        %v4284 = vpop.f32.mrf.mxu0
        %v4285 = vadd.f32 0.0, %v4284
        %v4286 = vpop.f32.mrf.mxu0
        %4287 = vdwg.mxu0
        %v4288 = vadd.f32 %v4158, %v4258
        %v4289 = vadd.f32 %v4159, %v4261
        %v4290 = vadd.f32 %v4160, %v4266
        %v4291 = vadd.f32 %v4161, %v4269
        %v4292 = vadd.f32 %v4162, %v4274
        %v4293 = vadd.f32 %v4163, %v4277
        %v4294 = vadd.f32 %v4164, %v4282
        %v4295 = vadd.f32 %v4165, %v4285
        %v4296 = vld [vmem:[%s2561] sm:$0xff]
        %v4297 = vld [vmem:[%s2561 + $0x10] sm:$0xff]
        %v4298 = vld [vmem:[%s2561 + $0x20] sm:$0xff]
        %v4299 = vld [vmem:[%s2561 + $0x30] sm:$0xff]
        %v4300 = vld [vmem:[%s2561 + $0x40] sm:$0xff]
        %v4301 = vld [vmem:[%s2561 + $0x50] sm:$0xff]
        %v4302 = vld [vmem:[%s2561 + $0x60] sm:$0xff]
        %v4303 = vld [vmem:[%s2561 + $0x70] sm:$0xff]
        %v4304 = vpack.c.bf16 %v4297, %v4296
        %v4305 = vpack.c.bf16 %v4299, %v4298
        %v4306 = vpack.c.bf16 %v4301, %v4300
        %v4307 = vpack.c.bf16 %v4303, %v4302
        %s4308 = scalar_lea.vmem %s13, 192
        %v4309 = vld [vmem:[%s4308] sm:$0xf]
        %v4310 = vld [vmem:[%s4308 + $0x4] sm:$0xf]
        %v4311 = vld [vmem:[%s4308 + $0x8] sm:$0xf]
        %v4312 = vld [vmem:[%s4308 + $0xc] sm:$0xf]
        %v4313 = vld [vmem:[%s4308 + $0x10] sm:$0xf]
        %v4314 = vld [vmem:[%s4308 + $0x14] sm:$0xf]
        %v4315 = vld [vmem:[%s4308 + $0x18] sm:$0xf]
        %v4316 = vld [vmem:[%s4308 + $0x1c] sm:$0xf]
        %v4325 = vunpack.c.l.b16 %v4309
        %v4326 = vunpack.c.l.b16 %v4310
        %v4327 = vunpack.c.l.b16 %v4311
        %v4328 = vunpack.c.l.b16 %v4312
        %v4329 = vunpack.c.l.b16 %v4313
        %v4330 = vunpack.c.l.b16 %v4314
        %v4331 = vunpack.c.l.b16 %v4315
        %v4332 = vunpack.c.l.b16 %v4316
        %v4333 = vpack.c.b16 %v4326, %v4325
        %v4334 = vpack.c.b16 %v4328, %v4327
        %v4335 = vpack.c.b16 %v4330, %v4329
        %v4336 = vpack.c.b16 %v4332, %v4331
        %v4342 = vsel %vm1203, %v4304, 0
        %v4345 = vsel %vm1203, %v4305, 0
        %v4348 = vsel %vm1203, %v4306, 0
        %v4351 = vsel %vm1203, %v4307, 0
        %4353 = vmatprep.subr.bf16.mxu0 0
        %4354 = vmatpush1.bf16.msra.mxu0 0
        %4355 = vmatprep.subr.bf16.mxu0 0
        %4356 = vmatpush1.bf16.msra.mxu0 0
        %4357 = vmatprep.subr.bf16.mxu0 0
        %4358 = vmatpush1.bf16.msra.mxu0 0
        %4359 = vmatprep.subr.bf16.mxu0 0
        %4360 = vmatpush1.bf16.msra.mxu0 0
        %4361 = vmatprep.subr.bf16.mxu0 0
        %4362 = vmatpush1.bf16.msra.mxu0 %v4336
        %4363 = vmatprep.subr.bf16.mxu0 0
        %4364 = vmatpush1.bf16.msra.mxu0 %v4335
        %4365 = vmatprep.subr.bf16.mxu0 0
        %4366 = vmatpush1.bf16.msra.mxu0 %v4334
        %4367 = vmatprep.subr.bf16.mxu0 0
        %4368 = vmatpush1.bf16.msra.mxu0 %v4333
        %4369 = vmatprep.subr.bf16.mxu0 0
        %4370 = vmatpush2.bf16.msra.mxu0 0
        %4371 = vmatprep.subr.bf16.mxu0 0
        %4372 = vmatpush2.bf16.msra.mxu0 0
        %4373 = vmatprep.subr.bf16.mxu0 0
        %4374 = vmatpush2.bf16.msra.mxu0 0
        %4375 = vmatprep.subr.bf16.mxu0 0
        %4376 = vmatpush2.bf16.msra.mxu0 0
        %4377 = vmatprep.subr.bf16.mxu0 0
        %4378 = vmatpush2.bf16.msra.mxu0 0
        %4379 = vmatprep.subr.bf16.mxu0 0
        %4380 = vmatpush2.bf16.msra.mxu0 0
        %4381 = vmatprep.subr.bf16.mxu0 0
        %4382 = vmatpush2.bf16.msra.mxu0 0
        %4383 = vmatprep.subr.bf16.mxu0 0
        %4384 = vmatpush2.bf16.msra.mxu0 0
        %4385 = vmatprep.mubr.bf16.mxu0 0
        %4386 = vmatmul.mubr.bf16.gmra.mxu0 %v4342
        %v4387 = vpop.f32.mrf.mxu0
        %v4388 = vadd.f32 0.0, %v4387
        %v4389 = vpop.f32.mrf.mxu0
        %v4390 = vpop.f32.mrf.mxu0
        %v4391 = vadd.f32 0.0, %v4390
        %v4392 = vpop.f32.mrf.mxu0
        %4393 = vmatprep.mubr.bf16.mxu0 0
        %4394 = vmatmul.mubr.bf16.gmra.mxu0 %v4345
        %v4395 = vpop.f32.mrf.mxu0
        %v4396 = vadd.f32 0.0, %v4395
        %v4397 = vpop.f32.mrf.mxu0
        %v4398 = vpop.f32.mrf.mxu0
        %v4399 = vadd.f32 0.0, %v4398
        %v4400 = vpop.f32.mrf.mxu0
        %4401 = vmatprep.mubr.bf16.mxu0 0
        %4402 = vmatmul.mubr.bf16.gmra.mxu0 %v4348
        %v4403 = vpop.f32.mrf.mxu0
        %v4404 = vadd.f32 0.0, %v4403
        %v4405 = vpop.f32.mrf.mxu0
        %v4406 = vpop.f32.mrf.mxu0
        %v4407 = vadd.f32 0.0, %v4406
        %v4408 = vpop.f32.mrf.mxu0
        %4409 = vmatprep.mubr.bf16.mxu0 0
        %4410 = vmatmul.mubr.bf16.gmra.mxu0 %v4351
        %v4411 = vpop.f32.mrf.mxu0
        %v4412 = vadd.f32 0.0, %v4411
        %v4413 = vpop.f32.mrf.mxu0
        %v4414 = vpop.f32.mrf.mxu0
        %v4415 = vadd.f32 0.0, %v4414
        %v4416 = vpop.f32.mrf.mxu0
        %4417 = vdwg.mxu0
        %v4418 = vadd.f32 %v4288, %v4388
        %v4419 = vadd.f32 %v4289, %v4391
        %v4420 = vadd.f32 %v4290, %v4396
        %v4421 = vadd.f32 %v4291, %v4399
        %v4422 = vadd.f32 %v4292, %v4404
        %v4423 = vadd.f32 %v4293, %v4407
        %v4424 = vadd.f32 %v4294, %v4412
        %v4425 = vadd.f32 %v4295, %v4415
        %v4426 = vld [vmem:[%s2561 + $0x1] sm:$0xff]
        %v4427 = vld [vmem:[%s2561 + $0x11] sm:$0xff]
        %v4428 = vld [vmem:[%s2561 + $0x21] sm:$0xff]
        %v4429 = vld [vmem:[%s2561 + $0x31] sm:$0xff]
        %v4430 = vld [vmem:[%s2561 + $0x41] sm:$0xff]
        %v4431 = vld [vmem:[%s2561 + $0x51] sm:$0xff]
        %v4432 = vld [vmem:[%s2561 + $0x61] sm:$0xff]
        %v4433 = vld [vmem:[%s2561 + $0x71] sm:$0xff]
        %v4434 = vpack.c.bf16 %v4427, %v4426
        %v4435 = vpack.c.bf16 %v4429, %v4428
        %v4436 = vpack.c.bf16 %v4431, %v4430
        %v4437 = vpack.c.bf16 %v4433, %v4432
        %s4438 = scalar_lea.vmem %s13, 224
        %v4439 = vld [vmem:[%s4438] sm:$0xf]
        %v4440 = vld [vmem:[%s4438 + $0x4] sm:$0xf]
        %v4441 = vld [vmem:[%s4438 + $0x8] sm:$0xf]
        %v4442 = vld [vmem:[%s4438 + $0xc] sm:$0xf]
        %v4443 = vld [vmem:[%s4438 + $0x10] sm:$0xf]
        %v4444 = vld [vmem:[%s4438 + $0x14] sm:$0xf]
        %v4445 = vld [vmem:[%s4438 + $0x18] sm:$0xf]
        %v4446 = vld [vmem:[%s4438 + $0x1c] sm:$0xf]
        %v4455 = vunpack.c.l.b16 %v4439
        %v4456 = vunpack.c.l.b16 %v4440
        %v4457 = vunpack.c.l.b16 %v4441
        %v4458 = vunpack.c.l.b16 %v4442
        %v4459 = vunpack.c.l.b16 %v4443
        %v4460 = vunpack.c.l.b16 %v4444
        %v4461 = vunpack.c.l.b16 %v4445
        %v4462 = vunpack.c.l.b16 %v4446
        %v4463 = vpack.c.b16 %v4456, %v4455
        %v4464 = vpack.c.b16 %v4458, %v4457
        %v4465 = vpack.c.b16 %v4460, %v4459
        %v4466 = vpack.c.b16 %v4462, %v4461
        %v4472 = vsel %vm1203, %v4434, 0
        %v4475 = vsel %vm1203, %v4435, 0
        %v4478 = vsel %vm1203, %v4436, 0
        %v4481 = vsel %vm1203, %v4437, 0
        %4483 = vmatprep.subr.bf16.mxu0 0
        %4484 = vmatpush1.bf16.msra.mxu0 0
        %4485 = vmatprep.subr.bf16.mxu0 0
        %4486 = vmatpush1.bf16.msra.mxu0 0
        %4487 = vmatprep.subr.bf16.mxu0 0
        %4488 = vmatpush1.bf16.msra.mxu0 0
        %4489 = vmatprep.subr.bf16.mxu0 0
        %4490 = vmatpush1.bf16.msra.mxu0 0
        %4491 = vmatprep.subr.bf16.mxu0 0
        %4492 = vmatpush1.bf16.msra.mxu0 %v4466
        %4493 = vmatprep.subr.bf16.mxu0 0
        %4494 = vmatpush1.bf16.msra.mxu0 %v4465
        %4495 = vmatprep.subr.bf16.mxu0 0
        %4496 = vmatpush1.bf16.msra.mxu0 %v4464
        %4497 = vmatprep.subr.bf16.mxu0 0
        %4498 = vmatpush1.bf16.msra.mxu0 %v4463
        %4499 = vmatprep.subr.bf16.mxu0 0
        %4500 = vmatpush2.bf16.msra.mxu0 0
        %4501 = vmatprep.subr.bf16.mxu0 0
        %4502 = vmatpush2.bf16.msra.mxu0 0
        %4503 = vmatprep.subr.bf16.mxu0 0
        %4504 = vmatpush2.bf16.msra.mxu0 0
        %4505 = vmatprep.subr.bf16.mxu0 0
        %4506 = vmatpush2.bf16.msra.mxu0 0
        %4507 = vmatprep.subr.bf16.mxu0 0
        %4508 = vmatpush2.bf16.msra.mxu0 0
        %4509 = vmatprep.subr.bf16.mxu0 0
        %4510 = vmatpush2.bf16.msra.mxu0 0
        %4511 = vmatprep.subr.bf16.mxu0 0
        %4512 = vmatpush2.bf16.msra.mxu0 0
        %4513 = vmatprep.subr.bf16.mxu0 0
        %4514 = vmatpush2.bf16.msra.mxu0 0
        %4515 = vmatprep.mubr.bf16.mxu0 0
        %4516 = vmatmul.mubr.bf16.gmra.mxu0 %v4472
        %v4517 = vpop.f32.mrf.mxu0
        %v4518 = vadd.f32 0.0, %v4517
        %v4519 = vpop.f32.mrf.mxu0
        %v4520 = vpop.f32.mrf.mxu0
        %v4521 = vadd.f32 0.0, %v4520
        %v4522 = vpop.f32.mrf.mxu0
        %4523 = vmatprep.mubr.bf16.mxu0 0
        %4524 = vmatmul.mubr.bf16.gmra.mxu0 %v4475
        %v4525 = vpop.f32.mrf.mxu0
        %v4526 = vadd.f32 0.0, %v4525
        %v4527 = vpop.f32.mrf.mxu0
        %v4528 = vpop.f32.mrf.mxu0
        %v4529 = vadd.f32 0.0, %v4528
        %v4530 = vpop.f32.mrf.mxu0
        %4531 = vmatprep.mubr.bf16.mxu0 0
        %4532 = vmatmul.mubr.bf16.gmra.mxu0 %v4478
        %v4533 = vpop.f32.mrf.mxu0
        %v4534 = vadd.f32 0.0, %v4533
        %v4535 = vpop.f32.mrf.mxu0
        %v4536 = vpop.f32.mrf.mxu0
        %v4537 = vadd.f32 0.0, %v4536
        %v4538 = vpop.f32.mrf.mxu0
        %4539 = vmatprep.mubr.bf16.mxu0 0
        %4540 = vmatmul.mubr.bf16.gmra.mxu0 %v4481
        %v4541 = vpop.f32.mrf.mxu0
        %v4542 = vadd.f32 0.0, %v4541
        %v4543 = vpop.f32.mrf.mxu0
        %v4544 = vpop.f32.mrf.mxu0
        %v4545 = vadd.f32 0.0, %v4544
        %v4546 = vpop.f32.mrf.mxu0
        %4547 = vdwg.mxu0
        %v4548 = vadd.f32 %v4418, %v4518
        %v4549 = vadd.f32 %v4419, %v4521
        %v4550 = vadd.f32 %v4420, %v4526
        %v4551 = vadd.f32 %v4421, %v4529
        %v4552 = vadd.f32 %v4422, %v4534
        %v4553 = vadd.f32 %v4423, %v4537
        %v4554 = vadd.f32 %v4424, %v4542
        %v4555 = vadd.f32 %v4425, %v4545
        %v4556 = vld [vmem:[%s2561 + $0x2] sm:$0xff]
        %v4557 = vld [vmem:[%s2561 + $0x12] sm:$0xff]
        %v4558 = vld [vmem:[%s2561 + $0x22] sm:$0xff]
        %v4559 = vld [vmem:[%s2561 + $0x32] sm:$0xff]
        %v4560 = vld [vmem:[%s2561 + $0x42] sm:$0xff]
        %v4561 = vld [vmem:[%s2561 + $0x52] sm:$0xff]
        %v4562 = vld [vmem:[%s2561 + $0x62] sm:$0xff]
        %v4563 = vld [vmem:[%s2561 + $0x72] sm:$0xff]
        %v4564 = vpack.c.bf16 %v4557, %v4556
        %v4565 = vpack.c.bf16 %v4559, %v4558
        %v4566 = vpack.c.bf16 %v4561, %v4560
        %v4567 = vpack.c.bf16 %v4563, %v4562
        %s4568 = scalar_lea.vmem %s13, 256
        %v4569 = vld [vmem:[%s4568] sm:$0xf]
        %v4570 = vld [vmem:[%s4568 + $0x4] sm:$0xf]
        %v4571 = vld [vmem:[%s4568 + $0x8] sm:$0xf]
        %v4572 = vld [vmem:[%s4568 + $0xc] sm:$0xf]
        %v4573 = vld [vmem:[%s4568 + $0x10] sm:$0xf]
        %v4574 = vld [vmem:[%s4568 + $0x14] sm:$0xf]
        %v4575 = vld [vmem:[%s4568 + $0x18] sm:$0xf]
        %v4576 = vld [vmem:[%s4568 + $0x1c] sm:$0xf]
        %v4585 = vunpack.c.l.b16 %v4569
        %v4586 = vunpack.c.l.b16 %v4570
        %v4587 = vunpack.c.l.b16 %v4571
        %v4588 = vunpack.c.l.b16 %v4572
        %v4589 = vunpack.c.l.b16 %v4573
        %v4590 = vunpack.c.l.b16 %v4574
        %v4591 = vunpack.c.l.b16 %v4575
        %v4592 = vunpack.c.l.b16 %v4576
        %v4593 = vpack.c.b16 %v4586, %v4585
        %v4594 = vpack.c.b16 %v4588, %v4587
        %v4595 = vpack.c.b16 %v4590, %v4589
        %v4596 = vpack.c.b16 %v4592, %v4591
        %v4602 = vsel %vm1203, %v4564, 0
        %v4605 = vsel %vm1203, %v4565, 0
        %v4608 = vsel %vm1203, %v4566, 0
        %v4611 = vsel %vm1203, %v4567, 0
        %4613 = vmatprep.subr.bf16.mxu0 0
        %4614 = vmatpush1.bf16.msra.mxu0 0
        %4615 = vmatprep.subr.bf16.mxu0 0
        %4616 = vmatpush1.bf16.msra.mxu0 0
        %4617 = vmatprep.subr.bf16.mxu0 0
        %4618 = vmatpush1.bf16.msra.mxu0 0
        %4619 = vmatprep.subr.bf16.mxu0 0
        %4620 = vmatpush1.bf16.msra.mxu0 0
        %4621 = vmatprep.subr.bf16.mxu0 0
        %4622 = vmatpush1.bf16.msra.mxu0 %v4596
        %4623 = vmatprep.subr.bf16.mxu0 0
        %4624 = vmatpush1.bf16.msra.mxu0 %v4595
        %4625 = vmatprep.subr.bf16.mxu0 0
        %4626 = vmatpush1.bf16.msra.mxu0 %v4594
        %4627 = vmatprep.subr.bf16.mxu0 0
        %4628 = vmatpush1.bf16.msra.mxu0 %v4593
        %4629 = vmatprep.subr.bf16.mxu0 0
        %4630 = vmatpush2.bf16.msra.mxu0 0
        %4631 = vmatprep.subr.bf16.mxu0 0
        %4632 = vmatpush2.bf16.msra.mxu0 0
        %4633 = vmatprep.subr.bf16.mxu0 0
        %4634 = vmatpush2.bf16.msra.mxu0 0
        %4635 = vmatprep.subr.bf16.mxu0 0
        %4636 = vmatpush2.bf16.msra.mxu0 0
        %4637 = vmatprep.subr.bf16.mxu0 0
        %4638 = vmatpush2.bf16.msra.mxu0 0
        %4639 = vmatprep.subr.bf16.mxu0 0
        %4640 = vmatpush2.bf16.msra.mxu0 0
        %4641 = vmatprep.subr.bf16.mxu0 0
        %4642 = vmatpush2.bf16.msra.mxu0 0
        %4643 = vmatprep.subr.bf16.mxu0 0
        %4644 = vmatpush2.bf16.msra.mxu0 0
        %4645 = vmatprep.mubr.bf16.mxu0 0
        %4646 = vmatmul.mubr.bf16.gmra.mxu0 %v4602
        %v4647 = vpop.f32.mrf.mxu0
        %v4648 = vadd.f32 0.0, %v4647
        %v4649 = vpop.f32.mrf.mxu0
        %v4650 = vpop.f32.mrf.mxu0
        %v4651 = vadd.f32 0.0, %v4650
        %v4652 = vpop.f32.mrf.mxu0
        %4653 = vmatprep.mubr.bf16.mxu0 0
        %4654 = vmatmul.mubr.bf16.gmra.mxu0 %v4605
        %v4655 = vpop.f32.mrf.mxu0
        %v4656 = vadd.f32 0.0, %v4655
        %v4657 = vpop.f32.mrf.mxu0
        %v4658 = vpop.f32.mrf.mxu0
        %v4659 = vadd.f32 0.0, %v4658
        %v4660 = vpop.f32.mrf.mxu0
        %4661 = vmatprep.mubr.bf16.mxu0 0
        %4662 = vmatmul.mubr.bf16.gmra.mxu0 %v4608
        %v4663 = vpop.f32.mrf.mxu0
        %v4664 = vadd.f32 0.0, %v4663
        %v4665 = vpop.f32.mrf.mxu0
        %v4666 = vpop.f32.mrf.mxu0
        %v4667 = vadd.f32 0.0, %v4666
        %v4668 = vpop.f32.mrf.mxu0
        %4669 = vmatprep.mubr.bf16.mxu0 0
        %4670 = vmatmul.mubr.bf16.gmra.mxu0 %v4611
        %v4671 = vpop.f32.mrf.mxu0
        %v4672 = vadd.f32 0.0, %v4671
        %v4673 = vpop.f32.mrf.mxu0
        %v4674 = vpop.f32.mrf.mxu0
        %v4675 = vadd.f32 0.0, %v4674
        %v4676 = vpop.f32.mrf.mxu0
        %4677 = vdwg.mxu0
        %v4678 = vadd.f32 %v4548, %v4648
        %v4679 = vadd.f32 %v4549, %v4651
        %v4680 = vadd.f32 %v4550, %v4656
        %v4681 = vadd.f32 %v4551, %v4659
        %v4682 = vadd.f32 %v4552, %v4664
        %v4683 = vadd.f32 %v4553, %v4667
        %v4684 = vadd.f32 %v4554, %v4672
        %v4685 = vadd.f32 %v4555, %v4675
        %v4686 = vld [vmem:[%s14] sm:$0x1]
        %v4688 = vlaneseq
        %v4689 = vshrl.u32 %v4688, 7
        %v4690 = vsub.s32 0, %v4689
        %v4691 = vrot.slane %v4686, %v4690
        %v4693 = vadd.f32 %v4678, %v4691
        %v4694 = vadd.f32 %v4679, %v4691
        %v4695 = vadd.f32 %v4680, %v4691
        %v4696 = vadd.f32 %v4681, %v4691
        %v4697 = vadd.f32 %v4682, %v4691
        %v4698 = vadd.f32 %v4683, %v4691
        %v4699 = vadd.f32 %v4684, %v4691
        %v4700 = vadd.f32 %v4685, %v4691
        %v4701 = vmax.f32 %v4693, 0.0
        %v4702 = vmax.f32 %v4694, 0.0
        %v4703 = vmax.f32 %v4695, 0.0
        %v4704 = vmax.f32 %v4696, 0.0
        %v4705 = vmax.f32 %v4697, 0.0
        %v4706 = vmax.f32 %v4698, 0.0
        %v4707 = vmax.f32 %v4699, 0.0
        %v4708 = vmax.f32 %v4700, 0.0
        %v4709 = vpack.c.bf16 %v4702, %v4701
        %v4710 = vpack.c.bf16 %v4704, %v4703
        %v4711 = vpack.c.bf16 %v4706, %v4705
        %v4712 = vpack.c.bf16 %v4708, %v4707
        %v4713 = vld [vmem:[%s15] sm:$0xff]
        %v4714 = vld [vmem:[%s15 + $0x8] sm:$0xff]
        %v4715 = vld [vmem:[%s15 + $0x10] sm:$0xff]
        %v4716 = vld [vmem:[%s15 + $0x18] sm:$0xff]
        %v4717 = vld [vmem:[%s15 + $0x20] sm:$0xff]
        %v4718 = vld [vmem:[%s15 + $0x28] sm:$0xff]
        %v4719 = vld [vmem:[%s15 + $0x30] sm:$0xff]
        %v4720 = vld [vmem:[%s15 + $0x38] sm:$0xff]
        %v4721 = vld [vmem:[%s16] sm:$0x3]
        %v4723 = vlaneseq
        %v4724 = vshrl.u32 %v4723, 7
        %v4725 = vsub.s32 0, %v4724
        %v4726 = vrot.slane %v4721, %v4725
        %v4727 = vlaneseq
        %v4728 = vshrl.u32 %v4727, 7
        %v4729 = vsub.s32 1, %v4728
        %v4730 = vrot.slane %v4721, %v4729
        %v4741 = vunpack.c.l.b16 %v4713
        %v4742 = vunpack.c.h.b16 %v4713
        %v4743 = vunpack.c.l.b16 %v4714
        %v4744 = vunpack.c.h.b16 %v4714
        %v4745 = vunpack.c.l.b16 %v4715
        %v4746 = vunpack.c.h.b16 %v4715
        %v4747 = vunpack.c.l.b16 %v4716
        %v4748 = vunpack.c.h.b16 %v4716
        %v4749 = vunpack.c.l.b16 %v4717
        %v4750 = vunpack.c.h.b16 %v4717
        %v4751 = vunpack.c.l.b16 %v4718
        %v4752 = vunpack.c.h.b16 %v4718
        %v4753 = vunpack.c.l.b16 %v4719
        %v4754 = vunpack.c.h.b16 %v4719
        %v4755 = vunpack.c.l.b16 %v4720
        %v4756 = vunpack.c.h.b16 %v4720
        %v4757 = vpack.c.b16 %v4743, %v4741
        %v4758 = vpack.c.b16 %v4744, %v4742
        %v4759 = vpack.c.b16 %v4747, %v4745
        %v4760 = vpack.c.b16 %v4748, %v4746
        %v4761 = vpack.c.b16 %v4751, %v4749
        %v4762 = vpack.c.b16 %v4752, %v4750
        %v4763 = vpack.c.b16 %v4755, %v4753
        %v4764 = vpack.c.b16 %v4756, %v4754
        %v4774 = vsel %vm1203, %v4709, 0
        %v4777 = vsel %vm1203, %v4710, 0
        %v4780 = vsel %vm1203, %v4711, 0
        %v4783 = vsel %vm1203, %v4712, 0
        %4785 = vmatprep.subr.bf16.mxu0 0
        %4786 = vmatpush1.bf16.msra.mxu0 0
        %4787 = vmatprep.subr.bf16.mxu0 0
        %4788 = vmatpush1.bf16.msra.mxu0 0
        %4789 = vmatprep.subr.bf16.mxu0 0
        %4790 = vmatpush1.bf16.msra.mxu0 0
        %4791 = vmatprep.subr.bf16.mxu0 0
        %4792 = vmatpush1.bf16.msra.mxu0 0
        %4793 = vmatprep.subr.bf16.mxu0 %v4764
        %4794 = vmatpush1.bf16.msra.mxu0 %v4763
        %4795 = vmatprep.subr.bf16.mxu0 %v4762
        %4796 = vmatpush1.bf16.msra.mxu0 %v4761
        %4797 = vmatprep.subr.bf16.mxu0 %v4760
        %4798 = vmatpush1.bf16.msra.mxu0 %v4759
        %4799 = vmatprep.subr.bf16.mxu0 %v4758
        %4800 = vmatpush1.bf16.msra.mxu0 %v4757
        %4801 = vmatprep.subr.bf16.mxu0 0
        %4802 = vmatpush2.bf16.msra.mxu0 0
        %4803 = vmatprep.subr.bf16.mxu0 0
        %4804 = vmatpush2.bf16.msra.mxu0 0
        %4805 = vmatprep.subr.bf16.mxu0 0
        %4806 = vmatpush2.bf16.msra.mxu0 0
        %4807 = vmatprep.subr.bf16.mxu0 0
        %4808 = vmatpush2.bf16.msra.mxu0 0
        %4809 = vmatprep.subr.bf16.mxu0 0
        %4810 = vmatpush2.bf16.msra.mxu0 0
        %4811 = vmatprep.subr.bf16.mxu0 0
        %4812 = vmatpush2.bf16.msra.mxu0 0
        %4813 = vmatprep.subr.bf16.mxu0 0
        %4814 = vmatpush2.bf16.msra.mxu0 0
        %4815 = vmatprep.subr.bf16.mxu0 0
        %4816 = vmatpush2.bf16.msra.mxu0 0
        %4817 = vmatprep.mubr.bf16.mxu0 0
        %4818 = vmatmul.mubr.bf16.gmra.mxu0 %v4774
        %v4819 = vpop.f32.mrf.mxu0
        %v4820 = vadd.f32 %v4726, %v4819
        %v4821 = vpop.f32.mrf.mxu0
        %v4822 = vadd.f32 %v4730, %v4821
        %v4823 = vpop.f32.mrf.mxu0
        %v4824 = vadd.f32 %v4726, %v4823
        %v4825 = vpop.f32.mrf.mxu0
        %v4826 = vadd.f32 %v4730, %v4825
        %4827 = vmatprep.mubr.bf16.mxu0 0
        %4828 = vmatmul.mubr.bf16.gmra.mxu0 %v4777
        %v4829 = vpop.f32.mrf.mxu0
        %v4830 = vadd.f32 %v4726, %v4829
        %v4831 = vpop.f32.mrf.mxu0
        %v4832 = vadd.f32 %v4730, %v4831
        %v4833 = vpop.f32.mrf.mxu0
        %v4834 = vadd.f32 %v4726, %v4833
        %v4835 = vpop.f32.mrf.mxu0
        %v4836 = vadd.f32 %v4730, %v4835
        %4837 = vmatprep.mubr.bf16.mxu0 0
        %4838 = vmatmul.mubr.bf16.gmra.mxu0 %v4780
        %v4839 = vpop.f32.mrf.mxu0
        %v4840 = vadd.f32 %v4726, %v4839
        %v4841 = vpop.f32.mrf.mxu0
        %v4842 = vadd.f32 %v4730, %v4841
        %v4843 = vpop.f32.mrf.mxu0
        %v4844 = vadd.f32 %v4726, %v4843
        %v4845 = vpop.f32.mrf.mxu0
        %v4846 = vadd.f32 %v4730, %v4845
        %4847 = vmatprep.mubr.bf16.mxu0 0
        %4848 = vmatmul.mubr.bf16.gmra.mxu0 %v4783
        %v4849 = vpop.f32.mrf.mxu0
        %v4850 = vadd.f32 %v4726, %v4849
        %v4851 = vpop.f32.mrf.mxu0
        %v4852 = vadd.f32 %v4730, %v4851
        %v4853 = vpop.f32.mrf.mxu0
        %v4854 = vadd.f32 %v4726, %v4853
        %v4855 = vpop.f32.mrf.mxu0
        %v4856 = vadd.f32 %v4730, %v4855
        %4857 = vdwg.mxu0
        %v4858 = vadd.f32 %v4820, %v3273
        %v4859 = vadd.f32 %v4822, %v3274
        %v4860 = vadd.f32 %v4824, %v3275
        %v4861 = vadd.f32 %v4826, %v3276
        %v4862 = vadd.f32 %v4830, %v3277
        %v4863 = vadd.f32 %v4832, %v3278
        %v4864 = vadd.f32 %v4834, %v3279
        %v4865 = vadd.f32 %v4836, %v3280
        %v4866 = vadd.f32 %v4840, %v3281
        %v4867 = vadd.f32 %v4842, %v3282
        %v4868 = vadd.f32 %v4844, %v3283
        %v4869 = vadd.f32 %v4846, %v3284
        %v4870 = vadd.f32 %v4850, %v3285
        %v4871 = vadd.f32 %v4852, %v3286
        %v4872 = vadd.f32 %v4854, %v3287
        %v4873 = vadd.f32 %v4856, %v3288
        %v4874 = vmax.f32 %v4858, 0.0
        %v4875 = vmax.f32 %v4859, 0.0
        %v4876 = vmax.f32 %v4860, 0.0
        %v4877 = vmax.f32 %v4861, 0.0
        %v4878 = vmax.f32 %v4862, 0.0
        %v4879 = vmax.f32 %v4863, 0.0
        %v4880 = vmax.f32 %v4864, 0.0
        %v4881 = vmax.f32 %v4865, 0.0
        %v4882 = vmax.f32 %v4866, 0.0
        %v4883 = vmax.f32 %v4867, 0.0
        %v4884 = vmax.f32 %v4868, 0.0
        %v4885 = vmax.f32 %v4869, 0.0
        %v4886 = vmax.f32 %v4870, 0.0
        %v4887 = vmax.f32 %v4871, 0.0
        %v4888 = vmax.f32 %v4872, 0.0
        %v4889 = vmax.f32 %v4873, 0.0
        %v4890 = vpack.c.bf16 %v4876, %v4874
        %v4891 = vpack.c.bf16 %v4877, %v4875
        %v4892 = vpack.c.bf16 %v4880, %v4878
        %v4893 = vpack.c.bf16 %v4881, %v4879
        %v4894 = vpack.c.bf16 %v4884, %v4882
        %v4895 = vpack.c.bf16 %v4885, %v4883
        %v4896 = vpack.c.bf16 %v4888, %v4886
        %v4897 = vpack.c.bf16 %v4889, %v4887
        %v4898 = vld [vmem:[%s17] sm:$0xf]
        %v4899 = vld [vmem:[%s17 + $0x4] sm:$0xf]
        %v4900 = vld [vmem:[%s17 + $0x8] sm:$0xf]
        %v4901 = vld [vmem:[%s17 + $0xc] sm:$0xf]
        %v4902 = vld [vmem:[%s17 + $0x10] sm:$0xf]
        %v4903 = vld [vmem:[%s17 + $0x14] sm:$0xf]
        %v4904 = vld [vmem:[%s17 + $0x18] sm:$0xf]
        %v4905 = vld [vmem:[%s17 + $0x1c] sm:$0xf]
        %v4906 = vld [vmem:[%s17 + $0x20] sm:$0xf]
        %v4907 = vld [vmem:[%s17 + $0x24] sm:$0xf]
        %v4908 = vld [vmem:[%s17 + $0x28] sm:$0xf]
        %v4909 = vld [vmem:[%s17 + $0x2c] sm:$0xf]
        %v4910 = vld [vmem:[%s17 + $0x30] sm:$0xf]
        %v4911 = vld [vmem:[%s17 + $0x34] sm:$0xf]
        %v4912 = vld [vmem:[%s17 + $0x38] sm:$0xf]
        %v4913 = vld [vmem:[%s17 + $0x3c] sm:$0xf]
        %v4914 = vld [vmem:[%s17 + $0x40] sm:$0xf]
        %v4915 = vld [vmem:[%s17 + $0x44] sm:$0xf]
        %v4916 = vld [vmem:[%s17 + $0x48] sm:$0xf]
        %v4917 = vld [vmem:[%s17 + $0x4c] sm:$0xf]
        %v4918 = vld [vmem:[%s17 + $0x50] sm:$0xf]
        %v4919 = vld [vmem:[%s17 + $0x54] sm:$0xf]
        %v4920 = vld [vmem:[%s17 + $0x58] sm:$0xf]
        %v4921 = vld [vmem:[%s17 + $0x5c] sm:$0xf]
        %v4922 = vld [vmem:[%s17 + $0x60] sm:$0xf]
        %v4923 = vld [vmem:[%s17 + $0x64] sm:$0xf]
        %v4924 = vld [vmem:[%s17 + $0x68] sm:$0xf]
        %v4925 = vld [vmem:[%s17 + $0x6c] sm:$0xf]
        %v4926 = vld [vmem:[%s17 + $0x70] sm:$0xf]
        %v4927 = vld [vmem:[%s17 + $0x74] sm:$0xf]
        %v4928 = vld [vmem:[%s17 + $0x78] sm:$0xf]
        %v4929 = vld [vmem:[%s17 + $0x7c] sm:$0xf]
        %v4930 = vld [vmem:[%s18] sm:$0x1]
        %v4932 = vlaneseq
        %v4933 = vshrl.u32 %v4932, 7
        %v4934 = vsub.s32 0, %v4933
        %v4935 = vrot.slane %v4930, %v4934
        %v4969 = vunpack.c.l.b16 %v4898
        %v4970 = vunpack.c.l.b16 %v4899
        %v4971 = vunpack.c.l.b16 %v4900
        %v4972 = vunpack.c.l.b16 %v4901
        %v4973 = vunpack.c.l.b16 %v4902
        %v4974 = vunpack.c.l.b16 %v4903
        %v4975 = vunpack.c.l.b16 %v4904
        %v4976 = vunpack.c.l.b16 %v4905
        %v4977 = vunpack.c.l.b16 %v4906
        %v4978 = vunpack.c.l.b16 %v4907
        %v4979 = vunpack.c.l.b16 %v4908
        %v4980 = vunpack.c.l.b16 %v4909
        %v4981 = vunpack.c.l.b16 %v4910
        %v4982 = vunpack.c.l.b16 %v4911
        %v4983 = vunpack.c.l.b16 %v4912
        %v4984 = vunpack.c.l.b16 %v4913
        %v4985 = vunpack.c.l.b16 %v4914
        %v4986 = vunpack.c.l.b16 %v4915
        %v4987 = vunpack.c.l.b16 %v4916
        %v4988 = vunpack.c.l.b16 %v4917
        %v4989 = vunpack.c.l.b16 %v4918
        %v4990 = vunpack.c.l.b16 %v4919
        %v4991 = vunpack.c.l.b16 %v4920
        %v4992 = vunpack.c.l.b16 %v4921
        %v4993 = vunpack.c.l.b16 %v4922
        %v4994 = vunpack.c.l.b16 %v4923
        %v4995 = vunpack.c.l.b16 %v4924
        %v4996 = vunpack.c.l.b16 %v4925
        %v4997 = vunpack.c.l.b16 %v4926
        %v4998 = vunpack.c.l.b16 %v4927
        %v4999 = vunpack.c.l.b16 %v4928
        %v5000 = vunpack.c.l.b16 %v4929
        %v5001 = vpack.c.b16 %v4970, %v4969
        %v5002 = vpack.c.b16 %v4972, %v4971
        %v5003 = vpack.c.b16 %v4974, %v4973
        %v5004 = vpack.c.b16 %v4976, %v4975
        %v5005 = vpack.c.b16 %v4978, %v4977
        %v5006 = vpack.c.b16 %v4980, %v4979
        %v5007 = vpack.c.b16 %v4982, %v4981
        %v5008 = vpack.c.b16 %v4984, %v4983
        %v5009 = vpack.c.b16 %v4986, %v4985
        %v5010 = vpack.c.b16 %v4988, %v4987
        %v5011 = vpack.c.b16 %v4990, %v4989
        %v5012 = vpack.c.b16 %v4992, %v4991
        %v5013 = vpack.c.b16 %v4994, %v4993
        %v5014 = vpack.c.b16 %v4996, %v4995
        %v5015 = vpack.c.b16 %v4998, %v4997
        %v5016 = vpack.c.b16 %v5000, %v4999
        %5033 = vmatprep.subr.bf16.mxu0 0
        %5034 = vmatpush1.bf16.msra.mxu0 %v5008
        %5035 = vmatprep.subr.bf16.mxu0 0
        %5036 = vmatpush1.bf16.msra.mxu0 %v5007
        %5037 = vmatprep.subr.bf16.mxu0 0
        %5038 = vmatpush1.bf16.msra.mxu0 %v5006
        %5039 = vmatprep.subr.bf16.mxu0 0
        %5040 = vmatpush1.bf16.msra.mxu0 %v5005
        %5041 = vmatprep.subr.bf16.mxu0 0
        %5042 = vmatpush1.bf16.msra.mxu0 %v5004
        %5043 = vmatprep.subr.bf16.mxu0 0
        %5044 = vmatpush1.bf16.msra.mxu0 %v5003
        %5045 = vmatprep.subr.bf16.mxu0 0
        %5046 = vmatpush1.bf16.msra.mxu0 %v5002
        %5047 = vmatprep.subr.bf16.mxu0 0
        %5048 = vmatpush1.bf16.msra.mxu0 %v5001
        %5049 = vmatprep.subr.bf16.mxu0 0
        %5050 = vmatpush2.bf16.msra.mxu0 %v5016
        %5051 = vmatprep.subr.bf16.mxu0 0
        %5052 = vmatpush2.bf16.msra.mxu0 %v5015
        %5053 = vmatprep.subr.bf16.mxu0 0
        %5054 = vmatpush2.bf16.msra.mxu0 %v5014
        %5055 = vmatprep.subr.bf16.mxu0 0
        %5056 = vmatpush2.bf16.msra.mxu0 %v5013
        %5057 = vmatprep.subr.bf16.mxu0 0
        %5058 = vmatpush2.bf16.msra.mxu0 %v5012
        %5059 = vmatprep.subr.bf16.mxu0 0
        %5060 = vmatpush2.bf16.msra.mxu0 %v5011
        %5061 = vmatprep.subr.bf16.mxu0 0
        %5062 = vmatpush2.bf16.msra.mxu0 %v5010
        %5063 = vmatprep.subr.bf16.mxu0 0
        %5064 = vmatpush2.bf16.msra.mxu0 %v5009
        %5065 = vmatprep.mubr.bf16.mxu0 %v4891
        %5066 = vmatmul.mubr.bf16.gmra.mxu0 %v4890
        %v5067 = vpop.f32.mrf.mxu0
        %v5068 = vadd.f32 %v4935, %v5067
        %v5069 = vpop.f32.mrf.mxu0
        %v5070 = vpop.f32.mrf.mxu0
        %v5071 = vadd.f32 %v4935, %v5070
        %v5072 = vpop.f32.mrf.mxu0
        %5073 = vmatprep.mubr.bf16.mxu0 %v4893
        %5074 = vmatmul.mubr.bf16.gmra.mxu0 %v4892
        %v5075 = vpop.f32.mrf.mxu0
        %v5076 = vadd.f32 %v4935, %v5075
        %v5077 = vpop.f32.mrf.mxu0
        %v5078 = vpop.f32.mrf.mxu0
        %v5079 = vadd.f32 %v4935, %v5078
        %v5080 = vpop.f32.mrf.mxu0
        %5081 = vmatprep.mubr.bf16.mxu0 %v4895
        %5082 = vmatmul.mubr.bf16.gmra.mxu0 %v4894
        %v5083 = vpop.f32.mrf.mxu0
        %v5084 = vadd.f32 %v4935, %v5083
        %v5085 = vpop.f32.mrf.mxu0
        %v5086 = vpop.f32.mrf.mxu0
        %v5087 = vadd.f32 %v4935, %v5086
        %v5088 = vpop.f32.mrf.mxu0
        %5089 = vmatprep.mubr.bf16.mxu0 %v4897
        %5090 = vmatmul.mubr.bf16.gmra.mxu0 %v4896
        %v5091 = vpop.f32.mrf.mxu0
        %v5092 = vadd.f32 %v4935, %v5091
        %v5093 = vpop.f32.mrf.mxu0
        %v5094 = vpop.f32.mrf.mxu0
        %v5095 = vadd.f32 %v4935, %v5094
        %v5096 = vpop.f32.mrf.mxu0
        %5097 = vdwg.mxu0
        %v5098 = vmax.f32 %v5068, 0.0
        %v5099 = vmax.f32 %v5071, 0.0
        %v5100 = vmax.f32 %v5076, 0.0
        %v5101 = vmax.f32 %v5079, 0.0
        %v5102 = vmax.f32 %v5084, 0.0
        %v5103 = vmax.f32 %v5087, 0.0
        %v5104 = vmax.f32 %v5092, 0.0
        %v5105 = vmax.f32 %v5095, 0.0
        %5106 = vst.msk [vmem:[#allocation4] sm:$0xff] %vm1203, 0.0
        %5107 = vst.msk [vmem:[#allocation4 + $0x8] sm:$0x3] %vm1206, 0.0
        %5108 = vst.msk [vmem:[#allocation4 + $0x10] sm:$0xff] %vm1203, 0.0
        %5109 = vst.msk [vmem:[#allocation4 + $0x18] sm:$0x3] %vm1206, 0.0
        %5110 = vst.msk [vmem:[#allocation4 + $0x20] sm:$0xff] %vm1203, 0.0
        %5111 = vst.msk [vmem:[#allocation4 + $0x28] sm:$0x3] %vm1206, 0.0
        %5112 = vst.msk [vmem:[#allocation4 + $0x30] sm:$0xff] %vm1203, 0.0
        %5113 = vst.msk [vmem:[#allocation4 + $0x38] sm:$0x3] %vm1206, 0.0
        %5114 = vst.msk [vmem:[#allocation4 + $0x40] sm:$0xff] %vm1203, 0.0
        %5115 = vst.msk [vmem:[#allocation4 + $0x48] sm:$0x3] %vm1206, 0.0
        %5116 = vst.msk [vmem:[#allocation4 + $0x50] sm:$0xff] %vm1203, 0.0
        %5117 = vst.msk [vmem:[#allocation4 + $0x58] sm:$0x3] %vm1206, 0.0
        %5118 = vst.msk [vmem:[#allocation4 + $0x60] sm:$0xff] %vm1203, 0.0
        %5119 = vst.msk [vmem:[#allocation4 + $0x68] sm:$0x3] %vm1206, 0.0
        %5120 = vst.msk [vmem:[#allocation4 + $0x70] sm:$0xff] %vm1203, 0.0
        %5121 = vst.msk [vmem:[#allocation4 + $0x78] sm:$0x3] %vm1206, 0.0
        %5122 = vst.msk [vmem:[#allocation4 + $0x80] sm:$0xff] %vm1203, 0.0
        %5123 = vst.msk [vmem:[#allocation4 + $0x88] sm:$0x3] %vm1206, 0.0
        %5124 = vst.msk [vmem:[#allocation4 + $0x90] sm:$0xff] %vm1203, 0.0
        %5125 = vst.msk [vmem:[#allocation4 + $0x98] sm:$0x3] %vm1206, 0.0
        %5126 = vst.msk [vmem:[%s1789 + $0x1] sm:$0xff] %vm1203, %v5098
        %5127 = vst.msk [vmem:[%s1789 + $0x11] sm:$0xff] %vm1203, %v5099
        %5128 = vst.msk [vmem:[%s1789 + $0x21] sm:$0xff] %vm1203, %v5100
        %5129 = vst.msk [vmem:[%s1789 + $0x31] sm:$0xff] %vm1203, %v5101
        %5130 = vst.msk [vmem:[%s1789 + $0x41] sm:$0xff] %vm1203, %v5102
        %5131 = vst.msk [vmem:[%s1789 + $0x51] sm:$0xff] %vm1203, %v5103
        %5132 = vst.msk [vmem:[%s1789 + $0x61] sm:$0xff] %vm1203, %v5104
        %5133 = vst.msk [vmem:[%s1789 + $0x71] sm:$0xff] %vm1203, %v5105
        %v5134 = vld [vmem:[#allocation4] sm:$0xff]
        %v5135 = vld [vmem:[#allocation4 + $0x10] sm:$0xff]
        %v5136 = vld [vmem:[#allocation4 + $0x20] sm:$0xff]
        %v5137 = vld [vmem:[#allocation4 + $0x30] sm:$0xff]
        %v5138 = vld [vmem:[#allocation4 + $0x40] sm:$0xff]
        %v5139 = vld [vmem:[#allocation4 + $0x50] sm:$0xff]
        %v5140 = vld [vmem:[#allocation4 + $0x60] sm:$0xff]
        %v5141 = vld [vmem:[#allocation4 + $0x70] sm:$0xff]
        %v5142 = vpack.c.bf16 %v5135, %v5134
        %v5143 = vpack.c.bf16 %v5137, %v5136
        %v5144 = vpack.c.bf16 %v5139, %v5138
        %v5145 = vpack.c.bf16 %v5141, %v5140
        %v5146 = vld [vmem:[%s19] sm:$0xf]
        %v5147 = vld [vmem:[%s19 + $0x4] sm:$0xf]
        %v5148 = vld [vmem:[%s19 + $0x8] sm:$0xf]
        %v5149 = vld [vmem:[%s19 + $0xc] sm:$0xf]
        %v5150 = vld [vmem:[%s19 + $0x10] sm:$0xf]
        %v5151 = vld [vmem:[%s19 + $0x14] sm:$0xf]
        %v5152 = vld [vmem:[%s19 + $0x18] sm:$0xf]
        %v5153 = vld [vmem:[%s19 + $0x1c] sm:$0xf]
        %v5154 = vld [vmem:[#allocation4 + $0x1] sm:$0xff]
        %v5155 = vld [vmem:[#allocation4 + $0x11] sm:$0xff]
        %v5156 = vld [vmem:[#allocation4 + $0x21] sm:$0xff]
        %v5157 = vld [vmem:[#allocation4 + $0x31] sm:$0xff]
        %v5158 = vld [vmem:[#allocation4 + $0x41] sm:$0xff]
        %v5159 = vld [vmem:[#allocation4 + $0x51] sm:$0xff]
        %v5160 = vld [vmem:[#allocation4 + $0x61] sm:$0xff]
        %v5161 = vld [vmem:[#allocation4 + $0x71] sm:$0xff]
        %v5162 = vpack.c.bf16 %v5155, %v5154
        %v5163 = vpack.c.bf16 %v5157, %v5156
        %v5164 = vpack.c.bf16 %v5159, %v5158
        %v5165 = vpack.c.bf16 %v5161, %v5160
        %s5166 = scalar_lea.vmem %s19, 32
        %v5167 = vld [vmem:[%s5166] sm:$0xf]
        %v5168 = vld [vmem:[%s5166 + $0x4] sm:$0xf]
        %v5169 = vld [vmem:[%s5166 + $0x8] sm:$0xf]
        %v5170 = vld [vmem:[%s5166 + $0xc] sm:$0xf]
        %v5171 = vld [vmem:[%s5166 + $0x10] sm:$0xf]
        %v5172 = vld [vmem:[%s5166 + $0x14] sm:$0xf]
        %v5173 = vld [vmem:[%s5166 + $0x18] sm:$0xf]
        %v5174 = vld [vmem:[%s5166 + $0x1c] sm:$0xf]
        %v5183 = vunpack.c.l.b16 %v5167
        %v5184 = vunpack.c.l.b16 %v5168
        %v5185 = vunpack.c.l.b16 %v5169
        %v5186 = vunpack.c.l.b16 %v5170
        %v5187 = vunpack.c.l.b16 %v5171
        %v5188 = vunpack.c.l.b16 %v5172
        %v5189 = vunpack.c.l.b16 %v5173
        %v5190 = vunpack.c.l.b16 %v5174
        %v5191 = vpack.c.b16 %v5184, %v5183
        %v5192 = vpack.c.b16 %v5186, %v5185
        %v5193 = vpack.c.b16 %v5188, %v5187
        %v5194 = vpack.c.b16 %v5190, %v5189
        %v5200 = vsel %vm1203, %v5162, 0
        %v5203 = vsel %vm1203, %v5163, 0
        %v5206 = vsel %vm1203, %v5164, 0
        %v5209 = vsel %vm1203, %v5165, 0
        %5211 = vmatprep.subr.bf16.mxu0 0
        %5212 = vmatpush1.bf16.msra.mxu0 0
        %5213 = vmatprep.subr.bf16.mxu0 0
        %5214 = vmatpush1.bf16.msra.mxu0 0
        %5215 = vmatprep.subr.bf16.mxu0 0
        %5216 = vmatpush1.bf16.msra.mxu0 0
        %5217 = vmatprep.subr.bf16.mxu0 0
        %5218 = vmatpush1.bf16.msra.mxu0 0
        %5219 = vmatprep.subr.bf16.mxu0 0
        %5220 = vmatpush1.bf16.msra.mxu0 %v5194
        %5221 = vmatprep.subr.bf16.mxu0 0
        %5222 = vmatpush1.bf16.msra.mxu0 %v5193
        %5223 = vmatprep.subr.bf16.mxu0 0
        %5224 = vmatpush1.bf16.msra.mxu0 %v5192
        %5225 = vmatprep.subr.bf16.mxu0 0
        %5226 = vmatpush1.bf16.msra.mxu0 %v5191
        %5227 = vmatprep.subr.bf16.mxu0 0
        %5228 = vmatpush2.bf16.msra.mxu0 0
        %5229 = vmatprep.subr.bf16.mxu0 0
        %5230 = vmatpush2.bf16.msra.mxu0 0
        %5231 = vmatprep.subr.bf16.mxu0 0
        %5232 = vmatpush2.bf16.msra.mxu0 0
        %5233 = vmatprep.subr.bf16.mxu0 0
        %5234 = vmatpush2.bf16.msra.mxu0 0
        %5235 = vmatprep.subr.bf16.mxu0 0
        %5236 = vmatpush2.bf16.msra.mxu0 0
        %5237 = vmatprep.subr.bf16.mxu0 0
        %5238 = vmatpush2.bf16.msra.mxu0 0
        %5239 = vmatprep.subr.bf16.mxu0 0
        %5240 = vmatpush2.bf16.msra.mxu0 0
        %5241 = vmatprep.subr.bf16.mxu0 0
        %5242 = vmatpush2.bf16.msra.mxu0 0
        %5243 = vmatprep.mubr.bf16.mxu0 0
        %5244 = vmatmul.mubr.bf16.gmra.mxu0 %v5200
        %v5245 = vpop.f32.mrf.mxu0
        %v5246 = vadd.f32 0.0, %v5245
        %v5247 = vpop.f32.mrf.mxu0
        %v5248 = vpop.f32.mrf.mxu0
        %v5249 = vadd.f32 0.0, %v5248
        %v5250 = vpop.f32.mrf.mxu0
        %5251 = vmatprep.mubr.bf16.mxu0 0
        %5252 = vmatmul.mubr.bf16.gmra.mxu0 %v5203
        %v5253 = vpop.f32.mrf.mxu0
        %v5254 = vadd.f32 0.0, %v5253
        %v5255 = vpop.f32.mrf.mxu0
        %v5256 = vpop.f32.mrf.mxu0
        %v5257 = vadd.f32 0.0, %v5256
        %v5258 = vpop.f32.mrf.mxu0
        %5259 = vmatprep.mubr.bf16.mxu0 0
        %5260 = vmatmul.mubr.bf16.gmra.mxu0 %v5206
        %v5261 = vpop.f32.mrf.mxu0
        %v5262 = vadd.f32 0.0, %v5261
        %v5263 = vpop.f32.mrf.mxu0
        %v5264 = vpop.f32.mrf.mxu0
        %v5265 = vadd.f32 0.0, %v5264
        %v5266 = vpop.f32.mrf.mxu0
        %5267 = vmatprep.mubr.bf16.mxu0 0
        %5268 = vmatmul.mubr.bf16.gmra.mxu0 %v5209
        %v5269 = vpop.f32.mrf.mxu0
        %v5270 = vadd.f32 0.0, %v5269
        %v5271 = vpop.f32.mrf.mxu0
        %v5272 = vpop.f32.mrf.mxu0
        %v5273 = vadd.f32 0.0, %v5272
        %v5274 = vpop.f32.mrf.mxu0
        %5275 = vdwg.mxu0
        %v5284 = vunpack.c.l.b16 %v5146
        %v5285 = vunpack.c.l.b16 %v5147
        %v5286 = vunpack.c.l.b16 %v5148
        %v5287 = vunpack.c.l.b16 %v5149
        %v5288 = vunpack.c.l.b16 %v5150
        %v5289 = vunpack.c.l.b16 %v5151
        %v5290 = vunpack.c.l.b16 %v5152
        %v5291 = vunpack.c.l.b16 %v5153
        %v5292 = vpack.c.b16 %v5285, %v5284
        %v5293 = vpack.c.b16 %v5287, %v5286
        %v5294 = vpack.c.b16 %v5289, %v5288
        %v5295 = vpack.c.b16 %v5291, %v5290
        %v5301 = vsel %vm1203, %v5142, 0
        %v5304 = vsel %vm1203, %v5143, 0
        %v5307 = vsel %vm1203, %v5144, 0
        %v5310 = vsel %vm1203, %v5145, 0
        %5312 = vmatprep.subr.bf16.mxu0 0
        %5313 = vmatpush1.bf16.msra.mxu0 0
        %5314 = vmatprep.subr.bf16.mxu0 0
        %5315 = vmatpush1.bf16.msra.mxu0 0
        %5316 = vmatprep.subr.bf16.mxu0 0
        %5317 = vmatpush1.bf16.msra.mxu0 0
        %5318 = vmatprep.subr.bf16.mxu0 0
        %5319 = vmatpush1.bf16.msra.mxu0 0
        %5320 = vmatprep.subr.bf16.mxu0 0
        %5321 = vmatpush1.bf16.msra.mxu0 %v5295
        %5322 = vmatprep.subr.bf16.mxu0 0
        %5323 = vmatpush1.bf16.msra.mxu0 %v5294
        %5324 = vmatprep.subr.bf16.mxu0 0
        %5325 = vmatpush1.bf16.msra.mxu0 %v5293
        %5326 = vmatprep.subr.bf16.mxu0 0
        %5327 = vmatpush1.bf16.msra.mxu0 %v5292
        %5328 = vmatprep.subr.bf16.mxu0 0
        %5329 = vmatpush2.bf16.msra.mxu0 0
        %5330 = vmatprep.subr.bf16.mxu0 0
        %5331 = vmatpush2.bf16.msra.mxu0 0
        %5332 = vmatprep.subr.bf16.mxu0 0
        %5333 = vmatpush2.bf16.msra.mxu0 0
        %5334 = vmatprep.subr.bf16.mxu0 0
        %5335 = vmatpush2.bf16.msra.mxu0 0
        %5336 = vmatprep.subr.bf16.mxu0 0
        %5337 = vmatpush2.bf16.msra.mxu0 0
        %5338 = vmatprep.subr.bf16.mxu0 0
        %5339 = vmatpush2.bf16.msra.mxu0 0
        %5340 = vmatprep.subr.bf16.mxu0 0
        %5341 = vmatpush2.bf16.msra.mxu0 0
        %5342 = vmatprep.subr.bf16.mxu0 0
        %5343 = vmatpush2.bf16.msra.mxu0 0
        %5344 = vmatprep.mubr.bf16.mxu0 0
        %5345 = vmatmul.mubr.bf16.gmra.mxu0 %v5301
        %v5346 = vpop.f32.mrf.mxu0
        %v5347 = vadd.f32 %v5246, %v5346
        %v5348 = vpop.f32.mrf.mxu0
        %v5349 = vpop.f32.mrf.mxu0
        %v5350 = vadd.f32 %v5249, %v5349
        %v5351 = vpop.f32.mrf.mxu0
        %5352 = vmatprep.mubr.bf16.mxu0 0
        %5353 = vmatmul.mubr.bf16.gmra.mxu0 %v5304
        %v5354 = vpop.f32.mrf.mxu0
        %v5355 = vadd.f32 %v5254, %v5354
        %v5356 = vpop.f32.mrf.mxu0
        %v5357 = vpop.f32.mrf.mxu0
        %v5358 = vadd.f32 %v5257, %v5357
        %v5359 = vpop.f32.mrf.mxu0
        %5360 = vmatprep.mubr.bf16.mxu0 0
        %5361 = vmatmul.mubr.bf16.gmra.mxu0 %v5307
        %v5362 = vpop.f32.mrf.mxu0
        %v5363 = vadd.f32 %v5262, %v5362
        %v5364 = vpop.f32.mrf.mxu0
        %v5365 = vpop.f32.mrf.mxu0
        %v5366 = vadd.f32 %v5265, %v5365
        %v5367 = vpop.f32.mrf.mxu0
        %5368 = vmatprep.mubr.bf16.mxu0 0
        %5369 = vmatmul.mubr.bf16.gmra.mxu0 %v5310
        %v5370 = vpop.f32.mrf.mxu0
        %v5371 = vadd.f32 %v5270, %v5370
        %v5372 = vpop.f32.mrf.mxu0
        %v5373 = vpop.f32.mrf.mxu0
        %v5374 = vadd.f32 %v5273, %v5373
        %v5375 = vpop.f32.mrf.mxu0
        %5376 = vdwg.mxu0
        %v5377 = vld [vmem:[#allocation4 + $0x2] sm:$0xff]
        %v5378 = vld [vmem:[#allocation4 + $0x12] sm:$0xff]
        %v5379 = vld [vmem:[#allocation4 + $0x22] sm:$0xff]
        %v5380 = vld [vmem:[#allocation4 + $0x32] sm:$0xff]
        %v5381 = vld [vmem:[#allocation4 + $0x42] sm:$0xff]
        %v5382 = vld [vmem:[#allocation4 + $0x52] sm:$0xff]
        %v5383 = vld [vmem:[#allocation4 + $0x62] sm:$0xff]
        %v5384 = vld [vmem:[#allocation4 + $0x72] sm:$0xff]
        %v5385 = vpack.c.bf16 %v5378, %v5377
        %v5386 = vpack.c.bf16 %v5380, %v5379
        %v5387 = vpack.c.bf16 %v5382, %v5381
        %v5388 = vpack.c.bf16 %v5384, %v5383
        %s5389 = scalar_lea.vmem %s19, 64
        %v5390 = vld [vmem:[%s5389] sm:$0xf]
        %v5391 = vld [vmem:[%s5389 + $0x4] sm:$0xf]
        %v5392 = vld [vmem:[%s5389 + $0x8] sm:$0xf]
        %v5393 = vld [vmem:[%s5389 + $0xc] sm:$0xf]
        %v5394 = vld [vmem:[%s5389 + $0x10] sm:$0xf]
        %v5395 = vld [vmem:[%s5389 + $0x14] sm:$0xf]
        %v5396 = vld [vmem:[%s5389 + $0x18] sm:$0xf]
        %v5397 = vld [vmem:[%s5389 + $0x1c] sm:$0xf]
        %v5406 = vunpack.c.l.b16 %v5390
        %v5407 = vunpack.c.l.b16 %v5391
        %v5408 = vunpack.c.l.b16 %v5392
        %v5409 = vunpack.c.l.b16 %v5393
        %v5410 = vunpack.c.l.b16 %v5394
        %v5411 = vunpack.c.l.b16 %v5395
        %v5412 = vunpack.c.l.b16 %v5396
        %v5413 = vunpack.c.l.b16 %v5397
        %v5414 = vpack.c.b16 %v5407, %v5406
        %v5415 = vpack.c.b16 %v5409, %v5408
        %v5416 = vpack.c.b16 %v5411, %v5410
        %v5417 = vpack.c.b16 %v5413, %v5412
        %v5423 = vsel %vm1203, %v5385, 0
        %v5426 = vsel %vm1203, %v5386, 0
        %v5429 = vsel %vm1203, %v5387, 0
        %v5432 = vsel %vm1203, %v5388, 0
        %5434 = vmatprep.subr.bf16.mxu0 0
        %5435 = vmatpush1.bf16.msra.mxu0 0
        %5436 = vmatprep.subr.bf16.mxu0 0
        %5437 = vmatpush1.bf16.msra.mxu0 0
        %5438 = vmatprep.subr.bf16.mxu0 0
        %5439 = vmatpush1.bf16.msra.mxu0 0
        %5440 = vmatprep.subr.bf16.mxu0 0
        %5441 = vmatpush1.bf16.msra.mxu0 0
        %5442 = vmatprep.subr.bf16.mxu0 0
        %5443 = vmatpush1.bf16.msra.mxu0 %v5417
        %5444 = vmatprep.subr.bf16.mxu0 0
        %5445 = vmatpush1.bf16.msra.mxu0 %v5416
        %5446 = vmatprep.subr.bf16.mxu0 0
        %5447 = vmatpush1.bf16.msra.mxu0 %v5415
        %5448 = vmatprep.subr.bf16.mxu0 0
        %5449 = vmatpush1.bf16.msra.mxu0 %v5414
        %5450 = vmatprep.subr.bf16.mxu0 0
        %5451 = vmatpush2.bf16.msra.mxu0 0
        %5452 = vmatprep.subr.bf16.mxu0 0
        %5453 = vmatpush2.bf16.msra.mxu0 0
        %5454 = vmatprep.subr.bf16.mxu0 0
        %5455 = vmatpush2.bf16.msra.mxu0 0
        %5456 = vmatprep.subr.bf16.mxu0 0
        %5457 = vmatpush2.bf16.msra.mxu0 0
        %5458 = vmatprep.subr.bf16.mxu0 0
        %5459 = vmatpush2.bf16.msra.mxu0 0
        %5460 = vmatprep.subr.bf16.mxu0 0
        %5461 = vmatpush2.bf16.msra.mxu0 0
        %5462 = vmatprep.subr.bf16.mxu0 0
        %5463 = vmatpush2.bf16.msra.mxu0 0
        %5464 = vmatprep.subr.bf16.mxu0 0
        %5465 = vmatpush2.bf16.msra.mxu0 0
        %5466 = vmatprep.mubr.bf16.mxu0 0
        %5467 = vmatmul.mubr.bf16.gmra.mxu0 %v5423
        %v5468 = vpop.f32.mrf.mxu0
        %v5469 = vadd.f32 0.0, %v5468
        %v5470 = vpop.f32.mrf.mxu0
        %v5471 = vpop.f32.mrf.mxu0
        %v5472 = vadd.f32 0.0, %v5471
        %v5473 = vpop.f32.mrf.mxu0
        %5474 = vmatprep.mubr.bf16.mxu0 0
        %5475 = vmatmul.mubr.bf16.gmra.mxu0 %v5426
        %v5476 = vpop.f32.mrf.mxu0
        %v5477 = vadd.f32 0.0, %v5476
        %v5478 = vpop.f32.mrf.mxu0
        %v5479 = vpop.f32.mrf.mxu0
        %v5480 = vadd.f32 0.0, %v5479
        %v5481 = vpop.f32.mrf.mxu0
        %5482 = vmatprep.mubr.bf16.mxu0 0
        %5483 = vmatmul.mubr.bf16.gmra.mxu0 %v5429
        %v5484 = vpop.f32.mrf.mxu0
        %v5485 = vadd.f32 0.0, %v5484
        %v5486 = vpop.f32.mrf.mxu0
        %v5487 = vpop.f32.mrf.mxu0
        %v5488 = vadd.f32 0.0, %v5487
        %v5489 = vpop.f32.mrf.mxu0
        %5490 = vmatprep.mubr.bf16.mxu0 0
        %5491 = vmatmul.mubr.bf16.gmra.mxu0 %v5432
        %v5492 = vpop.f32.mrf.mxu0
        %v5493 = vadd.f32 0.0, %v5492
        %v5494 = vpop.f32.mrf.mxu0
        %v5495 = vpop.f32.mrf.mxu0
        %v5496 = vadd.f32 0.0, %v5495
        %v5497 = vpop.f32.mrf.mxu0
        %5498 = vdwg.mxu0
        %v5499 = vadd.f32 %v5347, %v5469
        %v5500 = vadd.f32 %v5350, %v5472
        %v5501 = vadd.f32 %v5355, %v5477
        %v5502 = vadd.f32 %v5358, %v5480
        %v5503 = vadd.f32 %v5363, %v5485
        %v5504 = vadd.f32 %v5366, %v5488
        %v5505 = vadd.f32 %v5371, %v5493
        %v5506 = vadd.f32 %v5374, %v5496
        %v5507 = vld [vmem:[%s1789] sm:$0xff]
        %v5508 = vld [vmem:[%s1789 + $0x10] sm:$0xff]
        %v5509 = vld [vmem:[%s1789 + $0x20] sm:$0xff]
        %v5510 = vld [vmem:[%s1789 + $0x30] sm:$0xff]
        %v5511 = vld [vmem:[%s1789 + $0x40] sm:$0xff]
        %v5512 = vld [vmem:[%s1789 + $0x50] sm:$0xff]
        %v5513 = vld [vmem:[%s1789 + $0x60] sm:$0xff]
        %v5514 = vld [vmem:[%s1789 + $0x70] sm:$0xff]
        %v5515 = vpack.c.bf16 %v5508, %v5507
        %v5516 = vpack.c.bf16 %v5510, %v5509
        %v5517 = vpack.c.bf16 %v5512, %v5511
        %v5518 = vpack.c.bf16 %v5514, %v5513
        %s5519 = scalar_lea.vmem %s19, 96
        %v5520 = vld [vmem:[%s5519] sm:$0xf]
        %v5521 = vld [vmem:[%s5519 + $0x4] sm:$0xf]
        %v5522 = vld [vmem:[%s5519 + $0x8] sm:$0xf]
        %v5523 = vld [vmem:[%s5519 + $0xc] sm:$0xf]
        %v5524 = vld [vmem:[%s5519 + $0x10] sm:$0xf]
        %v5525 = vld [vmem:[%s5519 + $0x14] sm:$0xf]
        %v5526 = vld [vmem:[%s5519 + $0x18] sm:$0xf]
        %v5527 = vld [vmem:[%s5519 + $0x1c] sm:$0xf]
        %v5536 = vunpack.c.l.b16 %v5520
        %v5537 = vunpack.c.l.b16 %v5521
        %v5538 = vunpack.c.l.b16 %v5522
        %v5539 = vunpack.c.l.b16 %v5523
        %v5540 = vunpack.c.l.b16 %v5524
        %v5541 = vunpack.c.l.b16 %v5525
        %v5542 = vunpack.c.l.b16 %v5526
        %v5543 = vunpack.c.l.b16 %v5527
        %v5544 = vpack.c.b16 %v5537, %v5536
        %v5545 = vpack.c.b16 %v5539, %v5538
        %v5546 = vpack.c.b16 %v5541, %v5540
        %v5547 = vpack.c.b16 %v5543, %v5542
        %v5553 = vsel %vm1203, %v5515, 0
        %v5556 = vsel %vm1203, %v5516, 0
        %v5559 = vsel %vm1203, %v5517, 0
        %v5562 = vsel %vm1203, %v5518, 0
        %5564 = vmatprep.subr.bf16.mxu0 0
        %5565 = vmatpush1.bf16.msra.mxu0 0
        %5566 = vmatprep.subr.bf16.mxu0 0
        %5567 = vmatpush1.bf16.msra.mxu0 0
        %5568 = vmatprep.subr.bf16.mxu0 0
        %5569 = vmatpush1.bf16.msra.mxu0 0
        %5570 = vmatprep.subr.bf16.mxu0 0
        %5571 = vmatpush1.bf16.msra.mxu0 0
        %5572 = vmatprep.subr.bf16.mxu0 0
        %5573 = vmatpush1.bf16.msra.mxu0 %v5547
        %5574 = vmatprep.subr.bf16.mxu0 0
        %5575 = vmatpush1.bf16.msra.mxu0 %v5546
        %5576 = vmatprep.subr.bf16.mxu0 0
        %5577 = vmatpush1.bf16.msra.mxu0 %v5545
        %5578 = vmatprep.subr.bf16.mxu0 0
        %5579 = vmatpush1.bf16.msra.mxu0 %v5544
        %5580 = vmatprep.subr.bf16.mxu0 0
        %5581 = vmatpush2.bf16.msra.mxu0 0
        %5582 = vmatprep.subr.bf16.mxu0 0
        %5583 = vmatpush2.bf16.msra.mxu0 0
        %5584 = vmatprep.subr.bf16.mxu0 0
        %5585 = vmatpush2.bf16.msra.mxu0 0
        %5586 = vmatprep.subr.bf16.mxu0 0
        %5587 = vmatpush2.bf16.msra.mxu0 0
        %5588 = vmatprep.subr.bf16.mxu0 0
        %5589 = vmatpush2.bf16.msra.mxu0 0
        %5590 = vmatprep.subr.bf16.mxu0 0
        %5591 = vmatpush2.bf16.msra.mxu0 0
        %5592 = vmatprep.subr.bf16.mxu0 0
        %5593 = vmatpush2.bf16.msra.mxu0 0
        %5594 = vmatprep.subr.bf16.mxu0 0
        %5595 = vmatpush2.bf16.msra.mxu0 0
        %5596 = vmatprep.mubr.bf16.mxu0 0
        %5597 = vmatmul.mubr.bf16.gmra.mxu0 %v5553
        %v5598 = vpop.f32.mrf.mxu0
        %v5599 = vadd.f32 0.0, %v5598
        %v5600 = vpop.f32.mrf.mxu0
        %v5601 = vpop.f32.mrf.mxu0
        %v5602 = vadd.f32 0.0, %v5601
        %v5603 = vpop.f32.mrf.mxu0
        %5604 = vmatprep.mubr.bf16.mxu0 0
        %5605 = vmatmul.mubr.bf16.gmra.mxu0 %v5556
        %v5606 = vpop.f32.mrf.mxu0
        %v5607 = vadd.f32 0.0, %v5606
        %v5608 = vpop.f32.mrf.mxu0
        %v5609 = vpop.f32.mrf.mxu0
        %v5610 = vadd.f32 0.0, %v5609
        %v5611 = vpop.f32.mrf.mxu0
        %5612 = vmatprep.mubr.bf16.mxu0 0
        %5613 = vmatmul.mubr.bf16.gmra.mxu0 %v5559
        %v5614 = vpop.f32.mrf.mxu0
        %v5615 = vadd.f32 0.0, %v5614
        %v5616 = vpop.f32.mrf.mxu0
        %v5617 = vpop.f32.mrf.mxu0
        %v5618 = vadd.f32 0.0, %v5617
        %v5619 = vpop.f32.mrf.mxu0
        %5620 = vmatprep.mubr.bf16.mxu0 0
        %5621 = vmatmul.mubr.bf16.gmra.mxu0 %v5562
        %v5622 = vpop.f32.mrf.mxu0
        %v5623 = vadd.f32 0.0, %v5622
        %v5624 = vpop.f32.mrf.mxu0
        %v5625 = vpop.f32.mrf.mxu0
        %v5626 = vadd.f32 0.0, %v5625
        %v5627 = vpop.f32.mrf.mxu0
        %5628 = vdwg.mxu0
        %v5629 = vadd.f32 %v5499, %v5599
        %v5630 = vadd.f32 %v5500, %v5602
        %v5631 = vadd.f32 %v5501, %v5607
        %v5632 = vadd.f32 %v5502, %v5610
        %v5633 = vadd.f32 %v5503, %v5615
        %v5634 = vadd.f32 %v5504, %v5618
        %v5635 = vadd.f32 %v5505, %v5623
        %v5636 = vadd.f32 %v5506, %v5626
        %v5637 = vld [vmem:[%s1789 + $0x1] sm:$0xff]
        %v5638 = vld [vmem:[%s1789 + $0x11] sm:$0xff]
        %v5639 = vld [vmem:[%s1789 + $0x21] sm:$0xff]
        %v5640 = vld [vmem:[%s1789 + $0x31] sm:$0xff]
        %v5641 = vld [vmem:[%s1789 + $0x41] sm:$0xff]
        %v5642 = vld [vmem:[%s1789 + $0x51] sm:$0xff]
        %v5643 = vld [vmem:[%s1789 + $0x61] sm:$0xff]
        %v5644 = vld [vmem:[%s1789 + $0x71] sm:$0xff]
        %v5645 = vpack.c.bf16 %v5638, %v5637
        %v5646 = vpack.c.bf16 %v5640, %v5639
        %v5647 = vpack.c.bf16 %v5642, %v5641
        %v5648 = vpack.c.bf16 %v5644, %v5643
        %s5649 = scalar_lea.vmem %s19, 128
        %v5650 = vld [vmem:[%s5649] sm:$0xf]
        %v5651 = vld [vmem:[%s5649 + $0x4] sm:$0xf]
        %v5652 = vld [vmem:[%s5649 + $0x8] sm:$0xf]
        %v5653 = vld [vmem:[%s5649 + $0xc] sm:$0xf]
        %v5654 = vld [vmem:[%s5649 + $0x10] sm:$0xf]
        %v5655 = vld [vmem:[%s5649 + $0x14] sm:$0xf]
        %v5656 = vld [vmem:[%s5649 + $0x18] sm:$0xf]
        %v5657 = vld [vmem:[%s5649 + $0x1c] sm:$0xf]
        %v5666 = vunpack.c.l.b16 %v5650
        %v5667 = vunpack.c.l.b16 %v5651
        %v5668 = vunpack.c.l.b16 %v5652
        %v5669 = vunpack.c.l.b16 %v5653
        %v5670 = vunpack.c.l.b16 %v5654
        %v5671 = vunpack.c.l.b16 %v5655
        %v5672 = vunpack.c.l.b16 %v5656
        %v5673 = vunpack.c.l.b16 %v5657
        %v5674 = vpack.c.b16 %v5667, %v5666
        %v5675 = vpack.c.b16 %v5669, %v5668
        %v5676 = vpack.c.b16 %v5671, %v5670
        %v5677 = vpack.c.b16 %v5673, %v5672
        %v5683 = vsel %vm1203, %v5645, 0
        %v5686 = vsel %vm1203, %v5646, 0
        %v5689 = vsel %vm1203, %v5647, 0
        %v5692 = vsel %vm1203, %v5648, 0
        %5694 = vmatprep.subr.bf16.mxu0 0
        %5695 = vmatpush1.bf16.msra.mxu0 0
        %5696 = vmatprep.subr.bf16.mxu0 0
        %5697 = vmatpush1.bf16.msra.mxu0 0
        %5698 = vmatprep.subr.bf16.mxu0 0
        %5699 = vmatpush1.bf16.msra.mxu0 0
        %5700 = vmatprep.subr.bf16.mxu0 0
        %5701 = vmatpush1.bf16.msra.mxu0 0
        %5702 = vmatprep.subr.bf16.mxu0 0
        %5703 = vmatpush1.bf16.msra.mxu0 %v5677
        %5704 = vmatprep.subr.bf16.mxu0 0
        %5705 = vmatpush1.bf16.msra.mxu0 %v5676
        %5706 = vmatprep.subr.bf16.mxu0 0
        %5707 = vmatpush1.bf16.msra.mxu0 %v5675
        %5708 = vmatprep.subr.bf16.mxu0 0
        %5709 = vmatpush1.bf16.msra.mxu0 %v5674
        %5710 = vmatprep.subr.bf16.mxu0 0
        %5711 = vmatpush2.bf16.msra.mxu0 0
        %5712 = vmatprep.subr.bf16.mxu0 0
        %5713 = vmatpush2.bf16.msra.mxu0 0
        %5714 = vmatprep.subr.bf16.mxu0 0
        %5715 = vmatpush2.bf16.msra.mxu0 0
        %5716 = vmatprep.subr.bf16.mxu0 0
        %5717 = vmatpush2.bf16.msra.mxu0 0
        %5718 = vmatprep.subr.bf16.mxu0 0
        %5719 = vmatpush2.bf16.msra.mxu0 0
        %5720 = vmatprep.subr.bf16.mxu0 0
        %5721 = vmatpush2.bf16.msra.mxu0 0
        %5722 = vmatprep.subr.bf16.mxu0 0
        %5723 = vmatpush2.bf16.msra.mxu0 0
        %5724 = vmatprep.subr.bf16.mxu0 0
        %5725 = vmatpush2.bf16.msra.mxu0 0
        %5726 = vmatprep.mubr.bf16.mxu0 0
        %5727 = vmatmul.mubr.bf16.gmra.mxu0 %v5683
        %v5728 = vpop.f32.mrf.mxu0
        %v5729 = vadd.f32 0.0, %v5728
        %v5730 = vpop.f32.mrf.mxu0
        %v5731 = vpop.f32.mrf.mxu0
        %v5732 = vadd.f32 0.0, %v5731
        %v5733 = vpop.f32.mrf.mxu0
        %5734 = vmatprep.mubr.bf16.mxu0 0
        %5735 = vmatmul.mubr.bf16.gmra.mxu0 %v5686
        %v5736 = vpop.f32.mrf.mxu0
        %v5737 = vadd.f32 0.0, %v5736
        %v5738 = vpop.f32.mrf.mxu0
        %v5739 = vpop.f32.mrf.mxu0
        %v5740 = vadd.f32 0.0, %v5739
        %v5741 = vpop.f32.mrf.mxu0
        %5742 = vmatprep.mubr.bf16.mxu0 0
        %5743 = vmatmul.mubr.bf16.gmra.mxu0 %v5689
        %v5744 = vpop.f32.mrf.mxu0
        %v5745 = vadd.f32 0.0, %v5744
        %v5746 = vpop.f32.mrf.mxu0
        %v5747 = vpop.f32.mrf.mxu0
        %v5748 = vadd.f32 0.0, %v5747
        %v5749 = vpop.f32.mrf.mxu0
        %5750 = vmatprep.mubr.bf16.mxu0 0
        %5751 = vmatmul.mubr.bf16.gmra.mxu0 %v5692
        %v5752 = vpop.f32.mrf.mxu0
        %v5753 = vadd.f32 0.0, %v5752
        %v5754 = vpop.f32.mrf.mxu0
        %v5755 = vpop.f32.mrf.mxu0
        %v5756 = vadd.f32 0.0, %v5755
        %v5757 = vpop.f32.mrf.mxu0
        %5758 = vdwg.mxu0
        %v5759 = vadd.f32 %v5629, %v5729
        %v5760 = vadd.f32 %v5630, %v5732
        %v5761 = vadd.f32 %v5631, %v5737
        %v5762 = vadd.f32 %v5632, %v5740
        %v5763 = vadd.f32 %v5633, %v5745
        %v5764 = vadd.f32 %v5634, %v5748
        %v5765 = vadd.f32 %v5635, %v5753
        %v5766 = vadd.f32 %v5636, %v5756
        %v5767 = vld [vmem:[%s1789 + $0x2] sm:$0xff]
        %v5768 = vld [vmem:[%s1789 + $0x12] sm:$0xff]
        %v5769 = vld [vmem:[%s1789 + $0x22] sm:$0xff]
        %v5770 = vld [vmem:[%s1789 + $0x32] sm:$0xff]
        %v5771 = vld [vmem:[%s1789 + $0x42] sm:$0xff]
        %v5772 = vld [vmem:[%s1789 + $0x52] sm:$0xff]
        %v5773 = vld [vmem:[%s1789 + $0x62] sm:$0xff]
        %v5774 = vld [vmem:[%s1789 + $0x72] sm:$0xff]
        %v5775 = vpack.c.bf16 %v5768, %v5767
        %v5776 = vpack.c.bf16 %v5770, %v5769
        %v5777 = vpack.c.bf16 %v5772, %v5771
        %v5778 = vpack.c.bf16 %v5774, %v5773
        %s5779 = scalar_lea.vmem %s19, 160
        %v5780 = vld [vmem:[%s5779] sm:$0xf]
        %v5781 = vld [vmem:[%s5779 + $0x4] sm:$0xf]
        %v5782 = vld [vmem:[%s5779 + $0x8] sm:$0xf]
        %v5783 = vld [vmem:[%s5779 + $0xc] sm:$0xf]
        %v5784 = vld [vmem:[%s5779 + $0x10] sm:$0xf]
        %v5785 = vld [vmem:[%s5779 + $0x14] sm:$0xf]
        %v5786 = vld [vmem:[%s5779 + $0x18] sm:$0xf]
        %v5787 = vld [vmem:[%s5779 + $0x1c] sm:$0xf]
        %v5796 = vunpack.c.l.b16 %v5780
        %v5797 = vunpack.c.l.b16 %v5781
        %v5798 = vunpack.c.l.b16 %v5782
        %v5799 = vunpack.c.l.b16 %v5783
        %v5800 = vunpack.c.l.b16 %v5784
        %v5801 = vunpack.c.l.b16 %v5785
        %v5802 = vunpack.c.l.b16 %v5786
        %v5803 = vunpack.c.l.b16 %v5787
        %v5804 = vpack.c.b16 %v5797, %v5796
        %v5805 = vpack.c.b16 %v5799, %v5798
        %v5806 = vpack.c.b16 %v5801, %v5800
        %v5807 = vpack.c.b16 %v5803, %v5802
        %v5813 = vsel %vm1203, %v5775, 0
        %v5816 = vsel %vm1203, %v5776, 0
        %v5819 = vsel %vm1203, %v5777, 0
        %v5822 = vsel %vm1203, %v5778, 0
        %5824 = vmatprep.subr.bf16.mxu0 0
        %5825 = vmatpush1.bf16.msra.mxu0 0
        %5826 = vmatprep.subr.bf16.mxu0 0
        %5827 = vmatpush1.bf16.msra.mxu0 0
        %5828 = vmatprep.subr.bf16.mxu0 0
        %5829 = vmatpush1.bf16.msra.mxu0 0
        %5830 = vmatprep.subr.bf16.mxu0 0
        %5831 = vmatpush1.bf16.msra.mxu0 0
        %5832 = vmatprep.subr.bf16.mxu0 0
        %5833 = vmatpush1.bf16.msra.mxu0 %v5807
        %5834 = vmatprep.subr.bf16.mxu0 0
        %5835 = vmatpush1.bf16.msra.mxu0 %v5806
        %5836 = vmatprep.subr.bf16.mxu0 0
        %5837 = vmatpush1.bf16.msra.mxu0 %v5805
        %5838 = vmatprep.subr.bf16.mxu0 0
        %5839 = vmatpush1.bf16.msra.mxu0 %v5804
        %5840 = vmatprep.subr.bf16.mxu0 0
        %5841 = vmatpush2.bf16.msra.mxu0 0
        %5842 = vmatprep.subr.bf16.mxu0 0
        %5843 = vmatpush2.bf16.msra.mxu0 0
        %5844 = vmatprep.subr.bf16.mxu0 0
        %5845 = vmatpush2.bf16.msra.mxu0 0
        %5846 = vmatprep.subr.bf16.mxu0 0
        %5847 = vmatpush2.bf16.msra.mxu0 0
        %5848 = vmatprep.subr.bf16.mxu0 0
        %5849 = vmatpush2.bf16.msra.mxu0 0
        %5850 = vmatprep.subr.bf16.mxu0 0
        %5851 = vmatpush2.bf16.msra.mxu0 0
        %5852 = vmatprep.subr.bf16.mxu0 0
        %5853 = vmatpush2.bf16.msra.mxu0 0
        %5854 = vmatprep.subr.bf16.mxu0 0
        %5855 = vmatpush2.bf16.msra.mxu0 0
        %5856 = vmatprep.mubr.bf16.mxu0 0
        %5857 = vmatmul.mubr.bf16.gmra.mxu0 %v5813
        %v5858 = vpop.f32.mrf.mxu0
        %v5859 = vadd.f32 0.0, %v5858
        %v5860 = vpop.f32.mrf.mxu0
        %v5861 = vpop.f32.mrf.mxu0
        %v5862 = vadd.f32 0.0, %v5861
        %v5863 = vpop.f32.mrf.mxu0
        %5864 = vmatprep.mubr.bf16.mxu0 0
        %5865 = vmatmul.mubr.bf16.gmra.mxu0 %v5816
        %v5866 = vpop.f32.mrf.mxu0
        %v5867 = vadd.f32 0.0, %v5866
        %v5868 = vpop.f32.mrf.mxu0
        %v5869 = vpop.f32.mrf.mxu0
        %v5870 = vadd.f32 0.0, %v5869
        %v5871 = vpop.f32.mrf.mxu0
        %5872 = vmatprep.mubr.bf16.mxu0 0
        %5873 = vmatmul.mubr.bf16.gmra.mxu0 %v5819
        %v5874 = vpop.f32.mrf.mxu0
        %v5875 = vadd.f32 0.0, %v5874
        %v5876 = vpop.f32.mrf.mxu0
        %v5877 = vpop.f32.mrf.mxu0
        %v5878 = vadd.f32 0.0, %v5877
        %v5879 = vpop.f32.mrf.mxu0
        %5880 = vmatprep.mubr.bf16.mxu0 0
        %5881 = vmatmul.mubr.bf16.gmra.mxu0 %v5822
        %v5882 = vpop.f32.mrf.mxu0
        %v5883 = vadd.f32 0.0, %v5882
        %v5884 = vpop.f32.mrf.mxu0
        %v5885 = vpop.f32.mrf.mxu0
        %v5886 = vadd.f32 0.0, %v5885
        %v5887 = vpop.f32.mrf.mxu0
        %5888 = vdwg.mxu0
        %v5889 = vadd.f32 %v5759, %v5859
        %v5890 = vadd.f32 %v5760, %v5862
        %v5891 = vadd.f32 %v5761, %v5867
        %v5892 = vadd.f32 %v5762, %v5870
        %v5893 = vadd.f32 %v5763, %v5875
        %v5894 = vadd.f32 %v5764, %v5878
        %v5895 = vadd.f32 %v5765, %v5883
        %v5896 = vadd.f32 %v5766, %v5886
        %v5897 = vld [vmem:[%s2561] sm:$0xff]
        %v5898 = vld [vmem:[%s2561 + $0x10] sm:$0xff]
        %v5899 = vld [vmem:[%s2561 + $0x20] sm:$0xff]
        %v5900 = vld [vmem:[%s2561 + $0x30] sm:$0xff]
        %v5901 = vld [vmem:[%s2561 + $0x40] sm:$0xff]
        %v5902 = vld [vmem:[%s2561 + $0x50] sm:$0xff]
        %v5903 = vld [vmem:[%s2561 + $0x60] sm:$0xff]
        %v5904 = vld [vmem:[%s2561 + $0x70] sm:$0xff]
        %v5905 = vpack.c.bf16 %v5898, %v5897
        %v5906 = vpack.c.bf16 %v5900, %v5899
        %v5907 = vpack.c.bf16 %v5902, %v5901
        %v5908 = vpack.c.bf16 %v5904, %v5903
        %s5909 = scalar_lea.vmem %s19, 192
        %v5910 = vld [vmem:[%s5909] sm:$0xf]
        %v5911 = vld [vmem:[%s5909 + $0x4] sm:$0xf]
        %v5912 = vld [vmem:[%s5909 + $0x8] sm:$0xf]
        %v5913 = vld [vmem:[%s5909 + $0xc] sm:$0xf]
        %v5914 = vld [vmem:[%s5909 + $0x10] sm:$0xf]
        %v5915 = vld [vmem:[%s5909 + $0x14] sm:$0xf]
        %v5916 = vld [vmem:[%s5909 + $0x18] sm:$0xf]
        %v5917 = vld [vmem:[%s5909 + $0x1c] sm:$0xf]
        %v5926 = vunpack.c.l.b16 %v5910
        %v5927 = vunpack.c.l.b16 %v5911
        %v5928 = vunpack.c.l.b16 %v5912
        %v5929 = vunpack.c.l.b16 %v5913
        %v5930 = vunpack.c.l.b16 %v5914
        %v5931 = vunpack.c.l.b16 %v5915
        %v5932 = vunpack.c.l.b16 %v5916
        %v5933 = vunpack.c.l.b16 %v5917
        %v5934 = vpack.c.b16 %v5927, %v5926
        %v5935 = vpack.c.b16 %v5929, %v5928
        %v5936 = vpack.c.b16 %v5931, %v5930
        %v5937 = vpack.c.b16 %v5933, %v5932
        %v5943 = vsel %vm1203, %v5905, 0
        %v5946 = vsel %vm1203, %v5906, 0
        %v5949 = vsel %vm1203, %v5907, 0
        %v5952 = vsel %vm1203, %v5908, 0
        %5954 = vmatprep.subr.bf16.mxu0 0
        %5955 = vmatpush1.bf16.msra.mxu0 0
        %5956 = vmatprep.subr.bf16.mxu0 0
        %5957 = vmatpush1.bf16.msra.mxu0 0
        %5958 = vmatprep.subr.bf16.mxu0 0
        %5959 = vmatpush1.bf16.msra.mxu0 0
        %5960 = vmatprep.subr.bf16.mxu0 0
        %5961 = vmatpush1.bf16.msra.mxu0 0
        %5962 = vmatprep.subr.bf16.mxu0 0
        %5963 = vmatpush1.bf16.msra.mxu0 %v5937
        %5964 = vmatprep.subr.bf16.mxu0 0
        %5965 = vmatpush1.bf16.msra.mxu0 %v5936
        %5966 = vmatprep.subr.bf16.mxu0 0
        %5967 = vmatpush1.bf16.msra.mxu0 %v5935
        %5968 = vmatprep.subr.bf16.mxu0 0
        %5969 = vmatpush1.bf16.msra.mxu0 %v5934
        %5970 = vmatprep.subr.bf16.mxu0 0
        %5971 = vmatpush2.bf16.msra.mxu0 0
        %5972 = vmatprep.subr.bf16.mxu0 0
        %5973 = vmatpush2.bf16.msra.mxu0 0
        %5974 = vmatprep.subr.bf16.mxu0 0
        %5975 = vmatpush2.bf16.msra.mxu0 0
        %5976 = vmatprep.subr.bf16.mxu0 0
        %5977 = vmatpush2.bf16.msra.mxu0 0
        %5978 = vmatprep.subr.bf16.mxu0 0
        %5979 = vmatpush2.bf16.msra.mxu0 0
        %5980 = vmatprep.subr.bf16.mxu0 0
        %5981 = vmatpush2.bf16.msra.mxu0 0
        %5982 = vmatprep.subr.bf16.mxu0 0
        %5983 = vmatpush2.bf16.msra.mxu0 0
        %5984 = vmatprep.subr.bf16.mxu0 0
        %5985 = vmatpush2.bf16.msra.mxu0 0
        %5986 = vmatprep.mubr.bf16.mxu0 0
        %5987 = vmatmul.mubr.bf16.gmra.mxu0 %v5943
        %v5988 = vpop.f32.mrf.mxu0
        %v5989 = vadd.f32 0.0, %v5988
        %v5990 = vpop.f32.mrf.mxu0
        %v5991 = vpop.f32.mrf.mxu0
        %v5992 = vadd.f32 0.0, %v5991
        %v5993 = vpop.f32.mrf.mxu0
        %5994 = vmatprep.mubr.bf16.mxu0 0
        %5995 = vmatmul.mubr.bf16.gmra.mxu0 %v5946
        %v5996 = vpop.f32.mrf.mxu0
        %v5997 = vadd.f32 0.0, %v5996
        %v5998 = vpop.f32.mrf.mxu0
        %v5999 = vpop.f32.mrf.mxu0
        %v6000 = vadd.f32 0.0, %v5999
        %v6001 = vpop.f32.mrf.mxu0
        %6002 = vmatprep.mubr.bf16.mxu0 0
        %6003 = vmatmul.mubr.bf16.gmra.mxu0 %v5949
        %v6004 = vpop.f32.mrf.mxu0
        %v6005 = vadd.f32 0.0, %v6004
        %v6006 = vpop.f32.mrf.mxu0
        %v6007 = vpop.f32.mrf.mxu0
        %v6008 = vadd.f32 0.0, %v6007
        %v6009 = vpop.f32.mrf.mxu0
        %6010 = vmatprep.mubr.bf16.mxu0 0
        %6011 = vmatmul.mubr.bf16.gmra.mxu0 %v5952
        %v6012 = vpop.f32.mrf.mxu0
        %v6013 = vadd.f32 0.0, %v6012
        %v6014 = vpop.f32.mrf.mxu0
        %v6015 = vpop.f32.mrf.mxu0
        %v6016 = vadd.f32 0.0, %v6015
        %v6017 = vpop.f32.mrf.mxu0
        %6018 = vdwg.mxu0
        %v6019 = vadd.f32 %v5889, %v5989
        %v6020 = vadd.f32 %v5890, %v5992
        %v6021 = vadd.f32 %v5891, %v5997
        %v6022 = vadd.f32 %v5892, %v6000
        %v6023 = vadd.f32 %v5893, %v6005
        %v6024 = vadd.f32 %v5894, %v6008
        %v6025 = vadd.f32 %v5895, %v6013
        %v6026 = vadd.f32 %v5896, %v6016
        %v6027 = vld [vmem:[%s2561 + $0x1] sm:$0xff]
        %v6028 = vld [vmem:[%s2561 + $0x11] sm:$0xff]
        %v6029 = vld [vmem:[%s2561 + $0x21] sm:$0xff]
        %v6030 = vld [vmem:[%s2561 + $0x31] sm:$0xff]
        %v6031 = vld [vmem:[%s2561 + $0x41] sm:$0xff]
        %v6032 = vld [vmem:[%s2561 + $0x51] sm:$0xff]
        %v6033 = vld [vmem:[%s2561 + $0x61] sm:$0xff]
        %v6034 = vld [vmem:[%s2561 + $0x71] sm:$0xff]
        %v6035 = vpack.c.bf16 %v6028, %v6027
        %v6036 = vpack.c.bf16 %v6030, %v6029
        %v6037 = vpack.c.bf16 %v6032, %v6031
        %v6038 = vpack.c.bf16 %v6034, %v6033
        %s6039 = scalar_lea.vmem %s19, 224
        %v6040 = vld [vmem:[%s6039] sm:$0xf]
        %v6041 = vld [vmem:[%s6039 + $0x4] sm:$0xf]
        %v6042 = vld [vmem:[%s6039 + $0x8] sm:$0xf]
        %v6043 = vld [vmem:[%s6039 + $0xc] sm:$0xf]
        %v6044 = vld [vmem:[%s6039 + $0x10] sm:$0xf]
        %v6045 = vld [vmem:[%s6039 + $0x14] sm:$0xf]
        %v6046 = vld [vmem:[%s6039 + $0x18] sm:$0xf]
        %v6047 = vld [vmem:[%s6039 + $0x1c] sm:$0xf]
        %v6056 = vunpack.c.l.b16 %v6040
        %v6057 = vunpack.c.l.b16 %v6041
        %v6058 = vunpack.c.l.b16 %v6042
        %v6059 = vunpack.c.l.b16 %v6043
        %v6060 = vunpack.c.l.b16 %v6044
        %v6061 = vunpack.c.l.b16 %v6045
        %v6062 = vunpack.c.l.b16 %v6046
        %v6063 = vunpack.c.l.b16 %v6047
        %v6064 = vpack.c.b16 %v6057, %v6056
        %v6065 = vpack.c.b16 %v6059, %v6058
        %v6066 = vpack.c.b16 %v6061, %v6060
        %v6067 = vpack.c.b16 %v6063, %v6062
        %v6073 = vsel %vm1203, %v6035, 0
        %v6076 = vsel %vm1203, %v6036, 0
        %v6079 = vsel %vm1203, %v6037, 0
        %v6082 = vsel %vm1203, %v6038, 0
        %6084 = vmatprep.subr.bf16.mxu0 0
        %6085 = vmatpush1.bf16.msra.mxu0 0
        %6086 = vmatprep.subr.bf16.mxu0 0
        %6087 = vmatpush1.bf16.msra.mxu0 0
        %6088 = vmatprep.subr.bf16.mxu0 0
        %6089 = vmatpush1.bf16.msra.mxu0 0
        %6090 = vmatprep.subr.bf16.mxu0 0
        %6091 = vmatpush1.bf16.msra.mxu0 0
        %6092 = vmatprep.subr.bf16.mxu0 0
        %6093 = vmatpush1.bf16.msra.mxu0 %v6067
        %6094 = vmatprep.subr.bf16.mxu0 0
        %6095 = vmatpush1.bf16.msra.mxu0 %v6066
        %6096 = vmatprep.subr.bf16.mxu0 0
        %6097 = vmatpush1.bf16.msra.mxu0 %v6065
        %6098 = vmatprep.subr.bf16.mxu0 0
        %6099 = vmatpush1.bf16.msra.mxu0 %v6064
        %6100 = vmatprep.subr.bf16.mxu0 0
        %6101 = vmatpush2.bf16.msra.mxu0 0
        %6102 = vmatprep.subr.bf16.mxu0 0
        %6103 = vmatpush2.bf16.msra.mxu0 0
        %6104 = vmatprep.subr.bf16.mxu0 0
        %6105 = vmatpush2.bf16.msra.mxu0 0
        %6106 = vmatprep.subr.bf16.mxu0 0
        %6107 = vmatpush2.bf16.msra.mxu0 0
        %6108 = vmatprep.subr.bf16.mxu0 0
        %6109 = vmatpush2.bf16.msra.mxu0 0
        %6110 = vmatprep.subr.bf16.mxu0 0
        %6111 = vmatpush2.bf16.msra.mxu0 0
        %6112 = vmatprep.subr.bf16.mxu0 0
        %6113 = vmatpush2.bf16.msra.mxu0 0
        %6114 = vmatprep.subr.bf16.mxu0 0
        %6115 = vmatpush2.bf16.msra.mxu0 0
        %6116 = vmatprep.mubr.bf16.mxu0 0
        %6117 = vmatmul.mubr.bf16.gmra.mxu0 %v6073
        %v6118 = vpop.f32.mrf.mxu0
        %v6119 = vadd.f32 0.0, %v6118
        %v6120 = vpop.f32.mrf.mxu0
        %v6121 = vpop.f32.mrf.mxu0
        %v6122 = vadd.f32 0.0, %v6121
        %v6123 = vpop.f32.mrf.mxu0
        %6124 = vmatprep.mubr.bf16.mxu0 0
        %6125 = vmatmul.mubr.bf16.gmra.mxu0 %v6076
        %v6126 = vpop.f32.mrf.mxu0
        %v6127 = vadd.f32 0.0, %v6126
        %v6128 = vpop.f32.mrf.mxu0
        %v6129 = vpop.f32.mrf.mxu0
        %v6130 = vadd.f32 0.0, %v6129
        %v6131 = vpop.f32.mrf.mxu0
        %6132 = vmatprep.mubr.bf16.mxu0 0
        %6133 = vmatmul.mubr.bf16.gmra.mxu0 %v6079
        %v6134 = vpop.f32.mrf.mxu0
        %v6135 = vadd.f32 0.0, %v6134
        %v6136 = vpop.f32.mrf.mxu0
        %v6137 = vpop.f32.mrf.mxu0
        %v6138 = vadd.f32 0.0, %v6137
        %v6139 = vpop.f32.mrf.mxu0
        %6140 = vmatprep.mubr.bf16.mxu0 0
        %6141 = vmatmul.mubr.bf16.gmra.mxu0 %v6082
        %v6142 = vpop.f32.mrf.mxu0
        %v6143 = vadd.f32 0.0, %v6142
        %v6144 = vpop.f32.mrf.mxu0
        %v6145 = vpop.f32.mrf.mxu0
        %v6146 = vadd.f32 0.0, %v6145
        %v6147 = vpop.f32.mrf.mxu0
        %6148 = vdwg.mxu0
        %v6149 = vadd.f32 %v6019, %v6119
        %v6150 = vadd.f32 %v6020, %v6122
        %v6151 = vadd.f32 %v6021, %v6127
        %v6152 = vadd.f32 %v6022, %v6130
        %v6153 = vadd.f32 %v6023, %v6135
        %v6154 = vadd.f32 %v6024, %v6138
        %v6155 = vadd.f32 %v6025, %v6143
        %v6156 = vadd.f32 %v6026, %v6146
        %v6157 = vld [vmem:[%s2561 + $0x2] sm:$0xff]
        %v6158 = vld [vmem:[%s2561 + $0x12] sm:$0xff]
        %v6159 = vld [vmem:[%s2561 + $0x22] sm:$0xff]
        %v6160 = vld [vmem:[%s2561 + $0x32] sm:$0xff]
        %v6161 = vld [vmem:[%s2561 + $0x42] sm:$0xff]
        %v6162 = vld [vmem:[%s2561 + $0x52] sm:$0xff]
        %v6163 = vld [vmem:[%s2561 + $0x62] sm:$0xff]
        %v6164 = vld [vmem:[%s2561 + $0x72] sm:$0xff]
        %v6165 = vpack.c.bf16 %v6158, %v6157
        %v6166 = vpack.c.bf16 %v6160, %v6159
        %v6167 = vpack.c.bf16 %v6162, %v6161
        %v6168 = vpack.c.bf16 %v6164, %v6163
        %s6169 = scalar_lea.vmem %s19, 256
        %v6170 = vld [vmem:[%s6169] sm:$0xf]
        %v6171 = vld [vmem:[%s6169 + $0x4] sm:$0xf]
        %v6172 = vld [vmem:[%s6169 + $0x8] sm:$0xf]
        %v6173 = vld [vmem:[%s6169 + $0xc] sm:$0xf]
        %v6174 = vld [vmem:[%s6169 + $0x10] sm:$0xf]
        %v6175 = vld [vmem:[%s6169 + $0x14] sm:$0xf]
        %v6176 = vld [vmem:[%s6169 + $0x18] sm:$0xf]
        %v6177 = vld [vmem:[%s6169 + $0x1c] sm:$0xf]
        %v6186 = vunpack.c.l.b16 %v6170
        %v6187 = vunpack.c.l.b16 %v6171
        %v6188 = vunpack.c.l.b16 %v6172
        %v6189 = vunpack.c.l.b16 %v6173
        %v6190 = vunpack.c.l.b16 %v6174
        %v6191 = vunpack.c.l.b16 %v6175
        %v6192 = vunpack.c.l.b16 %v6176
        %v6193 = vunpack.c.l.b16 %v6177
        %v6194 = vpack.c.b16 %v6187, %v6186
        %v6195 = vpack.c.b16 %v6189, %v6188
        %v6196 = vpack.c.b16 %v6191, %v6190
        %v6197 = vpack.c.b16 %v6193, %v6192
        %v6203 = vsel %vm1203, %v6165, 0
        %v6206 = vsel %vm1203, %v6166, 0
        %v6209 = vsel %vm1203, %v6167, 0
        %v6212 = vsel %vm1203, %v6168, 0
        %6214 = vmatprep.subr.bf16.mxu0 0
        %6215 = vmatpush1.bf16.msra.mxu0 0
        %6216 = vmatprep.subr.bf16.mxu0 0
        %6217 = vmatpush1.bf16.msra.mxu0 0
        %6218 = vmatprep.subr.bf16.mxu0 0
        %6219 = vmatpush1.bf16.msra.mxu0 0
        %6220 = vmatprep.subr.bf16.mxu0 0
        %6221 = vmatpush1.bf16.msra.mxu0 0
        %6222 = vmatprep.subr.bf16.mxu0 0
        %6223 = vmatpush1.bf16.msra.mxu0 %v6197
        %6224 = vmatprep.subr.bf16.mxu0 0
        %6225 = vmatpush1.bf16.msra.mxu0 %v6196
        %6226 = vmatprep.subr.bf16.mxu0 0
        %6227 = vmatpush1.bf16.msra.mxu0 %v6195
        %6228 = vmatprep.subr.bf16.mxu0 0
        %6229 = vmatpush1.bf16.msra.mxu0 %v6194
        %6230 = vmatprep.subr.bf16.mxu0 0
        %6231 = vmatpush2.bf16.msra.mxu0 0
        %6232 = vmatprep.subr.bf16.mxu0 0
        %6233 = vmatpush2.bf16.msra.mxu0 0
        %6234 = vmatprep.subr.bf16.mxu0 0
        %6235 = vmatpush2.bf16.msra.mxu0 0
        %6236 = vmatprep.subr.bf16.mxu0 0
        %6237 = vmatpush2.bf16.msra.mxu0 0
        %6238 = vmatprep.subr.bf16.mxu0 0
        %6239 = vmatpush2.bf16.msra.mxu0 0
        %6240 = vmatprep.subr.bf16.mxu0 0
        %6241 = vmatpush2.bf16.msra.mxu0 0
        %6242 = vmatprep.subr.bf16.mxu0 0
        %6243 = vmatpush2.bf16.msra.mxu0 0
        %6244 = vmatprep.subr.bf16.mxu0 0
        %6245 = vmatpush2.bf16.msra.mxu0 0
        %6246 = vmatprep.mubr.bf16.mxu0 0
        %6247 = vmatmul.mubr.bf16.gmra.mxu0 %v6203
        %v6248 = vpop.f32.mrf.mxu0
        %v6249 = vadd.f32 0.0, %v6248
        %v6250 = vpop.f32.mrf.mxu0
        %v6251 = vpop.f32.mrf.mxu0
        %v6252 = vadd.f32 0.0, %v6251
        %v6253 = vpop.f32.mrf.mxu0
        %6254 = vmatprep.mubr.bf16.mxu0 0
        %6255 = vmatmul.mubr.bf16.gmra.mxu0 %v6206
        %v6256 = vpop.f32.mrf.mxu0
        %v6257 = vadd.f32 0.0, %v6256
        %v6258 = vpop.f32.mrf.mxu0
        %v6259 = vpop.f32.mrf.mxu0
        %v6260 = vadd.f32 0.0, %v6259
        %v6261 = vpop.f32.mrf.mxu0
        %6262 = vmatprep.mubr.bf16.mxu0 0
        %6263 = vmatmul.mubr.bf16.gmra.mxu0 %v6209
        %v6264 = vpop.f32.mrf.mxu0
        %v6265 = vadd.f32 0.0, %v6264
        %v6266 = vpop.f32.mrf.mxu0
        %v6267 = vpop.f32.mrf.mxu0
        %v6268 = vadd.f32 0.0, %v6267
        %v6269 = vpop.f32.mrf.mxu0
        %6270 = vmatprep.mubr.bf16.mxu0 0
        %6271 = vmatmul.mubr.bf16.gmra.mxu0 %v6212
        %v6272 = vpop.f32.mrf.mxu0
        %v6273 = vadd.f32 0.0, %v6272
        %v6274 = vpop.f32.mrf.mxu0
        %v6275 = vpop.f32.mrf.mxu0
        %v6276 = vadd.f32 0.0, %v6275
        %v6277 = vpop.f32.mrf.mxu0
        %6278 = vdwg.mxu0
        %v6279 = vadd.f32 %v6149, %v6249
        %v6280 = vadd.f32 %v6150, %v6252
        %v6281 = vadd.f32 %v6151, %v6257
        %v6282 = vadd.f32 %v6152, %v6260
        %v6283 = vadd.f32 %v6153, %v6265
        %v6284 = vadd.f32 %v6154, %v6268
        %v6285 = vadd.f32 %v6155, %v6273
        %v6286 = vadd.f32 %v6156, %v6276
        %v6287 = vld [vmem:[%s20] sm:$0x1]
        %v6289 = vlaneseq
        %v6290 = vshrl.u32 %v6289, 7
        %v6291 = vsub.s32 0, %v6290
        %v6292 = vrot.slane %v6287, %v6291
        %v6294 = vadd.f32 %v6279, %v6292
        %v6295 = vadd.f32 %v6280, %v6292
        %v6296 = vadd.f32 %v6281, %v6292
        %v6297 = vadd.f32 %v6282, %v6292
        %v6298 = vadd.f32 %v6283, %v6292
        %v6299 = vadd.f32 %v6284, %v6292
        %v6300 = vadd.f32 %v6285, %v6292
        %v6301 = vadd.f32 %v6286, %v6292
        %v6302 = vmax.f32 %v6294, 0.0
        %v6303 = vmax.f32 %v6295, 0.0
        %v6304 = vmax.f32 %v6296, 0.0
        %v6305 = vmax.f32 %v6297, 0.0
        %v6306 = vmax.f32 %v6298, 0.0
        %v6307 = vmax.f32 %v6299, 0.0
        %v6308 = vmax.f32 %v6300, 0.0
        %v6309 = vmax.f32 %v6301, 0.0
        %v6310 = vpack.c.bf16 %v6303, %v6302
        %v6311 = vpack.c.bf16 %v6305, %v6304
        %v6312 = vpack.c.bf16 %v6307, %v6306
        %v6313 = vpack.c.bf16 %v6309, %v6308
        %v6314 = vld [vmem:[%s21] sm:$0xff]
        %v6315 = vld [vmem:[%s21 + $0x8] sm:$0xff]
        %v6316 = vld [vmem:[%s21 + $0x10] sm:$0xff]
        %v6317 = vld [vmem:[%s21 + $0x18] sm:$0xff]
        %v6318 = vld [vmem:[%s21 + $0x20] sm:$0xff]
        %v6319 = vld [vmem:[%s21 + $0x28] sm:$0xff]
        %v6320 = vld [vmem:[%s21 + $0x30] sm:$0xff]
        %v6321 = vld [vmem:[%s21 + $0x38] sm:$0xff]
        %v6322 = vld [vmem:[%s22] sm:$0x3]
        %v6324 = vlaneseq
        %v6325 = vshrl.u32 %v6324, 7
        %v6326 = vsub.s32 0, %v6325
        %v6327 = vrot.slane %v6322, %v6326
        %v6328 = vlaneseq
        %v6329 = vshrl.u32 %v6328, 7
        %v6330 = vsub.s32 1, %v6329
        %v6331 = vrot.slane %v6322, %v6330
        %v6342 = vunpack.c.l.b16 %v6314
        %v6343 = vunpack.c.h.b16 %v6314
        %v6344 = vunpack.c.l.b16 %v6315
        %v6345 = vunpack.c.h.b16 %v6315
        %v6346 = vunpack.c.l.b16 %v6316
        %v6347 = vunpack.c.h.b16 %v6316
        %v6348 = vunpack.c.l.b16 %v6317
        %v6349 = vunpack.c.h.b16 %v6317
        %v6350 = vunpack.c.l.b16 %v6318
        %v6351 = vunpack.c.h.b16 %v6318
        %v6352 = vunpack.c.l.b16 %v6319
        %v6353 = vunpack.c.h.b16 %v6319
        %v6354 = vunpack.c.l.b16 %v6320
        %v6355 = vunpack.c.h.b16 %v6320
        %v6356 = vunpack.c.l.b16 %v6321
        %v6357 = vunpack.c.h.b16 %v6321
        %v6358 = vpack.c.b16 %v6344, %v6342
        %v6359 = vpack.c.b16 %v6345, %v6343
        %v6360 = vpack.c.b16 %v6348, %v6346
        %v6361 = vpack.c.b16 %v6349, %v6347
        %v6362 = vpack.c.b16 %v6352, %v6350
        %v6363 = vpack.c.b16 %v6353, %v6351
        %v6364 = vpack.c.b16 %v6356, %v6354
        %v6365 = vpack.c.b16 %v6357, %v6355
        %v6375 = vsel %vm1203, %v6310, 0
        %v6378 = vsel %vm1203, %v6311, 0
        %v6381 = vsel %vm1203, %v6312, 0
        %v6384 = vsel %vm1203, %v6313, 0
        %6386 = vmatprep.subr.bf16.mxu0 0
        %6387 = vmatpush1.bf16.msra.mxu0 0
        %6388 = vmatprep.subr.bf16.mxu0 0
        %6389 = vmatpush1.bf16.msra.mxu0 0
        %6390 = vmatprep.subr.bf16.mxu0 0
        %6391 = vmatpush1.bf16.msra.mxu0 0
        %6392 = vmatprep.subr.bf16.mxu0 0
        %6393 = vmatpush1.bf16.msra.mxu0 0
        %6394 = vmatprep.subr.bf16.mxu0 %v6365
        %6395 = vmatpush1.bf16.msra.mxu0 %v6364
        %6396 = vmatprep.subr.bf16.mxu0 %v6363
        %6397 = vmatpush1.bf16.msra.mxu0 %v6362
        %6398 = vmatprep.subr.bf16.mxu0 %v6361
        %6399 = vmatpush1.bf16.msra.mxu0 %v6360
        %6400 = vmatprep.subr.bf16.mxu0 %v6359
        %6401 = vmatpush1.bf16.msra.mxu0 %v6358
        %6402 = vmatprep.subr.bf16.mxu0 0
        %6403 = vmatpush2.bf16.msra.mxu0 0
        %6404 = vmatprep.subr.bf16.mxu0 0
        %6405 = vmatpush2.bf16.msra.mxu0 0
        %6406 = vmatprep.subr.bf16.mxu0 0
        %6407 = vmatpush2.bf16.msra.mxu0 0
        %6408 = vmatprep.subr.bf16.mxu0 0
        %6409 = vmatpush2.bf16.msra.mxu0 0
        %6410 = vmatprep.subr.bf16.mxu0 0
        %6411 = vmatpush2.bf16.msra.mxu0 0
        %6412 = vmatprep.subr.bf16.mxu0 0
        %6413 = vmatpush2.bf16.msra.mxu0 0
        %6414 = vmatprep.subr.bf16.mxu0 0
        %6415 = vmatpush2.bf16.msra.mxu0 0
        %6416 = vmatprep.subr.bf16.mxu0 0
        %6417 = vmatpush2.bf16.msra.mxu0 0
        %6418 = vmatprep.mubr.bf16.mxu0 0
        %6419 = vmatmul.mubr.bf16.gmra.mxu0 %v6375
        %v6420 = vpop.f32.mrf.mxu0
        %v6421 = vadd.f32 %v6327, %v6420
        %v6422 = vpop.f32.mrf.mxu0
        %v6423 = vadd.f32 %v6331, %v6422
        %v6424 = vpop.f32.mrf.mxu0
        %v6425 = vadd.f32 %v6327, %v6424
        %v6426 = vpop.f32.mrf.mxu0
        %v6427 = vadd.f32 %v6331, %v6426
        %6428 = vmatprep.mubr.bf16.mxu0 0
        %6429 = vmatmul.mubr.bf16.gmra.mxu0 %v6378
        %v6430 = vpop.f32.mrf.mxu0
        %v6431 = vadd.f32 %v6327, %v6430
        %v6432 = vpop.f32.mrf.mxu0
        %v6433 = vadd.f32 %v6331, %v6432
        %v6434 = vpop.f32.mrf.mxu0
        %v6435 = vadd.f32 %v6327, %v6434
        %v6436 = vpop.f32.mrf.mxu0
        %v6437 = vadd.f32 %v6331, %v6436
        %6438 = vmatprep.mubr.bf16.mxu0 0
        %6439 = vmatmul.mubr.bf16.gmra.mxu0 %v6381
        %v6440 = vpop.f32.mrf.mxu0
        %v6441 = vadd.f32 %v6327, %v6440
        %v6442 = vpop.f32.mrf.mxu0
        %v6443 = vadd.f32 %v6331, %v6442
        %v6444 = vpop.f32.mrf.mxu0
        %v6445 = vadd.f32 %v6327, %v6444
        %v6446 = vpop.f32.mrf.mxu0
        %v6447 = vadd.f32 %v6331, %v6446
        %6448 = vmatprep.mubr.bf16.mxu0 0
        %6449 = vmatmul.mubr.bf16.gmra.mxu0 %v6384
        %v6450 = vpop.f32.mrf.mxu0
        %v6451 = vadd.f32 %v6327, %v6450
        %v6452 = vpop.f32.mrf.mxu0
        %v6453 = vadd.f32 %v6331, %v6452
        %v6454 = vpop.f32.mrf.mxu0
        %v6455 = vadd.f32 %v6327, %v6454
        %v6456 = vpop.f32.mrf.mxu0
        %v6457 = vadd.f32 %v6331, %v6456
        %6458 = vdwg.mxu0
        %v6459 = vadd.f32 %v6421, %v4874
        %v6460 = vadd.f32 %v6423, %v4875
        %v6461 = vadd.f32 %v6425, %v4876
        %v6462 = vadd.f32 %v6427, %v4877
        %v6463 = vadd.f32 %v6431, %v4878
        %v6464 = vadd.f32 %v6433, %v4879
        %v6465 = vadd.f32 %v6435, %v4880
        %v6466 = vadd.f32 %v6437, %v4881
        %v6467 = vadd.f32 %v6441, %v4882
        %v6468 = vadd.f32 %v6443, %v4883
        %v6469 = vadd.f32 %v6445, %v4884
        %v6470 = vadd.f32 %v6447, %v4885
        %v6471 = vadd.f32 %v6451, %v4886
        %v6472 = vadd.f32 %v6453, %v4887
        %v6473 = vadd.f32 %v6455, %v4888
        %v6474 = vadd.f32 %v6457, %v4889
        %v6475 = vmax.f32 %v6459, 0.0
        %v6476 = vmax.f32 %v6460, 0.0
        %v6477 = vmax.f32 %v6461, 0.0
        %v6478 = vmax.f32 %v6462, 0.0
        %v6479 = vmax.f32 %v6463, 0.0
        %v6480 = vmax.f32 %v6464, 0.0
        %v6481 = vmax.f32 %v6465, 0.0
        %v6482 = vmax.f32 %v6466, 0.0
        %v6483 = vmax.f32 %v6467, 0.0
        %v6484 = vmax.f32 %v6468, 0.0
        %v6485 = vmax.f32 %v6469, 0.0
        %v6486 = vmax.f32 %v6470, 0.0
        %v6487 = vmax.f32 %v6471, 0.0
        %v6488 = vmax.f32 %v6472, 0.0
        %v6489 = vmax.f32 %v6473, 0.0
        %v6490 = vmax.f32 %v6474, 0.0
        %6491 = vst [vmem:[%s706] sm:$0xff] %v6475
        %6492 = vst [vmem:[%s706 + $0x8] sm:$0xff] %v6476
        %6493 = vst [vmem:[%s706 + $0x10] sm:$0xff] %v6477
        %6494 = vst [vmem:[%s706 + $0x18] sm:$0xff] %v6478
        %6495 = vst [vmem:[%s706 + $0x20] sm:$0xff] %v6479
        %6496 = vst [vmem:[%s706 + $0x28] sm:$0xff] %v6480
        %6497 = vst [vmem:[%s706 + $0x30] sm:$0xff] %v6481
        %6498 = vst [vmem:[%s706 + $0x38] sm:$0xff] %v6482
        %6499 = vst [vmem:[%s706 + $0x40] sm:$0xff] %v6483
        %6500 = vst [vmem:[%s706 + $0x48] sm:$0xff] %v6484
        %6501 = vst [vmem:[%s706 + $0x50] sm:$0xff] %v6485
        %6502 = vst [vmem:[%s706 + $0x58] sm:$0xff] %v6486
        %6503 = vst [vmem:[%s706 + $0x60] sm:$0xff] %v6487
        %6504 = vst [vmem:[%s706 + $0x68] sm:$0xff] %v6488
        %6505 = vst [vmem:[%s706 + $0x70] sm:$0xff] %v6489
        %6506 = vst [vmem:[%s706 + $0x78] sm:$0xff] %v6490
        %s6507 = sand.u32 %s533, 1
        %s6508 = scalar_lea.sflag [#allocation6], %s6507
        %s6509 = sand.u32 %s533, 1
        %s6510 = smul.addr %s6509, 128
        %s6511 = scalar_lea.vmem [#allocation5], %s6510
        // Predicated region
        $region113: #{shallow_module_forward.1} parent=111 // pred_check
          %p6512 = pneg %p543
        $region114: #{shallow_module_forward.1} parent=111 // pred_check_branch
          %6514 = sbr.rel (%p6512) target = $region116
        $region115: #{shallow_module_forward.1} parent=111 // pred_region
          %s6516 = ssub.s32 2048, 2048
          %6517 = vsyncadd %s6508, %s6516
          %s6518 = smul.addr %s37, 16
          %s6519 = smul.addr %s6518, 128
          %s6520 = scalar_lea.hbm %s23, %s6519
          %s6521 = sshll.u32 %s6511, 4
          %s6522 = int_to_ptr.vmem [resolvable:$true] %s6521
          %6527 = dma.vmem_to_hbm [thread:$0]  %s6522, 2048, %s6520, %s6508, 256, 256, 16
        $region116: #{shallow_module_forward.1} parent=111 // pred_fallthru
          _
      $region112: #{shallow_module_forward.1} parent=5 // pred_fallthru
        _
      %p6528 = scmp.le.s32.totalorder 2, %s32
      // Predicated region
      $region117: #{shallow_module_forward.1} parent=5 // pred_check
        %p6529 = pneg %p6528
      $region118: #{shallow_module_forward.1} parent=5 // pred_check_branch
        %6531 = sbr.rel (%p6529) target = $region120
      $region119: #{shallow_module_forward.1} parent=5 // pred_region
        %s6532 = ssub.s32 %s32, 2
        // Predicated region
        $region121: #{shallow_module_forward.1} parent=119 // pred_check
          %p6533 = pneg %p549
        $region122: #{shallow_module_forward.1} parent=119 // pred_check_branch
          %6535 = sbr.rel (%p6533) target = $region124
        $region123: #{shallow_module_forward.1} parent=119 // pred_region
          %s6536 = sand.u32 %s534, 1
          %s6537 = scalar_lea.sflag [#allocation6], %s6536
          %s6538 = sand.u32 %s534, 1
          %s6539 = smul.addr %s6538, 128
          %s6540 = scalar_lea.vmem [#allocation5], %s6539
          %6541 = dma.done %s6537, 2048
        $region124: #{shallow_module_forward.1} parent=119 // pred_fallthru
          _
      $region120: #{shallow_module_forward.1} parent=5 // pred_fallthru
        _
    $region6: #{shallow_module_forward.1} parent=1 // loop_footer
      %s36 = sadd.s32 1, %s32
    $region7: #{shallow_module_forward.1} parent=1 // loop_footer_branch
      %31 = sbr.rel target = $region3
    $region8: #{shallow_module_forward.1} parent=1 // loop_exit
      _
    %6542 = vsyncpa [#allocation6], 1
    %s6543 = scalar_lea.sflag [#allocation6], 1
    %6544 = vsyncpa %s6543, 1

</llo_original>
